<compile_context>
chip_gen: v5e
topology: v5e:2x2
jax: 0.10.0
libtpu: 0.0.40
codegen_flags: <defaults>
</compile_context>

<pallas_src>
import functools

import jax
import jax.numpy as jnp
import numpy as np
from jax import lax
from jax.experimental import pallas as pl
from jax.experimental.pallas import tpu as pltpu

_EPS = 1e-5  # nn.BatchNorm2d default eps


# --------------------------- fused kernel -----------------------------------
def _basic_block_kernel(x_ref, w1_ref, w2_ref, g1_ref, b1_ref, g2_ref, b2_ref,
                        o_ref, pad_ref, *, N, H, W, C):
    """out = relu(bn2(conv2(relu(bn1(conv1(x))))) + x), BN with batch stats."""
    M = N * H * W
    inv_cnt = 1.0 / M

    x = x_ref[...]                                       # (N, H, W, C) f32

    def conv3x3(act_nhwc_f32, w_ref):
        # Zero-padded halo copy of the activations in VMEM scratch (reused for
        # both convolutions) — conv padding applied AFTER the activation, which
        # is exactly Conv2d(padding=1) semantics.
        pad_ref[...] = jnp.zeros_like(pad_ref)
        pad_ref[:, 1:H + 1, 1:W + 1, :] = act_nhwc_f32
        ap = pad_ref[...]                                # (N, H+2, W+2, C) f32
        acc = jnp.zeros((M, C), jnp.float32)
        # Implicit im2col: 9 shifted bf16 MXU matmuls accumulated in f32.
        for t in range(9):
            dy, dx = divmod(t, 3)
            lhs = ap[:, dy:dy + H, dx:dx + W, :].reshape(M, C).astype(jnp.bfloat16)
            acc = acc + jnp.dot(lhs, w_ref[t], preferred_element_type=jnp.float32)
        return acc

    def fold_bn(acc, g_ref, b_ref):
        # Training-mode BatchNorm folded into a single per-channel scale/shift.
        s = jnp.sum(acc, axis=0, keepdims=True)          # (1, C)
        q = jnp.sum(acc * acc, axis=0, keepdims=True)    # (1, C)
        mean = s * inv_cnt
        var = jnp.maximum(q * inv_cnt - mean * mean, 0.0)
        scale = g_ref[...] * lax.rsqrt(var + _EPS)
        shift = b_ref[...] - mean * scale
        return scale, shift

    # conv1 -> bn1 -> relu
    acc1 = conv3x3(x, w1_ref)                            # (M, C) f32
    sc1, sh1 = fold_bn(acc1, g1_ref, b1_ref)
    a1 = jnp.maximum(acc1 * sc1 + sh1, 0.0)

    # conv2 -> bn2 -> +residual -> relu
    acc2 = conv3x3(a1.reshape(N, H, W, C), w2_ref)
    sc2, sh2 = fold_bn(acc2, g2_ref, b2_ref)

    out = jnp.maximum(acc2 * sc2 + sh2 + x.reshape(M, C), 0.0)
    o_ref[...] = out.reshape(N, H, W, C)


# --------------------------- wrapper -----------------------------------------
def basic_block_pallas(x_nhwc, params):
    """relu(bn2(conv2(relu(bn1(conv1(x))))) + x), stride=1 identity shortcut."""
    N, H, W, C = x_nhwc.shape
    assert params["w1"].shape[-1] == C and params["w2"].shape[-1] == C, \
        "identity shortcut requires Cin == Cout (stride=1, downsample=None)"

    x32 = x_nhwc.astype(jnp.float32)
    w1 = params["w1"].reshape(9, C, C).astype(jnp.bfloat16)
    w2 = params["w2"].reshape(9, C, C).astype(jnp.bfloat16)
    g1 = params["g1"].reshape(1, C).astype(jnp.float32)
    beta1 = params["beta1"].reshape(1, C).astype(jnp.float32)
    g2 = params["g2"].reshape(1, C).astype(jnp.float32)
    beta2 = params["beta2"].reshape(1, C).astype(jnp.float32)

    kernel = functools.partial(_basic_block_kernel, N=N, H=H, W=W, C=C)
    img_spec = pl.BlockSpec((N, H, W, C), lambda i: (0, 0, 0, 0))
    w_spec = pl.BlockSpec((9, C, C), lambda i: (0, 0, 0))
    vec_spec = pl.BlockSpec((1, C), lambda i: (0, 0))

    return pl.pallas_call(
        kernel,
        grid=(1,),
        in_specs=[img_spec, w_spec, w_spec, vec_spec, vec_spec, vec_spec, vec_spec],
        out_specs=img_spec,
        out_shape=jax.ShapeDtypeStruct((N, H, W, C), jnp.float32),
        scratch_shapes=[pltpu.VMEM((N, H + 2, W + 2, C), jnp.float32)],
        compiler_params=pltpu.CompilerParams(
            dimension_semantics=("arbitrary",),
        ),
    )(x32, w1, w2, g1, beta1, g2, beta2)


# ----------------------- pure-JAX reference (for checking) -------------------
def _bn_train_ref(y, g, b, eps=_EPS):
    m = jnp.mean(y, axis=(0, 1, 2), keepdims=True)
    v = jnp.mean((y - m) ** 2, axis=(0, 1, 2), keepdims=True)
    return (y - m) * lax.rsqrt(v + eps) * g + b


def basic_block_ref(x_nhwc, params):
    dn = ("NHWC", "HWIO", "NHWC")
    out = lax.conv_general_dilated(x_nhwc, params["w1"], (1, 1), "SAME",
                                   dimension_numbers=dn) + params["b1"]
    out = jnp.maximum(_bn_train_ref(out, params["g1"], params["beta1"]), 0.0)
    out = lax.conv_general_dilated(out, params["w2"], (1, 1), "SAME",
                                   dimension_numbers=dn) + params["b2"]
    out = _bn_train_ref(out, params["g2"], params["beta2"]) + x_nhwc
    return jnp.maximum(out, 0.0)


if __name__ == "__main__":
    key = jax.random.PRNGKey(0)
    # in_channels == out_channels == 8, stride=1, downsample=None
    N, C, H, W = 2, 8, 16, 16
    ks = jax.random.split(key, 9)

    x_nchw = jax.random.normal(ks[0], (N, C, H, W), dtype=jnp.float32)  # PyTorch layout
    x = jnp.transpose(x_nchw, (0, 2, 3, 1))                             # NHWC for kernel

    params = {
        "w1": 0.1 * jax.random.normal(ks[1], (3, 3, C, C), dtype=jnp.float32),
        "b1": 0.1 * jax.random.normal(ks[2], (C,), dtype=jnp.float32),
        "g1": 1.0 + 0.1 * jax.random.normal(ks[3], (C,), dtype=jnp.float32),
        "beta1": 0.1 * jax.random.normal(ks[4], (C,), dtype=jnp.float32),
        "w2": 0.1 * jax.random.normal(ks[5], (3, 3, C, C), dtype=jnp.float32),
        "b2": 0.1 * jax.random.normal(ks[6], (C,), dtype=jnp.float32),
        "g2": 1.0 + 0.1 * jax.random.normal(ks[7], (C,), dtype=jnp.float32),
        "beta2": 0.1 * jax.random.normal(ks[8], (C,), dtype=jnp.float32),
    }

    out = jax.block_until_ready(jax.jit(basic_block_pallas)(x, params))
    ref = jax.block_until_ready(basic_block_ref(x, params))

    np.testing.assert_allclose(np.asarray(out), np.asarray(ref), rtol=5e-2, atol=5e-2)
    print("KERNEL_OK")
</pallas_src>

<mosaic_0001>
module attributes {stable_mosaic.version = 11 : i64} {
  func.func @_basic_block_kernel(%arg0: i32, %arg1: memref<2x16x16x8xf32, #tpu.memory_space<vmem>>, %arg2: memref<9x8x8xbf16, #tpu.memory_space<vmem>>, %arg3: memref<9x8x8xbf16, #tpu.memory_space<vmem>>, %arg4: memref<1x8xf32, #tpu.memory_space<vmem>>, %arg5: memref<1x8xf32, #tpu.memory_space<vmem>>, %arg6: memref<1x8xf32, #tpu.memory_space<vmem>>, %arg7: memref<1x8xf32, #tpu.memory_space<vmem>>, %arg8: memref<2x16x16x8xf32, #tpu.memory_space<vmem>>, %arg9: memref<2x18x18x8xf32, #tpu.memory_space<vmem>>) attributes {dimension_semantics = [#tpu.dimension_semantics<arbitrary>], iteration_bounds = array<i64: 1>, scalar_prefetch = 0 : i64, scratch_operands = 1 : i64, tpu.core_type = #tpu.core_type<tc>, window_params = [{pipeline_mode = #tpu.pipeline_mode<synchronous>, transform_indices = @transform_0, window_bounds = array<i64: 2, 16, 16, 8>}, {pipeline_mode = #tpu.pipeline_mode<synchronous>, transform_indices = @transform_1, window_bounds = array<i64: 9, 8, 8>}, {pipeline_mode = #tpu.pipeline_mode<synchronous>, transform_indices = @transform_2, window_bounds = array<i64: 9, 8, 8>}, {pipeline_mode = #tpu.pipeline_mode<synchronous>, transform_indices = @transform_3, window_bounds = array<i64: 1, 8>}, {pipeline_mode = #tpu.pipeline_mode<synchronous>, transform_indices = @transform_4, window_bounds = array<i64: 1, 8>}, {pipeline_mode = #tpu.pipeline_mode<synchronous>, transform_indices = @transform_5, window_bounds = array<i64: 1, 8>}, {pipeline_mode = #tpu.pipeline_mode<synchronous>, transform_indices = @transform_6, window_bounds = array<i64: 1, 8>}, {pipeline_mode = #tpu.pipeline_mode<synchronous>, transform_indices = @transform_7, window_bounds = array<i64: 2, 16, 16, 8>}]} {
    %c0 = arith.constant 0 : index
    %c0_0 = arith.constant 0 : index
    %c0_1 = arith.constant 0 : index
    %c0_2 = arith.constant 0 : index
    %0 = vector.load %arg1[%c0, %c0_0, %c0_1, %c0_2] : memref<2x16x16x8xf32, #tpu.memory_space<vmem>>, vector<2x16x16x8xf32>
    %cst = arith.constant 0.000000e+00 : f32
    %1 = vector.broadcast %cst : f32 to vector<2x18x18x8xf32>
    %c0_3 = arith.constant 0 : index
    %c0_4 = arith.constant 0 : index
    %c0_5 = arith.constant 0 : index
    %c0_6 = arith.constant 0 : index
    %2 = vector.load %arg9[%c0_3, %c0_4, %c0_5, %c0_6] : memref<2x18x18x8xf32, #tpu.memory_space<vmem>>, vector<2x18x18x8xf32>
    tpu.vector_store %arg9[%c0_3, %c0_4, %c0_5, %c0_6], %1 {strides = array<i32>} : memref<2x18x18x8xf32, #tpu.memory_space<vmem>>, vector<2x18x18x8xf32>,
    %c0_7 = arith.constant 0 : index
    %c1 = arith.constant 1 : index
    %c1_8 = arith.constant 1 : index
    %c0_9 = arith.constant 0 : index
    %3 = vector.load %arg9[%c0_7, %c1, %c1_8, %c0_9] : memref<2x18x18x8xf32, #tpu.memory_space<vmem>>, vector<2x16x16x8xf32>
    tpu.vector_store %arg9[%c0_7, %c1, %c1_8, %c0_9], %0 {strides = array<i32>} : memref<2x18x18x8xf32, #tpu.memory_space<vmem>>, vector<2x16x16x8xf32>,
    %c0_10 = arith.constant 0 : index
    %c0_11 = arith.constant 0 : index
    %c0_12 = arith.constant 0 : index
    %c0_13 = arith.constant 0 : index
    %4 = vector.load %arg9[%c0_10, %c0_11, %c0_12, %c0_13] : memref<2x18x18x8xf32, #tpu.memory_space<vmem>>, vector<2x18x18x8xf32>
    %cst_14 = arith.constant 0.000000e+00 : f32
    %5 = vector.broadcast %cst_14 : f32 to vector<512x8xf32>
    %6 = vector.extract_strided_slice %4 {offsets = [0, 0, 0, 0], sizes = [2, 16, 16, 8], strides = [1, 1, 1, 1]} : vector<2x18x18x8xf32> to vector<2x16x16x8xf32>
    %7 = vector.shape_cast %6 : vector<2x16x16x8xf32> to vector<512x8xf32>
    %8 = arith.truncf %7 : vector<512x8xf32> to vector<512x8xbf16>
    %c0_15 = arith.constant 0 : index
    %c0_16 = arith.constant 0 : index
    %c0_17 = arith.constant 0 : index
    %9 = vector.load %arg2[%c0_15, %c0_16, %c0_17] : memref<9x8x8xbf16, #tpu.memory_space<vmem>>, vector<1x8x8xbf16>
    %10 = vector.shape_cast %9 : vector<1x8x8xbf16> to vector<8x8xbf16>
    %cst_18 = arith.constant dense<0.000000e+00> : vector<512x8xf32>
    %11 = tpu.matmul %8, %10, %cst_18 {dimension_numbers = #tpu.dot_dimension_numbers<[1], [0], [0], [1], [0, 0, 1, 1], [], []>} : vector<512x8xbf16>, vector<8x8xbf16>, vector<512x8xf32> -> vector<512x8xf32>
    %12 = arith.addf %5, %11 : vector<512x8xf32>
    %13 = vector.extract_strided_slice %4 {offsets = [0, 0, 1, 0], sizes = [2, 16, 16, 8], strides = [1, 1, 1, 1]} : vector<2x18x18x8xf32> to vector<2x16x16x8xf32>
    %14 = vector.shape_cast %13 : vector<2x16x16x8xf32> to vector<512x8xf32>
    %15 = arith.truncf %14 : vector<512x8xf32> to vector<512x8xbf16>
    %c1_19 = arith.constant 1 : index
    %c0_20 = arith.constant 0 : index
    %c0_21 = arith.constant 0 : index
    %16 = vector.load %arg2[%c1_19, %c0_20, %c0_21] : memref<9x8x8xbf16, #tpu.memory_space<vmem>>, vector<1x8x8xbf16>
    %17 = vector.shape_cast %16 : vector<1x8x8xbf16> to vector<8x8xbf16>
    %cst_22 = arith.constant dense<0.000000e+00> : vector<512x8xf32>
    %18 = tpu.matmul %15, %17, %cst_22 {dimension_numbers = #tpu.dot_dimension_numbers<[1], [0], [0], [1], [0, 0, 1, 1], [], []>} : vector<512x8xbf16>, vector<8x8xbf16>, vector<512x8xf32> -> vector<512x8xf32>
    %19 = arith.addf %12, %18 : vector<512x8xf32>
    %20 = vector.extract_strided_slice %4 {offsets = [0, 0, 2, 0], sizes = [2, 16, 16, 8], strides = [1, 1, 1, 1]} : vector<2x18x18x8xf32> to vector<2x16x16x8xf32>
    %21 = vector.shape_cast %20 : vector<2x16x16x8xf32> to vector<512x8xf32>
    %22 = arith.truncf %21 : vector<512x8xf32> to vector<512x8xbf16>
    %c2 = arith.constant 2 : index
    %c0_23 = arith.constant 0 : index
    %c0_24 = arith.constant 0 : index
    %23 = vector.load %arg2[%c2, %c0_23, %c0_24] : memref<9x8x8xbf16, #tpu.memory_space<vmem>>, vector<1x8x8xbf16>
    %24 = vector.shape_cast %23 : vector<1x8x8xbf16> to vector<8x8xbf16>
    %cst_25 = arith.constant dense<0.000000e+00> : vector<512x8xf32>
    %25 = tpu.matmul %22, %24, %cst_25 {dimension_numbers = #tpu.dot_dimension_numbers<[1], [0], [0], [1], [0, 0, 1, 1], [], []>} : vector<512x8xbf16>, vector<8x8xbf16>, vector<512x8xf32> -> vector<512x8xf32>
    %26 = arith.addf %19, %25 : vector<512x8xf32>
    %27 = vector.extract_strided_slice %4 {offsets = [0, 1, 0, 0], sizes = [2, 16, 16, 8], strides = [1, 1, 1, 1]} : vector<2x18x18x8xf32> to vector<2x16x16x8xf32>
    %28 = vector.shape_cast %27 : vector<2x16x16x8xf32> to vector<512x8xf32>
    %29 = arith.truncf %28 : vector<512x8xf32> to vector<512x8xbf16>
    %c3 = arith.constant 3 : index
    %c0_26 = arith.constant 0 : index
    %c0_27 = arith.constant 0 : index
    %30 = vector.load %arg2[%c3, %c0_26, %c0_27] : memref<9x8x8xbf16, #tpu.memory_space<vmem>>, vector<1x8x8xbf16>
    %31 = vector.shape_cast %30 : vector<1x8x8xbf16> to vector<8x8xbf16>
    %cst_28 = arith.constant dense<0.000000e+00> : vector<512x8xf32>
    %32 = tpu.matmul %29, %31, %cst_28 {dimension_numbers = #tpu.dot_dimension_numbers<[1], [0], [0], [1], [0, 0, 1, 1], [], []>} : vector<512x8xbf16>, vector<8x8xbf16>, vector<512x8xf32> -> vector<512x8xf32>
    %33 = arith.addf %26, %32 : vector<512x8xf32>
    %34 = vector.extract_strided_slice %4 {offsets = [0, 1, 1, 0], sizes = [2, 16, 16, 8], strides = [1, 1, 1, 1]} : vector<2x18x18x8xf32> to vector<2x16x16x8xf32>
    %35 = vector.shape_cast %34 : vector<2x16x16x8xf32> to vector<512x8xf32>
    %36 = arith.truncf %35 : vector<512x8xf32> to vector<512x8xbf16>
    %c4 = arith.constant 4 : index
    %c0_29 = arith.constant 0 : index
    %c0_30 = arith.constant 0 : index
    %37 = vector.load %arg2[%c4, %c0_29, %c0_30] : memref<9x8x8xbf16, #tpu.memory_space<vmem>>, vector<1x8x8xbf16>
    %38 = vector.shape_cast %37 : vector<1x8x8xbf16> to vector<8x8xbf16>
    %cst_31 = arith.constant dense<0.000000e+00> : vector<512x8xf32>
    %39 = tpu.matmul %36, %38, %cst_31 {dimension_numbers = #tpu.dot_dimension_numbers<[1], [0], [0], [1], [0, 0, 1, 1], [], []>} : vector<512x8xbf16>, vector<8x8xbf16>, vector<512x8xf32> -> vector<512x8xf32>
    %40 = arith.addf %33, %39 : vector<512x8xf32>
    %41 = vector.extract_strided_slice %4 {offsets = [0, 1, 2, 0], sizes = [2, 16, 16, 8], strides = [1, 1, 1, 1]} : vector<2x18x18x8xf32> to vector<2x16x16x8xf32>
    %42 = vector.shape_cast %41 : vector<2x16x16x8xf32> to vector<512x8xf32>
    %43 = arith.truncf %42 : vector<512x8xf32> to vector<512x8xbf16>
    %c5 = arith.constant 5 : index
    %c0_32 = arith.constant 0 : index
    %c0_33 = arith.constant 0 : index
    %44 = vector.load %arg2[%c5, %c0_32, %c0_33] : memref<9x8x8xbf16, #tpu.memory_space<vmem>>, vector<1x8x8xbf16>
    %45 = vector.shape_cast %44 : vector<1x8x8xbf16> to vector<8x8xbf16>
    %cst_34 = arith.constant dense<0.000000e+00> : vector<512x8xf32>
    %46 = tpu.matmul %43, %45, %cst_34 {dimension_numbers = #tpu.dot_dimension_numbers<[1], [0], [0], [1], [0, 0, 1, 1], [], []>} : vector<512x8xbf16>, vector<8x8xbf16>, vector<512x8xf32> -> vector<512x8xf32>
    %47 = arith.addf %40, %46 : vector<512x8xf32>
    %48 = vector.extract_strided_slice %4 {offsets = [0, 2, 0, 0], sizes = [2, 16, 16, 8], strides = [1, 1, 1, 1]} : vector<2x18x18x8xf32> to vector<2x16x16x8xf32>
    %49 = vector.shape_cast %48 : vector<2x16x16x8xf32> to vector<512x8xf32>
    %50 = arith.truncf %49 : vector<512x8xf32> to vector<512x8xbf16>
    %c6 = arith.constant 6 : index
    %c0_35 = arith.constant 0 : index
    %c0_36 = arith.constant 0 : index
    %51 = vector.load %arg2[%c6, %c0_35, %c0_36] : memref<9x8x8xbf16, #tpu.memory_space<vmem>>, vector<1x8x8xbf16>
    %52 = vector.shape_cast %51 : vector<1x8x8xbf16> to vector<8x8xbf16>
    %cst_37 = arith.constant dense<0.000000e+00> : vector<512x8xf32>
    %53 = tpu.matmul %50, %52, %cst_37 {dimension_numbers = #tpu.dot_dimension_numbers<[1], [0], [0], [1], [0, 0, 1, 1], [], []>} : vector<512x8xbf16>, vector<8x8xbf16>, vector<512x8xf32> -> vector<512x8xf32>
    %54 = arith.addf %47, %53 : vector<512x8xf32>
    %55 = vector.extract_strided_slice %4 {offsets = [0, 2, 1, 0], sizes = [2, 16, 16, 8], strides = [1, 1, 1, 1]} : vector<2x18x18x8xf32> to vector<2x16x16x8xf32>
    %56 = vector.shape_cast %55 : vector<2x16x16x8xf32> to vector<512x8xf32>
    %57 = arith.truncf %56 : vector<512x8xf32> to vector<512x8xbf16>
    %c7 = arith.constant 7 : index
    %c0_38 = arith.constant 0 : index
    %c0_39 = arith.constant 0 : index
    %58 = vector.load %arg2[%c7, %c0_38, %c0_39] : memref<9x8x8xbf16, #tpu.memory_space<vmem>>, vector<1x8x8xbf16>
    %59 = vector.shape_cast %58 : vector<1x8x8xbf16> to vector<8x8xbf16>
    %cst_40 = arith.constant dense<0.000000e+00> : vector<512x8xf32>
    %60 = tpu.matmul %57, %59, %cst_40 {dimension_numbers = #tpu.dot_dimension_numbers<[1], [0], [0], [1], [0, 0, 1, 1], [], []>} : vector<512x8xbf16>, vector<8x8xbf16>, vector<512x8xf32> -> vector<512x8xf32>
    %61 = arith.addf %54, %60 : vector<512x8xf32>
    %62 = vector.extract_strided_slice %4 {offsets = [0, 2, 2, 0], sizes = [2, 16, 16, 8], strides = [1, 1, 1, 1]} : vector<2x18x18x8xf32> to vector<2x16x16x8xf32>
    %63 = vector.shape_cast %62 : vector<2x16x16x8xf32> to vector<512x8xf32>
    %64 = arith.truncf %63 : vector<512x8xf32> to vector<512x8xbf16>
    %c8 = arith.constant 8 : index
    %c0_41 = arith.constant 0 : index
    %c0_42 = arith.constant 0 : index
    %65 = vector.load %arg2[%c8, %c0_41, %c0_42] : memref<9x8x8xbf16, #tpu.memory_space<vmem>>, vector<1x8x8xbf16>
    %66 = vector.shape_cast %65 : vector<1x8x8xbf16> to vector<8x8xbf16>
    %cst_43 = arith.constant dense<0.000000e+00> : vector<512x8xf32>
    %67 = tpu.matmul %64, %66, %cst_43 {dimension_numbers = #tpu.dot_dimension_numbers<[1], [0], [0], [1], [0, 0, 1, 1], [], []>} : vector<512x8xbf16>, vector<8x8xbf16>, vector<512x8xf32> -> vector<512x8xf32>
    %68 = arith.addf %61, %67 : vector<512x8xf32>
    %cst_44 = arith.constant dense<0.000000e+00> : vector<8xf32>
    %69 = vector.multi_reduction <add>, %68, %cst_44 [0] : vector<512x8xf32> to vector<8xf32>
    %70 = vector.shape_cast %69 : vector<8xf32> to vector<1x8xf32>
    %71 = arith.mulf %68, %68 : vector<512x8xf32>
    %cst_45 = arith.constant dense<0.000000e+00> : vector<8xf32>
    %72 = vector.multi_reduction <add>, %71, %cst_45 [0] : vector<512x8xf32> to vector<8xf32>
    %73 = vector.shape_cast %72 : vector<8xf32> to vector<1x8xf32>
    %cst_46 = arith.constant 0.001953125 : f32
    %74 = vector.broadcast %cst_46 : f32 to vector<1x8xf32>
    %75 = arith.mulf %70, %74 : vector<1x8xf32>
    %cst_47 = arith.constant 0.001953125 : f32
    %76 = vector.broadcast %cst_47 : f32 to vector<1x8xf32>
    %77 = arith.mulf %73, %76 : vector<1x8xf32>
    %78 = arith.mulf %75, %75 : vector<1x8xf32>
    %79 = arith.subf %77, %78 : vector<1x8xf32>
    %cst_48 = arith.constant 0.000000e+00 : f32
    %80 = vector.broadcast %cst_48 : f32 to vector<1x8xf32>
    %81 = arith.maximumf %79, %80 : vector<1x8xf32>
    %c0_49 = arith.constant 0 : index
    %c0_50 = arith.constant 0 : index
    %82 = vector.load %arg4[%c0_49, %c0_50] : memref<1x8xf32, #tpu.memory_space<vmem>>, vector<1x8xf32>
    %cst_51 = arith.constant 9.99999974E-6 : f32
    %83 = vector.broadcast %cst_51 : f32 to vector<1x8xf32>
    %84 = arith.addf %81, %83 : vector<1x8xf32>
    %85 = math.rsqrt %84 : vector<1x8xf32>
    %86 = arith.mulf %82, %85 : vector<1x8xf32>
    %c0_52 = arith.constant 0 : index
    %c0_53 = arith.constant 0 : index
    %87 = vector.load %arg5[%c0_52, %c0_53] : memref<1x8xf32, #tpu.memory_space<vmem>>, vector<1x8xf32>
    %88 = arith.mulf %75, %86 : vector<1x8xf32>
    %89 = arith.subf %87, %88 : vector<1x8xf32>
    %90 = vector.broadcast %86 : vector<1x8xf32> to vector<512x8xf32>
    %91 = arith.mulf %68, %90 : vector<512x8xf32>
    %92 = vector.broadcast %89 : vector<1x8xf32> to vector<512x8xf32>
    %93 = arith.addf %91, %92 : vector<512x8xf32>
    %cst_54 = arith.constant 0.000000e+00 : f32
    %94 = vector.broadcast %cst_54 : f32 to vector<512x8xf32>
    %95 = arith.maximumf %93, %94 : vector<512x8xf32>
    %96 = vector.shape_cast %95 : vector<512x8xf32> to vector<2x16x16x8xf32>
    %cst_55 = arith.constant 0.000000e+00 : f32
    %97 = vector.broadcast %cst_55 : f32 to vector<2x18x18x8xf32>
    %c0_56 = arith.constant 0 : index
    %c0_57 = arith.constant 0 : index
    %c0_58 = arith.constant 0 : index
    %c0_59 = arith.constant 0 : index
    %98 = vector.load %arg9[%c0_56, %c0_57, %c0_58, %c0_59] : memref<2x18x18x8xf32, #tpu.memory_space<vmem>>, vector<2x18x18x8xf32>
    tpu.vector_store %arg9[%c0_56, %c0_57, %c0_58, %c0_59], %97 {strides = array<i32>} : memref<2x18x18x8xf32, #tpu.memory_space<vmem>>, vector<2x18x18x8xf32>,
    %c0_60 = arith.constant 0 : index
    %c1_61 = arith.constant 1 : index
    %c1_62 = arith.constant 1 : index
    %c0_63 = arith.constant 0 : index
    %99 = vector.load %arg9[%c0_60, %c1_61, %c1_62, %c0_63] : memref<2x18x18x8xf32, #tpu.memory_space<vmem>>, vector<2x16x16x8xf32>
    tpu.vector_store %arg9[%c0_60, %c1_61, %c1_62, %c0_63], %96 {strides = array<i32>} : memref<2x18x18x8xf32, #tpu.memory_space<vmem>>, vector<2x16x16x8xf32>,
    %c0_64 = arith.constant 0 : index
    %c0_65 = arith.constant 0 : index
    %c0_66 = arith.constant 0 : index
    %c0_67 = arith.constant 0 : index
    %100 = vector.load %arg9[%c0_64, %c0_65, %c0_66, %c0_67] : memref<2x18x18x8xf32, #tpu.memory_space<vmem>>, vector<2x18x18x8xf32>
    %cst_68 = arith.constant 0.000000e+00 : f32
    %101 = vector.broadcast %cst_68 : f32 to vector<512x8xf32>
    %102 = vector.extract_strided_slice %100 {offsets = [0, 0, 0, 0], sizes = [2, 16, 16, 8], strides = [1, 1, 1, 1]} : vector<2x18x18x8xf32> to vector<2x16x16x8xf32>
    %103 = vector.shape_cast %102 : vector<2x16x16x8xf32> to vector<512x8xf32>
    %104 = arith.truncf %103 : vector<512x8xf32> to vector<512x8xbf16>
    %c0_69 = arith.constant 0 : index
    %c0_70 = arith.constant 0 : index
    %c0_71 = arith.constant 0 : index
    %105 = vector.load %arg3[%c0_69, %c0_70, %c0_71] : memref<9x8x8xbf16, #tpu.memory_space<vmem>>, vector<1x8x8xbf16>
    %106 = vector.shape_cast %105 : vector<1x8x8xbf16> to vector<8x8xbf16>
    %cst_72 = arith.constant dense<0.000000e+00> : vector<512x8xf32>
    %107 = tpu.matmul %104, %106, %cst_72 {dimension_numbers = #tpu.dot_dimension_numbers<[1], [0], [0], [1], [0, 0, 1, 1], [], []>} : vector<512x8xbf16>, vector<8x8xbf16>, vector<512x8xf32> -> vector<512x8xf32>
    %108 = arith.addf %101, %107 : vector<512x8xf32>
    %109 = vector.extract_strided_slice %100 {offsets = [0, 0, 1, 0], sizes = [2, 16, 16, 8], strides = [1, 1, 1, 1]} : vector<2x18x18x8xf32> to vector<2x16x16x8xf32>
    %110 = vector.shape_cast %109 : vector<2x16x16x8xf32> to vector<512x8xf32>
    %111 = arith.truncf %110 : vector<512x8xf32> to vector<512x8xbf16>
    %c1_73 = arith.constant 1 : index
    %c0_74 = arith.constant 0 : index
    %c0_75 = arith.constant 0 : index
    %112 = vector.load %arg3[%c1_73, %c0_74, %c0_75] : memref<9x8x8xbf16, #tpu.memory_space<vmem>>, vector<1x8x8xbf16>
    %113 = vector.shape_cast %112 : vector<1x8x8xbf16> to vector<8x8xbf16>
    %cst_76 = arith.constant dense<0.000000e+00> : vector<512x8xf32>
    %114 = tpu.matmul %111, %113, %cst_76 {dimension_numbers = #tpu.dot_dimension_numbers<[1], [0], [0], [1], [0, 0, 1, 1], [], []>} : vector<512x8xbf16>, vector<8x8xbf16>, vector<512x8xf32> -> vector<512x8xf32>
    %115 = arith.addf %108, %114 : vector<512x8xf32>
    %116 = vector.extract_strided_slice %100 {offsets = [0, 0, 2, 0], sizes = [2, 16, 16, 8], strides = [1, 1, 1, 1]} : vector<2x18x18x8xf32> to vector<2x16x16x8xf32>
    %117 = vector.shape_cast %116 : vector<2x16x16x8xf32> to vector<512x8xf32>
    %118 = arith.truncf %117 : vector<512x8xf32> to vector<512x8xbf16>
    %c2_77 = arith.constant 2 : index
    %c0_78 = arith.constant 0 : index
    %c0_79 = arith.constant 0 : index
    %119 = vector.load %arg3[%c2_77, %c0_78, %c0_79] : memref<9x8x8xbf16, #tpu.memory_space<vmem>>, vector<1x8x8xbf16>
    %120 = vector.shape_cast %119 : vector<1x8x8xbf16> to vector<8x8xbf16>
    %cst_80 = arith.constant dense<0.000000e+00> : vector<512x8xf32>
    %121 = tpu.matmul %118, %120, %cst_80 {dimension_numbers = #tpu.dot_dimension_numbers<[1], [0], [0], [1], [0, 0, 1, 1], [], []>} : vector<512x8xbf16>, vector<8x8xbf16>, vector<512x8xf32> -> vector<512x8xf32>
    %122 = arith.addf %115, %121 : vector<512x8xf32>
    %123 = vector.extract_strided_slice %100 {offsets = [0, 1, 0, 0], sizes = [2, 16, 16, 8], strides = [1, 1, 1, 1]} : vector<2x18x18x8xf32> to vector<2x16x16x8xf32>
    %124 = vector.shape_cast %123 : vector<2x16x16x8xf32> to vector<512x8xf32>
    %125 = arith.truncf %124 : vector<512x8xf32> to vector<512x8xbf16>
    %c3_81 = arith.constant 3 : index
    %c0_82 = arith.constant 0 : index
    %c0_83 = arith.constant 0 : index
    %126 = vector.load %arg3[%c3_81, %c0_82, %c0_83] : memref<9x8x8xbf16, #tpu.memory_space<vmem>>, vector<1x8x8xbf16>
    %127 = vector.shape_cast %126 : vector<1x8x8xbf16> to vector<8x8xbf16>
    %cst_84 = arith.constant dense<0.000000e+00> : vector<512x8xf32>
    %128 = tpu.matmul %125, %127, %cst_84 {dimension_numbers = #tpu.dot_dimension_numbers<[1], [0], [0], [1], [0, 0, 1, 1], [], []>} : vector<512x8xbf16>, vector<8x8xbf16>, vector<512x8xf32> -> vector<512x8xf32>
    %129 = arith.addf %122, %128 : vector<512x8xf32>
    %130 = vector.extract_strided_slice %100 {offsets = [0, 1, 1, 0], sizes = [2, 16, 16, 8], strides = [1, 1, 1, 1]} : vector<2x18x18x8xf32> to vector<2x16x16x8xf32>
    %131 = vector.shape_cast %130 : vector<2x16x16x8xf32> to vector<512x8xf32>
    %132 = arith.truncf %131 : vector<512x8xf32> to vector<512x8xbf16>
    %c4_85 = arith.constant 4 : index
    %c0_86 = arith.constant 0 : index
    %c0_87 = arith.constant 0 : index
    %133 = vector.load %arg3[%c4_85, %c0_86, %c0_87] : memref<9x8x8xbf16, #tpu.memory_space<vmem>>, vector<1x8x8xbf16>
    %134 = vector.shape_cast %133 : vector<1x8x8xbf16> to vector<8x8xbf16>
    %cst_88 = arith.constant dense<0.000000e+00> : vector<512x8xf32>
    %135 = tpu.matmul %132, %134, %cst_88 {dimension_numbers = #tpu.dot_dimension_numbers<[1], [0], [0], [1], [0, 0, 1, 1], [], []>} : vector<512x8xbf16>, vector<8x8xbf16>, vector<512x8xf32> -> vector<512x8xf32>
    %136 = arith.addf %129, %135 : vector<512x8xf32>
    %137 = vector.extract_strided_slice %100 {offsets = [0, 1, 2, 0], sizes = [2, 16, 16, 8], strides = [1, 1, 1, 1]} : vector<2x18x18x8xf32> to vector<2x16x16x8xf32>
    %138 = vector.shape_cast %137 : vector<2x16x16x8xf32> to vector<512x8xf32>
    %139 = arith.truncf %138 : vector<512x8xf32> to vector<512x8xbf16>
    %c5_89 = arith.constant 5 : index
    %c0_90 = arith.constant 0 : index
    %c0_91 = arith.constant 0 : index
    %140 = vector.load %arg3[%c5_89, %c0_90, %c0_91] : memref<9x8x8xbf16, #tpu.memory_space<vmem>>, vector<1x8x8xbf16>
    %141 = vector.shape_cast %140 : vector<1x8x8xbf16> to vector<8x8xbf16>
    %cst_92 = arith.constant dense<0.000000e+00> : vector<512x8xf32>
    %142 = tpu.matmul %139, %141, %cst_92 {dimension_numbers = #tpu.dot_dimension_numbers<[1], [0], [0], [1], [0, 0, 1, 1], [], []>} : vector<512x8xbf16>, vector<8x8xbf16>, vector<512x8xf32> -> vector<512x8xf32>
    %143 = arith.addf %136, %142 : vector<512x8xf32>
    %144 = vector.extract_strided_slice %100 {offsets = [0, 2, 0, 0], sizes = [2, 16, 16, 8], strides = [1, 1, 1, 1]} : vector<2x18x18x8xf32> to vector<2x16x16x8xf32>
    %145 = vector.shape_cast %144 : vector<2x16x16x8xf32> to vector<512x8xf32>
    %146 = arith.truncf %145 : vector<512x8xf32> to vector<512x8xbf16>
    %c6_93 = arith.constant 6 : index
    %c0_94 = arith.constant 0 : index
    %c0_95 = arith.constant 0 : index
    %147 = vector.load %arg3[%c6_93, %c0_94, %c0_95] : memref<9x8x8xbf16, #tpu.memory_space<vmem>>, vector<1x8x8xbf16>
    %148 = vector.shape_cast %147 : vector<1x8x8xbf16> to vector<8x8xbf16>
    %cst_96 = arith.constant dense<0.000000e+00> : vector<512x8xf32>
    %149 = tpu.matmul %146, %148, %cst_96 {dimension_numbers = #tpu.dot_dimension_numbers<[1], [0], [0], [1], [0, 0, 1, 1], [], []>} : vector<512x8xbf16>, vector<8x8xbf16>, vector<512x8xf32> -> vector<512x8xf32>
    %150 = arith.addf %143, %149 : vector<512x8xf32>
    %151 = vector.extract_strided_slice %100 {offsets = [0, 2, 1, 0], sizes = [2, 16, 16, 8], strides = [1, 1, 1, 1]} : vector<2x18x18x8xf32> to vector<2x16x16x8xf32>
    %152 = vector.shape_cast %151 : vector<2x16x16x8xf32> to vector<512x8xf32>
    %153 = arith.truncf %152 : vector<512x8xf32> to vector<512x8xbf16>
    %c7_97 = arith.constant 7 : index
    %c0_98 = arith.constant 0 : index
    %c0_99 = arith.constant 0 : index
    %154 = vector.load %arg3[%c7_97, %c0_98, %c0_99] : memref<9x8x8xbf16, #tpu.memory_space<vmem>>, vector<1x8x8xbf16>
    %155 = vector.shape_cast %154 : vector<1x8x8xbf16> to vector<8x8xbf16>
    %cst_100 = arith.constant dense<0.000000e+00> : vector<512x8xf32>
    %156 = tpu.matmul %153, %155, %cst_100 {dimension_numbers = #tpu.dot_dimension_numbers<[1], [0], [0], [1], [0, 0, 1, 1], [], []>} : vector<512x8xbf16>, vector<8x8xbf16>, vector<512x8xf32> -> vector<512x8xf32>
    %157 = arith.addf %150, %156 : vector<512x8xf32>
    %158 = vector.extract_strided_slice %100 {offsets = [0, 2, 2, 0], sizes = [2, 16, 16, 8], strides = [1, 1, 1, 1]} : vector<2x18x18x8xf32> to vector<2x16x16x8xf32>
    %159 = vector.shape_cast %158 : vector<2x16x16x8xf32> to vector<512x8xf32>
    %160 = arith.truncf %159 : vector<512x8xf32> to vector<512x8xbf16>
    %c8_101 = arith.constant 8 : index
    %c0_102 = arith.constant 0 : index
    %c0_103 = arith.constant 0 : index
    %161 = vector.load %arg3[%c8_101, %c0_102, %c0_103] : memref<9x8x8xbf16, #tpu.memory_space<vmem>>, vector<1x8x8xbf16>
    %162 = vector.shape_cast %161 : vector<1x8x8xbf16> to vector<8x8xbf16>
    %cst_104 = arith.constant dense<0.000000e+00> : vector<512x8xf32>
    %163 = tpu.matmul %160, %162, %cst_104 {dimension_numbers = #tpu.dot_dimension_numbers<[1], [0], [0], [1], [0, 0, 1, 1], [], []>} : vector<512x8xbf16>, vector<8x8xbf16>, vector<512x8xf32> -> vector<512x8xf32>
    %164 = arith.addf %157, %163 : vector<512x8xf32>
    %cst_105 = arith.constant dense<0.000000e+00> : vector<8xf32>
    %165 = vector.multi_reduction <add>, %164, %cst_105 [0] : vector<512x8xf32> to vector<8xf32>
    %166 = vector.shape_cast %165 : vector<8xf32> to vector<1x8xf32>
    %167 = arith.mulf %164, %164 : vector<512x8xf32>
    %cst_106 = arith.constant dense<0.000000e+00> : vector<8xf32>
    %168 = vector.multi_reduction <add>, %167, %cst_106 [0] : vector<512x8xf32> to vector<8xf32>
    %169 = vector.shape_cast %168 : vector<8xf32> to vector<1x8xf32>
    %cst_107 = arith.constant 0.001953125 : f32
    %170 = vector.broadcast %cst_107 : f32 to vector<1x8xf32>
    %171 = arith.mulf %166, %170 : vector<1x8xf32>
    %cst_108 = arith.constant 0.001953125 : f32
    %172 = vector.broadcast %cst_108 : f32 to vector<1x8xf32>
    %173 = arith.mulf %169, %172 : vector<1x8xf32>
    %174 = arith.mulf %171, %171 : vector<1x8xf32>
    %175 = arith.subf %173, %174 : vector<1x8xf32>
    %cst_109 = arith.constant 0.000000e+00 : f32
    %176 = vector.broadcast %cst_109 : f32 to vector<1x8xf32>
    %177 = arith.maximumf %175, %176 : vector<1x8xf32>
    %c0_110 = arith.constant 0 : index
    %c0_111 = arith.constant 0 : index
    %178 = vector.load %arg6[%c0_110, %c0_111] : memref<1x8xf32, #tpu.memory_space<vmem>>, vector<1x8xf32>
    %cst_112 = arith.constant 9.99999974E-6 : f32
    %179 = vector.broadcast %cst_112 : f32 to vector<1x8xf32>
    %180 = arith.addf %177, %179 : vector<1x8xf32>
    %181 = math.rsqrt %180 : vector<1x8xf32>
    %182 = arith.mulf %178, %181 : vector<1x8xf32>
    %c0_113 = arith.constant 0 : index
    %c0_114 = arith.constant 0 : index
    %183 = vector.load %arg7[%c0_113, %c0_114] : memref<1x8xf32, #tpu.memory_space<vmem>>, vector<1x8xf32>
    %184 = arith.mulf %171, %182 : vector<1x8xf32>
    %185 = arith.subf %183, %184 : vector<1x8xf32>
    %186 = vector.broadcast %182 : vector<1x8xf32> to vector<512x8xf32>
    %187 = arith.mulf %164, %186 : vector<512x8xf32>
    %188 = vector.broadcast %185 : vector<1x8xf32> to vector<512x8xf32>
    %189 = arith.addf %187, %188 : vector<512x8xf32>
    %190 = vector.shape_cast %0 : vector<2x16x16x8xf32> to vector<512x8xf32>
    %191 = arith.addf %189, %190 : vector<512x8xf32>
    %cst_115 = arith.constant 0.000000e+00 : f32
    %192 = vector.broadcast %cst_115 : f32 to vector<512x8xf32>
    %193 = arith.maximumf %191, %192 : vector<512x8xf32>
    %194 = vector.shape_cast %193 : vector<512x8xf32> to vector<2x16x16x8xf32>
    %c0_116 = arith.constant 0 : index
    %c0_117 = arith.constant 0 : index
    %c0_118 = arith.constant 0 : index
    %c0_119 = arith.constant 0 : index
    %195 = vector.load %arg8[%c0_116, %c0_117, %c0_118, %c0_119] : memref<2x16x16x8xf32, #tpu.memory_space<vmem>>, vector<2x16x16x8xf32>
    tpu.vector_store %arg8[%c0_116, %c0_117, %c0_118, %c0_119], %194 {strides = array<i32>} : memref<2x16x16x8xf32, #tpu.memory_space<vmem>>, vector<2x16x16x8xf32>,
    return
  }
  func.func @transform_0(%arg0: i32) -> (i32, i32, i32, i32) {
    %c0_i32 = arith.constant 0 : i32
    %c0_i32_0 = arith.constant 0 : i32
    %c0_i32_1 = arith.constant 0 : i32
    %c0_i32_2 = arith.constant 0 : i32
    %c0_i32_3 = arith.constant 0 : i32
    return %c0_i32, %c0_i32_0, %c0_i32_1, %c0_i32_2 : i32, i32, i32, i32
  }
  func.func @transform_1(%arg0: i32) -> (i32, i32, i32) {
    %c0_i32 = arith.constant 0 : i32
    %c0_i32_0 = arith.constant 0 : i32
    %c0_i32_1 = arith.constant 0 : i32
    %c0_i32_2 = arith.constant 0 : i32
    return %c0_i32, %c0_i32_0, %c0_i32_1 : i32, i32, i32
  }
  func.func @transform_2(%arg0: i32) -> (i32, i32, i32) {
    %c0_i32 = arith.constant 0 : i32
    %c0_i32_0 = arith.constant 0 : i32
    %c0_i32_1 = arith.constant 0 : i32
    %c0_i32_2 = arith.constant 0 : i32
    return %c0_i32, %c0_i32_0, %c0_i32_1 : i32, i32, i32
  }
  func.func @transform_3(%arg0: i32) -> (i32, i32) {
    %c0_i32 = arith.constant 0 : i32
    %c0_i32_0 = arith.constant 0 : i32
    %c0_i32_1 = arith.constant 0 : i32
    return %c0_i32, %c0_i32_0 : i32, i32
  }
  func.func @transform_4(%arg0: i32) -> (i32, i32) {
    %c0_i32 = arith.constant 0 : i32
    %c0_i32_0 = arith.constant 0 : i32
    %c0_i32_1 = arith.constant 0 : i32
    return %c0_i32, %c0_i32_0 : i32, i32
  }
  func.func @transform_5(%arg0: i32) -> (i32, i32) {
    %c0_i32 = arith.constant 0 : i32
    %c0_i32_0 = arith.constant 0 : i32
    %c0_i32_1 = arith.constant 0 : i32
    return %c0_i32, %c0_i32_0 : i32, i32
  }
  func.func @transform_6(%arg0: i32) -> (i32, i32) {
    %c0_i32 = arith.constant 0 : i32
    %c0_i32_0 = arith.constant 0 : i32
    %c0_i32_1 = arith.constant 0 : i32
    return %c0_i32, %c0_i32_0 : i32, i32
  }
  func.func @transform_7(%arg0: i32) -> (i32, i32, i32, i32) {
    %c0_i32 = arith.constant 0 : i32
    %c0_i32_0 = arith.constant 0 : i32
    %c0_i32_1 = arith.constant 0 : i32
    %c0_i32_2 = arith.constant 0 : i32
    %c0_i32_3 = arith.constant 0 : i32
    return %c0_i32, %c0_i32_0, %c0_i32_1, %c0_i32_2 : i32, i32, i32, i32
  }
}

</mosaic_0001>

<llo_original>
// kernel: basic_block_pallas.1
$region0: #{basic_block_pallas.1}
  #allocation0 [shape = 'u32[]', space=smem, size = 0x4, offset = 0x4, fixed_abs, tag = 'smem constant byte address 0x4 - core index']
  #allocation1 [shape = 'u32[72,128]{1,0:T(1,128)}', space=vmem, size = 0x9000, scoped, tag = 'internal scratch']
  #allocation2 [shape = 'f32[2,18,18,8]{3,2,1,0:T(8,128)}', space=vmem, size = 0x6c000, scoped, tag = 'scratch operand']
  %s0 = inlined_call_operand.vmem [shape: f32[2,16,16,8], index: 0, kind: input, shape index: {}]
  %s1 = inlined_call_operand.vmem [shape: bf16[9,8,8], index: 1, kind: input, shape index: {}]
  %s2 = inlined_call_operand.vmem [shape: bf16[9,8,8], index: 2, kind: input, shape index: {}]
  %s3 = inlined_call_operand.vmem [shape: f32[1,8], index: 3, kind: input, shape index: {}]
  %s4 = inlined_call_operand.vmem [shape: f32[1,8], index: 4, kind: input, shape index: {}]
  %s5 = inlined_call_operand.vmem [shape: f32[1,8], index: 5, kind: input, shape index: {}]
  %s6 = inlined_call_operand.vmem [shape: f32[1,8], index: 6, kind: input, shape index: {}]
  %s7 = inlined_call_operand.vmem [shape: f32[2,16,16,8], index: 7, kind: output, shape index: {}]
  %s8 = sld [smem:[#allocation0]]
  $region38: #{basic_block_pallas.1} parent=0
    _
  %s10 = ssub.s32 1, %s8
  %s11 = scalar_select 0, %s10, %s8
  // Predicated region
  $region2: #{basic_block_pallas.1} parent=0 // pred_check
    _
  $region3: #{basic_block_pallas.1} parent=0 // pred_check_branch
    %13 = sbr.rel (0) target = $region5
  $region4: #{basic_block_pallas.1} parent=0 // pred_region
    _
  $region5: #{basic_block_pallas.1} parent=0 // pred_fallthru
    _
  // Predicated region
  $region6: #{basic_block_pallas.1} parent=0 // pred_check
    _
  $region7: #{basic_block_pallas.1} parent=0 // pred_check_branch
    %15 = sbr.rel (0) target = $region9
  $region8: #{basic_block_pallas.1} parent=0 // pred_region
    _
  $region9: #{basic_block_pallas.1} parent=0 // pred_fallthru
    _
  // Predicated region
  $region10: #{basic_block_pallas.1} parent=0 // pred_check
    _
  $region11: #{basic_block_pallas.1} parent=0 // pred_check_branch
    %17 = sbr.rel (0) target = $region13
  $region12: #{basic_block_pallas.1} parent=0 // pred_region
    _
  $region13: #{basic_block_pallas.1} parent=0 // pred_fallthru
    _
  // Predicated region
  $region14: #{basic_block_pallas.1} parent=0 // pred_check
    _
  $region15: #{basic_block_pallas.1} parent=0 // pred_check_branch
    %19 = sbr.rel (0) target = $region17
  $region16: #{basic_block_pallas.1} parent=0 // pred_region
    _
  $region17: #{basic_block_pallas.1} parent=0 // pred_fallthru
    _
  // Predicated region
  $region18: #{basic_block_pallas.1} parent=0 // pred_check
    _
  $region19: #{basic_block_pallas.1} parent=0 // pred_check_branch
    %21 = sbr.rel (0) target = $region21
  $region20: #{basic_block_pallas.1} parent=0 // pred_region
    _
  $region21: #{basic_block_pallas.1} parent=0 // pred_fallthru
    _
  // Predicated region
  $region22: #{basic_block_pallas.1} parent=0 // pred_check
    _
  $region23: #{basic_block_pallas.1} parent=0 // pred_check_branch
    %23 = sbr.rel (0) target = $region25
  $region24: #{basic_block_pallas.1} parent=0 // pred_region
    _
  $region25: #{basic_block_pallas.1} parent=0 // pred_fallthru
    _
  // Predicated region
  $region26: #{basic_block_pallas.1} parent=0 // pred_check
    _
  $region27: #{basic_block_pallas.1} parent=0 // pred_check_branch
    %25 = sbr.rel (0) target = $region29
  $region28: #{basic_block_pallas.1} parent=0 // pred_region
    _
  $region29: #{basic_block_pallas.1} parent=0 // pred_fallthru
    _
  %v27 = vld [vmem:[%s0] sm:$0xff]
  %v28 = vld [vmem:[%s0 + $0x8] sm:$0xff]
  %v29 = vld [vmem:[%s0 + $0x10] sm:$0xff]
  %v30 = vld [vmem:[%s0 + $0x18] sm:$0xff]
  %v31 = vld [vmem:[%s0 + $0x20] sm:$0xff]
  %v32 = vld [vmem:[%s0 + $0x28] sm:$0xff]
  %v33 = vld [vmem:[%s0 + $0x30] sm:$0xff]
  %v34 = vld [vmem:[%s0 + $0x38] sm:$0xff]
  %v35 = vld [vmem:[%s0 + $0x40] sm:$0xff]
  %v36 = vld [vmem:[%s0 + $0x48] sm:$0xff]
  %v37 = vld [vmem:[%s0 + $0x50] sm:$0xff]
  %v38 = vld [vmem:[%s0 + $0x58] sm:$0xff]
  %v39 = vld [vmem:[%s0 + $0x60] sm:$0xff]
  %v40 = vld [vmem:[%s0 + $0x68] sm:$0xff]
  %v41 = vld [vmem:[%s0 + $0x70] sm:$0xff]
  %v42 = vld [vmem:[%s0 + $0x78] sm:$0xff]
  %v43 = vld [vmem:[%s0 + $0x80] sm:$0xff]
  %v44 = vld [vmem:[%s0 + $0x88] sm:$0xff]
  %v45 = vld [vmem:[%s0 + $0x90] sm:$0xff]
  %v46 = vld [vmem:[%s0 + $0x98] sm:$0xff]
  %v47 = vld [vmem:[%s0 + $0xa0] sm:$0xff]
  %v48 = vld [vmem:[%s0 + $0xa8] sm:$0xff]
  %v49 = vld [vmem:[%s0 + $0xb0] sm:$0xff]
  %v50 = vld [vmem:[%s0 + $0xb8] sm:$0xff]
  %v51 = vld [vmem:[%s0 + $0xc0] sm:$0xff]
  %v52 = vld [vmem:[%s0 + $0xc8] sm:$0xff]
  %v53 = vld [vmem:[%s0 + $0xd0] sm:$0xff]
  %v54 = vld [vmem:[%s0 + $0xd8] sm:$0xff]
  %v55 = vld [vmem:[%s0 + $0xe0] sm:$0xff]
  %v56 = vld [vmem:[%s0 + $0xe8] sm:$0xff]
  %v57 = vld [vmem:[%s0 + $0xf0] sm:$0xff]
  %v58 = vld [vmem:[%s0 + $0xf8] sm:$0xff]
  %v59 = vld [vmem:[%s0 + $0x100] sm:$0xff]
  %v60 = vld [vmem:[%s0 + $0x108] sm:$0xff]
  %v61 = vld [vmem:[%s0 + $0x110] sm:$0xff]
  %v62 = vld [vmem:[%s0 + $0x118] sm:$0xff]
  %v63 = vld [vmem:[%s0 + $0x120] sm:$0xff]
  %v64 = vld [vmem:[%s0 + $0x128] sm:$0xff]
  %v65 = vld [vmem:[%s0 + $0x130] sm:$0xff]
  %v66 = vld [vmem:[%s0 + $0x138] sm:$0xff]
  %v67 = vld [vmem:[%s0 + $0x140] sm:$0xff]
  %v68 = vld [vmem:[%s0 + $0x148] sm:$0xff]
  %v69 = vld [vmem:[%s0 + $0x150] sm:$0xff]
  %v70 = vld [vmem:[%s0 + $0x158] sm:$0xff]
  %v71 = vld [vmem:[%s0 + $0x160] sm:$0xff]
  %v72 = vld [vmem:[%s0 + $0x168] sm:$0xff]
  %v73 = vld [vmem:[%s0 + $0x170] sm:$0xff]
  %v74 = vld [vmem:[%s0 + $0x178] sm:$0xff]
  %v75 = vld [vmem:[%s0 + $0x180] sm:$0xff]
  %v76 = vld [vmem:[%s0 + $0x188] sm:$0xff]
  %v77 = vld [vmem:[%s0 + $0x190] sm:$0xff]
  %v78 = vld [vmem:[%s0 + $0x198] sm:$0xff]
  %v79 = vld [vmem:[%s0 + $0x1a0] sm:$0xff]
  %v80 = vld [vmem:[%s0 + $0x1a8] sm:$0xff]
  %v81 = vld [vmem:[%s0 + $0x1b0] sm:$0xff]
  %v82 = vld [vmem:[%s0 + $0x1b8] sm:$0xff]
  %v83 = vld [vmem:[%s0 + $0x1c0] sm:$0xff]
  %v84 = vld [vmem:[%s0 + $0x1c8] sm:$0xff]
  %v85 = vld [vmem:[%s0 + $0x1d0] sm:$0xff]
  %v86 = vld [vmem:[%s0 + $0x1d8] sm:$0xff]
  %v87 = vld [vmem:[%s0 + $0x1e0] sm:$0xff]
  %v88 = vld [vmem:[%s0 + $0x1e8] sm:$0xff]
  %v89 = vld [vmem:[%s0 + $0x1f0] sm:$0xff]
  %v90 = vld [vmem:[%s0 + $0x1f8] sm:$0xff]
  %vm91 = vcmask 64512
  %92 = vst.msk [vmem:[#allocation2] sm:$0xff] %vm91, 0.0
  %93 = vst.msk [vmem:[#allocation2 + $0x8] sm:$0xff] %vm91, 0.0
  %vm94 = vcmask 58368
  %95 = vst.msk [vmem:[#allocation2 + $0x10] sm:$0x3] %vm94, 0.0
  %96 = vst.msk [vmem:[#allocation2 + $0x18] sm:$0xff] %vm91, 0.0
  %97 = vst.msk [vmem:[#allocation2 + $0x20] sm:$0xff] %vm91, 0.0
  %98 = vst.msk [vmem:[#allocation2 + $0x28] sm:$0x3] %vm94, 0.0
  %99 = vst.msk [vmem:[#allocation2 + $0x30] sm:$0xff] %vm91, 0.0
  %100 = vst.msk [vmem:[#allocation2 + $0x38] sm:$0xff] %vm91, 0.0
  %101 = vst.msk [vmem:[#allocation2 + $0x40] sm:$0x3] %vm94, 0.0
  %102 = vst.msk [vmem:[#allocation2 + $0x48] sm:$0xff] %vm91, 0.0
  %103 = vst.msk [vmem:[#allocation2 + $0x50] sm:$0xff] %vm91, 0.0
  %104 = vst.msk [vmem:[#allocation2 + $0x58] sm:$0x3] %vm94, 0.0
  %105 = vst.msk [vmem:[#allocation2 + $0x60] sm:$0xff] %vm91, 0.0
  %106 = vst.msk [vmem:[#allocation2 + $0x68] sm:$0xff] %vm91, 0.0
  %107 = vst.msk [vmem:[#allocation2 + $0x70] sm:$0x3] %vm94, 0.0
  %108 = vst.msk [vmem:[#allocation2 + $0x78] sm:$0xff] %vm91, 0.0
  %109 = vst.msk [vmem:[#allocation2 + $0x80] sm:$0xff] %vm91, 0.0
  %110 = vst.msk [vmem:[#allocation2 + $0x88] sm:$0x3] %vm94, 0.0
  %111 = vst.msk [vmem:[#allocation2 + $0x90] sm:$0xff] %vm91, 0.0
  %112 = vst.msk [vmem:[#allocation2 + $0x98] sm:$0xff] %vm91, 0.0
  %113 = vst.msk [vmem:[#allocation2 + $0xa0] sm:$0x3] %vm94, 0.0
  %114 = vst.msk [vmem:[#allocation2 + $0xa8] sm:$0xff] %vm91, 0.0
  %115 = vst.msk [vmem:[#allocation2 + $0xb0] sm:$0xff] %vm91, 0.0
  %116 = vst.msk [vmem:[#allocation2 + $0xb8] sm:$0x3] %vm94, 0.0
  %117 = vst.msk [vmem:[#allocation2 + $0xc0] sm:$0xff] %vm91, 0.0
  %118 = vst.msk [vmem:[#allocation2 + $0xc8] sm:$0xff] %vm91, 0.0
  %119 = vst.msk [vmem:[#allocation2 + $0xd0] sm:$0x3] %vm94, 0.0
  %120 = vst.msk [vmem:[#allocation2 + $0xd8] sm:$0xff] %vm91, 0.0
  %121 = vst.msk [vmem:[#allocation2 + $0xe0] sm:$0xff] %vm91, 0.0
  %122 = vst.msk [vmem:[#allocation2 + $0xe8] sm:$0x3] %vm94, 0.0
  %123 = vst.msk [vmem:[#allocation2 + $0xf0] sm:$0xff] %vm91, 0.0
  %124 = vst.msk [vmem:[#allocation2 + $0xf8] sm:$0xff] %vm91, 0.0
  %125 = vst.msk [vmem:[#allocation2 + $0x100] sm:$0x3] %vm94, 0.0
  %126 = vst.msk [vmem:[#allocation2 + $0x108] sm:$0xff] %vm91, 0.0
  %127 = vst.msk [vmem:[#allocation2 + $0x110] sm:$0xff] %vm91, 0.0
  %128 = vst.msk [vmem:[#allocation2 + $0x118] sm:$0x3] %vm94, 0.0
  %129 = vst.msk [vmem:[#allocation2 + $0x120] sm:$0xff] %vm91, 0.0
  %130 = vst.msk [vmem:[#allocation2 + $0x128] sm:$0xff] %vm91, 0.0
  %131 = vst.msk [vmem:[#allocation2 + $0x130] sm:$0x3] %vm94, 0.0
  %132 = vst.msk [vmem:[#allocation2 + $0x138] sm:$0xff] %vm91, 0.0
  %133 = vst.msk [vmem:[#allocation2 + $0x140] sm:$0xff] %vm91, 0.0
  %134 = vst.msk [vmem:[#allocation2 + $0x148] sm:$0x3] %vm94, 0.0
  %135 = vst.msk [vmem:[#allocation2 + $0x150] sm:$0xff] %vm91, 0.0
  %136 = vst.msk [vmem:[#allocation2 + $0x158] sm:$0xff] %vm91, 0.0
  %137 = vst.msk [vmem:[#allocation2 + $0x160] sm:$0x3] %vm94, 0.0
  %138 = vst.msk [vmem:[#allocation2 + $0x168] sm:$0xff] %vm91, 0.0
  %139 = vst.msk [vmem:[#allocation2 + $0x170] sm:$0xff] %vm91, 0.0
  %140 = vst.msk [vmem:[#allocation2 + $0x178] sm:$0x3] %vm94, 0.0
  %141 = vst.msk [vmem:[#allocation2 + $0x180] sm:$0xff] %vm91, 0.0
  %142 = vst.msk [vmem:[#allocation2 + $0x188] sm:$0xff] %vm91, 0.0
  %143 = vst.msk [vmem:[#allocation2 + $0x190] sm:$0x3] %vm94, 0.0
  %144 = vst.msk [vmem:[#allocation2 + $0x198] sm:$0xff] %vm91, 0.0
  %145 = vst.msk [vmem:[#allocation2 + $0x1a0] sm:$0xff] %vm91, 0.0
  %146 = vst.msk [vmem:[#allocation2 + $0x1a8] sm:$0x3] %vm94, 0.0
  %147 = vst.msk [vmem:[#allocation2 + $0x1b0] sm:$0xff] %vm91, 0.0
  %148 = vst.msk [vmem:[#allocation2 + $0x1b8] sm:$0xff] %vm91, 0.0
  %149 = vst.msk [vmem:[#allocation2 + $0x1c0] sm:$0x3] %vm94, 0.0
  %150 = vst.msk [vmem:[#allocation2 + $0x1c8] sm:$0xff] %vm91, 0.0
  %151 = vst.msk [vmem:[#allocation2 + $0x1d0] sm:$0xff] %vm91, 0.0
  %152 = vst.msk [vmem:[#allocation2 + $0x1d8] sm:$0x3] %vm94, 0.0
  %153 = vst.msk [vmem:[#allocation2 + $0x1e0] sm:$0xff] %vm91, 0.0
  %154 = vst.msk [vmem:[#allocation2 + $0x1e8] sm:$0xff] %vm91, 0.0
  %155 = vst.msk [vmem:[#allocation2 + $0x1f0] sm:$0x3] %vm94, 0.0
  %156 = vst.msk [vmem:[#allocation2 + $0x1f8] sm:$0xff] %vm91, 0.0
  %157 = vst.msk [vmem:[#allocation2 + $0x200] sm:$0xff] %vm91, 0.0
  %158 = vst.msk [vmem:[#allocation2 + $0x208] sm:$0x3] %vm94, 0.0
  %159 = vst.msk [vmem:[#allocation2 + $0x210] sm:$0xff] %vm91, 0.0
  %160 = vst.msk [vmem:[#allocation2 + $0x218] sm:$0xff] %vm91, 0.0
  %161 = vst.msk [vmem:[#allocation2 + $0x220] sm:$0x3] %vm94, 0.0
  %162 = vst.msk [vmem:[#allocation2 + $0x228] sm:$0xff] %vm91, 0.0
  %163 = vst.msk [vmem:[#allocation2 + $0x230] sm:$0xff] %vm91, 0.0
  %164 = vst.msk [vmem:[#allocation2 + $0x238] sm:$0x3] %vm94, 0.0
  %165 = vst.msk [vmem:[#allocation2 + $0x240] sm:$0xff] %vm91, 0.0
  %166 = vst.msk [vmem:[#allocation2 + $0x248] sm:$0xff] %vm91, 0.0
  %167 = vst.msk [vmem:[#allocation2 + $0x250] sm:$0x3] %vm94, 0.0
  %168 = vst.msk [vmem:[#allocation2 + $0x258] sm:$0xff] %vm91, 0.0
  %169 = vst.msk [vmem:[#allocation2 + $0x260] sm:$0xff] %vm91, 0.0
  %170 = vst.msk [vmem:[#allocation2 + $0x268] sm:$0x3] %vm94, 0.0
  %171 = vst.msk [vmem:[#allocation2 + $0x270] sm:$0xff] %vm91, 0.0
  %172 = vst.msk [vmem:[#allocation2 + $0x278] sm:$0xff] %vm91, 0.0
  %173 = vst.msk [vmem:[#allocation2 + $0x280] sm:$0x3] %vm94, 0.0
  %174 = vst.msk [vmem:[#allocation2 + $0x288] sm:$0xff] %vm91, 0.0
  %175 = vst.msk [vmem:[#allocation2 + $0x290] sm:$0xff] %vm91, 0.0
  %176 = vst.msk [vmem:[#allocation2 + $0x298] sm:$0x3] %vm94, 0.0
  %177 = vst.msk [vmem:[#allocation2 + $0x2a0] sm:$0xff] %vm91, 0.0
  %178 = vst.msk [vmem:[#allocation2 + $0x2a8] sm:$0xff] %vm91, 0.0
  %179 = vst.msk [vmem:[#allocation2 + $0x2b0] sm:$0x3] %vm94, 0.0
  %180 = vst.msk [vmem:[#allocation2 + $0x2b8] sm:$0xff] %vm91, 0.0
  %181 = vst.msk [vmem:[#allocation2 + $0x2c0] sm:$0xff] %vm91, 0.0
  %182 = vst.msk [vmem:[#allocation2 + $0x2c8] sm:$0x3] %vm94, 0.0
  %183 = vst.msk [vmem:[#allocation2 + $0x2d0] sm:$0xff] %vm91, 0.0
  %184 = vst.msk [vmem:[#allocation2 + $0x2d8] sm:$0xff] %vm91, 0.0
  %185 = vst.msk [vmem:[#allocation2 + $0x2e0] sm:$0x3] %vm94, 0.0
  %186 = vst.msk [vmem:[#allocation2 + $0x2e8] sm:$0xff] %vm91, 0.0
  %187 = vst.msk [vmem:[#allocation2 + $0x2f0] sm:$0xff] %vm91, 0.0
  %188 = vst.msk [vmem:[#allocation2 + $0x2f8] sm:$0x3] %vm94, 0.0
  %189 = vst.msk [vmem:[#allocation2 + $0x300] sm:$0xff] %vm91, 0.0
  %190 = vst.msk [vmem:[#allocation2 + $0x308] sm:$0xff] %vm91, 0.0
  %191 = vst.msk [vmem:[#allocation2 + $0x310] sm:$0x3] %vm94, 0.0
  %192 = vst.msk [vmem:[#allocation2 + $0x318] sm:$0xff] %vm91, 0.0
  %193 = vst.msk [vmem:[#allocation2 + $0x320] sm:$0xff] %vm91, 0.0
  %194 = vst.msk [vmem:[#allocation2 + $0x328] sm:$0x3] %vm94, 0.0
  %195 = vst.msk [vmem:[#allocation2 + $0x330] sm:$0xff] %vm91, 0.0
  %196 = vst.msk [vmem:[#allocation2 + $0x338] sm:$0xff] %vm91, 0.0
  %197 = vst.msk [vmem:[#allocation2 + $0x340] sm:$0x3] %vm94, 0.0
  %198 = vst.msk [vmem:[#allocation2 + $0x348] sm:$0xff] %vm91, 0.0
  %199 = vst.msk [vmem:[#allocation2 + $0x350] sm:$0xff] %vm91, 0.0
  %200 = vst.msk [vmem:[#allocation2 + $0x358] sm:$0x3] %vm94, 0.0
  %s201 = scalar_lea.vmem [#allocation2], 24
  %202 = vst.msk [vmem:[%s201 + $0x1] sm:$0xff] %vm91, %v27
  %203 = vst.msk [vmem:[%s201 + $0x9] sm:$0xff] %vm91, %v28
  %204 = vst.msk [vmem:[%s201 + $0x19] sm:$0xff] %vm91, %v29
  %205 = vst.msk [vmem:[%s201 + $0x21] sm:$0xff] %vm91, %v30
  %206 = vst.msk [vmem:[%s201 + $0x31] sm:$0xff] %vm91, %v31
  %207 = vst.msk [vmem:[%s201 + $0x39] sm:$0xff] %vm91, %v32
  %208 = vst.msk [vmem:[%s201 + $0x49] sm:$0xff] %vm91, %v33
  %209 = vst.msk [vmem:[%s201 + $0x51] sm:$0xff] %vm91, %v34
  %210 = vst.msk [vmem:[%s201 + $0x61] sm:$0xff] %vm91, %v35
  %211 = vst.msk [vmem:[%s201 + $0x69] sm:$0xff] %vm91, %v36
  %212 = vst.msk [vmem:[%s201 + $0x79] sm:$0xff] %vm91, %v37
  %213 = vst.msk [vmem:[%s201 + $0x81] sm:$0xff] %vm91, %v38
  %214 = vst.msk [vmem:[%s201 + $0x91] sm:$0xff] %vm91, %v39
  %215 = vst.msk [vmem:[%s201 + $0x99] sm:$0xff] %vm91, %v40
  %216 = vst.msk [vmem:[%s201 + $0xa9] sm:$0xff] %vm91, %v41
  %217 = vst.msk [vmem:[%s201 + $0xb1] sm:$0xff] %vm91, %v42
  %218 = vst.msk [vmem:[%s201 + $0xc1] sm:$0xff] %vm91, %v43
  %219 = vst.msk [vmem:[%s201 + $0xc9] sm:$0xff] %vm91, %v44
  %220 = vst.msk [vmem:[%s201 + $0xd9] sm:$0xff] %vm91, %v45
  %221 = vst.msk [vmem:[%s201 + $0xe1] sm:$0xff] %vm91, %v46
  %222 = vst.msk [vmem:[%s201 + $0xf1] sm:$0xff] %vm91, %v47
  %223 = vst.msk [vmem:[%s201 + $0xf9] sm:$0xff] %vm91, %v48
  %224 = vst.msk [vmem:[%s201 + $0x109] sm:$0xff] %vm91, %v49
  %225 = vst.msk [vmem:[%s201 + $0x111] sm:$0xff] %vm91, %v50
  %226 = vst.msk [vmem:[%s201 + $0x121] sm:$0xff] %vm91, %v51
  %227 = vst.msk [vmem:[%s201 + $0x129] sm:$0xff] %vm91, %v52
  %228 = vst.msk [vmem:[%s201 + $0x139] sm:$0xff] %vm91, %v53
  %229 = vst.msk [vmem:[%s201 + $0x141] sm:$0xff] %vm91, %v54
  %230 = vst.msk [vmem:[%s201 + $0x151] sm:$0xff] %vm91, %v55
  %231 = vst.msk [vmem:[%s201 + $0x159] sm:$0xff] %vm91, %v56
  %232 = vst.msk [vmem:[%s201 + $0x169] sm:$0xff] %vm91, %v57
  %233 = vst.msk [vmem:[%s201 + $0x171] sm:$0xff] %vm91, %v58
  %234 = vst.msk [vmem:[%s201 + $0x1b1] sm:$0xff] %vm91, %v59
  %235 = vst.msk [vmem:[%s201 + $0x1b9] sm:$0xff] %vm91, %v60
  %236 = vst.msk [vmem:[%s201 + $0x1c9] sm:$0xff] %vm91, %v61
  %237 = vst.msk [vmem:[%s201 + $0x1d1] sm:$0xff] %vm91, %v62
  %238 = vst.msk [vmem:[%s201 + $0x1e1] sm:$0xff] %vm91, %v63
  %239 = vst.msk [vmem:[%s201 + $0x1e9] sm:$0xff] %vm91, %v64
  %240 = vst.msk [vmem:[%s201 + $0x1f9] sm:$0xff] %vm91, %v65
  %241 = vst.msk [vmem:[%s201 + $0x201] sm:$0xff] %vm91, %v66
  %242 = vst.msk [vmem:[%s201 + $0x211] sm:$0xff] %vm91, %v67
  %243 = vst.msk [vmem:[%s201 + $0x219] sm:$0xff] %vm91, %v68
  %244 = vst.msk [vmem:[%s201 + $0x229] sm:$0xff] %vm91, %v69
  %245 = vst.msk [vmem:[%s201 + $0x231] sm:$0xff] %vm91, %v70
  %246 = vst.msk [vmem:[%s201 + $0x241] sm:$0xff] %vm91, %v71
  %247 = vst.msk [vmem:[%s201 + $0x249] sm:$0xff] %vm91, %v72
  %248 = vst.msk [vmem:[%s201 + $0x259] sm:$0xff] %vm91, %v73
  %249 = vst.msk [vmem:[%s201 + $0x261] sm:$0xff] %vm91, %v74
  %250 = vst.msk [vmem:[%s201 + $0x271] sm:$0xff] %vm91, %v75
  %251 = vst.msk [vmem:[%s201 + $0x279] sm:$0xff] %vm91, %v76
  %252 = vst.msk [vmem:[%s201 + $0x289] sm:$0xff] %vm91, %v77
  %253 = vst.msk [vmem:[%s201 + $0x291] sm:$0xff] %vm91, %v78
  %254 = vst.msk [vmem:[%s201 + $0x2a1] sm:$0xff] %vm91, %v79
  %255 = vst.msk [vmem:[%s201 + $0x2a9] sm:$0xff] %vm91, %v80
  %256 = vst.msk [vmem:[%s201 + $0x2b9] sm:$0xff] %vm91, %v81
  %257 = vst.msk [vmem:[%s201 + $0x2c1] sm:$0xff] %vm91, %v82
  %258 = vst.msk [vmem:[%s201 + $0x2d1] sm:$0xff] %vm91, %v83
  %259 = vst.msk [vmem:[%s201 + $0x2d9] sm:$0xff] %vm91, %v84
  %260 = vst.msk [vmem:[%s201 + $0x2e9] sm:$0xff] %vm91, %v85
  %261 = vst.msk [vmem:[%s201 + $0x2f1] sm:$0xff] %vm91, %v86
  %262 = vst.msk [vmem:[%s201 + $0x301] sm:$0xff] %vm91, %v87
  %263 = vst.msk [vmem:[%s201 + $0x309] sm:$0xff] %vm91, %v88
  %264 = vst.msk [vmem:[%s201 + $0x319] sm:$0xff] %vm91, %v89
  %265 = vst.msk [vmem:[%s201 + $0x321] sm:$0xff] %vm91, %v90
  %v266 = vld [vmem:[#allocation2] sm:$0xff]
  %v267 = vld [vmem:[#allocation2 + $0x8] sm:$0xff]
  %v268 = vld [vmem:[#allocation2 + $0x10] sm:$0x3]
  %v269 = vld [vmem:[#allocation2 + $0x18] sm:$0xff]
  %v270 = vld [vmem:[#allocation2 + $0x20] sm:$0xff]
  %v271 = vld [vmem:[#allocation2 + $0x28] sm:$0x3]
  %v272 = vld [vmem:[#allocation2 + $0x30] sm:$0xff]
  %v273 = vld [vmem:[#allocation2 + $0x38] sm:$0xff]
  %v274 = vld [vmem:[#allocation2 + $0x40] sm:$0x3]
  %v275 = vld [vmem:[#allocation2 + $0x48] sm:$0xff]
  %v276 = vld [vmem:[#allocation2 + $0x50] sm:$0xff]
  %v277 = vld [vmem:[#allocation2 + $0x58] sm:$0x3]
  %v278 = vld [vmem:[#allocation2 + $0x60] sm:$0xff]
  %v279 = vld [vmem:[#allocation2 + $0x68] sm:$0xff]
  %v280 = vld [vmem:[#allocation2 + $0x70] sm:$0x3]
  %v281 = vld [vmem:[#allocation2 + $0x78] sm:$0xff]
  %v282 = vld [vmem:[#allocation2 + $0x80] sm:$0xff]
  %v283 = vld [vmem:[#allocation2 + $0x88] sm:$0x3]
  %v284 = vld [vmem:[#allocation2 + $0x90] sm:$0xff]
  %v285 = vld [vmem:[#allocation2 + $0x98] sm:$0xff]
  %v286 = vld [vmem:[#allocation2 + $0xa0] sm:$0x3]
  %v287 = vld [vmem:[#allocation2 + $0xa8] sm:$0xff]
  %v288 = vld [vmem:[#allocation2 + $0xb0] sm:$0xff]
  %v289 = vld [vmem:[#allocation2 + $0xb8] sm:$0x3]
  %v290 = vld [vmem:[#allocation2 + $0xc0] sm:$0xff]
  %v291 = vld [vmem:[#allocation2 + $0xc8] sm:$0xff]
  %v292 = vld [vmem:[#allocation2 + $0xd0] sm:$0x3]
  %v293 = vld [vmem:[#allocation2 + $0xd8] sm:$0xff]
  %v294 = vld [vmem:[#allocation2 + $0xe0] sm:$0xff]
  %v295 = vld [vmem:[#allocation2 + $0xe8] sm:$0x3]
  %v296 = vld [vmem:[#allocation2 + $0xf0] sm:$0xff]
  %v297 = vld [vmem:[#allocation2 + $0xf8] sm:$0xff]
  %v298 = vld [vmem:[#allocation2 + $0x100] sm:$0x3]
  %v299 = vld [vmem:[#allocation2 + $0x108] sm:$0xff]
  %v300 = vld [vmem:[#allocation2 + $0x110] sm:$0xff]
  %v301 = vld [vmem:[#allocation2 + $0x118] sm:$0x3]
  %v302 = vld [vmem:[#allocation2 + $0x120] sm:$0xff]
  %v303 = vld [vmem:[#allocation2 + $0x128] sm:$0xff]
  %v304 = vld [vmem:[#allocation2 + $0x130] sm:$0x3]
  %v305 = vld [vmem:[#allocation2 + $0x138] sm:$0xff]
  %v306 = vld [vmem:[#allocation2 + $0x140] sm:$0xff]
  %v307 = vld [vmem:[#allocation2 + $0x148] sm:$0x3]
  %v308 = vld [vmem:[#allocation2 + $0x150] sm:$0xff]
  %v309 = vld [vmem:[#allocation2 + $0x158] sm:$0xff]
  %v310 = vld [vmem:[#allocation2 + $0x160] sm:$0x3]
  %v311 = vld [vmem:[#allocation2 + $0x168] sm:$0xff]
  %v312 = vld [vmem:[#allocation2 + $0x170] sm:$0xff]
  %v313 = vld [vmem:[#allocation2 + $0x178] sm:$0x3]
  %v314 = vld [vmem:[#allocation2 + $0x180] sm:$0xff]
  %v315 = vld [vmem:[#allocation2 + $0x188] sm:$0xff]
  %v316 = vld [vmem:[#allocation2 + $0x190] sm:$0x3]
  %v317 = vld [vmem:[#allocation2 + $0x198] sm:$0xff]
  %v318 = vld [vmem:[#allocation2 + $0x1a0] sm:$0xff]
  %v319 = vld [vmem:[#allocation2 + $0x1a8] sm:$0x3]
  %v320 = vld [vmem:[#allocation2 + $0x1b0] sm:$0xff]
  %v321 = vld [vmem:[#allocation2 + $0x1b8] sm:$0xff]
  %v322 = vld [vmem:[#allocation2 + $0x1c0] sm:$0x3]
  %v323 = vld [vmem:[#allocation2 + $0x1c8] sm:$0xff]
  %v324 = vld [vmem:[#allocation2 + $0x1d0] sm:$0xff]
  %v325 = vld [vmem:[#allocation2 + $0x1d8] sm:$0x3]
  %v326 = vld [vmem:[#allocation2 + $0x1e0] sm:$0xff]
  %v327 = vld [vmem:[#allocation2 + $0x1e8] sm:$0xff]
  %v328 = vld [vmem:[#allocation2 + $0x1f0] sm:$0x3]
  %v329 = vld [vmem:[#allocation2 + $0x1f8] sm:$0xff]
  %v330 = vld [vmem:[#allocation2 + $0x200] sm:$0xff]
  %v331 = vld [vmem:[#allocation2 + $0x208] sm:$0x3]
  %v332 = vld [vmem:[#allocation2 + $0x210] sm:$0xff]
  %v333 = vld [vmem:[#allocation2 + $0x218] sm:$0xff]
  %v334 = vld [vmem:[#allocation2 + $0x220] sm:$0x3]
  %v335 = vld [vmem:[#allocation2 + $0x228] sm:$0xff]
  %v336 = vld [vmem:[#allocation2 + $0x230] sm:$0xff]
  %v337 = vld [vmem:[#allocation2 + $0x238] sm:$0x3]
  %v338 = vld [vmem:[#allocation2 + $0x240] sm:$0xff]
  %v339 = vld [vmem:[#allocation2 + $0x248] sm:$0xff]
  %v340 = vld [vmem:[#allocation2 + $0x250] sm:$0x3]
  %v341 = vld [vmem:[#allocation2 + $0x258] sm:$0xff]
  %v342 = vld [vmem:[#allocation2 + $0x260] sm:$0xff]
  %v343 = vld [vmem:[#allocation2 + $0x268] sm:$0x3]
  %v344 = vld [vmem:[#allocation2 + $0x270] sm:$0xff]
  %v345 = vld [vmem:[#allocation2 + $0x278] sm:$0xff]
  %v346 = vld [vmem:[#allocation2 + $0x280] sm:$0x3]
  %v347 = vld [vmem:[#allocation2 + $0x288] sm:$0xff]
  %v348 = vld [vmem:[#allocation2 + $0x290] sm:$0xff]
  %v349 = vld [vmem:[#allocation2 + $0x298] sm:$0x3]
  %v350 = vld [vmem:[#allocation2 + $0x2a0] sm:$0xff]
  %v351 = vld [vmem:[#allocation2 + $0x2a8] sm:$0xff]
  %v352 = vld [vmem:[#allocation2 + $0x2b0] sm:$0x3]
  %v353 = vld [vmem:[#allocation2 + $0x2b8] sm:$0xff]
  %v354 = vld [vmem:[#allocation2 + $0x2c0] sm:$0xff]
  %v355 = vld [vmem:[#allocation2 + $0x2c8] sm:$0x3]
  %v356 = vld [vmem:[#allocation2 + $0x2d0] sm:$0xff]
  %v357 = vld [vmem:[#allocation2 + $0x2d8] sm:$0xff]
  %v358 = vld [vmem:[#allocation2 + $0x2e0] sm:$0x3]
  %v359 = vld [vmem:[#allocation2 + $0x2e8] sm:$0xff]
  %v360 = vld [vmem:[#allocation2 + $0x2f0] sm:$0xff]
  %v361 = vld [vmem:[#allocation2 + $0x2f8] sm:$0x3]
  %v362 = vld [vmem:[#allocation2 + $0x300] sm:$0xff]
  %v363 = vld [vmem:[#allocation2 + $0x308] sm:$0xff]
  %v364 = vld [vmem:[#allocation2 + $0x310] sm:$0x3]
  %v365 = vld [vmem:[#allocation2 + $0x318] sm:$0xff]
  %v366 = vld [vmem:[#allocation2 + $0x320] sm:$0xff]
  %v367 = vld [vmem:[#allocation2 + $0x328] sm:$0x3]
  %v368 = vld [vmem:[#allocation2 + $0x330] sm:$0xff]
  %v369 = vld [vmem:[#allocation2 + $0x338] sm:$0xff]
  %v370 = vld [vmem:[#allocation2 + $0x340] sm:$0x3]
  %v371 = vld [vmem:[#allocation2 + $0x348] sm:$0xff]
  %v372 = vld [vmem:[#allocation2 + $0x350] sm:$0xff]
  %v373 = vld [vmem:[#allocation2 + $0x358] sm:$0x3]
  %v374 = vpack.c.bf16 %v267, %v266
  %v375 = vpack.c.bf16 %v270, %v269
  %v376 = vpack.c.bf16 %v273, %v272
  %v377 = vpack.c.bf16 %v276, %v275
  %v378 = vpack.c.bf16 %v279, %v278
  %v379 = vpack.c.bf16 %v282, %v281
  %v380 = vpack.c.bf16 %v285, %v284
  %v381 = vpack.c.bf16 %v288, %v287
  %v382 = vpack.c.bf16 %v291, %v290
  %v383 = vpack.c.bf16 %v294, %v293
  %v384 = vpack.c.bf16 %v297, %v296
  %v385 = vpack.c.bf16 %v300, %v299
  %v386 = vpack.c.bf16 %v303, %v302
  %v387 = vpack.c.bf16 %v306, %v305
  %v388 = vpack.c.bf16 %v309, %v308
  %v389 = vpack.c.bf16 %v312, %v311
  %v390 = vpack.c.bf16 %v321, %v320
  %v391 = vpack.c.bf16 %v324, %v323
  %v392 = vpack.c.bf16 %v327, %v326
  %v393 = vpack.c.bf16 %v330, %v329
  %v394 = vpack.c.bf16 %v333, %v332
  %v395 = vpack.c.bf16 %v336, %v335
  %v396 = vpack.c.bf16 %v339, %v338
  %v397 = vpack.c.bf16 %v342, %v341
  %v398 = vpack.c.bf16 %v345, %v344
  %v399 = vpack.c.bf16 %v348, %v347
  %v400 = vpack.c.bf16 %v351, %v350
  %v401 = vpack.c.bf16 %v354, %v353
  %v402 = vpack.c.bf16 %v357, %v356
  %v403 = vpack.c.bf16 %v360, %v359
  %v404 = vpack.c.bf16 %v363, %v362
  %v405 = vpack.c.bf16 %v366, %v365
  %v406 = vld [vmem:[%s1] sm:$0xf]
  %vm503 = vcmask 1046528
  %v504 = vrot.slane %v266, 1
  %v505 = vrot.slane %v267, 1
  %v506 = vsel %vm503, %v504, %v505
  %v507 = vrot.slane %v268, 1
  %v508 = vsel %vm503, %v505, %v507
  %v509 = vrot.slane %v269, 1
  %v510 = vrot.slane %v270, 1
  %v511 = vsel %vm503, %v509, %v510
  %v512 = vrot.slane %v271, 1
  %v513 = vsel %vm503, %v510, %v512
  %v514 = vrot.slane %v272, 1
  %v515 = vrot.slane %v273, 1
  %v516 = vsel %vm503, %v514, %v515
  %v517 = vrot.slane %v274, 1
  %v518 = vsel %vm503, %v515, %v517
  %v519 = vrot.slane %v275, 1
  %v520 = vrot.slane %v276, 1
  %v521 = vsel %vm503, %v519, %v520
  %v522 = vrot.slane %v277, 1
  %v523 = vsel %vm503, %v520, %v522
  %v524 = vrot.slane %v278, 1
  %v525 = vrot.slane %v279, 1
  %v526 = vsel %vm503, %v524, %v525
  %v527 = vrot.slane %v280, 1
  %v528 = vsel %vm503, %v525, %v527
  %v529 = vrot.slane %v281, 1
  %v530 = vrot.slane %v282, 1
  %v531 = vsel %vm503, %v529, %v530
  %v532 = vrot.slane %v283, 1
  %v533 = vsel %vm503, %v530, %v532
  %v534 = vrot.slane %v284, 1
  %v535 = vrot.slane %v285, 1
  %v536 = vsel %vm503, %v534, %v535
  %v537 = vrot.slane %v286, 1
  %v538 = vsel %vm503, %v535, %v537
  %v539 = vrot.slane %v287, 1
  %v540 = vrot.slane %v288, 1
  %v541 = vsel %vm503, %v539, %v540
  %v542 = vrot.slane %v289, 1
  %v543 = vsel %vm503, %v540, %v542
  %v544 = vrot.slane %v290, 1
  %v545 = vrot.slane %v291, 1
  %v546 = vsel %vm503, %v544, %v545
  %v547 = vrot.slane %v292, 1
  %v548 = vsel %vm503, %v545, %v547
  %v549 = vrot.slane %v293, 1
  %v550 = vrot.slane %v294, 1
  %v551 = vsel %vm503, %v549, %v550
  %v552 = vrot.slane %v295, 1
  %v553 = vsel %vm503, %v550, %v552
  %v554 = vrot.slane %v296, 1
  %v555 = vrot.slane %v297, 1
  %v556 = vsel %vm503, %v554, %v555
  %v557 = vrot.slane %v298, 1
  %v558 = vsel %vm503, %v555, %v557
  %v559 = vrot.slane %v299, 1
  %v560 = vrot.slane %v300, 1
  %v561 = vsel %vm503, %v559, %v560
  %v562 = vrot.slane %v301, 1
  %v563 = vsel %vm503, %v560, %v562
  %v564 = vrot.slane %v302, 1
  %v565 = vrot.slane %v303, 1
  %v566 = vsel %vm503, %v564, %v565
  %v567 = vrot.slane %v304, 1
  %v568 = vsel %vm503, %v565, %v567
  %v569 = vrot.slane %v305, 1
  %v570 = vrot.slane %v306, 1
  %v571 = vsel %vm503, %v569, %v570
  %v572 = vrot.slane %v307, 1
  %v573 = vsel %vm503, %v570, %v572
  %v574 = vrot.slane %v308, 1
  %v575 = vrot.slane %v309, 1
  %v576 = vsel %vm503, %v574, %v575
  %v577 = vrot.slane %v310, 1
  %v578 = vsel %vm503, %v575, %v577
  %v579 = vrot.slane %v311, 1
  %v580 = vrot.slane %v312, 1
  %v581 = vsel %vm503, %v579, %v580
  %v582 = vrot.slane %v313, 1
  %v583 = vsel %vm503, %v580, %v582
  %v584 = vrot.slane %v320, 1
  %v585 = vrot.slane %v321, 1
  %v586 = vsel %vm503, %v584, %v585
  %v587 = vrot.slane %v322, 1
  %v588 = vsel %vm503, %v585, %v587
  %v589 = vrot.slane %v323, 1
  %v590 = vrot.slane %v324, 1
  %v591 = vsel %vm503, %v589, %v590
  %v592 = vrot.slane %v325, 1
  %v593 = vsel %vm503, %v590, %v592
  %v594 = vrot.slane %v326, 1
  %v595 = vrot.slane %v327, 1
  %v596 = vsel %vm503, %v594, %v595
  %v597 = vrot.slane %v328, 1
  %v598 = vsel %vm503, %v595, %v597
  %v599 = vrot.slane %v329, 1
  %v600 = vrot.slane %v330, 1
  %v601 = vsel %vm503, %v599, %v600
  %v602 = vrot.slane %v331, 1
  %v603 = vsel %vm503, %v600, %v602
  %v604 = vrot.slane %v332, 1
  %v605 = vrot.slane %v333, 1
  %v606 = vsel %vm503, %v604, %v605
  %v607 = vrot.slane %v334, 1
  %v608 = vsel %vm503, %v605, %v607
  %v609 = vrot.slane %v335, 1
  %v610 = vrot.slane %v336, 1
  %v611 = vsel %vm503, %v609, %v610
  %v612 = vrot.slane %v337, 1
  %v613 = vsel %vm503, %v610, %v612
  %v614 = vrot.slane %v338, 1
  %v615 = vrot.slane %v339, 1
  %v616 = vsel %vm503, %v614, %v615
  %v617 = vrot.slane %v340, 1
  %v618 = vsel %vm503, %v615, %v617
  %v619 = vrot.slane %v341, 1
  %v620 = vrot.slane %v342, 1
  %v621 = vsel %vm503, %v619, %v620
  %v622 = vrot.slane %v343, 1
  %v623 = vsel %vm503, %v620, %v622
  %v624 = vrot.slane %v344, 1
  %v625 = vrot.slane %v345, 1
  %v626 = vsel %vm503, %v624, %v625
  %v627 = vrot.slane %v346, 1
  %v628 = vsel %vm503, %v625, %v627
  %v629 = vrot.slane %v347, 1
  %v630 = vrot.slane %v348, 1
  %v631 = vsel %vm503, %v629, %v630
  %v632 = vrot.slane %v349, 1
  %v633 = vsel %vm503, %v630, %v632
  %v634 = vrot.slane %v350, 1
  %v635 = vrot.slane %v351, 1
  %v636 = vsel %vm503, %v634, %v635
  %v637 = vrot.slane %v352, 1
  %v638 = vsel %vm503, %v635, %v637
  %v639 = vrot.slane %v353, 1
  %v640 = vrot.slane %v354, 1
  %v641 = vsel %vm503, %v639, %v640
  %v642 = vrot.slane %v355, 1
  %v643 = vsel %vm503, %v640, %v642
  %v644 = vrot.slane %v356, 1
  %v645 = vrot.slane %v357, 1
  %v646 = vsel %vm503, %v644, %v645
  %v647 = vrot.slane %v358, 1
  %v648 = vsel %vm503, %v645, %v647
  %v649 = vrot.slane %v359, 1
  %v650 = vrot.slane %v360, 1
  %v651 = vsel %vm503, %v649, %v650
  %v652 = vrot.slane %v361, 1
  %v653 = vsel %vm503, %v650, %v652
  %v654 = vrot.slane %v362, 1
  %v655 = vrot.slane %v363, 1
  %v656 = vsel %vm503, %v654, %v655
  %v657 = vrot.slane %v364, 1
  %v658 = vsel %vm503, %v655, %v657
  %v659 = vrot.slane %v365, 1
  %v660 = vrot.slane %v366, 1
  %v661 = vsel %vm503, %v659, %v660
  %v662 = vrot.slane %v367, 1
  %v663 = vsel %vm503, %v660, %v662
  %v728 = vpack.c.bf16 %v508, %v506
  %v729 = vpack.c.bf16 %v513, %v511
  %v730 = vpack.c.bf16 %v518, %v516
  %v731 = vpack.c.bf16 %v523, %v521
  %v732 = vpack.c.bf16 %v528, %v526
  %v733 = vpack.c.bf16 %v533, %v531
  %v734 = vpack.c.bf16 %v538, %v536
  %v735 = vpack.c.bf16 %v543, %v541
  %v736 = vpack.c.bf16 %v548, %v546
  %v737 = vpack.c.bf16 %v553, %v551
  %v738 = vpack.c.bf16 %v558, %v556
  %v739 = vpack.c.bf16 %v563, %v561
  %v740 = vpack.c.bf16 %v568, %v566
  %v741 = vpack.c.bf16 %v573, %v571
  %v742 = vpack.c.bf16 %v578, %v576
  %v743 = vpack.c.bf16 %v583, %v581
  %v744 = vpack.c.bf16 %v588, %v586
  %v745 = vpack.c.bf16 %v593, %v591
  %v746 = vpack.c.bf16 %v598, %v596
  %v747 = vpack.c.bf16 %v603, %v601
  %v748 = vpack.c.bf16 %v608, %v606
  %v749 = vpack.c.bf16 %v613, %v611
  %v750 = vpack.c.bf16 %v618, %v616
  %v751 = vpack.c.bf16 %v623, %v621
  %v752 = vpack.c.bf16 %v628, %v626
  %v753 = vpack.c.bf16 %v633, %v631
  %v754 = vpack.c.bf16 %v638, %v636
  %v755 = vpack.c.bf16 %v643, %v641
  %v756 = vpack.c.bf16 %v648, %v646
  %v757 = vpack.c.bf16 %v653, %v651
  %v758 = vpack.c.bf16 %v658, %v656
  %v759 = vpack.c.bf16 %v663, %v661
  %s760 = scalar_lea.vmem %s1, 4
  %v761 = vld [vmem:[%s760] sm:$0xf]
  %v763 = vsel %vm91, %v728, 0
  %v766 = vsel %vm91, %v729, 0
  %v769 = vsel %vm91, %v730, 0
  %v772 = vsel %vm91, %v731, 0
  %v775 = vsel %vm91, %v732, 0
  %v778 = vsel %vm91, %v733, 0
  %v781 = vsel %vm91, %v734, 0
  %v784 = vsel %vm91, %v735, 0
  %v787 = vsel %vm91, %v736, 0
  %v790 = vsel %vm91, %v737, 0
  %v793 = vsel %vm91, %v738, 0
  %v796 = vsel %vm91, %v739, 0
  %v799 = vsel %vm91, %v740, 0
  %v802 = vsel %vm91, %v741, 0
  %v805 = vsel %vm91, %v742, 0
  %v808 = vsel %vm91, %v743, 0
  %v811 = vsel %vm91, %v744, 0
  %v814 = vsel %vm91, %v745, 0
  %v817 = vsel %vm91, %v746, 0
  %v820 = vsel %vm91, %v747, 0
  %v823 = vsel %vm91, %v748, 0
  %v826 = vsel %vm91, %v749, 0
  %v829 = vsel %vm91, %v750, 0
  %v832 = vsel %vm91, %v751, 0
  %v835 = vsel %vm91, %v752, 0
  %v838 = vsel %vm91, %v753, 0
  %v841 = vsel %vm91, %v754, 0
  %v844 = vsel %vm91, %v755, 0
  %v847 = vsel %vm91, %v756, 0
  %v850 = vsel %vm91, %v757, 0
  %v853 = vsel %vm91, %v758, 0
  %v856 = vsel %vm91, %v759, 0
  %vm858 = vcmask 1043456
  %v860 = vsel %vm858, %v761, 0
  %862 = vmatpush.bf16.msra.mxu0 0
  %863 = vmatpush.bf16.msra.mxu0 0
  %864 = vmatpush.bf16.msra.mxu0 0
  %865 = vmatpush.bf16.msra.mxu0 0
  %866 = vmatpush.bf16.msra.mxu0 0
  %867 = vmatpush.bf16.msra.mxu0 0
  %868 = vmatpush.bf16.msra.mxu0 0
  %869 = vmatpush.bf16.msra.mxu0 %v860
  %870 = vmatmul.bf16.gmra.mxu0 %v763
  %v871 = vpop.f32.mrf.mxu0
  %v872 = vadd.f32 0.0, %v871
  %v873 = vpop.f32.mrf.mxu0
  %v874 = vadd.f32 0.0, %v873
  %875 = vmatmul.bf16.gmra.mxu0 %v766
  %v876 = vpop.f32.mrf.mxu0
  %v877 = vadd.f32 0.0, %v876
  %v878 = vpop.f32.mrf.mxu0
  %v879 = vadd.f32 0.0, %v878
  %880 = vmatmul.bf16.gmra.mxu0 %v769
  %v881 = vpop.f32.mrf.mxu0
  %v882 = vadd.f32 0.0, %v881
  %v883 = vpop.f32.mrf.mxu0
  %v884 = vadd.f32 0.0, %v883
  %885 = vmatmul.bf16.gmra.mxu0 %v772
  %v886 = vpop.f32.mrf.mxu0
  %v887 = vadd.f32 0.0, %v886
  %v888 = vpop.f32.mrf.mxu0
  %v889 = vadd.f32 0.0, %v888
  %890 = vmatmul.bf16.gmra.mxu0 %v775
  %v891 = vpop.f32.mrf.mxu0
  %v892 = vadd.f32 0.0, %v891
  %v893 = vpop.f32.mrf.mxu0
  %v894 = vadd.f32 0.0, %v893
  %895 = vmatmul.bf16.gmra.mxu0 %v778
  %v896 = vpop.f32.mrf.mxu0
  %v897 = vadd.f32 0.0, %v896
  %v898 = vpop.f32.mrf.mxu0
  %v899 = vadd.f32 0.0, %v898
  %900 = vmatmul.bf16.gmra.mxu0 %v781
  %v901 = vpop.f32.mrf.mxu0
  %v902 = vadd.f32 0.0, %v901
  %v903 = vpop.f32.mrf.mxu0
  %v904 = vadd.f32 0.0, %v903
  %905 = vmatmul.bf16.gmra.mxu0 %v784
  %v906 = vpop.f32.mrf.mxu0
  %v907 = vadd.f32 0.0, %v906
  %v908 = vpop.f32.mrf.mxu0
  %v909 = vadd.f32 0.0, %v908
  %910 = vmatmul.bf16.gmra.mxu0 %v787
  %v911 = vpop.f32.mrf.mxu0
  %v912 = vadd.f32 0.0, %v911
  %v913 = vpop.f32.mrf.mxu0
  %v914 = vadd.f32 0.0, %v913
  %915 = vmatmul.bf16.gmra.mxu0 %v790
  %v916 = vpop.f32.mrf.mxu0
  %v917 = vadd.f32 0.0, %v916
  %v918 = vpop.f32.mrf.mxu0
  %v919 = vadd.f32 0.0, %v918
  %920 = vmatmul.bf16.gmra.mxu0 %v793
  %v921 = vpop.f32.mrf.mxu0
  %v922 = vadd.f32 0.0, %v921
  %v923 = vpop.f32.mrf.mxu0
  %v924 = vadd.f32 0.0, %v923
  %925 = vmatmul.bf16.gmra.mxu0 %v796
  %v926 = vpop.f32.mrf.mxu0
  %v927 = vadd.f32 0.0, %v926
  %v928 = vpop.f32.mrf.mxu0
  %v929 = vadd.f32 0.0, %v928
  %930 = vmatmul.bf16.gmra.mxu0 %v799
  %v931 = vpop.f32.mrf.mxu0
  %v932 = vadd.f32 0.0, %v931
  %v933 = vpop.f32.mrf.mxu0
  %v934 = vadd.f32 0.0, %v933
  %935 = vmatmul.bf16.gmra.mxu0 %v802
  %v936 = vpop.f32.mrf.mxu0
  %v937 = vadd.f32 0.0, %v936
  %v938 = vpop.f32.mrf.mxu0
  %v939 = vadd.f32 0.0, %v938
  %940 = vmatmul.bf16.gmra.mxu0 %v805
  %v941 = vpop.f32.mrf.mxu0
  %v942 = vadd.f32 0.0, %v941
  %v943 = vpop.f32.mrf.mxu0
  %v944 = vadd.f32 0.0, %v943
  %945 = vmatmul.bf16.gmra.mxu0 %v808
  %v946 = vpop.f32.mrf.mxu0
  %v947 = vadd.f32 0.0, %v946
  %v948 = vpop.f32.mrf.mxu0
  %v949 = vadd.f32 0.0, %v948
  %950 = vmatmul.bf16.gmra.mxu0 %v811
  %v951 = vpop.f32.mrf.mxu0
  %v952 = vadd.f32 0.0, %v951
  %v953 = vpop.f32.mrf.mxu0
  %v954 = vadd.f32 0.0, %v953
  %955 = vmatmul.bf16.gmra.mxu0 %v814
  %v956 = vpop.f32.mrf.mxu0
  %v957 = vadd.f32 0.0, %v956
  %v958 = vpop.f32.mrf.mxu0
  %v959 = vadd.f32 0.0, %v958
  %960 = vmatmul.bf16.gmra.mxu0 %v817
  %v961 = vpop.f32.mrf.mxu0
  %v962 = vadd.f32 0.0, %v961
  %v963 = vpop.f32.mrf.mxu0
  %v964 = vadd.f32 0.0, %v963
  %965 = vmatmul.bf16.gmra.mxu0 %v820
  %v966 = vpop.f32.mrf.mxu0
  %v967 = vadd.f32 0.0, %v966
  %v968 = vpop.f32.mrf.mxu0
  %v969 = vadd.f32 0.0, %v968
  %970 = vmatmul.bf16.gmra.mxu0 %v823
  %v971 = vpop.f32.mrf.mxu0
  %v972 = vadd.f32 0.0, %v971
  %v973 = vpop.f32.mrf.mxu0
  %v974 = vadd.f32 0.0, %v973
  %975 = vmatmul.bf16.gmra.mxu0 %v826
  %v976 = vpop.f32.mrf.mxu0
  %v977 = vadd.f32 0.0, %v976
  %v978 = vpop.f32.mrf.mxu0
  %v979 = vadd.f32 0.0, %v978
  %980 = vmatmul.bf16.gmra.mxu0 %v829
  %v981 = vpop.f32.mrf.mxu0
  %v982 = vadd.f32 0.0, %v981
  %v983 = vpop.f32.mrf.mxu0
  %v984 = vadd.f32 0.0, %v983
  %985 = vmatmul.bf16.gmra.mxu0 %v832
  %v986 = vpop.f32.mrf.mxu0
  %v987 = vadd.f32 0.0, %v986
  %v988 = vpop.f32.mrf.mxu0
  %v989 = vadd.f32 0.0, %v988
  %990 = vmatmul.bf16.gmra.mxu0 %v835
  %v991 = vpop.f32.mrf.mxu0
  %v992 = vadd.f32 0.0, %v991
  %v993 = vpop.f32.mrf.mxu0
  %v994 = vadd.f32 0.0, %v993
  %995 = vmatmul.bf16.gmra.mxu0 %v838
  %v996 = vpop.f32.mrf.mxu0
  %v997 = vadd.f32 0.0, %v996
  %v998 = vpop.f32.mrf.mxu0
  %v999 = vadd.f32 0.0, %v998
  %1000 = vmatmul.bf16.gmra.mxu0 %v841
  %v1001 = vpop.f32.mrf.mxu0
  %v1002 = vadd.f32 0.0, %v1001
  %v1003 = vpop.f32.mrf.mxu0
  %v1004 = vadd.f32 0.0, %v1003
  %1005 = vmatmul.bf16.gmra.mxu0 %v844
  %v1006 = vpop.f32.mrf.mxu0
  %v1007 = vadd.f32 0.0, %v1006
  %v1008 = vpop.f32.mrf.mxu0
  %v1009 = vadd.f32 0.0, %v1008
  %1010 = vmatmul.bf16.gmra.mxu0 %v847
  %v1011 = vpop.f32.mrf.mxu0
  %v1012 = vadd.f32 0.0, %v1011
  %v1013 = vpop.f32.mrf.mxu0
  %v1014 = vadd.f32 0.0, %v1013
  %1015 = vmatmul.bf16.gmra.mxu0 %v850
  %v1016 = vpop.f32.mrf.mxu0
  %v1017 = vadd.f32 0.0, %v1016
  %v1018 = vpop.f32.mrf.mxu0
  %v1019 = vadd.f32 0.0, %v1018
  %1020 = vmatmul.bf16.gmra.mxu0 %v853
  %v1021 = vpop.f32.mrf.mxu0
  %v1022 = vadd.f32 0.0, %v1021
  %v1023 = vpop.f32.mrf.mxu0
  %v1024 = vadd.f32 0.0, %v1023
  %1025 = vmatmul.bf16.gmra.mxu0 %v856
  %v1026 = vpop.f32.mrf.mxu0
  %v1027 = vadd.f32 0.0, %v1026
  %v1028 = vpop.f32.mrf.mxu0
  %v1029 = vadd.f32 0.0, %v1028
  %1030 = vdwg.mxu0
  %v1032 = vsel %vm91, %v374, 0
  %v1035 = vsel %vm91, %v375, 0
  %v1038 = vsel %vm91, %v376, 0
  %v1041 = vsel %vm91, %v377, 0
  %v1044 = vsel %vm91, %v378, 0
  %v1047 = vsel %vm91, %v379, 0
  %v1050 = vsel %vm91, %v380, 0
  %v1053 = vsel %vm91, %v381, 0
  %v1056 = vsel %vm91, %v382, 0
  %v1059 = vsel %vm91, %v383, 0
  %v1062 = vsel %vm91, %v384, 0
  %v1065 = vsel %vm91, %v385, 0
  %v1068 = vsel %vm91, %v386, 0
  %v1071 = vsel %vm91, %v387, 0
  %v1074 = vsel %vm91, %v388, 0
  %v1077 = vsel %vm91, %v389, 0
  %v1080 = vsel %vm91, %v390, 0
  %v1083 = vsel %vm91, %v391, 0
  %v1086 = vsel %vm91, %v392, 0
  %v1089 = vsel %vm91, %v393, 0
  %v1092 = vsel %vm91, %v394, 0
  %v1095 = vsel %vm91, %v395, 0
  %v1098 = vsel %vm91, %v396, 0
  %v1101 = vsel %vm91, %v397, 0
  %v1104 = vsel %vm91, %v398, 0
  %v1107 = vsel %vm91, %v399, 0
  %v1110 = vsel %vm91, %v400, 0
  %v1113 = vsel %vm91, %v401, 0
  %v1116 = vsel %vm91, %v402, 0
  %v1119 = vsel %vm91, %v403, 0
  %v1122 = vsel %vm91, %v404, 0
  %v1125 = vsel %vm91, %v405, 0
  %v1128 = vsel %vm858, %v406, 0
  %1130 = vmatpush.bf16.msra.mxu0 0
  %1131 = vmatpush.bf16.msra.mxu0 0
  %1132 = vmatpush.bf16.msra.mxu0 0
  %1133 = vmatpush.bf16.msra.mxu0 0
  %1134 = vmatpush.bf16.msra.mxu0 0
  %1135 = vmatpush.bf16.msra.mxu0 0
  %1136 = vmatpush.bf16.msra.mxu0 0
  %1137 = vmatpush.bf16.msra.mxu0 %v1128
  %1138 = vmatmul.bf16.gmra.mxu0 %v1032
  %v1139 = vpop.f32.mrf.mxu0
  %v1140 = vadd.f32 %v872, %v1139
  %v1141 = vpop.f32.mrf.mxu0
  %v1142 = vadd.f32 %v874, %v1141
  %1143 = vmatmul.bf16.gmra.mxu0 %v1035
  %v1144 = vpop.f32.mrf.mxu0
  %v1145 = vadd.f32 %v877, %v1144
  %v1146 = vpop.f32.mrf.mxu0
  %v1147 = vadd.f32 %v879, %v1146
  %1148 = vmatmul.bf16.gmra.mxu0 %v1038
  %v1149 = vpop.f32.mrf.mxu0
  %v1150 = vadd.f32 %v882, %v1149
  %v1151 = vpop.f32.mrf.mxu0
  %v1152 = vadd.f32 %v884, %v1151
  %1153 = vmatmul.bf16.gmra.mxu0 %v1041
  %v1154 = vpop.f32.mrf.mxu0
  %v1155 = vadd.f32 %v887, %v1154
  %v1156 = vpop.f32.mrf.mxu0
  %v1157 = vadd.f32 %v889, %v1156
  %1158 = vmatmul.bf16.gmra.mxu0 %v1044
  %v1159 = vpop.f32.mrf.mxu0
  %v1160 = vadd.f32 %v892, %v1159
  %v1161 = vpop.f32.mrf.mxu0
  %v1162 = vadd.f32 %v894, %v1161
  %1163 = vmatmul.bf16.gmra.mxu0 %v1047
  %v1164 = vpop.f32.mrf.mxu0
  %v1165 = vadd.f32 %v897, %v1164
  %v1166 = vpop.f32.mrf.mxu0
  %v1167 = vadd.f32 %v899, %v1166
  %1168 = vmatmul.bf16.gmra.mxu0 %v1050
  %v1169 = vpop.f32.mrf.mxu0
  %v1170 = vadd.f32 %v902, %v1169
  %v1171 = vpop.f32.mrf.mxu0
  %v1172 = vadd.f32 %v904, %v1171
  %1173 = vmatmul.bf16.gmra.mxu0 %v1053
  %v1174 = vpop.f32.mrf.mxu0
  %v1175 = vadd.f32 %v907, %v1174
  %v1176 = vpop.f32.mrf.mxu0
  %v1177 = vadd.f32 %v909, %v1176
  %1178 = vmatmul.bf16.gmra.mxu0 %v1056
  %v1179 = vpop.f32.mrf.mxu0
  %v1180 = vadd.f32 %v912, %v1179
  %v1181 = vpop.f32.mrf.mxu0
  %v1182 = vadd.f32 %v914, %v1181
  %1183 = vmatmul.bf16.gmra.mxu0 %v1059
  %v1184 = vpop.f32.mrf.mxu0
  %v1185 = vadd.f32 %v917, %v1184
  %v1186 = vpop.f32.mrf.mxu0
  %v1187 = vadd.f32 %v919, %v1186
  %1188 = vmatmul.bf16.gmra.mxu0 %v1062
  %v1189 = vpop.f32.mrf.mxu0
  %v1190 = vadd.f32 %v922, %v1189
  %v1191 = vpop.f32.mrf.mxu0
  %v1192 = vadd.f32 %v924, %v1191
  %1193 = vmatmul.bf16.gmra.mxu0 %v1065
  %v1194 = vpop.f32.mrf.mxu0
  %v1195 = vadd.f32 %v927, %v1194
  %v1196 = vpop.f32.mrf.mxu0
  %v1197 = vadd.f32 %v929, %v1196
  %1198 = vmatmul.bf16.gmra.mxu0 %v1068
  %v1199 = vpop.f32.mrf.mxu0
  %v1200 = vadd.f32 %v932, %v1199
  %v1201 = vpop.f32.mrf.mxu0
  %v1202 = vadd.f32 %v934, %v1201
  %1203 = vmatmul.bf16.gmra.mxu0 %v1071
  %v1204 = vpop.f32.mrf.mxu0
  %v1205 = vadd.f32 %v937, %v1204
  %v1206 = vpop.f32.mrf.mxu0
  %v1207 = vadd.f32 %v939, %v1206
  %1208 = vmatmul.bf16.gmra.mxu0 %v1074
  %v1209 = vpop.f32.mrf.mxu0
  %v1210 = vadd.f32 %v942, %v1209
  %v1211 = vpop.f32.mrf.mxu0
  %v1212 = vadd.f32 %v944, %v1211
  %1213 = vmatmul.bf16.gmra.mxu0 %v1077
  %v1214 = vpop.f32.mrf.mxu0
  %v1215 = vadd.f32 %v947, %v1214
  %v1216 = vpop.f32.mrf.mxu0
  %v1217 = vadd.f32 %v949, %v1216
  %1218 = vmatmul.bf16.gmra.mxu0 %v1080
  %v1219 = vpop.f32.mrf.mxu0
  %v1220 = vadd.f32 %v952, %v1219
  %v1221 = vpop.f32.mrf.mxu0
  %v1222 = vadd.f32 %v954, %v1221
  %1223 = vmatmul.bf16.gmra.mxu0 %v1083
  %v1224 = vpop.f32.mrf.mxu0
  %v1225 = vadd.f32 %v957, %v1224
  %v1226 = vpop.f32.mrf.mxu0
  %v1227 = vadd.f32 %v959, %v1226
  %1228 = vmatmul.bf16.gmra.mxu0 %v1086
  %v1229 = vpop.f32.mrf.mxu0
  %v1230 = vadd.f32 %v962, %v1229
  %v1231 = vpop.f32.mrf.mxu0
  %v1232 = vadd.f32 %v964, %v1231
  %1233 = vmatmul.bf16.gmra.mxu0 %v1089
  %v1234 = vpop.f32.mrf.mxu0
  %v1235 = vadd.f32 %v967, %v1234
  %v1236 = vpop.f32.mrf.mxu0
  %v1237 = vadd.f32 %v969, %v1236
  %1238 = vmatmul.bf16.gmra.mxu0 %v1092
  %v1239 = vpop.f32.mrf.mxu0
  %v1240 = vadd.f32 %v972, %v1239
  %v1241 = vpop.f32.mrf.mxu0
  %v1242 = vadd.f32 %v974, %v1241
  %1243 = vmatmul.bf16.gmra.mxu0 %v1095
  %v1244 = vpop.f32.mrf.mxu0
  %v1245 = vadd.f32 %v977, %v1244
  %v1246 = vpop.f32.mrf.mxu0
  %v1247 = vadd.f32 %v979, %v1246
  %1248 = vmatmul.bf16.gmra.mxu0 %v1098
  %v1249 = vpop.f32.mrf.mxu0
  %v1250 = vadd.f32 %v982, %v1249
  %v1251 = vpop.f32.mrf.mxu0
  %v1252 = vadd.f32 %v984, %v1251
  %1253 = vmatmul.bf16.gmra.mxu0 %v1101
  %v1254 = vpop.f32.mrf.mxu0
  %v1255 = vadd.f32 %v987, %v1254
  %v1256 = vpop.f32.mrf.mxu0
  %v1257 = vadd.f32 %v989, %v1256
  %1258 = vmatmul.bf16.gmra.mxu0 %v1104
  %v1259 = vpop.f32.mrf.mxu0
  %v1260 = vadd.f32 %v992, %v1259
  %v1261 = vpop.f32.mrf.mxu0
  %v1262 = vadd.f32 %v994, %v1261
  %1263 = vmatmul.bf16.gmra.mxu0 %v1107
  %v1264 = vpop.f32.mrf.mxu0
  %v1265 = vadd.f32 %v997, %v1264
  %v1266 = vpop.f32.mrf.mxu0
  %v1267 = vadd.f32 %v999, %v1266
  %1268 = vmatmul.bf16.gmra.mxu0 %v1110
  %v1269 = vpop.f32.mrf.mxu0
  %v1270 = vadd.f32 %v1002, %v1269
  %v1271 = vpop.f32.mrf.mxu0
  %v1272 = vadd.f32 %v1004, %v1271
  %1273 = vmatmul.bf16.gmra.mxu0 %v1113
  %v1274 = vpop.f32.mrf.mxu0
  %v1275 = vadd.f32 %v1007, %v1274
  %v1276 = vpop.f32.mrf.mxu0
  %v1277 = vadd.f32 %v1009, %v1276
  %1278 = vmatmul.bf16.gmra.mxu0 %v1116
  %v1279 = vpop.f32.mrf.mxu0
  %v1280 = vadd.f32 %v1012, %v1279
  %v1281 = vpop.f32.mrf.mxu0
  %v1282 = vadd.f32 %v1014, %v1281
  %1283 = vmatmul.bf16.gmra.mxu0 %v1119
  %v1284 = vpop.f32.mrf.mxu0
  %v1285 = vadd.f32 %v1017, %v1284
  %v1286 = vpop.f32.mrf.mxu0
  %v1287 = vadd.f32 %v1019, %v1286
  %1288 = vmatmul.bf16.gmra.mxu0 %v1122
  %v1289 = vpop.f32.mrf.mxu0
  %v1290 = vadd.f32 %v1022, %v1289
  %v1291 = vpop.f32.mrf.mxu0
  %v1292 = vadd.f32 %v1024, %v1291
  %1293 = vmatmul.bf16.gmra.mxu0 %v1125
  %v1294 = vpop.f32.mrf.mxu0
  %v1295 = vadd.f32 %v1027, %v1294
  %v1296 = vpop.f32.mrf.mxu0
  %v1297 = vadd.f32 %v1029, %v1296
  %1298 = vdwg.mxu0
  %vm1299 = vcmask 1045504
  %v1300 = vrot.slane %v266, 2
  %v1301 = vrot.slane %v267, 2
  %v1302 = vsel %vm1299, %v1300, %v1301
  %v1303 = vrot.slane %v268, 2
  %v1304 = vsel %vm1299, %v1301, %v1303
  %v1305 = vrot.slane %v269, 2
  %v1306 = vrot.slane %v270, 2
  %v1307 = vsel %vm1299, %v1305, %v1306
  %v1308 = vrot.slane %v271, 2
  %v1309 = vsel %vm1299, %v1306, %v1308
  %v1310 = vrot.slane %v272, 2
  %v1311 = vrot.slane %v273, 2
  %v1312 = vsel %vm1299, %v1310, %v1311
  %v1313 = vrot.slane %v274, 2
  %v1314 = vsel %vm1299, %v1311, %v1313
  %v1315 = vrot.slane %v275, 2
  %v1316 = vrot.slane %v276, 2
  %v1317 = vsel %vm1299, %v1315, %v1316
  %v1318 = vrot.slane %v277, 2
  %v1319 = vsel %vm1299, %v1316, %v1318
  %v1320 = vrot.slane %v278, 2
  %v1321 = vrot.slane %v279, 2
  %v1322 = vsel %vm1299, %v1320, %v1321
  %v1323 = vrot.slane %v280, 2
  %v1324 = vsel %vm1299, %v1321, %v1323
  %v1325 = vrot.slane %v281, 2
  %v1326 = vrot.slane %v282, 2
  %v1327 = vsel %vm1299, %v1325, %v1326
  %v1328 = vrot.slane %v283, 2
  %v1329 = vsel %vm1299, %v1326, %v1328
  %v1330 = vrot.slane %v284, 2
  %v1331 = vrot.slane %v285, 2
  %v1332 = vsel %vm1299, %v1330, %v1331
  %v1333 = vrot.slane %v286, 2
  %v1334 = vsel %vm1299, %v1331, %v1333
  %v1335 = vrot.slane %v287, 2
  %v1336 = vrot.slane %v288, 2
  %v1337 = vsel %vm1299, %v1335, %v1336
  %v1338 = vrot.slane %v289, 2
  %v1339 = vsel %vm1299, %v1336, %v1338
  %v1340 = vrot.slane %v290, 2
  %v1341 = vrot.slane %v291, 2
  %v1342 = vsel %vm1299, %v1340, %v1341
  %v1343 = vrot.slane %v292, 2
  %v1344 = vsel %vm1299, %v1341, %v1343
  %v1345 = vrot.slane %v293, 2
  %v1346 = vrot.slane %v294, 2
  %v1347 = vsel %vm1299, %v1345, %v1346
  %v1348 = vrot.slane %v295, 2
  %v1349 = vsel %vm1299, %v1346, %v1348
  %v1350 = vrot.slane %v296, 2
  %v1351 = vrot.slane %v297, 2
  %v1352 = vsel %vm1299, %v1350, %v1351
  %v1353 = vrot.slane %v298, 2
  %v1354 = vsel %vm1299, %v1351, %v1353
  %v1355 = vrot.slane %v299, 2
  %v1356 = vrot.slane %v300, 2
  %v1357 = vsel %vm1299, %v1355, %v1356
  %v1358 = vrot.slane %v301, 2
  %v1359 = vsel %vm1299, %v1356, %v1358
  %v1360 = vrot.slane %v302, 2
  %v1361 = vrot.slane %v303, 2
  %v1362 = vsel %vm1299, %v1360, %v1361
  %v1363 = vrot.slane %v304, 2
  %v1364 = vsel %vm1299, %v1361, %v1363
  %v1365 = vrot.slane %v305, 2
  %v1366 = vrot.slane %v306, 2
  %v1367 = vsel %vm1299, %v1365, %v1366
  %v1368 = vrot.slane %v307, 2
  %v1369 = vsel %vm1299, %v1366, %v1368
  %v1370 = vrot.slane %v308, 2
  %v1371 = vrot.slane %v309, 2
  %v1372 = vsel %vm1299, %v1370, %v1371
  %v1373 = vrot.slane %v310, 2
  %v1374 = vsel %vm1299, %v1371, %v1373
  %v1375 = vrot.slane %v311, 2
  %v1376 = vrot.slane %v312, 2
  %v1377 = vsel %vm1299, %v1375, %v1376
  %v1378 = vrot.slane %v313, 2
  %v1379 = vsel %vm1299, %v1376, %v1378
  %v1380 = vrot.slane %v320, 2
  %v1381 = vrot.slane %v321, 2
  %v1382 = vsel %vm1299, %v1380, %v1381
  %v1383 = vrot.slane %v322, 2
  %v1384 = vsel %vm1299, %v1381, %v1383
  %v1385 = vrot.slane %v323, 2
  %v1386 = vrot.slane %v324, 2
  %v1387 = vsel %vm1299, %v1385, %v1386
  %v1388 = vrot.slane %v325, 2
  %v1389 = vsel %vm1299, %v1386, %v1388
  %v1390 = vrot.slane %v326, 2
  %v1391 = vrot.slane %v327, 2
  %v1392 = vsel %vm1299, %v1390, %v1391
  %v1393 = vrot.slane %v328, 2
  %v1394 = vsel %vm1299, %v1391, %v1393
  %v1395 = vrot.slane %v329, 2
  %v1396 = vrot.slane %v330, 2
  %v1397 = vsel %vm1299, %v1395, %v1396
  %v1398 = vrot.slane %v331, 2
  %v1399 = vsel %vm1299, %v1396, %v1398
  %v1400 = vrot.slane %v332, 2
  %v1401 = vrot.slane %v333, 2
  %v1402 = vsel %vm1299, %v1400, %v1401
  %v1403 = vrot.slane %v334, 2
  %v1404 = vsel %vm1299, %v1401, %v1403
  %v1405 = vrot.slane %v335, 2
  %v1406 = vrot.slane %v336, 2
  %v1407 = vsel %vm1299, %v1405, %v1406
  %v1408 = vrot.slane %v337, 2
  %v1409 = vsel %vm1299, %v1406, %v1408
  %v1410 = vrot.slane %v338, 2
  %v1411 = vrot.slane %v339, 2
  %v1412 = vsel %vm1299, %v1410, %v1411
  %v1413 = vrot.slane %v340, 2
  %v1414 = vsel %vm1299, %v1411, %v1413
  %v1415 = vrot.slane %v341, 2
  %v1416 = vrot.slane %v342, 2
  %v1417 = vsel %vm1299, %v1415, %v1416
  %v1418 = vrot.slane %v343, 2
  %v1419 = vsel %vm1299, %v1416, %v1418
  %v1420 = vrot.slane %v344, 2
  %v1421 = vrot.slane %v345, 2
  %v1422 = vsel %vm1299, %v1420, %v1421
  %v1423 = vrot.slane %v346, 2
  %v1424 = vsel %vm1299, %v1421, %v1423
  %v1425 = vrot.slane %v347, 2
  %v1426 = vrot.slane %v348, 2
  %v1427 = vsel %vm1299, %v1425, %v1426
  %v1428 = vrot.slane %v349, 2
  %v1429 = vsel %vm1299, %v1426, %v1428
  %v1430 = vrot.slane %v350, 2
  %v1431 = vrot.slane %v351, 2
  %v1432 = vsel %vm1299, %v1430, %v1431
  %v1433 = vrot.slane %v352, 2
  %v1434 = vsel %vm1299, %v1431, %v1433
  %v1435 = vrot.slane %v353, 2
  %v1436 = vrot.slane %v354, 2
  %v1437 = vsel %vm1299, %v1435, %v1436
  %v1438 = vrot.slane %v355, 2
  %v1439 = vsel %vm1299, %v1436, %v1438
  %v1440 = vrot.slane %v356, 2
  %v1441 = vrot.slane %v357, 2
  %v1442 = vsel %vm1299, %v1440, %v1441
  %v1443 = vrot.slane %v358, 2
  %v1444 = vsel %vm1299, %v1441, %v1443
  %v1445 = vrot.slane %v359, 2
  %v1446 = vrot.slane %v360, 2
  %v1447 = vsel %vm1299, %v1445, %v1446
  %v1448 = vrot.slane %v361, 2
  %v1449 = vsel %vm1299, %v1446, %v1448
  %v1450 = vrot.slane %v362, 2
  %v1451 = vrot.slane %v363, 2
  %v1452 = vsel %vm1299, %v1450, %v1451
  %v1453 = vrot.slane %v364, 2
  %v1454 = vsel %vm1299, %v1451, %v1453
  %v1455 = vrot.slane %v365, 2
  %v1456 = vrot.slane %v366, 2
  %v1457 = vsel %vm1299, %v1455, %v1456
  %v1458 = vrot.slane %v367, 2
  %v1459 = vsel %vm1299, %v1456, %v1458
  %v1524 = vpack.c.bf16 %v1304, %v1302
  %v1525 = vpack.c.bf16 %v1309, %v1307
  %v1526 = vpack.c.bf16 %v1314, %v1312
  %v1527 = vpack.c.bf16 %v1319, %v1317
  %v1528 = vpack.c.bf16 %v1324, %v1322
  %v1529 = vpack.c.bf16 %v1329, %v1327
  %v1530 = vpack.c.bf16 %v1334, %v1332
  %v1531 = vpack.c.bf16 %v1339, %v1337
  %v1532 = vpack.c.bf16 %v1344, %v1342
  %v1533 = vpack.c.bf16 %v1349, %v1347
  %v1534 = vpack.c.bf16 %v1354, %v1352
  %v1535 = vpack.c.bf16 %v1359, %v1357
  %v1536 = vpack.c.bf16 %v1364, %v1362
  %v1537 = vpack.c.bf16 %v1369, %v1367
  %v1538 = vpack.c.bf16 %v1374, %v1372
  %v1539 = vpack.c.bf16 %v1379, %v1377
  %v1540 = vpack.c.bf16 %v1384, %v1382
  %v1541 = vpack.c.bf16 %v1389, %v1387
  %v1542 = vpack.c.bf16 %v1394, %v1392
  %v1543 = vpack.c.bf16 %v1399, %v1397
  %v1544 = vpack.c.bf16 %v1404, %v1402
  %v1545 = vpack.c.bf16 %v1409, %v1407
  %v1546 = vpack.c.bf16 %v1414, %v1412
  %v1547 = vpack.c.bf16 %v1419, %v1417
  %v1548 = vpack.c.bf16 %v1424, %v1422
  %v1549 = vpack.c.bf16 %v1429, %v1427
  %v1550 = vpack.c.bf16 %v1434, %v1432
  %v1551 = vpack.c.bf16 %v1439, %v1437
  %v1552 = vpack.c.bf16 %v1444, %v1442
  %v1553 = vpack.c.bf16 %v1449, %v1447
  %v1554 = vpack.c.bf16 %v1454, %v1452
  %v1555 = vpack.c.bf16 %v1459, %v1457
  %s1556 = scalar_lea.vmem %s1, 8
  %v1557 = vld [vmem:[%s1556] sm:$0xf]
  %v1559 = vsel %vm91, %v1524, 0
  %v1562 = vsel %vm91, %v1525, 0
  %v1565 = vsel %vm91, %v1526, 0
  %v1568 = vsel %vm91, %v1527, 0
  %v1571 = vsel %vm91, %v1528, 0
  %v1574 = vsel %vm91, %v1529, 0
  %v1577 = vsel %vm91, %v1530, 0
  %v1580 = vsel %vm91, %v1531, 0
  %v1583 = vsel %vm91, %v1532, 0
  %v1586 = vsel %vm91, %v1533, 0
  %v1589 = vsel %vm91, %v1534, 0
  %v1592 = vsel %vm91, %v1535, 0
  %v1595 = vsel %vm91, %v1536, 0
  %v1598 = vsel %vm91, %v1537, 0
  %v1601 = vsel %vm91, %v1538, 0
  %v1604 = vsel %vm91, %v1539, 0
  %v1607 = vsel %vm91, %v1540, 0
  %v1610 = vsel %vm91, %v1541, 0
  %v1613 = vsel %vm91, %v1542, 0
  %v1616 = vsel %vm91, %v1543, 0
  %v1619 = vsel %vm91, %v1544, 0
  %v1622 = vsel %vm91, %v1545, 0
  %v1625 = vsel %vm91, %v1546, 0
  %v1628 = vsel %vm91, %v1547, 0
  %v1631 = vsel %vm91, %v1548, 0
  %v1634 = vsel %vm91, %v1549, 0
  %v1637 = vsel %vm91, %v1550, 0
  %v1640 = vsel %vm91, %v1551, 0
  %v1643 = vsel %vm91, %v1552, 0
  %v1646 = vsel %vm91, %v1553, 0
  %v1649 = vsel %vm91, %v1554, 0
  %v1652 = vsel %vm91, %v1555, 0
  %v1655 = vsel %vm858, %v1557, 0
  %1657 = vmatpush.bf16.msra.mxu0 0
  %1658 = vmatpush.bf16.msra.mxu0 0
  %1659 = vmatpush.bf16.msra.mxu0 0
  %1660 = vmatpush.bf16.msra.mxu0 0
  %1661 = vmatpush.bf16.msra.mxu0 0
  %1662 = vmatpush.bf16.msra.mxu0 0
  %1663 = vmatpush.bf16.msra.mxu0 0
  %1664 = vmatpush.bf16.msra.mxu0 %v1655
  %1665 = vmatmul.bf16.gmra.mxu0 %v1559
  %v1666 = vpop.f32.mrf.mxu0
  %v1667 = vadd.f32 0.0, %v1666
  %v1668 = vpop.f32.mrf.mxu0
  %v1669 = vadd.f32 0.0, %v1668
  %1670 = vmatmul.bf16.gmra.mxu0 %v1562
  %v1671 = vpop.f32.mrf.mxu0
  %v1672 = vadd.f32 0.0, %v1671
  %v1673 = vpop.f32.mrf.mxu0
  %v1674 = vadd.f32 0.0, %v1673
  %1675 = vmatmul.bf16.gmra.mxu0 %v1565
  %v1676 = vpop.f32.mrf.mxu0
  %v1677 = vadd.f32 0.0, %v1676
  %v1678 = vpop.f32.mrf.mxu0
  %v1679 = vadd.f32 0.0, %v1678
  %1680 = vmatmul.bf16.gmra.mxu0 %v1568
  %v1681 = vpop.f32.mrf.mxu0
  %v1682 = vadd.f32 0.0, %v1681
  %v1683 = vpop.f32.mrf.mxu0
  %v1684 = vadd.f32 0.0, %v1683
  %1685 = vmatmul.bf16.gmra.mxu0 %v1571
  %v1686 = vpop.f32.mrf.mxu0
  %v1687 = vadd.f32 0.0, %v1686
  %v1688 = vpop.f32.mrf.mxu0
  %v1689 = vadd.f32 0.0, %v1688
  %1690 = vmatmul.bf16.gmra.mxu0 %v1574
  %v1691 = vpop.f32.mrf.mxu0
  %v1692 = vadd.f32 0.0, %v1691
  %v1693 = vpop.f32.mrf.mxu0
  %v1694 = vadd.f32 0.0, %v1693
  %1695 = vmatmul.bf16.gmra.mxu0 %v1577
  %v1696 = vpop.f32.mrf.mxu0
  %v1697 = vadd.f32 0.0, %v1696
  %v1698 = vpop.f32.mrf.mxu0
  %v1699 = vadd.f32 0.0, %v1698
  %1700 = vmatmul.bf16.gmra.mxu0 %v1580
  %v1701 = vpop.f32.mrf.mxu0
  %v1702 = vadd.f32 0.0, %v1701
  %v1703 = vpop.f32.mrf.mxu0
  %v1704 = vadd.f32 0.0, %v1703
  %1705 = vmatmul.bf16.gmra.mxu0 %v1583
  %v1706 = vpop.f32.mrf.mxu0
  %v1707 = vadd.f32 0.0, %v1706
  %v1708 = vpop.f32.mrf.mxu0
  %v1709 = vadd.f32 0.0, %v1708
  %1710 = vmatmul.bf16.gmra.mxu0 %v1586
  %v1711 = vpop.f32.mrf.mxu0
  %v1712 = vadd.f32 0.0, %v1711
  %v1713 = vpop.f32.mrf.mxu0
  %v1714 = vadd.f32 0.0, %v1713
  %1715 = vmatmul.bf16.gmra.mxu0 %v1589
  %v1716 = vpop.f32.mrf.mxu0
  %v1717 = vadd.f32 0.0, %v1716
  %v1718 = vpop.f32.mrf.mxu0
  %v1719 = vadd.f32 0.0, %v1718
  %1720 = vmatmul.bf16.gmra.mxu0 %v1592
  %v1721 = vpop.f32.mrf.mxu0
  %v1722 = vadd.f32 0.0, %v1721
  %v1723 = vpop.f32.mrf.mxu0
  %v1724 = vadd.f32 0.0, %v1723
  %1725 = vmatmul.bf16.gmra.mxu0 %v1595
  %v1726 = vpop.f32.mrf.mxu0
  %v1727 = vadd.f32 0.0, %v1726
  %v1728 = vpop.f32.mrf.mxu0
  %v1729 = vadd.f32 0.0, %v1728
  %1730 = vmatmul.bf16.gmra.mxu0 %v1598
  %v1731 = vpop.f32.mrf.mxu0
  %v1732 = vadd.f32 0.0, %v1731
  %v1733 = vpop.f32.mrf.mxu0
  %v1734 = vadd.f32 0.0, %v1733
  %1735 = vmatmul.bf16.gmra.mxu0 %v1601
  %v1736 = vpop.f32.mrf.mxu0
  %v1737 = vadd.f32 0.0, %v1736
  %v1738 = vpop.f32.mrf.mxu0
  %v1739 = vadd.f32 0.0, %v1738
  %1740 = vmatmul.bf16.gmra.mxu0 %v1604
  %v1741 = vpop.f32.mrf.mxu0
  %v1742 = vadd.f32 0.0, %v1741
  %v1743 = vpop.f32.mrf.mxu0
  %v1744 = vadd.f32 0.0, %v1743
  %1745 = vmatmul.bf16.gmra.mxu0 %v1607
  %v1746 = vpop.f32.mrf.mxu0
  %v1747 = vadd.f32 0.0, %v1746
  %v1748 = vpop.f32.mrf.mxu0
  %v1749 = vadd.f32 0.0, %v1748
  %1750 = vmatmul.bf16.gmra.mxu0 %v1610
  %v1751 = vpop.f32.mrf.mxu0
  %v1752 = vadd.f32 0.0, %v1751
  %v1753 = vpop.f32.mrf.mxu0
  %v1754 = vadd.f32 0.0, %v1753
  %1755 = vmatmul.bf16.gmra.mxu0 %v1613
  %v1756 = vpop.f32.mrf.mxu0
  %v1757 = vadd.f32 0.0, %v1756
  %v1758 = vpop.f32.mrf.mxu0
  %v1759 = vadd.f32 0.0, %v1758
  %1760 = vmatmul.bf16.gmra.mxu0 %v1616
  %v1761 = vpop.f32.mrf.mxu0
  %v1762 = vadd.f32 0.0, %v1761
  %v1763 = vpop.f32.mrf.mxu0
  %v1764 = vadd.f32 0.0, %v1763
  %1765 = vmatmul.bf16.gmra.mxu0 %v1619
  %v1766 = vpop.f32.mrf.mxu0
  %v1767 = vadd.f32 0.0, %v1766
  %v1768 = vpop.f32.mrf.mxu0
  %v1769 = vadd.f32 0.0, %v1768
  %1770 = vmatmul.bf16.gmra.mxu0 %v1622
  %v1771 = vpop.f32.mrf.mxu0
  %v1772 = vadd.f32 0.0, %v1771
  %v1773 = vpop.f32.mrf.mxu0
  %v1774 = vadd.f32 0.0, %v1773
  %1775 = vmatmul.bf16.gmra.mxu0 %v1625
  %v1776 = vpop.f32.mrf.mxu0
  %v1777 = vadd.f32 0.0, %v1776
  %v1778 = vpop.f32.mrf.mxu0
  %v1779 = vadd.f32 0.0, %v1778
  %1780 = vmatmul.bf16.gmra.mxu0 %v1628
  %v1781 = vpop.f32.mrf.mxu0
  %v1782 = vadd.f32 0.0, %v1781
  %v1783 = vpop.f32.mrf.mxu0
  %v1784 = vadd.f32 0.0, %v1783
  %1785 = vmatmul.bf16.gmra.mxu0 %v1631
  %v1786 = vpop.f32.mrf.mxu0
  %v1787 = vadd.f32 0.0, %v1786
  %v1788 = vpop.f32.mrf.mxu0
  %v1789 = vadd.f32 0.0, %v1788
  %1790 = vmatmul.bf16.gmra.mxu0 %v1634
  %v1791 = vpop.f32.mrf.mxu0
  %v1792 = vadd.f32 0.0, %v1791
  %v1793 = vpop.f32.mrf.mxu0
  %v1794 = vadd.f32 0.0, %v1793
  %1795 = vmatmul.bf16.gmra.mxu0 %v1637
  %v1796 = vpop.f32.mrf.mxu0
  %v1797 = vadd.f32 0.0, %v1796
  %v1798 = vpop.f32.mrf.mxu0
  %v1799 = vadd.f32 0.0, %v1798
  %1800 = vmatmul.bf16.gmra.mxu0 %v1640
  %v1801 = vpop.f32.mrf.mxu0
  %v1802 = vadd.f32 0.0, %v1801
  %v1803 = vpop.f32.mrf.mxu0
  %v1804 = vadd.f32 0.0, %v1803
  %1805 = vmatmul.bf16.gmra.mxu0 %v1643
  %v1806 = vpop.f32.mrf.mxu0
  %v1807 = vadd.f32 0.0, %v1806
  %v1808 = vpop.f32.mrf.mxu0
  %v1809 = vadd.f32 0.0, %v1808
  %1810 = vmatmul.bf16.gmra.mxu0 %v1646
  %v1811 = vpop.f32.mrf.mxu0
  %v1812 = vadd.f32 0.0, %v1811
  %v1813 = vpop.f32.mrf.mxu0
  %v1814 = vadd.f32 0.0, %v1813
  %1815 = vmatmul.bf16.gmra.mxu0 %v1649
  %v1816 = vpop.f32.mrf.mxu0
  %v1817 = vadd.f32 0.0, %v1816
  %v1818 = vpop.f32.mrf.mxu0
  %v1819 = vadd.f32 0.0, %v1818
  %1820 = vmatmul.bf16.gmra.mxu0 %v1652
  %v1821 = vpop.f32.mrf.mxu0
  %v1822 = vadd.f32 0.0, %v1821
  %v1823 = vpop.f32.mrf.mxu0
  %v1824 = vadd.f32 0.0, %v1823
  %1825 = vdwg.mxu0
  %v1826 = vadd.f32 %v1140, %v1667
  %v1827 = vadd.f32 %v1142, %v1669
  %v1828 = vadd.f32 %v1145, %v1672
  %v1829 = vadd.f32 %v1147, %v1674
  %v1830 = vadd.f32 %v1150, %v1677
  %v1831 = vadd.f32 %v1152, %v1679
  %v1832 = vadd.f32 %v1155, %v1682
  %v1833 = vadd.f32 %v1157, %v1684
  %v1834 = vadd.f32 %v1160, %v1687
  %v1835 = vadd.f32 %v1162, %v1689
  %v1836 = vadd.f32 %v1165, %v1692
  %v1837 = vadd.f32 %v1167, %v1694
  %v1838 = vadd.f32 %v1170, %v1697
  %v1839 = vadd.f32 %v1172, %v1699
  %v1840 = vadd.f32 %v1175, %v1702
  %v1841 = vadd.f32 %v1177, %v1704
  %v1842 = vadd.f32 %v1180, %v1707
  %v1843 = vadd.f32 %v1182, %v1709
  %v1844 = vadd.f32 %v1185, %v1712
  %v1845 = vadd.f32 %v1187, %v1714
  %v1846 = vadd.f32 %v1190, %v1717
  %v1847 = vadd.f32 %v1192, %v1719
  %v1848 = vadd.f32 %v1195, %v1722
  %v1849 = vadd.f32 %v1197, %v1724
  %v1850 = vadd.f32 %v1200, %v1727
  %v1851 = vadd.f32 %v1202, %v1729
  %v1852 = vadd.f32 %v1205, %v1732
  %v1853 = vadd.f32 %v1207, %v1734
  %v1854 = vadd.f32 %v1210, %v1737
  %v1855 = vadd.f32 %v1212, %v1739
  %v1856 = vadd.f32 %v1215, %v1742
  %v1857 = vadd.f32 %v1217, %v1744
  %v1858 = vadd.f32 %v1220, %v1747
  %v1859 = vadd.f32 %v1222, %v1749
  %v1860 = vadd.f32 %v1225, %v1752
  %v1861 = vadd.f32 %v1227, %v1754
  %v1862 = vadd.f32 %v1230, %v1757
  %v1863 = vadd.f32 %v1232, %v1759
  %v1864 = vadd.f32 %v1235, %v1762
  %v1865 = vadd.f32 %v1237, %v1764
  %v1866 = vadd.f32 %v1240, %v1767
  %v1867 = vadd.f32 %v1242, %v1769
  %v1868 = vadd.f32 %v1245, %v1772
  %v1869 = vadd.f32 %v1247, %v1774
  %v1870 = vadd.f32 %v1250, %v1777
  %v1871 = vadd.f32 %v1252, %v1779
  %v1872 = vadd.f32 %v1255, %v1782
  %v1873 = vadd.f32 %v1257, %v1784
  %v1874 = vadd.f32 %v1260, %v1787
  %v1875 = vadd.f32 %v1262, %v1789
  %v1876 = vadd.f32 %v1265, %v1792
  %v1877 = vadd.f32 %v1267, %v1794
  %v1878 = vadd.f32 %v1270, %v1797
  %v1879 = vadd.f32 %v1272, %v1799
  %v1880 = vadd.f32 %v1275, %v1802
  %v1881 = vadd.f32 %v1277, %v1804
  %v1882 = vadd.f32 %v1280, %v1807
  %v1883 = vadd.f32 %v1282, %v1809
  %v1884 = vadd.f32 %v1285, %v1812
  %v1885 = vadd.f32 %v1287, %v1814
  %v1886 = vadd.f32 %v1290, %v1817
  %v1887 = vadd.f32 %v1292, %v1819
  %v1888 = vadd.f32 %v1295, %v1822
  %v1889 = vadd.f32 %v1297, %v1824
  %v1890 = vpack.c.bf16 %v315, %v314
  %v1891 = vpack.c.bf16 %v369, %v368
  %s1892 = scalar_lea.vmem %s1, 12
  %v1893 = vld [vmem:[%s1892] sm:$0xf]
  %v1895 = vsel %vm91, %v1890, 0
  %v1898 = vsel %vm91, %v1891, 0
  %v1901 = vsel %vm858, %v1893, 0
  %1903 = vmatpush.bf16.msra.mxu0 0
  %1904 = vmatpush.bf16.msra.mxu0 0
  %1905 = vmatpush.bf16.msra.mxu0 0
  %1906 = vmatpush.bf16.msra.mxu0 0
  %1907 = vmatpush.bf16.msra.mxu0 0
  %1908 = vmatpush.bf16.msra.mxu0 0
  %1909 = vmatpush.bf16.msra.mxu0 0
  %1910 = vmatpush.bf16.msra.mxu0 %v1901
  %1911 = vmatmul.bf16.gmra.mxu0 %v1035
  %v1912 = vpop.f32.mrf.mxu0
  %v1913 = vadd.f32 0.0, %v1912
  %v1914 = vpop.f32.mrf.mxu0
  %v1915 = vadd.f32 0.0, %v1914
  %1916 = vmatmul.bf16.gmra.mxu0 %v1038
  %v1917 = vpop.f32.mrf.mxu0
  %v1918 = vadd.f32 0.0, %v1917
  %v1919 = vpop.f32.mrf.mxu0
  %v1920 = vadd.f32 0.0, %v1919
  %1921 = vmatmul.bf16.gmra.mxu0 %v1041
  %v1922 = vpop.f32.mrf.mxu0
  %v1923 = vadd.f32 0.0, %v1922
  %v1924 = vpop.f32.mrf.mxu0
  %v1925 = vadd.f32 0.0, %v1924
  %1926 = vmatmul.bf16.gmra.mxu0 %v1044
  %v1927 = vpop.f32.mrf.mxu0
  %v1928 = vadd.f32 0.0, %v1927
  %v1929 = vpop.f32.mrf.mxu0
  %v1930 = vadd.f32 0.0, %v1929
  %1931 = vmatmul.bf16.gmra.mxu0 %v1047
  %v1932 = vpop.f32.mrf.mxu0
  %v1933 = vadd.f32 0.0, %v1932
  %v1934 = vpop.f32.mrf.mxu0
  %v1935 = vadd.f32 0.0, %v1934
  %1936 = vmatmul.bf16.gmra.mxu0 %v1050
  %v1937 = vpop.f32.mrf.mxu0
  %v1938 = vadd.f32 0.0, %v1937
  %v1939 = vpop.f32.mrf.mxu0
  %v1940 = vadd.f32 0.0, %v1939
  %1941 = vmatmul.bf16.gmra.mxu0 %v1053
  %v1942 = vpop.f32.mrf.mxu0
  %v1943 = vadd.f32 0.0, %v1942
  %v1944 = vpop.f32.mrf.mxu0
  %v1945 = vadd.f32 0.0, %v1944
  %1946 = vmatmul.bf16.gmra.mxu0 %v1056
  %v1947 = vpop.f32.mrf.mxu0
  %v1948 = vadd.f32 0.0, %v1947
  %v1949 = vpop.f32.mrf.mxu0
  %v1950 = vadd.f32 0.0, %v1949
  %1951 = vmatmul.bf16.gmra.mxu0 %v1059
  %v1952 = vpop.f32.mrf.mxu0
  %v1953 = vadd.f32 0.0, %v1952
  %v1954 = vpop.f32.mrf.mxu0
  %v1955 = vadd.f32 0.0, %v1954
  %1956 = vmatmul.bf16.gmra.mxu0 %v1062
  %v1957 = vpop.f32.mrf.mxu0
  %v1958 = vadd.f32 0.0, %v1957
  %v1959 = vpop.f32.mrf.mxu0
  %v1960 = vadd.f32 0.0, %v1959
  %1961 = vmatmul.bf16.gmra.mxu0 %v1065
  %v1962 = vpop.f32.mrf.mxu0
  %v1963 = vadd.f32 0.0, %v1962
  %v1964 = vpop.f32.mrf.mxu0
  %v1965 = vadd.f32 0.0, %v1964
  %1966 = vmatmul.bf16.gmra.mxu0 %v1068
  %v1967 = vpop.f32.mrf.mxu0
  %v1968 = vadd.f32 0.0, %v1967
  %v1969 = vpop.f32.mrf.mxu0
  %v1970 = vadd.f32 0.0, %v1969
  %1971 = vmatmul.bf16.gmra.mxu0 %v1071
  %v1972 = vpop.f32.mrf.mxu0
  %v1973 = vadd.f32 0.0, %v1972
  %v1974 = vpop.f32.mrf.mxu0
  %v1975 = vadd.f32 0.0, %v1974
  %1976 = vmatmul.bf16.gmra.mxu0 %v1074
  %v1977 = vpop.f32.mrf.mxu0
  %v1978 = vadd.f32 0.0, %v1977
  %v1979 = vpop.f32.mrf.mxu0
  %v1980 = vadd.f32 0.0, %v1979
  %1981 = vmatmul.bf16.gmra.mxu0 %v1077
  %v1982 = vpop.f32.mrf.mxu0
  %v1983 = vadd.f32 0.0, %v1982
  %v1984 = vpop.f32.mrf.mxu0
  %v1985 = vadd.f32 0.0, %v1984
  %1986 = vmatmul.bf16.gmra.mxu0 %v1895
  %v1987 = vpop.f32.mrf.mxu0
  %v1988 = vadd.f32 0.0, %v1987
  %v1989 = vpop.f32.mrf.mxu0
  %v1990 = vadd.f32 0.0, %v1989
  %1991 = vmatmul.bf16.gmra.mxu0 %v1083
  %v1992 = vpop.f32.mrf.mxu0
  %v1993 = vadd.f32 0.0, %v1992
  %v1994 = vpop.f32.mrf.mxu0
  %v1995 = vadd.f32 0.0, %v1994
  %1996 = vmatmul.bf16.gmra.mxu0 %v1086
  %v1997 = vpop.f32.mrf.mxu0
  %v1998 = vadd.f32 0.0, %v1997
  %v1999 = vpop.f32.mrf.mxu0
  %v2000 = vadd.f32 0.0, %v1999
  %2001 = vmatmul.bf16.gmra.mxu0 %v1089
  %v2002 = vpop.f32.mrf.mxu0
  %v2003 = vadd.f32 0.0, %v2002
  %v2004 = vpop.f32.mrf.mxu0
  %v2005 = vadd.f32 0.0, %v2004
  %2006 = vmatmul.bf16.gmra.mxu0 %v1092
  %v2007 = vpop.f32.mrf.mxu0
  %v2008 = vadd.f32 0.0, %v2007
  %v2009 = vpop.f32.mrf.mxu0
  %v2010 = vadd.f32 0.0, %v2009
  %2011 = vmatmul.bf16.gmra.mxu0 %v1095
  %v2012 = vpop.f32.mrf.mxu0
  %v2013 = vadd.f32 0.0, %v2012
  %v2014 = vpop.f32.mrf.mxu0
  %v2015 = vadd.f32 0.0, %v2014
  %2016 = vmatmul.bf16.gmra.mxu0 %v1098
  %v2017 = vpop.f32.mrf.mxu0
  %v2018 = vadd.f32 0.0, %v2017
  %v2019 = vpop.f32.mrf.mxu0
  %v2020 = vadd.f32 0.0, %v2019
  %2021 = vmatmul.bf16.gmra.mxu0 %v1101
  %v2022 = vpop.f32.mrf.mxu0
  %v2023 = vadd.f32 0.0, %v2022
  %v2024 = vpop.f32.mrf.mxu0
  %v2025 = vadd.f32 0.0, %v2024
  %2026 = vmatmul.bf16.gmra.mxu0 %v1104
  %v2027 = vpop.f32.mrf.mxu0
  %v2028 = vadd.f32 0.0, %v2027
  %v2029 = vpop.f32.mrf.mxu0
  %v2030 = vadd.f32 0.0, %v2029
  %2031 = vmatmul.bf16.gmra.mxu0 %v1107
  %v2032 = vpop.f32.mrf.mxu0
  %v2033 = vadd.f32 0.0, %v2032
  %v2034 = vpop.f32.mrf.mxu0
  %v2035 = vadd.f32 0.0, %v2034
  %2036 = vmatmul.bf16.gmra.mxu0 %v1110
  %v2037 = vpop.f32.mrf.mxu0
  %v2038 = vadd.f32 0.0, %v2037
  %v2039 = vpop.f32.mrf.mxu0
  %v2040 = vadd.f32 0.0, %v2039
  %2041 = vmatmul.bf16.gmra.mxu0 %v1113
  %v2042 = vpop.f32.mrf.mxu0
  %v2043 = vadd.f32 0.0, %v2042
  %v2044 = vpop.f32.mrf.mxu0
  %v2045 = vadd.f32 0.0, %v2044
  %2046 = vmatmul.bf16.gmra.mxu0 %v1116
  %v2047 = vpop.f32.mrf.mxu0
  %v2048 = vadd.f32 0.0, %v2047
  %v2049 = vpop.f32.mrf.mxu0
  %v2050 = vadd.f32 0.0, %v2049
  %2051 = vmatmul.bf16.gmra.mxu0 %v1119
  %v2052 = vpop.f32.mrf.mxu0
  %v2053 = vadd.f32 0.0, %v2052
  %v2054 = vpop.f32.mrf.mxu0
  %v2055 = vadd.f32 0.0, %v2054
  %2056 = vmatmul.bf16.gmra.mxu0 %v1122
  %v2057 = vpop.f32.mrf.mxu0
  %v2058 = vadd.f32 0.0, %v2057
  %v2059 = vpop.f32.mrf.mxu0
  %v2060 = vadd.f32 0.0, %v2059
  %2061 = vmatmul.bf16.gmra.mxu0 %v1125
  %v2062 = vpop.f32.mrf.mxu0
  %v2063 = vadd.f32 0.0, %v2062
  %v2064 = vpop.f32.mrf.mxu0
  %v2065 = vadd.f32 0.0, %v2064
  %2066 = vmatmul.bf16.gmra.mxu0 %v1898
  %v2067 = vpop.f32.mrf.mxu0
  %v2068 = vadd.f32 0.0, %v2067
  %v2069 = vpop.f32.mrf.mxu0
  %v2070 = vadd.f32 0.0, %v2069
  %2071 = vdwg.mxu0
  %v2072 = vadd.f32 %v1826, %v1913
  %v2073 = vadd.f32 %v1827, %v1915
  %v2074 = vadd.f32 %v1828, %v1918
  %v2075 = vadd.f32 %v1829, %v1920
  %v2076 = vadd.f32 %v1830, %v1923
  %v2077 = vadd.f32 %v1831, %v1925
  %v2078 = vadd.f32 %v1832, %v1928
  %v2079 = vadd.f32 %v1833, %v1930
  %v2080 = vadd.f32 %v1834, %v1933
  %v2081 = vadd.f32 %v1835, %v1935
  %v2082 = vadd.f32 %v1836, %v1938
  %v2083 = vadd.f32 %v1837, %v1940
  %v2084 = vadd.f32 %v1838, %v1943
  %v2085 = vadd.f32 %v1839, %v1945
  %v2086 = vadd.f32 %v1840, %v1948
  %v2087 = vadd.f32 %v1841, %v1950
  %v2088 = vadd.f32 %v1842, %v1953
  %v2089 = vadd.f32 %v1843, %v1955
  %v2090 = vadd.f32 %v1844, %v1958
  %v2091 = vadd.f32 %v1845, %v1960
  %v2092 = vadd.f32 %v1846, %v1963
  %v2093 = vadd.f32 %v1847, %v1965
  %v2094 = vadd.f32 %v1848, %v1968
  %v2095 = vadd.f32 %v1849, %v1970
  %v2096 = vadd.f32 %v1850, %v1973
  %v2097 = vadd.f32 %v1851, %v1975
  %v2098 = vadd.f32 %v1852, %v1978
  %v2099 = vadd.f32 %v1853, %v1980
  %v2100 = vadd.f32 %v1854, %v1983
  %v2101 = vadd.f32 %v1855, %v1985
  %v2102 = vadd.f32 %v1856, %v1988
  %v2103 = vadd.f32 %v1857, %v1990
  %v2104 = vadd.f32 %v1858, %v1993
  %v2105 = vadd.f32 %v1859, %v1995
  %v2106 = vadd.f32 %v1860, %v1998
  %v2107 = vadd.f32 %v1861, %v2000
  %v2108 = vadd.f32 %v1862, %v2003
  %v2109 = vadd.f32 %v1863, %v2005
  %v2110 = vadd.f32 %v1864, %v2008
  %v2111 = vadd.f32 %v1865, %v2010
  %v2112 = vadd.f32 %v1866, %v2013
  %v2113 = vadd.f32 %v1867, %v2015
  %v2114 = vadd.f32 %v1868, %v2018
  %v2115 = vadd.f32 %v1869, %v2020
  %v2116 = vadd.f32 %v1870, %v2023
  %v2117 = vadd.f32 %v1871, %v2025
  %v2118 = vadd.f32 %v1872, %v2028
  %v2119 = vadd.f32 %v1873, %v2030
  %v2120 = vadd.f32 %v1874, %v2033
  %v2121 = vadd.f32 %v1875, %v2035
  %v2122 = vadd.f32 %v1876, %v2038
  %v2123 = vadd.f32 %v1877, %v2040
  %v2124 = vadd.f32 %v1878, %v2043
  %v2125 = vadd.f32 %v1879, %v2045
  %v2126 = vadd.f32 %v1880, %v2048
  %v2127 = vadd.f32 %v1881, %v2050
  %v2128 = vadd.f32 %v1882, %v2053
  %v2129 = vadd.f32 %v1883, %v2055
  %v2130 = vadd.f32 %v1884, %v2058
  %v2131 = vadd.f32 %v1885, %v2060
  %v2132 = vadd.f32 %v1886, %v2063
  %v2133 = vadd.f32 %v1887, %v2065
  %v2134 = vadd.f32 %v1888, %v2068
  %v2135 = vadd.f32 %v1889, %v2070
  %v2142 = vrot.slane %v314, 1
  %v2143 = vrot.slane %v315, 1
  %v2144 = vsel %vm503, %v2142, %v2143
  %v2145 = vrot.slane %v316, 1
  %v2146 = vsel %vm503, %v2143, %v2145
  %v2147 = vrot.slane %v368, 1
  %v2148 = vrot.slane %v369, 1
  %v2149 = vsel %vm503, %v2147, %v2148
  %v2150 = vrot.slane %v370, 1
  %v2151 = vsel %vm503, %v2148, %v2150
  %v2156 = vpack.c.bf16 %v2146, %v2144
  %v2157 = vpack.c.bf16 %v2151, %v2149
  %s2158 = scalar_lea.vmem %s1, 16
  %v2159 = vld [vmem:[%s2158] sm:$0xf]
  %v2161 = vsel %vm91, %v2156, 0
  %v2164 = vsel %vm91, %v2157, 0
  %v2167 = vsel %vm858, %v2159, 0
  %2169 = vmatpush.bf16.msra.mxu0 0
  %2170 = vmatpush.bf16.msra.mxu0 0
  %2171 = vmatpush.bf16.msra.mxu0 0
  %2172 = vmatpush.bf16.msra.mxu0 0
  %2173 = vmatpush.bf16.msra.mxu0 0
  %2174 = vmatpush.bf16.msra.mxu0 0
  %2175 = vmatpush.bf16.msra.mxu0 0
  %2176 = vmatpush.bf16.msra.mxu0 %v2167
  %2177 = vmatmul.bf16.gmra.mxu0 %v766
  %v2178 = vpop.f32.mrf.mxu0
  %v2179 = vadd.f32 0.0, %v2178
  %v2180 = vpop.f32.mrf.mxu0
  %v2181 = vadd.f32 0.0, %v2180
  %2182 = vmatmul.bf16.gmra.mxu0 %v769
  %v2183 = vpop.f32.mrf.mxu0
  %v2184 = vadd.f32 0.0, %v2183
  %v2185 = vpop.f32.mrf.mxu0
  %v2186 = vadd.f32 0.0, %v2185
  %2187 = vmatmul.bf16.gmra.mxu0 %v772
  %v2188 = vpop.f32.mrf.mxu0
  %v2189 = vadd.f32 0.0, %v2188
  %v2190 = vpop.f32.mrf.mxu0
  %v2191 = vadd.f32 0.0, %v2190
  %2192 = vmatmul.bf16.gmra.mxu0 %v775
  %v2193 = vpop.f32.mrf.mxu0
  %v2194 = vadd.f32 0.0, %v2193
  %v2195 = vpop.f32.mrf.mxu0
  %v2196 = vadd.f32 0.0, %v2195
  %2197 = vmatmul.bf16.gmra.mxu0 %v778
  %v2198 = vpop.f32.mrf.mxu0
  %v2199 = vadd.f32 0.0, %v2198
  %v2200 = vpop.f32.mrf.mxu0
  %v2201 = vadd.f32 0.0, %v2200
  %2202 = vmatmul.bf16.gmra.mxu0 %v781
  %v2203 = vpop.f32.mrf.mxu0
  %v2204 = vadd.f32 0.0, %v2203
  %v2205 = vpop.f32.mrf.mxu0
  %v2206 = vadd.f32 0.0, %v2205
  %2207 = vmatmul.bf16.gmra.mxu0 %v784
  %v2208 = vpop.f32.mrf.mxu0
  %v2209 = vadd.f32 0.0, %v2208
  %v2210 = vpop.f32.mrf.mxu0
  %v2211 = vadd.f32 0.0, %v2210
  %2212 = vmatmul.bf16.gmra.mxu0 %v787
  %v2213 = vpop.f32.mrf.mxu0
  %v2214 = vadd.f32 0.0, %v2213
  %v2215 = vpop.f32.mrf.mxu0
  %v2216 = vadd.f32 0.0, %v2215
  %2217 = vmatmul.bf16.gmra.mxu0 %v790
  %v2218 = vpop.f32.mrf.mxu0
  %v2219 = vadd.f32 0.0, %v2218
  %v2220 = vpop.f32.mrf.mxu0
  %v2221 = vadd.f32 0.0, %v2220
  %2222 = vmatmul.bf16.gmra.mxu0 %v793
  %v2223 = vpop.f32.mrf.mxu0
  %v2224 = vadd.f32 0.0, %v2223
  %v2225 = vpop.f32.mrf.mxu0
  %v2226 = vadd.f32 0.0, %v2225
  %2227 = vmatmul.bf16.gmra.mxu0 %v796
  %v2228 = vpop.f32.mrf.mxu0
  %v2229 = vadd.f32 0.0, %v2228
  %v2230 = vpop.f32.mrf.mxu0
  %v2231 = vadd.f32 0.0, %v2230
  %2232 = vmatmul.bf16.gmra.mxu0 %v799
  %v2233 = vpop.f32.mrf.mxu0
  %v2234 = vadd.f32 0.0, %v2233
  %v2235 = vpop.f32.mrf.mxu0
  %v2236 = vadd.f32 0.0, %v2235
  %2237 = vmatmul.bf16.gmra.mxu0 %v802
  %v2238 = vpop.f32.mrf.mxu0
  %v2239 = vadd.f32 0.0, %v2238
  %v2240 = vpop.f32.mrf.mxu0
  %v2241 = vadd.f32 0.0, %v2240
  %2242 = vmatmul.bf16.gmra.mxu0 %v805
  %v2243 = vpop.f32.mrf.mxu0
  %v2244 = vadd.f32 0.0, %v2243
  %v2245 = vpop.f32.mrf.mxu0
  %v2246 = vadd.f32 0.0, %v2245
  %2247 = vmatmul.bf16.gmra.mxu0 %v808
  %v2248 = vpop.f32.mrf.mxu0
  %v2249 = vadd.f32 0.0, %v2248
  %v2250 = vpop.f32.mrf.mxu0
  %v2251 = vadd.f32 0.0, %v2250
  %2252 = vmatmul.bf16.gmra.mxu0 %v2161
  %v2253 = vpop.f32.mrf.mxu0
  %v2254 = vadd.f32 0.0, %v2253
  %v2255 = vpop.f32.mrf.mxu0
  %v2256 = vadd.f32 0.0, %v2255
  %2257 = vmatmul.bf16.gmra.mxu0 %v814
  %v2258 = vpop.f32.mrf.mxu0
  %v2259 = vadd.f32 0.0, %v2258
  %v2260 = vpop.f32.mrf.mxu0
  %v2261 = vadd.f32 0.0, %v2260
  %2262 = vmatmul.bf16.gmra.mxu0 %v817
  %v2263 = vpop.f32.mrf.mxu0
  %v2264 = vadd.f32 0.0, %v2263
  %v2265 = vpop.f32.mrf.mxu0
  %v2266 = vadd.f32 0.0, %v2265
  %2267 = vmatmul.bf16.gmra.mxu0 %v820
  %v2268 = vpop.f32.mrf.mxu0
  %v2269 = vadd.f32 0.0, %v2268
  %v2270 = vpop.f32.mrf.mxu0
  %v2271 = vadd.f32 0.0, %v2270
  %2272 = vmatmul.bf16.gmra.mxu0 %v823
  %v2273 = vpop.f32.mrf.mxu0
  %v2274 = vadd.f32 0.0, %v2273
  %v2275 = vpop.f32.mrf.mxu0
  %v2276 = vadd.f32 0.0, %v2275
  %2277 = vmatmul.bf16.gmra.mxu0 %v826
  %v2278 = vpop.f32.mrf.mxu0
  %v2279 = vadd.f32 0.0, %v2278
  %v2280 = vpop.f32.mrf.mxu0
  %v2281 = vadd.f32 0.0, %v2280
  %2282 = vmatmul.bf16.gmra.mxu0 %v829
  %v2283 = vpop.f32.mrf.mxu0
  %v2284 = vadd.f32 0.0, %v2283
  %v2285 = vpop.f32.mrf.mxu0
  %v2286 = vadd.f32 0.0, %v2285
  %2287 = vmatmul.bf16.gmra.mxu0 %v832
  %v2288 = vpop.f32.mrf.mxu0
  %v2289 = vadd.f32 0.0, %v2288
  %v2290 = vpop.f32.mrf.mxu0
  %v2291 = vadd.f32 0.0, %v2290
  %2292 = vmatmul.bf16.gmra.mxu0 %v835
  %v2293 = vpop.f32.mrf.mxu0
  %v2294 = vadd.f32 0.0, %v2293
  %v2295 = vpop.f32.mrf.mxu0
  %v2296 = vadd.f32 0.0, %v2295
  %2297 = vmatmul.bf16.gmra.mxu0 %v838
  %v2298 = vpop.f32.mrf.mxu0
  %v2299 = vadd.f32 0.0, %v2298
  %v2300 = vpop.f32.mrf.mxu0
  %v2301 = vadd.f32 0.0, %v2300
  %2302 = vmatmul.bf16.gmra.mxu0 %v841
  %v2303 = vpop.f32.mrf.mxu0
  %v2304 = vadd.f32 0.0, %v2303
  %v2305 = vpop.f32.mrf.mxu0
  %v2306 = vadd.f32 0.0, %v2305
  %2307 = vmatmul.bf16.gmra.mxu0 %v844
  %v2308 = vpop.f32.mrf.mxu0
  %v2309 = vadd.f32 0.0, %v2308
  %v2310 = vpop.f32.mrf.mxu0
  %v2311 = vadd.f32 0.0, %v2310
  %2312 = vmatmul.bf16.gmra.mxu0 %v847
  %v2313 = vpop.f32.mrf.mxu0
  %v2314 = vadd.f32 0.0, %v2313
  %v2315 = vpop.f32.mrf.mxu0
  %v2316 = vadd.f32 0.0, %v2315
  %2317 = vmatmul.bf16.gmra.mxu0 %v850
  %v2318 = vpop.f32.mrf.mxu0
  %v2319 = vadd.f32 0.0, %v2318
  %v2320 = vpop.f32.mrf.mxu0
  %v2321 = vadd.f32 0.0, %v2320
  %2322 = vmatmul.bf16.gmra.mxu0 %v853
  %v2323 = vpop.f32.mrf.mxu0
  %v2324 = vadd.f32 0.0, %v2323
  %v2325 = vpop.f32.mrf.mxu0
  %v2326 = vadd.f32 0.0, %v2325
  %2327 = vmatmul.bf16.gmra.mxu0 %v856
  %v2328 = vpop.f32.mrf.mxu0
  %v2329 = vadd.f32 0.0, %v2328
  %v2330 = vpop.f32.mrf.mxu0
  %v2331 = vadd.f32 0.0, %v2330
  %2332 = vmatmul.bf16.gmra.mxu0 %v2164
  %v2333 = vpop.f32.mrf.mxu0
  %v2334 = vadd.f32 0.0, %v2333
  %v2335 = vpop.f32.mrf.mxu0
  %v2336 = vadd.f32 0.0, %v2335
  %2337 = vdwg.mxu0
  %v2338 = vadd.f32 %v2072, %v2179
  %v2339 = vadd.f32 %v2073, %v2181
  %v2340 = vadd.f32 %v2074, %v2184
  %v2341 = vadd.f32 %v2075, %v2186
  %v2342 = vadd.f32 %v2076, %v2189
  %v2343 = vadd.f32 %v2077, %v2191
  %v2344 = vadd.f32 %v2078, %v2194
  %v2345 = vadd.f32 %v2079, %v2196
  %v2346 = vadd.f32 %v2080, %v2199
  %v2347 = vadd.f32 %v2081, %v2201
  %v2348 = vadd.f32 %v2082, %v2204
  %v2349 = vadd.f32 %v2083, %v2206
  %v2350 = vadd.f32 %v2084, %v2209
  %v2351 = vadd.f32 %v2085, %v2211
  %v2352 = vadd.f32 %v2086, %v2214
  %v2353 = vadd.f32 %v2087, %v2216
  %v2354 = vadd.f32 %v2088, %v2219
  %v2355 = vadd.f32 %v2089, %v2221
  %v2356 = vadd.f32 %v2090, %v2224
  %v2357 = vadd.f32 %v2091, %v2226
  %v2358 = vadd.f32 %v2092, %v2229
  %v2359 = vadd.f32 %v2093, %v2231
  %v2360 = vadd.f32 %v2094, %v2234
  %v2361 = vadd.f32 %v2095, %v2236
  %v2362 = vadd.f32 %v2096, %v2239
  %v2363 = vadd.f32 %v2097, %v2241
  %v2364 = vadd.f32 %v2098, %v2244
  %v2365 = vadd.f32 %v2099, %v2246
  %v2366 = vadd.f32 %v2100, %v2249
  %v2367 = vadd.f32 %v2101, %v2251
  %v2368 = vadd.f32 %v2102, %v2254
  %v2369 = vadd.f32 %v2103, %v2256
  %v2370 = vadd.f32 %v2104, %v2259
  %v2371 = vadd.f32 %v2105, %v2261
  %v2372 = vadd.f32 %v2106, %v2264
  %v2373 = vadd.f32 %v2107, %v2266
  %v2374 = vadd.f32 %v2108, %v2269
  %v2375 = vadd.f32 %v2109, %v2271
  %v2376 = vadd.f32 %v2110, %v2274
  %v2377 = vadd.f32 %v2111, %v2276
  %v2378 = vadd.f32 %v2112, %v2279
  %v2379 = vadd.f32 %v2113, %v2281
  %v2380 = vadd.f32 %v2114, %v2284
  %v2381 = vadd.f32 %v2115, %v2286
  %v2382 = vadd.f32 %v2116, %v2289
  %v2383 = vadd.f32 %v2117, %v2291
  %v2384 = vadd.f32 %v2118, %v2294
  %v2385 = vadd.f32 %v2119, %v2296
  %v2386 = vadd.f32 %v2120, %v2299
  %v2387 = vadd.f32 %v2121, %v2301
  %v2388 = vadd.f32 %v2122, %v2304
  %v2389 = vadd.f32 %v2123, %v2306
  %v2390 = vadd.f32 %v2124, %v2309
  %v2391 = vadd.f32 %v2125, %v2311
  %v2392 = vadd.f32 %v2126, %v2314
  %v2393 = vadd.f32 %v2127, %v2316
  %v2394 = vadd.f32 %v2128, %v2319
  %v2395 = vadd.f32 %v2129, %v2321
  %v2396 = vadd.f32 %v2130, %v2324
  %v2397 = vadd.f32 %v2131, %v2326
  %v2398 = vadd.f32 %v2132, %v2329
  %v2399 = vadd.f32 %v2133, %v2331
  %v2400 = vadd.f32 %v2134, %v2334
  %v2401 = vadd.f32 %v2135, %v2336
  %v2402 = vrot.slane %v314, 2
  %v2403 = vrot.slane %v315, 2
  %v2404 = vsel %vm1299, %v2402, %v2403
  %v2405 = vrot.slane %v316, 2
  %v2406 = vsel %vm1299, %v2403, %v2405
  %v2407 = vrot.slane %v368, 2
  %v2408 = vrot.slane %v369, 2
  %v2409 = vsel %vm1299, %v2407, %v2408
  %v2410 = vrot.slane %v370, 2
  %v2411 = vsel %vm1299, %v2408, %v2410
  %v2416 = vpack.c.bf16 %v2406, %v2404
  %v2417 = vpack.c.bf16 %v2411, %v2409
  %s2418 = scalar_lea.vmem %s1, 20
  %v2419 = vld [vmem:[%s2418] sm:$0xf]
  %v2421 = vsel %vm91, %v2416, 0
  %v2424 = vsel %vm91, %v2417, 0
  %v2427 = vsel %vm858, %v2419, 0
  %2429 = vmatpush.bf16.msra.mxu0 0
  %2430 = vmatpush.bf16.msra.mxu0 0
  %2431 = vmatpush.bf16.msra.mxu0 0
  %2432 = vmatpush.bf16.msra.mxu0 0
  %2433 = vmatpush.bf16.msra.mxu0 0
  %2434 = vmatpush.bf16.msra.mxu0 0
  %2435 = vmatpush.bf16.msra.mxu0 0
  %2436 = vmatpush.bf16.msra.mxu0 %v2427
  %2437 = vmatmul.bf16.gmra.mxu0 %v1562
  %v2438 = vpop.f32.mrf.mxu0
  %v2439 = vadd.f32 0.0, %v2438
  %v2440 = vpop.f32.mrf.mxu0
  %v2441 = vadd.f32 0.0, %v2440
  %2442 = vmatmul.bf16.gmra.mxu0 %v1565
  %v2443 = vpop.f32.mrf.mxu0
  %v2444 = vadd.f32 0.0, %v2443
  %v2445 = vpop.f32.mrf.mxu0
  %v2446 = vadd.f32 0.0, %v2445
  %2447 = vmatmul.bf16.gmra.mxu0 %v1568
  %v2448 = vpop.f32.mrf.mxu0
  %v2449 = vadd.f32 0.0, %v2448
  %v2450 = vpop.f32.mrf.mxu0
  %v2451 = vadd.f32 0.0, %v2450
  %2452 = vmatmul.bf16.gmra.mxu0 %v1571
  %v2453 = vpop.f32.mrf.mxu0
  %v2454 = vadd.f32 0.0, %v2453
  %v2455 = vpop.f32.mrf.mxu0
  %v2456 = vadd.f32 0.0, %v2455
  %2457 = vmatmul.bf16.gmra.mxu0 %v1574
  %v2458 = vpop.f32.mrf.mxu0
  %v2459 = vadd.f32 0.0, %v2458
  %v2460 = vpop.f32.mrf.mxu0
  %v2461 = vadd.f32 0.0, %v2460
  %2462 = vmatmul.bf16.gmra.mxu0 %v1577
  %v2463 = vpop.f32.mrf.mxu0
  %v2464 = vadd.f32 0.0, %v2463
  %v2465 = vpop.f32.mrf.mxu0
  %v2466 = vadd.f32 0.0, %v2465
  %2467 = vmatmul.bf16.gmra.mxu0 %v1580
  %v2468 = vpop.f32.mrf.mxu0
  %v2469 = vadd.f32 0.0, %v2468
  %v2470 = vpop.f32.mrf.mxu0
  %v2471 = vadd.f32 0.0, %v2470
  %2472 = vmatmul.bf16.gmra.mxu0 %v1583
  %v2473 = vpop.f32.mrf.mxu0
  %v2474 = vadd.f32 0.0, %v2473
  %v2475 = vpop.f32.mrf.mxu0
  %v2476 = vadd.f32 0.0, %v2475
  %2477 = vmatmul.bf16.gmra.mxu0 %v1586
  %v2478 = vpop.f32.mrf.mxu0
  %v2479 = vadd.f32 0.0, %v2478
  %v2480 = vpop.f32.mrf.mxu0
  %v2481 = vadd.f32 0.0, %v2480
  %2482 = vmatmul.bf16.gmra.mxu0 %v1589
  %v2483 = vpop.f32.mrf.mxu0
  %v2484 = vadd.f32 0.0, %v2483
  %v2485 = vpop.f32.mrf.mxu0
  %v2486 = vadd.f32 0.0, %v2485
  %2487 = vmatmul.bf16.gmra.mxu0 %v1592
  %v2488 = vpop.f32.mrf.mxu0
  %v2489 = vadd.f32 0.0, %v2488
  %v2490 = vpop.f32.mrf.mxu0
  %v2491 = vadd.f32 0.0, %v2490
  %2492 = vmatmul.bf16.gmra.mxu0 %v1595
  %v2493 = vpop.f32.mrf.mxu0
  %v2494 = vadd.f32 0.0, %v2493
  %v2495 = vpop.f32.mrf.mxu0
  %v2496 = vadd.f32 0.0, %v2495
  %2497 = vmatmul.bf16.gmra.mxu0 %v1598
  %v2498 = vpop.f32.mrf.mxu0
  %v2499 = vadd.f32 0.0, %v2498
  %v2500 = vpop.f32.mrf.mxu0
  %v2501 = vadd.f32 0.0, %v2500
  %2502 = vmatmul.bf16.gmra.mxu0 %v1601
  %v2503 = vpop.f32.mrf.mxu0
  %v2504 = vadd.f32 0.0, %v2503
  %v2505 = vpop.f32.mrf.mxu0
  %v2506 = vadd.f32 0.0, %v2505
  %2507 = vmatmul.bf16.gmra.mxu0 %v1604
  %v2508 = vpop.f32.mrf.mxu0
  %v2509 = vadd.f32 0.0, %v2508
  %v2510 = vpop.f32.mrf.mxu0
  %v2511 = vadd.f32 0.0, %v2510
  %2512 = vmatmul.bf16.gmra.mxu0 %v2421
  %v2513 = vpop.f32.mrf.mxu0
  %v2514 = vadd.f32 0.0, %v2513
  %v2515 = vpop.f32.mrf.mxu0
  %v2516 = vadd.f32 0.0, %v2515
  %2517 = vmatmul.bf16.gmra.mxu0 %v1610
  %v2518 = vpop.f32.mrf.mxu0
  %v2519 = vadd.f32 0.0, %v2518
  %v2520 = vpop.f32.mrf.mxu0
  %v2521 = vadd.f32 0.0, %v2520
  %2522 = vmatmul.bf16.gmra.mxu0 %v1613
  %v2523 = vpop.f32.mrf.mxu0
  %v2524 = vadd.f32 0.0, %v2523
  %v2525 = vpop.f32.mrf.mxu0
  %v2526 = vadd.f32 0.0, %v2525
  %2527 = vmatmul.bf16.gmra.mxu0 %v1616
  %v2528 = vpop.f32.mrf.mxu0
  %v2529 = vadd.f32 0.0, %v2528
  %v2530 = vpop.f32.mrf.mxu0
  %v2531 = vadd.f32 0.0, %v2530
  %2532 = vmatmul.bf16.gmra.mxu0 %v1619
  %v2533 = vpop.f32.mrf.mxu0
  %v2534 = vadd.f32 0.0, %v2533
  %v2535 = vpop.f32.mrf.mxu0
  %v2536 = vadd.f32 0.0, %v2535
  %2537 = vmatmul.bf16.gmra.mxu0 %v1622
  %v2538 = vpop.f32.mrf.mxu0
  %v2539 = vadd.f32 0.0, %v2538
  %v2540 = vpop.f32.mrf.mxu0
  %v2541 = vadd.f32 0.0, %v2540
  %2542 = vmatmul.bf16.gmra.mxu0 %v1625
  %v2543 = vpop.f32.mrf.mxu0
  %v2544 = vadd.f32 0.0, %v2543
  %v2545 = vpop.f32.mrf.mxu0
  %v2546 = vadd.f32 0.0, %v2545
  %2547 = vmatmul.bf16.gmra.mxu0 %v1628
  %v2548 = vpop.f32.mrf.mxu0
  %v2549 = vadd.f32 0.0, %v2548
  %v2550 = vpop.f32.mrf.mxu0
  %v2551 = vadd.f32 0.0, %v2550
  %2552 = vmatmul.bf16.gmra.mxu0 %v1631
  %v2553 = vpop.f32.mrf.mxu0
  %v2554 = vadd.f32 0.0, %v2553
  %v2555 = vpop.f32.mrf.mxu0
  %v2556 = vadd.f32 0.0, %v2555
  %2557 = vmatmul.bf16.gmra.mxu0 %v1634
  %v2558 = vpop.f32.mrf.mxu0
  %v2559 = vadd.f32 0.0, %v2558
  %v2560 = vpop.f32.mrf.mxu0
  %v2561 = vadd.f32 0.0, %v2560
  %2562 = vmatmul.bf16.gmra.mxu0 %v1637
  %v2563 = vpop.f32.mrf.mxu0
  %v2564 = vadd.f32 0.0, %v2563
  %v2565 = vpop.f32.mrf.mxu0
  %v2566 = vadd.f32 0.0, %v2565
  %2567 = vmatmul.bf16.gmra.mxu0 %v1640
  %v2568 = vpop.f32.mrf.mxu0
  %v2569 = vadd.f32 0.0, %v2568
  %v2570 = vpop.f32.mrf.mxu0
  %v2571 = vadd.f32 0.0, %v2570
  %2572 = vmatmul.bf16.gmra.mxu0 %v1643
  %v2573 = vpop.f32.mrf.mxu0
  %v2574 = vadd.f32 0.0, %v2573
  %v2575 = vpop.f32.mrf.mxu0
  %v2576 = vadd.f32 0.0, %v2575
  %2577 = vmatmul.bf16.gmra.mxu0 %v1646
  %v2578 = vpop.f32.mrf.mxu0
  %v2579 = vadd.f32 0.0, %v2578
  %v2580 = vpop.f32.mrf.mxu0
  %v2581 = vadd.f32 0.0, %v2580
  %2582 = vmatmul.bf16.gmra.mxu0 %v1649
  %v2583 = vpop.f32.mrf.mxu0
  %v2584 = vadd.f32 0.0, %v2583
  %v2585 = vpop.f32.mrf.mxu0
  %v2586 = vadd.f32 0.0, %v2585
  %2587 = vmatmul.bf16.gmra.mxu0 %v1652
  %v2588 = vpop.f32.mrf.mxu0
  %v2589 = vadd.f32 0.0, %v2588
  %v2590 = vpop.f32.mrf.mxu0
  %v2591 = vadd.f32 0.0, %v2590
  %2592 = vmatmul.bf16.gmra.mxu0 %v2424
  %v2593 = vpop.f32.mrf.mxu0
  %v2594 = vadd.f32 0.0, %v2593
  %v2595 = vpop.f32.mrf.mxu0
  %v2596 = vadd.f32 0.0, %v2595
  %2597 = vdwg.mxu0
  %v2598 = vadd.f32 %v2338, %v2439
  %v2599 = vadd.f32 %v2339, %v2441
  %v2600 = vadd.f32 %v2340, %v2444
  %v2601 = vadd.f32 %v2341, %v2446
  %v2602 = vadd.f32 %v2342, %v2449
  %v2603 = vadd.f32 %v2343, %v2451
  %v2604 = vadd.f32 %v2344, %v2454
  %v2605 = vadd.f32 %v2345, %v2456
  %v2606 = vadd.f32 %v2346, %v2459
  %v2607 = vadd.f32 %v2347, %v2461
  %v2608 = vadd.f32 %v2348, %v2464
  %v2609 = vadd.f32 %v2349, %v2466
  %v2610 = vadd.f32 %v2350, %v2469
  %v2611 = vadd.f32 %v2351, %v2471
  %v2612 = vadd.f32 %v2352, %v2474
  %v2613 = vadd.f32 %v2353, %v2476
  %v2614 = vadd.f32 %v2354, %v2479
  %v2615 = vadd.f32 %v2355, %v2481
  %v2616 = vadd.f32 %v2356, %v2484
  %v2617 = vadd.f32 %v2357, %v2486
  %v2618 = vadd.f32 %v2358, %v2489
  %v2619 = vadd.f32 %v2359, %v2491
  %v2620 = vadd.f32 %v2360, %v2494
  %v2621 = vadd.f32 %v2361, %v2496
  %v2622 = vadd.f32 %v2362, %v2499
  %v2623 = vadd.f32 %v2363, %v2501
  %v2624 = vadd.f32 %v2364, %v2504
  %v2625 = vadd.f32 %v2365, %v2506
  %v2626 = vadd.f32 %v2366, %v2509
  %v2627 = vadd.f32 %v2367, %v2511
  %v2628 = vadd.f32 %v2368, %v2514
  %v2629 = vadd.f32 %v2369, %v2516
  %v2630 = vadd.f32 %v2370, %v2519
  %v2631 = vadd.f32 %v2371, %v2521
  %v2632 = vadd.f32 %v2372, %v2524
  %v2633 = vadd.f32 %v2373, %v2526
  %v2634 = vadd.f32 %v2374, %v2529
  %v2635 = vadd.f32 %v2375, %v2531
  %v2636 = vadd.f32 %v2376, %v2534
  %v2637 = vadd.f32 %v2377, %v2536
  %v2638 = vadd.f32 %v2378, %v2539
  %v2639 = vadd.f32 %v2379, %v2541
  %v2640 = vadd.f32 %v2380, %v2544
  %v2641 = vadd.f32 %v2381, %v2546
  %v2642 = vadd.f32 %v2382, %v2549
  %v2643 = vadd.f32 %v2383, %v2551
  %v2644 = vadd.f32 %v2384, %v2554
  %v2645 = vadd.f32 %v2385, %v2556
  %v2646 = vadd.f32 %v2386, %v2559
  %v2647 = vadd.f32 %v2387, %v2561
  %v2648 = vadd.f32 %v2388, %v2564
  %v2649 = vadd.f32 %v2389, %v2566
  %v2650 = vadd.f32 %v2390, %v2569
  %v2651 = vadd.f32 %v2391, %v2571
  %v2652 = vadd.f32 %v2392, %v2574
  %v2653 = vadd.f32 %v2393, %v2576
  %v2654 = vadd.f32 %v2394, %v2579
  %v2655 = vadd.f32 %v2395, %v2581
  %v2656 = vadd.f32 %v2396, %v2584
  %v2657 = vadd.f32 %v2397, %v2586
  %v2658 = vadd.f32 %v2398, %v2589
  %v2659 = vadd.f32 %v2399, %v2591
  %v2660 = vadd.f32 %v2400, %v2594
  %v2661 = vadd.f32 %v2401, %v2596
  %v2662 = vpack.c.bf16 %v318, %v317
  %v2663 = vpack.c.bf16 %v372, %v371
  %s2664 = scalar_lea.vmem %s1, 24
  %v2665 = vld [vmem:[%s2664] sm:$0xf]
  %v2667 = vsel %vm91, %v2662, 0
  %v2670 = vsel %vm91, %v2663, 0
  %v2673 = vsel %vm858, %v2665, 0
  %2675 = vmatpush.bf16.msra.mxu0 0
  %2676 = vmatpush.bf16.msra.mxu0 0
  %2677 = vmatpush.bf16.msra.mxu0 0
  %2678 = vmatpush.bf16.msra.mxu0 0
  %2679 = vmatpush.bf16.msra.mxu0 0
  %2680 = vmatpush.bf16.msra.mxu0 0
  %2681 = vmatpush.bf16.msra.mxu0 0
  %2682 = vmatpush.bf16.msra.mxu0 %v2673
  %2683 = vmatmul.bf16.gmra.mxu0 %v1038
  %v2684 = vpop.f32.mrf.mxu0
  %v2685 = vadd.f32 0.0, %v2684
  %v2686 = vpop.f32.mrf.mxu0
  %v2687 = vadd.f32 0.0, %v2686
  %2688 = vmatmul.bf16.gmra.mxu0 %v1041
  %v2689 = vpop.f32.mrf.mxu0
  %v2690 = vadd.f32 0.0, %v2689
  %v2691 = vpop.f32.mrf.mxu0
  %v2692 = vadd.f32 0.0, %v2691
  %2693 = vmatmul.bf16.gmra.mxu0 %v1044
  %v2694 = vpop.f32.mrf.mxu0
  %v2695 = vadd.f32 0.0, %v2694
  %v2696 = vpop.f32.mrf.mxu0
  %v2697 = vadd.f32 0.0, %v2696
  %2698 = vmatmul.bf16.gmra.mxu0 %v1047
  %v2699 = vpop.f32.mrf.mxu0
  %v2700 = vadd.f32 0.0, %v2699
  %v2701 = vpop.f32.mrf.mxu0
  %v2702 = vadd.f32 0.0, %v2701
  %2703 = vmatmul.bf16.gmra.mxu0 %v1050
  %v2704 = vpop.f32.mrf.mxu0
  %v2705 = vadd.f32 0.0, %v2704
  %v2706 = vpop.f32.mrf.mxu0
  %v2707 = vadd.f32 0.0, %v2706
  %2708 = vmatmul.bf16.gmra.mxu0 %v1053
  %v2709 = vpop.f32.mrf.mxu0
  %v2710 = vadd.f32 0.0, %v2709
  %v2711 = vpop.f32.mrf.mxu0
  %v2712 = vadd.f32 0.0, %v2711
  %2713 = vmatmul.bf16.gmra.mxu0 %v1056
  %v2714 = vpop.f32.mrf.mxu0
  %v2715 = vadd.f32 0.0, %v2714
  %v2716 = vpop.f32.mrf.mxu0
  %v2717 = vadd.f32 0.0, %v2716
  %2718 = vmatmul.bf16.gmra.mxu0 %v1059
  %v2719 = vpop.f32.mrf.mxu0
  %v2720 = vadd.f32 0.0, %v2719
  %v2721 = vpop.f32.mrf.mxu0
  %v2722 = vadd.f32 0.0, %v2721
  %2723 = vmatmul.bf16.gmra.mxu0 %v1062
  %v2724 = vpop.f32.mrf.mxu0
  %v2725 = vadd.f32 0.0, %v2724
  %v2726 = vpop.f32.mrf.mxu0
  %v2727 = vadd.f32 0.0, %v2726
  %2728 = vmatmul.bf16.gmra.mxu0 %v1065
  %v2729 = vpop.f32.mrf.mxu0
  %v2730 = vadd.f32 0.0, %v2729
  %v2731 = vpop.f32.mrf.mxu0
  %v2732 = vadd.f32 0.0, %v2731
  %2733 = vmatmul.bf16.gmra.mxu0 %v1068
  %v2734 = vpop.f32.mrf.mxu0
  %v2735 = vadd.f32 0.0, %v2734
  %v2736 = vpop.f32.mrf.mxu0
  %v2737 = vadd.f32 0.0, %v2736
  %2738 = vmatmul.bf16.gmra.mxu0 %v1071
  %v2739 = vpop.f32.mrf.mxu0
  %v2740 = vadd.f32 0.0, %v2739
  %v2741 = vpop.f32.mrf.mxu0
  %v2742 = vadd.f32 0.0, %v2741
  %2743 = vmatmul.bf16.gmra.mxu0 %v1074
  %v2744 = vpop.f32.mrf.mxu0
  %v2745 = vadd.f32 0.0, %v2744
  %v2746 = vpop.f32.mrf.mxu0
  %v2747 = vadd.f32 0.0, %v2746
  %2748 = vmatmul.bf16.gmra.mxu0 %v1077
  %v2749 = vpop.f32.mrf.mxu0
  %v2750 = vadd.f32 0.0, %v2749
  %v2751 = vpop.f32.mrf.mxu0
  %v2752 = vadd.f32 0.0, %v2751
  %2753 = vmatmul.bf16.gmra.mxu0 %v1895
  %v2754 = vpop.f32.mrf.mxu0
  %v2755 = vadd.f32 0.0, %v2754
  %v2756 = vpop.f32.mrf.mxu0
  %v2757 = vadd.f32 0.0, %v2756
  %2758 = vmatmul.bf16.gmra.mxu0 %v2667
  %v2759 = vpop.f32.mrf.mxu0
  %v2760 = vadd.f32 0.0, %v2759
  %v2761 = vpop.f32.mrf.mxu0
  %v2762 = vadd.f32 0.0, %v2761
  %2763 = vmatmul.bf16.gmra.mxu0 %v1086
  %v2764 = vpop.f32.mrf.mxu0
  %v2765 = vadd.f32 0.0, %v2764
  %v2766 = vpop.f32.mrf.mxu0
  %v2767 = vadd.f32 0.0, %v2766
  %2768 = vmatmul.bf16.gmra.mxu0 %v1089
  %v2769 = vpop.f32.mrf.mxu0
  %v2770 = vadd.f32 0.0, %v2769
  %v2771 = vpop.f32.mrf.mxu0
  %v2772 = vadd.f32 0.0, %v2771
  %2773 = vmatmul.bf16.gmra.mxu0 %v1092
  %v2774 = vpop.f32.mrf.mxu0
  %v2775 = vadd.f32 0.0, %v2774
  %v2776 = vpop.f32.mrf.mxu0
  %v2777 = vadd.f32 0.0, %v2776
  %2778 = vmatmul.bf16.gmra.mxu0 %v1095
  %v2779 = vpop.f32.mrf.mxu0
  %v2780 = vadd.f32 0.0, %v2779
  %v2781 = vpop.f32.mrf.mxu0
  %v2782 = vadd.f32 0.0, %v2781
  %2783 = vmatmul.bf16.gmra.mxu0 %v1098
  %v2784 = vpop.f32.mrf.mxu0
  %v2785 = vadd.f32 0.0, %v2784
  %v2786 = vpop.f32.mrf.mxu0
  %v2787 = vadd.f32 0.0, %v2786
  %2788 = vmatmul.bf16.gmra.mxu0 %v1101
  %v2789 = vpop.f32.mrf.mxu0
  %v2790 = vadd.f32 0.0, %v2789
  %v2791 = vpop.f32.mrf.mxu0
  %v2792 = vadd.f32 0.0, %v2791
  %2793 = vmatmul.bf16.gmra.mxu0 %v1104
  %v2794 = vpop.f32.mrf.mxu0
  %v2795 = vadd.f32 0.0, %v2794
  %v2796 = vpop.f32.mrf.mxu0
  %v2797 = vadd.f32 0.0, %v2796
  %2798 = vmatmul.bf16.gmra.mxu0 %v1107
  %v2799 = vpop.f32.mrf.mxu0
  %v2800 = vadd.f32 0.0, %v2799
  %v2801 = vpop.f32.mrf.mxu0
  %v2802 = vadd.f32 0.0, %v2801
  %2803 = vmatmul.bf16.gmra.mxu0 %v1110
  %v2804 = vpop.f32.mrf.mxu0
  %v2805 = vadd.f32 0.0, %v2804
  %v2806 = vpop.f32.mrf.mxu0
  %v2807 = vadd.f32 0.0, %v2806
  %2808 = vmatmul.bf16.gmra.mxu0 %v1113
  %v2809 = vpop.f32.mrf.mxu0
  %v2810 = vadd.f32 0.0, %v2809
  %v2811 = vpop.f32.mrf.mxu0
  %v2812 = vadd.f32 0.0, %v2811
  %2813 = vmatmul.bf16.gmra.mxu0 %v1116
  %v2814 = vpop.f32.mrf.mxu0
  %v2815 = vadd.f32 0.0, %v2814
  %v2816 = vpop.f32.mrf.mxu0
  %v2817 = vadd.f32 0.0, %v2816
  %2818 = vmatmul.bf16.gmra.mxu0 %v1119
  %v2819 = vpop.f32.mrf.mxu0
  %v2820 = vadd.f32 0.0, %v2819
  %v2821 = vpop.f32.mrf.mxu0
  %v2822 = vadd.f32 0.0, %v2821
  %2823 = vmatmul.bf16.gmra.mxu0 %v1122
  %v2824 = vpop.f32.mrf.mxu0
  %v2825 = vadd.f32 0.0, %v2824
  %v2826 = vpop.f32.mrf.mxu0
  %v2827 = vadd.f32 0.0, %v2826
  %2828 = vmatmul.bf16.gmra.mxu0 %v1125
  %v2829 = vpop.f32.mrf.mxu0
  %v2830 = vadd.f32 0.0, %v2829
  %v2831 = vpop.f32.mrf.mxu0
  %v2832 = vadd.f32 0.0, %v2831
  %2833 = vmatmul.bf16.gmra.mxu0 %v1898
  %v2834 = vpop.f32.mrf.mxu0
  %v2835 = vadd.f32 0.0, %v2834
  %v2836 = vpop.f32.mrf.mxu0
  %v2837 = vadd.f32 0.0, %v2836
  %2838 = vmatmul.bf16.gmra.mxu0 %v2670
  %v2839 = vpop.f32.mrf.mxu0
  %v2840 = vadd.f32 0.0, %v2839
  %v2841 = vpop.f32.mrf.mxu0
  %v2842 = vadd.f32 0.0, %v2841
  %2843 = vdwg.mxu0
  %v2844 = vadd.f32 %v2598, %v2685
  %v2845 = vadd.f32 %v2599, %v2687
  %v2846 = vadd.f32 %v2600, %v2690
  %v2847 = vadd.f32 %v2601, %v2692
  %v2848 = vadd.f32 %v2602, %v2695
  %v2849 = vadd.f32 %v2603, %v2697
  %v2850 = vadd.f32 %v2604, %v2700
  %v2851 = vadd.f32 %v2605, %v2702
  %v2852 = vadd.f32 %v2606, %v2705
  %v2853 = vadd.f32 %v2607, %v2707
  %v2854 = vadd.f32 %v2608, %v2710
  %v2855 = vadd.f32 %v2609, %v2712
  %v2856 = vadd.f32 %v2610, %v2715
  %v2857 = vadd.f32 %v2611, %v2717
  %v2858 = vadd.f32 %v2612, %v2720
  %v2859 = vadd.f32 %v2613, %v2722
  %v2860 = vadd.f32 %v2614, %v2725
  %v2861 = vadd.f32 %v2615, %v2727
  %v2862 = vadd.f32 %v2616, %v2730
  %v2863 = vadd.f32 %v2617, %v2732
  %v2864 = vadd.f32 %v2618, %v2735
  %v2865 = vadd.f32 %v2619, %v2737
  %v2866 = vadd.f32 %v2620, %v2740
  %v2867 = vadd.f32 %v2621, %v2742
  %v2868 = vadd.f32 %v2622, %v2745
  %v2869 = vadd.f32 %v2623, %v2747
  %v2870 = vadd.f32 %v2624, %v2750
  %v2871 = vadd.f32 %v2625, %v2752
  %v2872 = vadd.f32 %v2626, %v2755
  %v2873 = vadd.f32 %v2627, %v2757
  %v2874 = vadd.f32 %v2628, %v2760
  %v2875 = vadd.f32 %v2629, %v2762
  %v2876 = vadd.f32 %v2630, %v2765
  %v2877 = vadd.f32 %v2631, %v2767
  %v2878 = vadd.f32 %v2632, %v2770
  %v2879 = vadd.f32 %v2633, %v2772
  %v2880 = vadd.f32 %v2634, %v2775
  %v2881 = vadd.f32 %v2635, %v2777
  %v2882 = vadd.f32 %v2636, %v2780
  %v2883 = vadd.f32 %v2637, %v2782
  %v2884 = vadd.f32 %v2638, %v2785
  %v2885 = vadd.f32 %v2639, %v2787
  %v2886 = vadd.f32 %v2640, %v2790
  %v2887 = vadd.f32 %v2641, %v2792
  %v2888 = vadd.f32 %v2642, %v2795
  %v2889 = vadd.f32 %v2643, %v2797
  %v2890 = vadd.f32 %v2644, %v2800
  %v2891 = vadd.f32 %v2645, %v2802
  %v2892 = vadd.f32 %v2646, %v2805
  %v2893 = vadd.f32 %v2647, %v2807
  %v2894 = vadd.f32 %v2648, %v2810
  %v2895 = vadd.f32 %v2649, %v2812
  %v2896 = vadd.f32 %v2650, %v2815
  %v2897 = vadd.f32 %v2651, %v2817
  %v2898 = vadd.f32 %v2652, %v2820
  %v2899 = vadd.f32 %v2653, %v2822
  %v2900 = vadd.f32 %v2654, %v2825
  %v2901 = vadd.f32 %v2655, %v2827
  %v2902 = vadd.f32 %v2656, %v2830
  %v2903 = vadd.f32 %v2657, %v2832
  %v2904 = vadd.f32 %v2658, %v2835
  %v2905 = vadd.f32 %v2659, %v2837
  %v2906 = vadd.f32 %v2660, %v2840
  %v2907 = vadd.f32 %v2661, %v2842
  %v2914 = vrot.slane %v317, 1
  %v2915 = vrot.slane %v318, 1
  %v2916 = vsel %vm503, %v2914, %v2915
  %v2917 = vrot.slane %v319, 1
  %v2918 = vsel %vm503, %v2915, %v2917
  %v2919 = vrot.slane %v371, 1
  %v2920 = vrot.slane %v372, 1
  %v2921 = vsel %vm503, %v2919, %v2920
  %v2922 = vrot.slane %v373, 1
  %v2923 = vsel %vm503, %v2920, %v2922
  %v2928 = vpack.c.bf16 %v2918, %v2916
  %v2929 = vpack.c.bf16 %v2923, %v2921
  %s2930 = scalar_lea.vmem %s1, 28
  %v2931 = vld [vmem:[%s2930] sm:$0xf]
  %v2933 = vsel %vm91, %v2928, 0
  %v2936 = vsel %vm91, %v2929, 0
  %v2939 = vsel %vm858, %v2931, 0
  %2941 = vmatpush.bf16.msra.mxu0 0
  %2942 = vmatpush.bf16.msra.mxu0 0
  %2943 = vmatpush.bf16.msra.mxu0 0
  %2944 = vmatpush.bf16.msra.mxu0 0
  %2945 = vmatpush.bf16.msra.mxu0 0
  %2946 = vmatpush.bf16.msra.mxu0 0
  %2947 = vmatpush.bf16.msra.mxu0 0
  %2948 = vmatpush.bf16.msra.mxu0 %v2939
  %2949 = vmatmul.bf16.gmra.mxu0 %v769
  %v2950 = vpop.f32.mrf.mxu0
  %v2951 = vadd.f32 0.0, %v2950
  %v2952 = vpop.f32.mrf.mxu0
  %v2953 = vadd.f32 0.0, %v2952
  %2954 = vmatmul.bf16.gmra.mxu0 %v772
  %v2955 = vpop.f32.mrf.mxu0
  %v2956 = vadd.f32 0.0, %v2955
  %v2957 = vpop.f32.mrf.mxu0
  %v2958 = vadd.f32 0.0, %v2957
  %2959 = vmatmul.bf16.gmra.mxu0 %v775
  %v2960 = vpop.f32.mrf.mxu0
  %v2961 = vadd.f32 0.0, %v2960
  %v2962 = vpop.f32.mrf.mxu0
  %v2963 = vadd.f32 0.0, %v2962
  %2964 = vmatmul.bf16.gmra.mxu0 %v778
  %v2965 = vpop.f32.mrf.mxu0
  %v2966 = vadd.f32 0.0, %v2965
  %v2967 = vpop.f32.mrf.mxu0
  %v2968 = vadd.f32 0.0, %v2967
  %2969 = vmatmul.bf16.gmra.mxu0 %v781
  %v2970 = vpop.f32.mrf.mxu0
  %v2971 = vadd.f32 0.0, %v2970
  %v2972 = vpop.f32.mrf.mxu0
  %v2973 = vadd.f32 0.0, %v2972
  %2974 = vmatmul.bf16.gmra.mxu0 %v784
  %v2975 = vpop.f32.mrf.mxu0
  %v2976 = vadd.f32 0.0, %v2975
  %v2977 = vpop.f32.mrf.mxu0
  %v2978 = vadd.f32 0.0, %v2977
  %2979 = vmatmul.bf16.gmra.mxu0 %v787
  %v2980 = vpop.f32.mrf.mxu0
  %v2981 = vadd.f32 0.0, %v2980
  %v2982 = vpop.f32.mrf.mxu0
  %v2983 = vadd.f32 0.0, %v2982
  %2984 = vmatmul.bf16.gmra.mxu0 %v790
  %v2985 = vpop.f32.mrf.mxu0
  %v2986 = vadd.f32 0.0, %v2985
  %v2987 = vpop.f32.mrf.mxu0
  %v2988 = vadd.f32 0.0, %v2987
  %2989 = vmatmul.bf16.gmra.mxu0 %v793
  %v2990 = vpop.f32.mrf.mxu0
  %v2991 = vadd.f32 0.0, %v2990
  %v2992 = vpop.f32.mrf.mxu0
  %v2993 = vadd.f32 0.0, %v2992
  %2994 = vmatmul.bf16.gmra.mxu0 %v796
  %v2995 = vpop.f32.mrf.mxu0
  %v2996 = vadd.f32 0.0, %v2995
  %v2997 = vpop.f32.mrf.mxu0
  %v2998 = vadd.f32 0.0, %v2997
  %2999 = vmatmul.bf16.gmra.mxu0 %v799
  %v3000 = vpop.f32.mrf.mxu0
  %v3001 = vadd.f32 0.0, %v3000
  %v3002 = vpop.f32.mrf.mxu0
  %v3003 = vadd.f32 0.0, %v3002
  %3004 = vmatmul.bf16.gmra.mxu0 %v802
  %v3005 = vpop.f32.mrf.mxu0
  %v3006 = vadd.f32 0.0, %v3005
  %v3007 = vpop.f32.mrf.mxu0
  %v3008 = vadd.f32 0.0, %v3007
  %3009 = vmatmul.bf16.gmra.mxu0 %v805
  %v3010 = vpop.f32.mrf.mxu0
  %v3011 = vadd.f32 0.0, %v3010
  %v3012 = vpop.f32.mrf.mxu0
  %v3013 = vadd.f32 0.0, %v3012
  %3014 = vmatmul.bf16.gmra.mxu0 %v808
  %v3015 = vpop.f32.mrf.mxu0
  %v3016 = vadd.f32 0.0, %v3015
  %v3017 = vpop.f32.mrf.mxu0
  %v3018 = vadd.f32 0.0, %v3017
  %3019 = vmatmul.bf16.gmra.mxu0 %v2161
  %v3020 = vpop.f32.mrf.mxu0
  %v3021 = vadd.f32 0.0, %v3020
  %v3022 = vpop.f32.mrf.mxu0
  %v3023 = vadd.f32 0.0, %v3022
  %3024 = vmatmul.bf16.gmra.mxu0 %v2933
  %v3025 = vpop.f32.mrf.mxu0
  %v3026 = vadd.f32 0.0, %v3025
  %v3027 = vpop.f32.mrf.mxu0
  %v3028 = vadd.f32 0.0, %v3027
  %3029 = vmatmul.bf16.gmra.mxu0 %v817
  %v3030 = vpop.f32.mrf.mxu0
  %v3031 = vadd.f32 0.0, %v3030
  %v3032 = vpop.f32.mrf.mxu0
  %v3033 = vadd.f32 0.0, %v3032
  %3034 = vmatmul.bf16.gmra.mxu0 %v820
  %v3035 = vpop.f32.mrf.mxu0
  %v3036 = vadd.f32 0.0, %v3035
  %v3037 = vpop.f32.mrf.mxu0
  %v3038 = vadd.f32 0.0, %v3037
  %3039 = vmatmul.bf16.gmra.mxu0 %v823
  %v3040 = vpop.f32.mrf.mxu0
  %v3041 = vadd.f32 0.0, %v3040
  %v3042 = vpop.f32.mrf.mxu0
  %v3043 = vadd.f32 0.0, %v3042
  %3044 = vmatmul.bf16.gmra.mxu0 %v826
  %v3045 = vpop.f32.mrf.mxu0
  %v3046 = vadd.f32 0.0, %v3045
  %v3047 = vpop.f32.mrf.mxu0
  %v3048 = vadd.f32 0.0, %v3047
  %3049 = vmatmul.bf16.gmra.mxu0 %v829
  %v3050 = vpop.f32.mrf.mxu0
  %v3051 = vadd.f32 0.0, %v3050
  %v3052 = vpop.f32.mrf.mxu0
  %v3053 = vadd.f32 0.0, %v3052
  %3054 = vmatmul.bf16.gmra.mxu0 %v832
  %v3055 = vpop.f32.mrf.mxu0
  %v3056 = vadd.f32 0.0, %v3055
  %v3057 = vpop.f32.mrf.mxu0
  %v3058 = vadd.f32 0.0, %v3057
  %3059 = vmatmul.bf16.gmra.mxu0 %v835
  %v3060 = vpop.f32.mrf.mxu0
  %v3061 = vadd.f32 0.0, %v3060
  %v3062 = vpop.f32.mrf.mxu0
  %v3063 = vadd.f32 0.0, %v3062
  %3064 = vmatmul.bf16.gmra.mxu0 %v838
  %v3065 = vpop.f32.mrf.mxu0
  %v3066 = vadd.f32 0.0, %v3065
  %v3067 = vpop.f32.mrf.mxu0
  %v3068 = vadd.f32 0.0, %v3067
  %3069 = vmatmul.bf16.gmra.mxu0 %v841
  %v3070 = vpop.f32.mrf.mxu0
  %v3071 = vadd.f32 0.0, %v3070
  %v3072 = vpop.f32.mrf.mxu0
  %v3073 = vadd.f32 0.0, %v3072
  %3074 = vmatmul.bf16.gmra.mxu0 %v844
  %v3075 = vpop.f32.mrf.mxu0
  %v3076 = vadd.f32 0.0, %v3075
  %v3077 = vpop.f32.mrf.mxu0
  %v3078 = vadd.f32 0.0, %v3077
  %3079 = vmatmul.bf16.gmra.mxu0 %v847
  %v3080 = vpop.f32.mrf.mxu0
  %v3081 = vadd.f32 0.0, %v3080
  %v3082 = vpop.f32.mrf.mxu0
  %v3083 = vadd.f32 0.0, %v3082
  %3084 = vmatmul.bf16.gmra.mxu0 %v850
  %v3085 = vpop.f32.mrf.mxu0
  %v3086 = vadd.f32 0.0, %v3085
  %v3087 = vpop.f32.mrf.mxu0
  %v3088 = vadd.f32 0.0, %v3087
  %3089 = vmatmul.bf16.gmra.mxu0 %v853
  %v3090 = vpop.f32.mrf.mxu0
  %v3091 = vadd.f32 0.0, %v3090
  %v3092 = vpop.f32.mrf.mxu0
  %v3093 = vadd.f32 0.0, %v3092
  %3094 = vmatmul.bf16.gmra.mxu0 %v856
  %v3095 = vpop.f32.mrf.mxu0
  %v3096 = vadd.f32 0.0, %v3095
  %v3097 = vpop.f32.mrf.mxu0
  %v3098 = vadd.f32 0.0, %v3097
  %3099 = vmatmul.bf16.gmra.mxu0 %v2164
  %v3100 = vpop.f32.mrf.mxu0
  %v3101 = vadd.f32 0.0, %v3100
  %v3102 = vpop.f32.mrf.mxu0
  %v3103 = vadd.f32 0.0, %v3102
  %3104 = vmatmul.bf16.gmra.mxu0 %v2936
  %v3105 = vpop.f32.mrf.mxu0
  %v3106 = vadd.f32 0.0, %v3105
  %v3107 = vpop.f32.mrf.mxu0
  %v3108 = vadd.f32 0.0, %v3107
  %3109 = vdwg.mxu0
  %v3110 = vadd.f32 %v2844, %v2951
  %v3111 = vadd.f32 %v2845, %v2953
  %v3112 = vadd.f32 %v2846, %v2956
  %v3113 = vadd.f32 %v2847, %v2958
  %v3114 = vadd.f32 %v2848, %v2961
  %v3115 = vadd.f32 %v2849, %v2963
  %v3116 = vadd.f32 %v2850, %v2966
  %v3117 = vadd.f32 %v2851, %v2968
  %v3118 = vadd.f32 %v2852, %v2971
  %v3119 = vadd.f32 %v2853, %v2973
  %v3120 = vadd.f32 %v2854, %v2976
  %v3121 = vadd.f32 %v2855, %v2978
  %v3122 = vadd.f32 %v2856, %v2981
  %v3123 = vadd.f32 %v2857, %v2983
  %v3124 = vadd.f32 %v2858, %v2986
  %v3125 = vadd.f32 %v2859, %v2988
  %v3126 = vadd.f32 %v2860, %v2991
  %v3127 = vadd.f32 %v2861, %v2993
  %v3128 = vadd.f32 %v2862, %v2996
  %v3129 = vadd.f32 %v2863, %v2998
  %v3130 = vadd.f32 %v2864, %v3001
  %v3131 = vadd.f32 %v2865, %v3003
  %v3132 = vadd.f32 %v2866, %v3006
  %v3133 = vadd.f32 %v2867, %v3008
  %v3134 = vadd.f32 %v2868, %v3011
  %v3135 = vadd.f32 %v2869, %v3013
  %v3136 = vadd.f32 %v2870, %v3016
  %v3137 = vadd.f32 %v2871, %v3018
  %v3138 = vadd.f32 %v2872, %v3021
  %v3139 = vadd.f32 %v2873, %v3023
  %v3140 = vadd.f32 %v2874, %v3026
  %v3141 = vadd.f32 %v2875, %v3028
  %v3142 = vadd.f32 %v2876, %v3031
  %v3143 = vadd.f32 %v2877, %v3033
  %v3144 = vadd.f32 %v2878, %v3036
  %v3145 = vadd.f32 %v2879, %v3038
  %v3146 = vadd.f32 %v2880, %v3041
  %v3147 = vadd.f32 %v2881, %v3043
  %v3148 = vadd.f32 %v2882, %v3046
  %v3149 = vadd.f32 %v2883, %v3048
  %v3150 = vadd.f32 %v2884, %v3051
  %v3151 = vadd.f32 %v2885, %v3053
  %v3152 = vadd.f32 %v2886, %v3056
  %v3153 = vadd.f32 %v2887, %v3058
  %v3154 = vadd.f32 %v2888, %v3061
  %v3155 = vadd.f32 %v2889, %v3063
  %v3156 = vadd.f32 %v2890, %v3066
  %v3157 = vadd.f32 %v2891, %v3068
  %v3158 = vadd.f32 %v2892, %v3071
  %v3159 = vadd.f32 %v2893, %v3073
  %v3160 = vadd.f32 %v2894, %v3076
  %v3161 = vadd.f32 %v2895, %v3078
  %v3162 = vadd.f32 %v2896, %v3081
  %v3163 = vadd.f32 %v2897, %v3083
  %v3164 = vadd.f32 %v2898, %v3086
  %v3165 = vadd.f32 %v2899, %v3088
  %v3166 = vadd.f32 %v2900, %v3091
  %v3167 = vadd.f32 %v2901, %v3093
  %v3168 = vadd.f32 %v2902, %v3096
  %v3169 = vadd.f32 %v2903, %v3098
  %v3170 = vadd.f32 %v2904, %v3101
  %v3171 = vadd.f32 %v2905, %v3103
  %v3172 = vadd.f32 %v2906, %v3106
  %v3173 = vadd.f32 %v2907, %v3108
  %v3174 = vrot.slane %v317, 2
  %v3175 = vrot.slane %v318, 2
  %v3176 = vsel %vm1299, %v3174, %v3175
  %v3177 = vrot.slane %v319, 2
  %v3178 = vsel %vm1299, %v3175, %v3177
  %v3179 = vrot.slane %v371, 2
  %v3180 = vrot.slane %v372, 2
  %v3181 = vsel %vm1299, %v3179, %v3180
  %v3182 = vrot.slane %v373, 2
  %v3183 = vsel %vm1299, %v3180, %v3182
  %v3188 = vpack.c.bf16 %v3178, %v3176
  %v3189 = vpack.c.bf16 %v3183, %v3181
  %s3190 = scalar_lea.vmem %s1, 32
  %v3191 = vld [vmem:[%s3190] sm:$0xf]
  %v3193 = vsel %vm91, %v3188, 0
  %v3196 = vsel %vm91, %v3189, 0
  %v3199 = vsel %vm858, %v3191, 0
  %3201 = vmatpush.bf16.msra.mxu0 0
  %3202 = vmatpush.bf16.msra.mxu0 0
  %3203 = vmatpush.bf16.msra.mxu0 0
  %3204 = vmatpush.bf16.msra.mxu0 0
  %3205 = vmatpush.bf16.msra.mxu0 0
  %3206 = vmatpush.bf16.msra.mxu0 0
  %3207 = vmatpush.bf16.msra.mxu0 0
  %3208 = vmatpush.bf16.msra.mxu0 %v3199
  %3209 = vmatmul.bf16.gmra.mxu0 %v1565
  %v3210 = vpop.f32.mrf.mxu0
  %v3211 = vadd.f32 0.0, %v3210
  %v3212 = vpop.f32.mrf.mxu0
  %v3213 = vadd.f32 0.0, %v3212
  %3214 = vmatmul.bf16.gmra.mxu0 %v1568
  %v3215 = vpop.f32.mrf.mxu0
  %v3216 = vadd.f32 0.0, %v3215
  %v3217 = vpop.f32.mrf.mxu0
  %v3218 = vadd.f32 0.0, %v3217
  %3219 = vmatmul.bf16.gmra.mxu0 %v1571
  %v3220 = vpop.f32.mrf.mxu0
  %v3221 = vadd.f32 0.0, %v3220
  %v3222 = vpop.f32.mrf.mxu0
  %v3223 = vadd.f32 0.0, %v3222
  %3224 = vmatmul.bf16.gmra.mxu0 %v1574
  %v3225 = vpop.f32.mrf.mxu0
  %v3226 = vadd.f32 0.0, %v3225
  %v3227 = vpop.f32.mrf.mxu0
  %v3228 = vadd.f32 0.0, %v3227
  %3229 = vmatmul.bf16.gmra.mxu0 %v1577
  %v3230 = vpop.f32.mrf.mxu0
  %v3231 = vadd.f32 0.0, %v3230
  %v3232 = vpop.f32.mrf.mxu0
  %v3233 = vadd.f32 0.0, %v3232
  %3234 = vmatmul.bf16.gmra.mxu0 %v1580
  %v3235 = vpop.f32.mrf.mxu0
  %v3236 = vadd.f32 0.0, %v3235
  %v3237 = vpop.f32.mrf.mxu0
  %v3238 = vadd.f32 0.0, %v3237
  %3239 = vmatmul.bf16.gmra.mxu0 %v1583
  %v3240 = vpop.f32.mrf.mxu0
  %v3241 = vadd.f32 0.0, %v3240
  %v3242 = vpop.f32.mrf.mxu0
  %v3243 = vadd.f32 0.0, %v3242
  %3244 = vmatmul.bf16.gmra.mxu0 %v1586
  %v3245 = vpop.f32.mrf.mxu0
  %v3246 = vadd.f32 0.0, %v3245
  %v3247 = vpop.f32.mrf.mxu0
  %v3248 = vadd.f32 0.0, %v3247
  %3249 = vmatmul.bf16.gmra.mxu0 %v1589
  %v3250 = vpop.f32.mrf.mxu0
  %v3251 = vadd.f32 0.0, %v3250
  %v3252 = vpop.f32.mrf.mxu0
  %v3253 = vadd.f32 0.0, %v3252
  %3254 = vmatmul.bf16.gmra.mxu0 %v1592
  %v3255 = vpop.f32.mrf.mxu0
  %v3256 = vadd.f32 0.0, %v3255
  %v3257 = vpop.f32.mrf.mxu0
  %v3258 = vadd.f32 0.0, %v3257
  %3259 = vmatmul.bf16.gmra.mxu0 %v1595
  %v3260 = vpop.f32.mrf.mxu0
  %v3261 = vadd.f32 0.0, %v3260
  %v3262 = vpop.f32.mrf.mxu0
  %v3263 = vadd.f32 0.0, %v3262
  %3264 = vmatmul.bf16.gmra.mxu0 %v1598
  %v3265 = vpop.f32.mrf.mxu0
  %v3266 = vadd.f32 0.0, %v3265
  %v3267 = vpop.f32.mrf.mxu0
  %v3268 = vadd.f32 0.0, %v3267
  %3269 = vmatmul.bf16.gmra.mxu0 %v1601
  %v3270 = vpop.f32.mrf.mxu0
  %v3271 = vadd.f32 0.0, %v3270
  %v3272 = vpop.f32.mrf.mxu0
  %v3273 = vadd.f32 0.0, %v3272
  %3274 = vmatmul.bf16.gmra.mxu0 %v1604
  %v3275 = vpop.f32.mrf.mxu0
  %v3276 = vadd.f32 0.0, %v3275
  %v3277 = vpop.f32.mrf.mxu0
  %v3278 = vadd.f32 0.0, %v3277
  %3279 = vmatmul.bf16.gmra.mxu0 %v2421
  %v3280 = vpop.f32.mrf.mxu0
  %v3281 = vadd.f32 0.0, %v3280
  %v3282 = vpop.f32.mrf.mxu0
  %v3283 = vadd.f32 0.0, %v3282
  %3284 = vmatmul.bf16.gmra.mxu0 %v3193
  %v3285 = vpop.f32.mrf.mxu0
  %v3286 = vadd.f32 0.0, %v3285
  %v3287 = vpop.f32.mrf.mxu0
  %v3288 = vadd.f32 0.0, %v3287
  %3289 = vmatmul.bf16.gmra.mxu0 %v1613
  %v3290 = vpop.f32.mrf.mxu0
  %v3291 = vadd.f32 0.0, %v3290
  %v3292 = vpop.f32.mrf.mxu0
  %v3293 = vadd.f32 0.0, %v3292
  %3294 = vmatmul.bf16.gmra.mxu0 %v1616
  %v3295 = vpop.f32.mrf.mxu0
  %v3296 = vadd.f32 0.0, %v3295
  %v3297 = vpop.f32.mrf.mxu0
  %v3298 = vadd.f32 0.0, %v3297
  %3299 = vmatmul.bf16.gmra.mxu0 %v1619
  %v3300 = vpop.f32.mrf.mxu0
  %v3301 = vadd.f32 0.0, %v3300
  %v3302 = vpop.f32.mrf.mxu0
  %v3303 = vadd.f32 0.0, %v3302
  %3304 = vmatmul.bf16.gmra.mxu0 %v1622
  %v3305 = vpop.f32.mrf.mxu0
  %v3306 = vadd.f32 0.0, %v3305
  %v3307 = vpop.f32.mrf.mxu0
  %v3308 = vadd.f32 0.0, %v3307
  %3309 = vmatmul.bf16.gmra.mxu0 %v1625
  %v3310 = vpop.f32.mrf.mxu0
  %v3311 = vadd.f32 0.0, %v3310
  %v3312 = vpop.f32.mrf.mxu0
  %v3313 = vadd.f32 0.0, %v3312
  %3314 = vmatmul.bf16.gmra.mxu0 %v1628
  %v3315 = vpop.f32.mrf.mxu0
  %v3316 = vadd.f32 0.0, %v3315
  %v3317 = vpop.f32.mrf.mxu0
  %v3318 = vadd.f32 0.0, %v3317
  %3319 = vmatmul.bf16.gmra.mxu0 %v1631
  %v3320 = vpop.f32.mrf.mxu0
  %v3321 = vadd.f32 0.0, %v3320
  %v3322 = vpop.f32.mrf.mxu0
  %v3323 = vadd.f32 0.0, %v3322
  %3324 = vmatmul.bf16.gmra.mxu0 %v1634
  %v3325 = vpop.f32.mrf.mxu0
  %v3326 = vadd.f32 0.0, %v3325
  %v3327 = vpop.f32.mrf.mxu0
  %v3328 = vadd.f32 0.0, %v3327
  %3329 = vmatmul.bf16.gmra.mxu0 %v1637
  %v3330 = vpop.f32.mrf.mxu0
  %v3331 = vadd.f32 0.0, %v3330
  %v3332 = vpop.f32.mrf.mxu0
  %v3333 = vadd.f32 0.0, %v3332
  %3334 = vmatmul.bf16.gmra.mxu0 %v1640
  %v3335 = vpop.f32.mrf.mxu0
  %v3336 = vadd.f32 0.0, %v3335
  %v3337 = vpop.f32.mrf.mxu0
  %v3338 = vadd.f32 0.0, %v3337
  %3339 = vmatmul.bf16.gmra.mxu0 %v1643
  %v3340 = vpop.f32.mrf.mxu0
  %v3341 = vadd.f32 0.0, %v3340
  %v3342 = vpop.f32.mrf.mxu0
  %v3343 = vadd.f32 0.0, %v3342
  %3344 = vmatmul.bf16.gmra.mxu0 %v1646
  %v3345 = vpop.f32.mrf.mxu0
  %v3346 = vadd.f32 0.0, %v3345
  %v3347 = vpop.f32.mrf.mxu0
  %v3348 = vadd.f32 0.0, %v3347
  %3349 = vmatmul.bf16.gmra.mxu0 %v1649
  %v3350 = vpop.f32.mrf.mxu0
  %v3351 = vadd.f32 0.0, %v3350
  %v3352 = vpop.f32.mrf.mxu0
  %v3353 = vadd.f32 0.0, %v3352
  %3354 = vmatmul.bf16.gmra.mxu0 %v1652
  %v3355 = vpop.f32.mrf.mxu0
  %v3356 = vadd.f32 0.0, %v3355
  %v3357 = vpop.f32.mrf.mxu0
  %v3358 = vadd.f32 0.0, %v3357
  %3359 = vmatmul.bf16.gmra.mxu0 %v2424
  %v3360 = vpop.f32.mrf.mxu0
  %v3361 = vadd.f32 0.0, %v3360
  %v3362 = vpop.f32.mrf.mxu0
  %v3363 = vadd.f32 0.0, %v3362
  %3364 = vmatmul.bf16.gmra.mxu0 %v3196
  %v3365 = vpop.f32.mrf.mxu0
  %v3366 = vadd.f32 0.0, %v3365
  %v3367 = vpop.f32.mrf.mxu0
  %v3368 = vadd.f32 0.0, %v3367
  %3369 = vdwg.mxu0
  %v3370 = vadd.f32 %v3110, %v3211
  %v3371 = vadd.f32 %v3111, %v3213
  %v3372 = vadd.f32 %v3112, %v3216
  %v3373 = vadd.f32 %v3113, %v3218
  %v3374 = vadd.f32 %v3114, %v3221
  %v3375 = vadd.f32 %v3115, %v3223
  %v3376 = vadd.f32 %v3116, %v3226
  %v3377 = vadd.f32 %v3117, %v3228
  %v3378 = vadd.f32 %v3118, %v3231
  %v3379 = vadd.f32 %v3119, %v3233
  %v3380 = vadd.f32 %v3120, %v3236
  %v3381 = vadd.f32 %v3121, %v3238
  %v3382 = vadd.f32 %v3122, %v3241
  %v3383 = vadd.f32 %v3123, %v3243
  %v3384 = vadd.f32 %v3124, %v3246
  %v3385 = vadd.f32 %v3125, %v3248
  %v3386 = vadd.f32 %v3126, %v3251
  %v3387 = vadd.f32 %v3127, %v3253
  %v3388 = vadd.f32 %v3128, %v3256
  %v3389 = vadd.f32 %v3129, %v3258
  %v3390 = vadd.f32 %v3130, %v3261
  %v3391 = vadd.f32 %v3131, %v3263
  %v3392 = vadd.f32 %v3132, %v3266
  %v3393 = vadd.f32 %v3133, %v3268
  %v3394 = vadd.f32 %v3134, %v3271
  %v3395 = vadd.f32 %v3135, %v3273
  %v3396 = vadd.f32 %v3136, %v3276
  %v3397 = vadd.f32 %v3137, %v3278
  %v3398 = vadd.f32 %v3138, %v3281
  %v3399 = vadd.f32 %v3139, %v3283
  %v3400 = vadd.f32 %v3140, %v3286
  %v3401 = vadd.f32 %v3141, %v3288
  %v3402 = vadd.f32 %v3142, %v3291
  %v3403 = vadd.f32 %v3143, %v3293
  %v3404 = vadd.f32 %v3144, %v3296
  %v3405 = vadd.f32 %v3145, %v3298
  %v3406 = vadd.f32 %v3146, %v3301
  %v3407 = vadd.f32 %v3147, %v3303
  %v3408 = vadd.f32 %v3148, %v3306
  %v3409 = vadd.f32 %v3149, %v3308
  %v3410 = vadd.f32 %v3150, %v3311
  %v3411 = vadd.f32 %v3151, %v3313
  %v3412 = vadd.f32 %v3152, %v3316
  %v3413 = vadd.f32 %v3153, %v3318
  %v3414 = vadd.f32 %v3154, %v3321
  %v3415 = vadd.f32 %v3155, %v3323
  %v3416 = vadd.f32 %v3156, %v3326
  %v3417 = vadd.f32 %v3157, %v3328
  %v3418 = vadd.f32 %v3158, %v3331
  %v3419 = vadd.f32 %v3159, %v3333
  %v3420 = vadd.f32 %v3160, %v3336
  %v3421 = vadd.f32 %v3161, %v3338
  %v3422 = vadd.f32 %v3162, %v3341
  %v3423 = vadd.f32 %v3163, %v3343
  %v3424 = vadd.f32 %v3164, %v3346
  %v3425 = vadd.f32 %v3165, %v3348
  %v3426 = vadd.f32 %v3166, %v3351
  %v3427 = vadd.f32 %v3167, %v3353
  %v3428 = vadd.f32 %v3168, %v3356
  %v3429 = vadd.f32 %v3169, %v3358
  %v3430 = vadd.f32 %v3170, %v3361
  %v3431 = vadd.f32 %v3171, %v3363
  %v3432 = vadd.f32 %v3172, %v3366
  %v3433 = vadd.f32 %v3173, %v3368
  %v3434 = vsel %vm91, %v3370, 0.0
  %v3435 = vsel %vm91, %v3371, 0.0
  %v3436 = vadd.f32 %v3434, %v3435
  %v3437 = vsel %vm91, %v3372, 0.0
  %v3438 = vadd.f32 %v3436, %v3437
  %v3439 = vsel %vm91, %v3373, 0.0
  %v3440 = vadd.f32 %v3438, %v3439
  %v3441 = vsel %vm91, %v3374, 0.0
  %v3442 = vadd.f32 %v3440, %v3441
  %v3443 = vsel %vm91, %v3375, 0.0
  %v3444 = vadd.f32 %v3442, %v3443
  %v3445 = vsel %vm91, %v3376, 0.0
  %v3446 = vadd.f32 %v3444, %v3445
  %v3447 = vsel %vm91, %v3377, 0.0
  %v3448 = vadd.f32 %v3446, %v3447
  %v3449 = vsel %vm91, %v3378, 0.0
  %v3450 = vadd.f32 %v3448, %v3449
  %v3451 = vsel %vm91, %v3379, 0.0
  %v3452 = vadd.f32 %v3450, %v3451
  %v3453 = vsel %vm91, %v3380, 0.0
  %v3454 = vadd.f32 %v3452, %v3453
  %v3455 = vsel %vm91, %v3381, 0.0
  %v3456 = vadd.f32 %v3454, %v3455
  %v3457 = vsel %vm91, %v3382, 0.0
  %v3458 = vadd.f32 %v3456, %v3457
  %v3459 = vsel %vm91, %v3383, 0.0
  %v3460 = vadd.f32 %v3458, %v3459
  %v3461 = vsel %vm91, %v3384, 0.0
  %v3462 = vadd.f32 %v3460, %v3461
  %v3463 = vsel %vm91, %v3385, 0.0
  %v3464 = vadd.f32 %v3462, %v3463
  %v3465 = vsel %vm91, %v3386, 0.0
  %v3466 = vadd.f32 %v3464, %v3465
  %v3467 = vsel %vm91, %v3387, 0.0
  %v3468 = vadd.f32 %v3466, %v3467
  %v3469 = vsel %vm91, %v3388, 0.0
  %v3470 = vadd.f32 %v3468, %v3469
  %v3471 = vsel %vm91, %v3389, 0.0
  %v3472 = vadd.f32 %v3470, %v3471
  %v3473 = vsel %vm91, %v3390, 0.0
  %v3474 = vadd.f32 %v3472, %v3473
  %v3475 = vsel %vm91, %v3391, 0.0
  %v3476 = vadd.f32 %v3474, %v3475
  %v3477 = vsel %vm91, %v3392, 0.0
  %v3478 = vadd.f32 %v3476, %v3477
  %v3479 = vsel %vm91, %v3393, 0.0
  %v3480 = vadd.f32 %v3478, %v3479
  %v3481 = vsel %vm91, %v3394, 0.0
  %v3482 = vadd.f32 %v3480, %v3481
  %v3483 = vsel %vm91, %v3395, 0.0
  %v3484 = vadd.f32 %v3482, %v3483
  %v3485 = vsel %vm91, %v3396, 0.0
  %v3486 = vadd.f32 %v3484, %v3485
  %v3487 = vsel %vm91, %v3397, 0.0
  %v3488 = vadd.f32 %v3486, %v3487
  %v3489 = vsel %vm91, %v3398, 0.0
  %v3490 = vadd.f32 %v3488, %v3489
  %v3491 = vsel %vm91, %v3399, 0.0
  %v3492 = vadd.f32 %v3490, %v3491
  %v3493 = vsel %vm91, %v3400, 0.0
  %v3494 = vadd.f32 %v3492, %v3493
  %v3495 = vsel %vm91, %v3401, 0.0
  %v3496 = vadd.f32 %v3494, %v3495
  %v3497 = vsel %vm91, %v3402, 0.0
  %v3498 = vadd.f32 %v3496, %v3497
  %v3499 = vsel %vm91, %v3403, 0.0
  %v3500 = vadd.f32 %v3498, %v3499
  %v3501 = vsel %vm91, %v3404, 0.0
  %v3502 = vadd.f32 %v3500, %v3501
  %v3503 = vsel %vm91, %v3405, 0.0
  %v3504 = vadd.f32 %v3502, %v3503
  %v3505 = vsel %vm91, %v3406, 0.0
  %v3506 = vadd.f32 %v3504, %v3505
  %v3507 = vsel %vm91, %v3407, 0.0
  %v3508 = vadd.f32 %v3506, %v3507
  %v3509 = vsel %vm91, %v3408, 0.0
  %v3510 = vadd.f32 %v3508, %v3509
  %v3511 = vsel %vm91, %v3409, 0.0
  %v3512 = vadd.f32 %v3510, %v3511
  %v3513 = vsel %vm91, %v3410, 0.0
  %v3514 = vadd.f32 %v3512, %v3513
  %v3515 = vsel %vm91, %v3411, 0.0
  %v3516 = vadd.f32 %v3514, %v3515
  %v3517 = vsel %vm91, %v3412, 0.0
  %v3518 = vadd.f32 %v3516, %v3517
  %v3519 = vsel %vm91, %v3413, 0.0
  %v3520 = vadd.f32 %v3518, %v3519
  %v3521 = vsel %vm91, %v3414, 0.0
  %v3522 = vadd.f32 %v3520, %v3521
  %v3523 = vsel %vm91, %v3415, 0.0
  %v3524 = vadd.f32 %v3522, %v3523
  %v3525 = vsel %vm91, %v3416, 0.0
  %v3526 = vadd.f32 %v3524, %v3525
  %v3527 = vsel %vm91, %v3417, 0.0
  %v3528 = vadd.f32 %v3526, %v3527
  %v3529 = vsel %vm91, %v3418, 0.0
  %v3530 = vadd.f32 %v3528, %v3529
  %v3531 = vsel %vm91, %v3419, 0.0
  %v3532 = vadd.f32 %v3530, %v3531
  %v3533 = vsel %vm91, %v3420, 0.0
  %v3534 = vadd.f32 %v3532, %v3533
  %v3535 = vsel %vm91, %v3421, 0.0
  %v3536 = vadd.f32 %v3534, %v3535
  %v3537 = vsel %vm91, %v3422, 0.0
  %v3538 = vadd.f32 %v3536, %v3537
  %v3539 = vsel %vm91, %v3423, 0.0
  %v3540 = vadd.f32 %v3538, %v3539
  %v3541 = vsel %vm91, %v3424, 0.0
  %v3542 = vadd.f32 %v3540, %v3541
  %v3543 = vsel %vm91, %v3425, 0.0
  %v3544 = vadd.f32 %v3542, %v3543
  %v3545 = vsel %vm91, %v3426, 0.0
  %v3546 = vadd.f32 %v3544, %v3545
  %v3547 = vsel %vm91, %v3427, 0.0
  %v3548 = vadd.f32 %v3546, %v3547
  %v3549 = vsel %vm91, %v3428, 0.0
  %v3550 = vadd.f32 %v3548, %v3549
  %v3551 = vsel %vm91, %v3429, 0.0
  %v3552 = vadd.f32 %v3550, %v3551
  %v3553 = vsel %vm91, %v3430, 0.0
  %v3554 = vadd.f32 %v3552, %v3553
  %v3555 = vsel %vm91, %v3431, 0.0
  %v3556 = vadd.f32 %v3554, %v3555
  %v3557 = vsel %vm91, %v3432, 0.0
  %v3558 = vadd.f32 %v3556, %v3557
  %v3559 = vsel %vm91, %v3433, 0.0
  %v3560 = vadd.f32 %v3558, %v3559
  %v3561 = vrot.slane %v3560, 4
  %v3562 = vadd.f32 %v3560, %v3561
  %v3563 = vrot.slane %v3562, 2
  %v3564 = vadd.f32 %v3562, %v3563
  %v3565 = vrot.slane %v3564, 1
  %v3566 = vadd.f32 %v3564, %v3565
  %v3567 = vmul.f32 %v3370, %v3370
  %v3568 = vmul.f32 %v3371, %v3371
  %v3569 = vmul.f32 %v3372, %v3372
  %v3570 = vmul.f32 %v3373, %v3373
  %v3571 = vmul.f32 %v3374, %v3374
  %v3572 = vmul.f32 %v3375, %v3375
  %v3573 = vmul.f32 %v3376, %v3376
  %v3574 = vmul.f32 %v3377, %v3377
  %v3575 = vmul.f32 %v3378, %v3378
  %v3576 = vmul.f32 %v3379, %v3379
  %v3577 = vmul.f32 %v3380, %v3380
  %v3578 = vmul.f32 %v3381, %v3381
  %v3579 = vmul.f32 %v3382, %v3382
  %v3580 = vmul.f32 %v3383, %v3383
  %v3581 = vmul.f32 %v3384, %v3384
  %v3582 = vmul.f32 %v3385, %v3385
  %v3583 = vmul.f32 %v3386, %v3386
  %v3584 = vmul.f32 %v3387, %v3387
  %v3585 = vmul.f32 %v3388, %v3388
  %v3586 = vmul.f32 %v3389, %v3389
  %v3587 = vmul.f32 %v3390, %v3390
  %v3588 = vmul.f32 %v3391, %v3391
  %v3589 = vmul.f32 %v3392, %v3392
  %v3590 = vmul.f32 %v3393, %v3393
  %v3591 = vmul.f32 %v3394, %v3394
  %v3592 = vmul.f32 %v3395, %v3395
  %v3593 = vmul.f32 %v3396, %v3396
  %v3594 = vmul.f32 %v3397, %v3397
  %v3595 = vmul.f32 %v3398, %v3398
  %v3596 = vmul.f32 %v3399, %v3399
  %v3597 = vmul.f32 %v3400, %v3400
  %v3598 = vmul.f32 %v3401, %v3401
  %v3599 = vmul.f32 %v3402, %v3402
  %v3600 = vmul.f32 %v3403, %v3403
  %v3601 = vmul.f32 %v3404, %v3404
  %v3602 = vmul.f32 %v3405, %v3405
  %v3603 = vmul.f32 %v3406, %v3406
  %v3604 = vmul.f32 %v3407, %v3407
  %v3605 = vmul.f32 %v3408, %v3408
  %v3606 = vmul.f32 %v3409, %v3409
  %v3607 = vmul.f32 %v3410, %v3410
  %v3608 = vmul.f32 %v3411, %v3411
  %v3609 = vmul.f32 %v3412, %v3412
  %v3610 = vmul.f32 %v3413, %v3413
  %v3611 = vmul.f32 %v3414, %v3414
  %v3612 = vmul.f32 %v3415, %v3415
  %v3613 = vmul.f32 %v3416, %v3416
  %v3614 = vmul.f32 %v3417, %v3417
  %v3615 = vmul.f32 %v3418, %v3418
  %v3616 = vmul.f32 %v3419, %v3419
  %v3617 = vmul.f32 %v3420, %v3420
  %v3618 = vmul.f32 %v3421, %v3421
  %v3619 = vmul.f32 %v3422, %v3422
  %v3620 = vmul.f32 %v3423, %v3423
  %v3621 = vmul.f32 %v3424, %v3424
  %v3622 = vmul.f32 %v3425, %v3425
  %v3623 = vmul.f32 %v3426, %v3426
  %v3624 = vmul.f32 %v3427, %v3427
  %v3625 = vmul.f32 %v3428, %v3428
  %v3626 = vmul.f32 %v3429, %v3429
  %v3627 = vmul.f32 %v3430, %v3430
  %v3628 = vmul.f32 %v3431, %v3431
  %v3629 = vmul.f32 %v3432, %v3432
  %v3630 = vmul.f32 %v3433, %v3433
  %v3631 = vsel %vm91, %v3567, 0.0
  %v3632 = vsel %vm91, %v3568, 0.0
  %v3633 = vadd.f32 %v3631, %v3632
  %v3634 = vsel %vm91, %v3569, 0.0
  %v3635 = vadd.f32 %v3633, %v3634
  %v3636 = vsel %vm91, %v3570, 0.0
  %v3637 = vadd.f32 %v3635, %v3636
  %v3638 = vsel %vm91, %v3571, 0.0
  %v3639 = vadd.f32 %v3637, %v3638
  %v3640 = vsel %vm91, %v3572, 0.0
  %v3641 = vadd.f32 %v3639, %v3640
  %v3642 = vsel %vm91, %v3573, 0.0
  %v3643 = vadd.f32 %v3641, %v3642
  %v3644 = vsel %vm91, %v3574, 0.0
  %v3645 = vadd.f32 %v3643, %v3644
  %v3646 = vsel %vm91, %v3575, 0.0
  %v3647 = vadd.f32 %v3645, %v3646
  %v3648 = vsel %vm91, %v3576, 0.0
  %v3649 = vadd.f32 %v3647, %v3648
  %v3650 = vsel %vm91, %v3577, 0.0
  %v3651 = vadd.f32 %v3649, %v3650
  %v3652 = vsel %vm91, %v3578, 0.0
  %v3653 = vadd.f32 %v3651, %v3652
  %v3654 = vsel %vm91, %v3579, 0.0
  %v3655 = vadd.f32 %v3653, %v3654
  %v3656 = vsel %vm91, %v3580, 0.0
  %v3657 = vadd.f32 %v3655, %v3656
  %v3658 = vsel %vm91, %v3581, 0.0
  %v3659 = vadd.f32 %v3657, %v3658
  %v3660 = vsel %vm91, %v3582, 0.0
  %v3661 = vadd.f32 %v3659, %v3660
  %v3662 = vsel %vm91, %v3583, 0.0
  %v3663 = vadd.f32 %v3661, %v3662
  %v3664 = vsel %vm91, %v3584, 0.0
  %v3665 = vadd.f32 %v3663, %v3664
  %v3666 = vsel %vm91, %v3585, 0.0
  %v3667 = vadd.f32 %v3665, %v3666
  %v3668 = vsel %vm91, %v3586, 0.0
  %v3669 = vadd.f32 %v3667, %v3668
  %v3670 = vsel %vm91, %v3587, 0.0
  %v3671 = vadd.f32 %v3669, %v3670
  %v3672 = vsel %vm91, %v3588, 0.0
  %v3673 = vadd.f32 %v3671, %v3672
  %v3674 = vsel %vm91, %v3589, 0.0
  %v3675 = vadd.f32 %v3673, %v3674
  %v3676 = vsel %vm91, %v3590, 0.0
  %v3677 = vadd.f32 %v3675, %v3676
  %v3678 = vsel %vm91, %v3591, 0.0
  %v3679 = vadd.f32 %v3677, %v3678
  %v3680 = vsel %vm91, %v3592, 0.0
  %v3681 = vadd.f32 %v3679, %v3680
  %v3682 = vsel %vm91, %v3593, 0.0
  %v3683 = vadd.f32 %v3681, %v3682
  %v3684 = vsel %vm91, %v3594, 0.0
  %v3685 = vadd.f32 %v3683, %v3684
  %v3686 = vsel %vm91, %v3595, 0.0
  %v3687 = vadd.f32 %v3685, %v3686
  %v3688 = vsel %vm91, %v3596, 0.0
  %v3689 = vadd.f32 %v3687, %v3688
  %v3690 = vsel %vm91, %v3597, 0.0
  %v3691 = vadd.f32 %v3689, %v3690
  %v3692 = vsel %vm91, %v3598, 0.0
  %v3693 = vadd.f32 %v3691, %v3692
  %v3694 = vsel %vm91, %v3599, 0.0
  %v3695 = vadd.f32 %v3693, %v3694
  %v3696 = vsel %vm91, %v3600, 0.0
  %v3697 = vadd.f32 %v3695, %v3696
  %v3698 = vsel %vm91, %v3601, 0.0
  %v3699 = vadd.f32 %v3697, %v3698
  %v3700 = vsel %vm91, %v3602, 0.0
  %v3701 = vadd.f32 %v3699, %v3700
  %v3702 = vsel %vm91, %v3603, 0.0
  %v3703 = vadd.f32 %v3701, %v3702
  %v3704 = vsel %vm91, %v3604, 0.0
  %v3705 = vadd.f32 %v3703, %v3704
  %v3706 = vsel %vm91, %v3605, 0.0
  %v3707 = vadd.f32 %v3705, %v3706
  %v3708 = vsel %vm91, %v3606, 0.0
  %v3709 = vadd.f32 %v3707, %v3708
  %v3710 = vsel %vm91, %v3607, 0.0
  %v3711 = vadd.f32 %v3709, %v3710
  %v3712 = vsel %vm91, %v3608, 0.0
  %v3713 = vadd.f32 %v3711, %v3712
  %v3714 = vsel %vm91, %v3609, 0.0
  %v3715 = vadd.f32 %v3713, %v3714
  %v3716 = vsel %vm91, %v3610, 0.0
  %v3717 = vadd.f32 %v3715, %v3716
  %v3718 = vsel %vm91, %v3611, 0.0
  %v3719 = vadd.f32 %v3717, %v3718
  %v3720 = vsel %vm91, %v3612, 0.0
  %v3721 = vadd.f32 %v3719, %v3720
  %v3722 = vsel %vm91, %v3613, 0.0
  %v3723 = vadd.f32 %v3721, %v3722
  %v3724 = vsel %vm91, %v3614, 0.0
  %v3725 = vadd.f32 %v3723, %v3724
  %v3726 = vsel %vm91, %v3615, 0.0
  %v3727 = vadd.f32 %v3725, %v3726
  %v3728 = vsel %vm91, %v3616, 0.0
  %v3729 = vadd.f32 %v3727, %v3728
  %v3730 = vsel %vm91, %v3617, 0.0
  %v3731 = vadd.f32 %v3729, %v3730
  %v3732 = vsel %vm91, %v3618, 0.0
  %v3733 = vadd.f32 %v3731, %v3732
  %v3734 = vsel %vm91, %v3619, 0.0
  %v3735 = vadd.f32 %v3733, %v3734
  %v3736 = vsel %vm91, %v3620, 0.0
  %v3737 = vadd.f32 %v3735, %v3736
  %v3738 = vsel %vm91, %v3621, 0.0
  %v3739 = vadd.f32 %v3737, %v3738
  %v3740 = vsel %vm91, %v3622, 0.0
  %v3741 = vadd.f32 %v3739, %v3740
  %v3742 = vsel %vm91, %v3623, 0.0
  %v3743 = vadd.f32 %v3741, %v3742
  %v3744 = vsel %vm91, %v3624, 0.0
  %v3745 = vadd.f32 %v3743, %v3744
  %v3746 = vsel %vm91, %v3625, 0.0
  %v3747 = vadd.f32 %v3745, %v3746
  %v3748 = vsel %vm91, %v3626, 0.0
  %v3749 = vadd.f32 %v3747, %v3748
  %v3750 = vsel %vm91, %v3627, 0.0
  %v3751 = vadd.f32 %v3749, %v3750
  %v3752 = vsel %vm91, %v3628, 0.0
  %v3753 = vadd.f32 %v3751, %v3752
  %v3754 = vsel %vm91, %v3629, 0.0
  %v3755 = vadd.f32 %v3753, %v3754
  %v3756 = vsel %vm91, %v3630, 0.0
  %v3757 = vadd.f32 %v3755, %v3756
  %v3758 = vrot.slane %v3757, 4
  %v3759 = vadd.f32 %v3757, %v3758
  %v3760 = vrot.slane %v3759, 2
  %v3761 = vadd.f32 %v3759, %v3760
  %v3762 = vrot.slane %v3761, 1
  %v3763 = vadd.f32 %v3761, %v3762
  %v3764 = vmul.f32 %v3566, 0.001953125
  %v3765 = vmul.f32 %v3763, 0.001953125
  %v3766 = vmul.f32 %v3764, %v3764
  %v3767 = vsub.f32 %v3765, %v3766
  %v3768 = vmax.f32 %v3767, 0.0
  %v3769 = vld [vmem:[%s3] sm:$0x1]
  %v3770 = vadd.f32 %v3768, 1e-05
  %v3771 = vrsqrt.pop %v3770
  %v3772 = vmul.f32 %v3771, %v3770
  %v3773 = vmul.f32 %v3772, %v3771
  %v3774 = vmul.f32 0.5, %v3773
  %v3775 = vsub.f32 1.5, %v3774
  %v3776 = vmul.f32 %v3771, %v3775
  %vm3777 = vweird.f32 %v3770
  %vm3778 = vweird.f32 %v3771
  %vm3779 = vmor %vm3777, %vm3778
  %v3780 = vsel %vm3779, %v3771, %v3776
  %v3781 = vmul.f32 %v3769, %v3780
  %v3782 = vld [vmem:[%s4] sm:$0x1]
  %v3783 = vmul.f32 %v3764, %v3781
  %v3784 = vsub.f32 %v3782, %v3783
  %v3786 = vperm.slane %v3781, 0
  %v3788 = vmul.f32 %v3370, %v3786
  %v3789 = vmul.f32 %v3371, %v3786
  %v3790 = vmul.f32 %v3372, %v3786
  %v3791 = vmul.f32 %v3373, %v3786
  %v3792 = vmul.f32 %v3374, %v3786
  %v3793 = vmul.f32 %v3375, %v3786
  %v3794 = vmul.f32 %v3376, %v3786
  %v3795 = vmul.f32 %v3377, %v3786
  %v3796 = vmul.f32 %v3378, %v3786
  %v3797 = vmul.f32 %v3379, %v3786
  %v3798 = vmul.f32 %v3380, %v3786
  %v3799 = vmul.f32 %v3381, %v3786
  %v3800 = vmul.f32 %v3382, %v3786
  %v3801 = vmul.f32 %v3383, %v3786
  %v3802 = vmul.f32 %v3384, %v3786
  %v3803 = vmul.f32 %v3385, %v3786
  %v3804 = vmul.f32 %v3386, %v3786
  %v3805 = vmul.f32 %v3387, %v3786
  %v3806 = vmul.f32 %v3388, %v3786
  %v3807 = vmul.f32 %v3389, %v3786
  %v3808 = vmul.f32 %v3390, %v3786
  %v3809 = vmul.f32 %v3391, %v3786
  %v3810 = vmul.f32 %v3392, %v3786
  %v3811 = vmul.f32 %v3393, %v3786
  %v3812 = vmul.f32 %v3394, %v3786
  %v3813 = vmul.f32 %v3395, %v3786
  %v3814 = vmul.f32 %v3396, %v3786
  %v3815 = vmul.f32 %v3397, %v3786
  %v3816 = vmul.f32 %v3398, %v3786
  %v3817 = vmul.f32 %v3399, %v3786
  %v3818 = vmul.f32 %v3400, %v3786
  %v3819 = vmul.f32 %v3401, %v3786
  %v3820 = vmul.f32 %v3402, %v3786
  %v3821 = vmul.f32 %v3403, %v3786
  %v3822 = vmul.f32 %v3404, %v3786
  %v3823 = vmul.f32 %v3405, %v3786
  %v3824 = vmul.f32 %v3406, %v3786
  %v3825 = vmul.f32 %v3407, %v3786
  %v3826 = vmul.f32 %v3408, %v3786
  %v3827 = vmul.f32 %v3409, %v3786
  %v3828 = vmul.f32 %v3410, %v3786
  %v3829 = vmul.f32 %v3411, %v3786
  %v3830 = vmul.f32 %v3412, %v3786
  %v3831 = vmul.f32 %v3413, %v3786
  %v3832 = vmul.f32 %v3414, %v3786
  %v3833 = vmul.f32 %v3415, %v3786
  %v3834 = vmul.f32 %v3416, %v3786
  %v3835 = vmul.f32 %v3417, %v3786
  %v3836 = vmul.f32 %v3418, %v3786
  %v3837 = vmul.f32 %v3419, %v3786
  %v3838 = vmul.f32 %v3420, %v3786
  %v3839 = vmul.f32 %v3421, %v3786
  %v3840 = vmul.f32 %v3422, %v3786
  %v3841 = vmul.f32 %v3423, %v3786
  %v3842 = vmul.f32 %v3424, %v3786
  %v3843 = vmul.f32 %v3425, %v3786
  %v3844 = vmul.f32 %v3426, %v3786
  %v3845 = vmul.f32 %v3427, %v3786
  %v3846 = vmul.f32 %v3428, %v3786
  %v3847 = vmul.f32 %v3429, %v3786
  %v3848 = vmul.f32 %v3430, %v3786
  %v3849 = vmul.f32 %v3431, %v3786
  %v3850 = vmul.f32 %v3432, %v3786
  %v3851 = vmul.f32 %v3433, %v3786
  %v3853 = vperm.slane %v3784, 0
  %v3855 = vadd.f32 %v3788, %v3853
  %v3856 = vadd.f32 %v3789, %v3853
  %v3857 = vadd.f32 %v3790, %v3853
  %v3858 = vadd.f32 %v3791, %v3853
  %v3859 = vadd.f32 %v3792, %v3853
  %v3860 = vadd.f32 %v3793, %v3853
  %v3861 = vadd.f32 %v3794, %v3853
  %v3862 = vadd.f32 %v3795, %v3853
  %v3863 = vadd.f32 %v3796, %v3853
  %v3864 = vadd.f32 %v3797, %v3853
  %v3865 = vadd.f32 %v3798, %v3853
  %v3866 = vadd.f32 %v3799, %v3853
  %v3867 = vadd.f32 %v3800, %v3853
  %v3868 = vadd.f32 %v3801, %v3853
  %v3869 = vadd.f32 %v3802, %v3853
  %v3870 = vadd.f32 %v3803, %v3853
  %v3871 = vadd.f32 %v3804, %v3853
  %v3872 = vadd.f32 %v3805, %v3853
  %v3873 = vadd.f32 %v3806, %v3853
  %v3874 = vadd.f32 %v3807, %v3853
  %v3875 = vadd.f32 %v3808, %v3853
  %v3876 = vadd.f32 %v3809, %v3853
  %v3877 = vadd.f32 %v3810, %v3853
  %v3878 = vadd.f32 %v3811, %v3853
  %v3879 = vadd.f32 %v3812, %v3853
  %v3880 = vadd.f32 %v3813, %v3853
  %v3881 = vadd.f32 %v3814, %v3853
  %v3882 = vadd.f32 %v3815, %v3853
  %v3883 = vadd.f32 %v3816, %v3853
  %v3884 = vadd.f32 %v3817, %v3853
  %v3885 = vadd.f32 %v3818, %v3853
  %v3886 = vadd.f32 %v3819, %v3853
  %v3887 = vadd.f32 %v3820, %v3853
  %v3888 = vadd.f32 %v3821, %v3853
  %v3889 = vadd.f32 %v3822, %v3853
  %v3890 = vadd.f32 %v3823, %v3853
  %v3891 = vadd.f32 %v3824, %v3853
  %v3892 = vadd.f32 %v3825, %v3853
  %v3893 = vadd.f32 %v3826, %v3853
  %v3894 = vadd.f32 %v3827, %v3853
  %v3895 = vadd.f32 %v3828, %v3853
  %v3896 = vadd.f32 %v3829, %v3853
  %v3897 = vadd.f32 %v3830, %v3853
  %v3898 = vadd.f32 %v3831, %v3853
  %v3899 = vadd.f32 %v3832, %v3853
  %v3900 = vadd.f32 %v3833, %v3853
  %v3901 = vadd.f32 %v3834, %v3853
  %v3902 = vadd.f32 %v3835, %v3853
  %v3903 = vadd.f32 %v3836, %v3853
  %v3904 = vadd.f32 %v3837, %v3853
  %v3905 = vadd.f32 %v3838, %v3853
  %v3906 = vadd.f32 %v3839, %v3853
  %v3907 = vadd.f32 %v3840, %v3853
  %v3908 = vadd.f32 %v3841, %v3853
  %v3909 = vadd.f32 %v3842, %v3853
  %v3910 = vadd.f32 %v3843, %v3853
  %v3911 = vadd.f32 %v3844, %v3853
  %v3912 = vadd.f32 %v3845, %v3853
  %v3913 = vadd.f32 %v3846, %v3853
  %v3914 = vadd.f32 %v3847, %v3853
  %v3915 = vadd.f32 %v3848, %v3853
  %v3916 = vadd.f32 %v3849, %v3853
  %v3917 = vadd.f32 %v3850, %v3853
  %v3918 = vadd.f32 %v3851, %v3853
  %v3919 = vmax.f32 %v3855, 0.0
  %v3920 = vmax.f32 %v3856, 0.0
  %v3921 = vmax.f32 %v3857, 0.0
  %v3922 = vmax.f32 %v3858, 0.0
  %v3923 = vmax.f32 %v3859, 0.0
  %v3924 = vmax.f32 %v3860, 0.0
  %v3925 = vmax.f32 %v3861, 0.0
  %v3926 = vmax.f32 %v3862, 0.0
  %v3927 = vmax.f32 %v3863, 0.0
  %v3928 = vmax.f32 %v3864, 0.0
  %v3929 = vmax.f32 %v3865, 0.0
  %v3930 = vmax.f32 %v3866, 0.0
  %v3931 = vmax.f32 %v3867, 0.0
  %v3932 = vmax.f32 %v3868, 0.0
  %v3933 = vmax.f32 %v3869, 0.0
  %v3934 = vmax.f32 %v3870, 0.0
  %v3935 = vmax.f32 %v3871, 0.0
  %v3936 = vmax.f32 %v3872, 0.0
  %v3937 = vmax.f32 %v3873, 0.0
  %v3938 = vmax.f32 %v3874, 0.0
  %v3939 = vmax.f32 %v3875, 0.0
  %v3940 = vmax.f32 %v3876, 0.0
  %v3941 = vmax.f32 %v3877, 0.0
  %v3942 = vmax.f32 %v3878, 0.0
  %v3943 = vmax.f32 %v3879, 0.0
  %v3944 = vmax.f32 %v3880, 0.0
  %v3945 = vmax.f32 %v3881, 0.0
  %v3946 = vmax.f32 %v3882, 0.0
  %v3947 = vmax.f32 %v3883, 0.0
  %v3948 = vmax.f32 %v3884, 0.0
  %v3949 = vmax.f32 %v3885, 0.0
  %v3950 = vmax.f32 %v3886, 0.0
  %v3951 = vmax.f32 %v3887, 0.0
  %v3952 = vmax.f32 %v3888, 0.0
  %v3953 = vmax.f32 %v3889, 0.0
  %v3954 = vmax.f32 %v3890, 0.0
  %v3955 = vmax.f32 %v3891, 0.0
  %v3956 = vmax.f32 %v3892, 0.0
  %v3957 = vmax.f32 %v3893, 0.0
  %v3958 = vmax.f32 %v3894, 0.0
  %v3959 = vmax.f32 %v3895, 0.0
  %v3960 = vmax.f32 %v3896, 0.0
  %v3961 = vmax.f32 %v3897, 0.0
  %v3962 = vmax.f32 %v3898, 0.0
  %v3963 = vmax.f32 %v3899, 0.0
  %v3964 = vmax.f32 %v3900, 0.0
  %v3965 = vmax.f32 %v3901, 0.0
  %v3966 = vmax.f32 %v3902, 0.0
  %v3967 = vmax.f32 %v3903, 0.0
  %v3968 = vmax.f32 %v3904, 0.0
  %v3969 = vmax.f32 %v3905, 0.0
  %v3970 = vmax.f32 %v3906, 0.0
  %v3971 = vmax.f32 %v3907, 0.0
  %v3972 = vmax.f32 %v3908, 0.0
  %v3973 = vmax.f32 %v3909, 0.0
  %v3974 = vmax.f32 %v3910, 0.0
  %v3975 = vmax.f32 %v3911, 0.0
  %v3976 = vmax.f32 %v3912, 0.0
  %v3977 = vmax.f32 %v3913, 0.0
  %v3978 = vmax.f32 %v3914, 0.0
  %v3979 = vmax.f32 %v3915, 0.0
  %v3980 = vmax.f32 %v3916, 0.0
  %v3981 = vmax.f32 %v3917, 0.0
  %v3982 = vmax.f32 %v3918, 0.0
  %3983 = vst.msk [vmem:[#allocation2] sm:$0xff] %vm91, 0.0
  %3984 = vst.msk [vmem:[#allocation2 + $0x8] sm:$0xff] %vm91, 0.0
  %3985 = vst.msk [vmem:[#allocation2 + $0x10] sm:$0x3] %vm94, 0.0
  %3986 = vst.msk [vmem:[#allocation2 + $0x18] sm:$0xff] %vm91, 0.0
  %3987 = vst.msk [vmem:[#allocation2 + $0x20] sm:$0xff] %vm91, 0.0
  %3988 = vst.msk [vmem:[#allocation2 + $0x28] sm:$0x3] %vm94, 0.0
  %3989 = vst.msk [vmem:[#allocation2 + $0x30] sm:$0xff] %vm91, 0.0
  %3990 = vst.msk [vmem:[#allocation2 + $0x38] sm:$0xff] %vm91, 0.0
  %3991 = vst.msk [vmem:[#allocation2 + $0x40] sm:$0x3] %vm94, 0.0
  %3992 = vst.msk [vmem:[#allocation2 + $0x48] sm:$0xff] %vm91, 0.0
  %3993 = vst.msk [vmem:[#allocation2 + $0x50] sm:$0xff] %vm91, 0.0
  %3994 = vst.msk [vmem:[#allocation2 + $0x58] sm:$0x3] %vm94, 0.0
  %3995 = vst.msk [vmem:[#allocation2 + $0x60] sm:$0xff] %vm91, 0.0
  %3996 = vst.msk [vmem:[#allocation2 + $0x68] sm:$0xff] %vm91, 0.0
  %3997 = vst.msk [vmem:[#allocation2 + $0x70] sm:$0x3] %vm94, 0.0
  %3998 = vst.msk [vmem:[#allocation2 + $0x78] sm:$0xff] %vm91, 0.0
  %3999 = vst.msk [vmem:[#allocation2 + $0x80] sm:$0xff] %vm91, 0.0
  %4000 = vst.msk [vmem:[#allocation2 + $0x88] sm:$0x3] %vm94, 0.0
  %4001 = vst.msk [vmem:[#allocation2 + $0x90] sm:$0xff] %vm91, 0.0
  %4002 = vst.msk [vmem:[#allocation2 + $0x98] sm:$0xff] %vm91, 0.0
  %4003 = vst.msk [vmem:[#allocation2 + $0xa0] sm:$0x3] %vm94, 0.0
  %4004 = vst.msk [vmem:[#allocation2 + $0xa8] sm:$0xff] %vm91, 0.0
  %4005 = vst.msk [vmem:[#allocation2 + $0xb0] sm:$0xff] %vm91, 0.0
  %4006 = vst.msk [vmem:[#allocation2 + $0xb8] sm:$0x3] %vm94, 0.0
  %4007 = vst.msk [vmem:[#allocation2 + $0xc0] sm:$0xff] %vm91, 0.0
  %4008 = vst.msk [vmem:[#allocation2 + $0xc8] sm:$0xff] %vm91, 0.0
  %4009 = vst.msk [vmem:[#allocation2 + $0xd0] sm:$0x3] %vm94, 0.0
  %4010 = vst.msk [vmem:[#allocation2 + $0xd8] sm:$0xff] %vm91, 0.0
  %4011 = vst.msk [vmem:[#allocation2 + $0xe0] sm:$0xff] %vm91, 0.0
  %4012 = vst.msk [vmem:[#allocation2 + $0xe8] sm:$0x3] %vm94, 0.0
  %4013 = vst.msk [vmem:[#allocation2 + $0xf0] sm:$0xff] %vm91, 0.0
  %4014 = vst.msk [vmem:[#allocation2 + $0xf8] sm:$0xff] %vm91, 0.0
  %4015 = vst.msk [vmem:[#allocation2 + $0x100] sm:$0x3] %vm94, 0.0
  %4016 = vst.msk [vmem:[#allocation2 + $0x108] sm:$0xff] %vm91, 0.0
  %4017 = vst.msk [vmem:[#allocation2 + $0x110] sm:$0xff] %vm91, 0.0
  %4018 = vst.msk [vmem:[#allocation2 + $0x118] sm:$0x3] %vm94, 0.0
  %4019 = vst.msk [vmem:[#allocation2 + $0x120] sm:$0xff] %vm91, 0.0
  %4020 = vst.msk [vmem:[#allocation2 + $0x128] sm:$0xff] %vm91, 0.0
  %4021 = vst.msk [vmem:[#allocation2 + $0x130] sm:$0x3] %vm94, 0.0
  %4022 = vst.msk [vmem:[#allocation2 + $0x138] sm:$0xff] %vm91, 0.0
  %4023 = vst.msk [vmem:[#allocation2 + $0x140] sm:$0xff] %vm91, 0.0
  %4024 = vst.msk [vmem:[#allocation2 + $0x148] sm:$0x3] %vm94, 0.0
  %4025 = vst.msk [vmem:[#allocation2 + $0x150] sm:$0xff] %vm91, 0.0
  %4026 = vst.msk [vmem:[#allocation2 + $0x158] sm:$0xff] %vm91, 0.0
  %4027 = vst.msk [vmem:[#allocation2 + $0x160] sm:$0x3] %vm94, 0.0
  %4028 = vst.msk [vmem:[#allocation2 + $0x168] sm:$0xff] %vm91, 0.0
  %4029 = vst.msk [vmem:[#allocation2 + $0x170] sm:$0xff] %vm91, 0.0
  %4030 = vst.msk [vmem:[#allocation2 + $0x178] sm:$0x3] %vm94, 0.0
  %4031 = vst.msk [vmem:[#allocation2 + $0x180] sm:$0xff] %vm91, 0.0
  %4032 = vst.msk [vmem:[#allocation2 + $0x188] sm:$0xff] %vm91, 0.0
  %4033 = vst.msk [vmem:[#allocation2 + $0x190] sm:$0x3] %vm94, 0.0
  %4034 = vst.msk [vmem:[#allocation2 + $0x198] sm:$0xff] %vm91, 0.0
  %4035 = vst.msk [vmem:[#allocation2 + $0x1a0] sm:$0xff] %vm91, 0.0
  %4036 = vst.msk [vmem:[#allocation2 + $0x1a8] sm:$0x3] %vm94, 0.0
  %4037 = vst.msk [vmem:[#allocation2 + $0x1b0] sm:$0xff] %vm91, 0.0
  %4038 = vst.msk [vmem:[#allocation2 + $0x1b8] sm:$0xff] %vm91, 0.0
  %4039 = vst.msk [vmem:[#allocation2 + $0x1c0] sm:$0x3] %vm94, 0.0
  %4040 = vst.msk [vmem:[#allocation2 + $0x1c8] sm:$0xff] %vm91, 0.0
  %4041 = vst.msk [vmem:[#allocation2 + $0x1d0] sm:$0xff] %vm91, 0.0
  %4042 = vst.msk [vmem:[#allocation2 + $0x1d8] sm:$0x3] %vm94, 0.0
  %4043 = vst.msk [vmem:[#allocation2 + $0x1e0] sm:$0xff] %vm91, 0.0
  %4044 = vst.msk [vmem:[#allocation2 + $0x1e8] sm:$0xff] %vm91, 0.0
  %4045 = vst.msk [vmem:[#allocation2 + $0x1f0] sm:$0x3] %vm94, 0.0
  %4046 = vst.msk [vmem:[#allocation2 + $0x1f8] sm:$0xff] %vm91, 0.0
  %4047 = vst.msk [vmem:[#allocation2 + $0x200] sm:$0xff] %vm91, 0.0
  %4048 = vst.msk [vmem:[#allocation2 + $0x208] sm:$0x3] %vm94, 0.0
  %4049 = vst.msk [vmem:[#allocation2 + $0x210] sm:$0xff] %vm91, 0.0
  %4050 = vst.msk [vmem:[#allocation2 + $0x218] sm:$0xff] %vm91, 0.0
  %4051 = vst.msk [vmem:[#allocation2 + $0x220] sm:$0x3] %vm94, 0.0
  %4052 = vst.msk [vmem:[#allocation2 + $0x228] sm:$0xff] %vm91, 0.0
  %4053 = vst.msk [vmem:[#allocation2 + $0x230] sm:$0xff] %vm91, 0.0
  %4054 = vst.msk [vmem:[#allocation2 + $0x238] sm:$0x3] %vm94, 0.0
  %4055 = vst.msk [vmem:[#allocation2 + $0x240] sm:$0xff] %vm91, 0.0
  %4056 = vst.msk [vmem:[#allocation2 + $0x248] sm:$0xff] %vm91, 0.0
  %4057 = vst.msk [vmem:[#allocation2 + $0x250] sm:$0x3] %vm94, 0.0
  %4058 = vst.msk [vmem:[#allocation2 + $0x258] sm:$0xff] %vm91, 0.0
  %4059 = vst.msk [vmem:[#allocation2 + $0x260] sm:$0xff] %vm91, 0.0
  %4060 = vst.msk [vmem:[#allocation2 + $0x268] sm:$0x3] %vm94, 0.0
  %4061 = vst.msk [vmem:[#allocation2 + $0x270] sm:$0xff] %vm91, 0.0
  %4062 = vst.msk [vmem:[#allocation2 + $0x278] sm:$0xff] %vm91, 0.0
  %4063 = vst.msk [vmem:[#allocation2 + $0x280] sm:$0x3] %vm94, 0.0
  %4064 = vst.msk [vmem:[#allocation2 + $0x288] sm:$0xff] %vm91, 0.0
  %4065 = vst.msk [vmem:[#allocation2 + $0x290] sm:$0xff] %vm91, 0.0
  %4066 = vst.msk [vmem:[#allocation2 + $0x298] sm:$0x3] %vm94, 0.0
  %4067 = vst.msk [vmem:[#allocation2 + $0x2a0] sm:$0xff] %vm91, 0.0
  %4068 = vst.msk [vmem:[#allocation2 + $0x2a8] sm:$0xff] %vm91, 0.0
  %4069 = vst.msk [vmem:[#allocation2 + $0x2b0] sm:$0x3] %vm94, 0.0
  %4070 = vst.msk [vmem:[#allocation2 + $0x2b8] sm:$0xff] %vm91, 0.0
  %4071 = vst.msk [vmem:[#allocation2 + $0x2c0] sm:$0xff] %vm91, 0.0
  %4072 = vst.msk [vmem:[#allocation2 + $0x2c8] sm:$0x3] %vm94, 0.0
  %4073 = vst.msk [vmem:[#allocation2 + $0x2d0] sm:$0xff] %vm91, 0.0
  %4074 = vst.msk [vmem:[#allocation2 + $0x2d8] sm:$0xff] %vm91, 0.0
  %4075 = vst.msk [vmem:[#allocation2 + $0x2e0] sm:$0x3] %vm94, 0.0
  %4076 = vst.msk [vmem:[#allocation2 + $0x2e8] sm:$0xff] %vm91, 0.0
  %4077 = vst.msk [vmem:[#allocation2 + $0x2f0] sm:$0xff] %vm91, 0.0
  %4078 = vst.msk [vmem:[#allocation2 + $0x2f8] sm:$0x3] %vm94, 0.0
  %4079 = vst.msk [vmem:[#allocation2 + $0x300] sm:$0xff] %vm91, 0.0
  %4080 = vst.msk [vmem:[#allocation2 + $0x308] sm:$0xff] %vm91, 0.0
  %4081 = vst.msk [vmem:[#allocation2 + $0x310] sm:$0x3] %vm94, 0.0
  %4082 = vst.msk [vmem:[#allocation2 + $0x318] sm:$0xff] %vm91, 0.0
  %4083 = vst.msk [vmem:[#allocation2 + $0x320] sm:$0xff] %vm91, 0.0
  %4084 = vst.msk [vmem:[#allocation2 + $0x328] sm:$0x3] %vm94, 0.0
  %4085 = vst.msk [vmem:[#allocation2 + $0x330] sm:$0xff] %vm91, 0.0
  %4086 = vst.msk [vmem:[#allocation2 + $0x338] sm:$0xff] %vm91, 0.0
  %4087 = vst.msk [vmem:[#allocation2 + $0x340] sm:$0x3] %vm94, 0.0
  %4088 = vst.msk [vmem:[#allocation2 + $0x348] sm:$0xff] %vm91, 0.0
  %4089 = vst.msk [vmem:[#allocation2 + $0x350] sm:$0xff] %vm91, 0.0
  %4090 = vst.msk [vmem:[#allocation2 + $0x358] sm:$0x3] %vm94, 0.0
  %4091 = vst.msk [vmem:[%s201 + $0x1] sm:$0xff] %vm91, %v3919
  %4092 = vst.msk [vmem:[%s201 + $0x9] sm:$0xff] %vm91, %v3920
  %4093 = vst.msk [vmem:[%s201 + $0x19] sm:$0xff] %vm91, %v3921
  %4094 = vst.msk [vmem:[%s201 + $0x21] sm:$0xff] %vm91, %v3922
  %4095 = vst.msk [vmem:[%s201 + $0x31] sm:$0xff] %vm91, %v3923
  %4096 = vst.msk [vmem:[%s201 + $0x39] sm:$0xff] %vm91, %v3924
  %4097 = vst.msk [vmem:[%s201 + $0x49] sm:$0xff] %vm91, %v3925
  %4098 = vst.msk [vmem:[%s201 + $0x51] sm:$0xff] %vm91, %v3926
  %4099 = vst.msk [vmem:[%s201 + $0x61] sm:$0xff] %vm91, %v3927
  %4100 = vst.msk [vmem:[%s201 + $0x69] sm:$0xff] %vm91, %v3928
  %4101 = vst.msk [vmem:[%s201 + $0x79] sm:$0xff] %vm91, %v3929
  %4102 = vst.msk [vmem:[%s201 + $0x81] sm:$0xff] %vm91, %v3930
  %4103 = vst.msk [vmem:[%s201 + $0x91] sm:$0xff] %vm91, %v3931
  %4104 = vst.msk [vmem:[%s201 + $0x99] sm:$0xff] %vm91, %v3932
  %4105 = vst.msk [vmem:[%s201 + $0xa9] sm:$0xff] %vm91, %v3933
  %4106 = vst.msk [vmem:[%s201 + $0xb1] sm:$0xff] %vm91, %v3934
  %4107 = vst.msk [vmem:[%s201 + $0xc1] sm:$0xff] %vm91, %v3935
  %4108 = vst.msk [vmem:[%s201 + $0xc9] sm:$0xff] %vm91, %v3936
  %4109 = vst.msk [vmem:[%s201 + $0xd9] sm:$0xff] %vm91, %v3937
  %4110 = vst.msk [vmem:[%s201 + $0xe1] sm:$0xff] %vm91, %v3938
  %4111 = vst.msk [vmem:[%s201 + $0xf1] sm:$0xff] %vm91, %v3939
  %4112 = vst.msk [vmem:[%s201 + $0xf9] sm:$0xff] %vm91, %v3940
  %4113 = vst.msk [vmem:[%s201 + $0x109] sm:$0xff] %vm91, %v3941
  %4114 = vst.msk [vmem:[%s201 + $0x111] sm:$0xff] %vm91, %v3942
  %4115 = vst.msk [vmem:[%s201 + $0x121] sm:$0xff] %vm91, %v3943
  %4116 = vst.msk [vmem:[%s201 + $0x129] sm:$0xff] %vm91, %v3944
  %4117 = vst.msk [vmem:[%s201 + $0x139] sm:$0xff] %vm91, %v3945
  %4118 = vst.msk [vmem:[%s201 + $0x141] sm:$0xff] %vm91, %v3946
  %4119 = vst.msk [vmem:[%s201 + $0x151] sm:$0xff] %vm91, %v3947
  %4120 = vst.msk [vmem:[%s201 + $0x159] sm:$0xff] %vm91, %v3948
  %4121 = vst.msk [vmem:[%s201 + $0x169] sm:$0xff] %vm91, %v3949
  %4122 = vst.msk [vmem:[%s201 + $0x171] sm:$0xff] %vm91, %v3950
  %4123 = vst.msk [vmem:[%s201 + $0x1b1] sm:$0xff] %vm91, %v3951
  %4124 = vst.msk [vmem:[%s201 + $0x1b9] sm:$0xff] %vm91, %v3952
  %4125 = vst.msk [vmem:[%s201 + $0x1c9] sm:$0xff] %vm91, %v3953
  %4126 = vst.msk [vmem:[%s201 + $0x1d1] sm:$0xff] %vm91, %v3954
  %4127 = vst.msk [vmem:[%s201 + $0x1e1] sm:$0xff] %vm91, %v3955
  %4128 = vst.msk [vmem:[%s201 + $0x1e9] sm:$0xff] %vm91, %v3956
  %4129 = vst.msk [vmem:[%s201 + $0x1f9] sm:$0xff] %vm91, %v3957
  %4130 = vst.msk [vmem:[%s201 + $0x201] sm:$0xff] %vm91, %v3958
  %4131 = vst.msk [vmem:[%s201 + $0x211] sm:$0xff] %vm91, %v3959
  %4132 = vst.msk [vmem:[%s201 + $0x219] sm:$0xff] %vm91, %v3960
  %4133 = vst.msk [vmem:[%s201 + $0x229] sm:$0xff] %vm91, %v3961
  %4134 = vst.msk [vmem:[%s201 + $0x231] sm:$0xff] %vm91, %v3962
  %4135 = vst.msk [vmem:[%s201 + $0x241] sm:$0xff] %vm91, %v3963
  %4136 = vst.msk [vmem:[%s201 + $0x249] sm:$0xff] %vm91, %v3964
  %4137 = vst.msk [vmem:[%s201 + $0x259] sm:$0xff] %vm91, %v3965
  %4138 = vst.msk [vmem:[%s201 + $0x261] sm:$0xff] %vm91, %v3966
  %4139 = vst.msk [vmem:[%s201 + $0x271] sm:$0xff] %vm91, %v3967
  %4140 = vst.msk [vmem:[%s201 + $0x279] sm:$0xff] %vm91, %v3968
  %4141 = vst.msk [vmem:[%s201 + $0x289] sm:$0xff] %vm91, %v3969
  %4142 = vst.msk [vmem:[%s201 + $0x291] sm:$0xff] %vm91, %v3970
  %4143 = vst.msk [vmem:[%s201 + $0x2a1] sm:$0xff] %vm91, %v3971
  %4144 = vst.msk [vmem:[%s201 + $0x2a9] sm:$0xff] %vm91, %v3972
  %4145 = vst.msk [vmem:[%s201 + $0x2b9] sm:$0xff] %vm91, %v3973
  %4146 = vst.msk [vmem:[%s201 + $0x2c1] sm:$0xff] %vm91, %v3974
  %4147 = vst.msk [vmem:[%s201 + $0x2d1] sm:$0xff] %vm91, %v3975
  %4148 = vst.msk [vmem:[%s201 + $0x2d9] sm:$0xff] %vm91, %v3976
  %4149 = vst.msk [vmem:[%s201 + $0x2e9] sm:$0xff] %vm91, %v3977
  %4150 = vst.msk [vmem:[%s201 + $0x2f1] sm:$0xff] %vm91, %v3978
  %4151 = vst.msk [vmem:[%s201 + $0x301] sm:$0xff] %vm91, %v3979
  %4152 = vst.msk [vmem:[%s201 + $0x309] sm:$0xff] %vm91, %v3980
  %4153 = vst.msk [vmem:[%s201 + $0x319] sm:$0xff] %vm91, %v3981
  %4154 = vst.msk [vmem:[%s201 + $0x321] sm:$0xff] %vm91, %v3982
  %v4155 = vld [vmem:[#allocation2] sm:$0xff]
  %v4156 = vld [vmem:[#allocation2 + $0x8] sm:$0xff]
  %v4157 = vld [vmem:[#allocation2 + $0x10] sm:$0x3]
  %v4158 = vld [vmem:[#allocation2 + $0x18] sm:$0xff]
  %v4159 = vld [vmem:[#allocation2 + $0x20] sm:$0xff]
  %v4160 = vld [vmem:[#allocation2 + $0x28] sm:$0x3]
  %v4161 = vld [vmem:[#allocation2 + $0x30] sm:$0xff]
  %v4162 = vld [vmem:[#allocation2 + $0x38] sm:$0xff]
  %v4163 = vld [vmem:[#allocation2 + $0x40] sm:$0x3]
  %v4164 = vld [vmem:[#allocation2 + $0x48] sm:$0xff]
  %v4165 = vld [vmem:[#allocation2 + $0x50] sm:$0xff]
  %v4166 = vld [vmem:[#allocation2 + $0x58] sm:$0x3]
  %v4167 = vld [vmem:[#allocation2 + $0x60] sm:$0xff]
  %v4168 = vld [vmem:[#allocation2 + $0x68] sm:$0xff]
  %v4169 = vld [vmem:[#allocation2 + $0x70] sm:$0x3]
  %v4170 = vld [vmem:[#allocation2 + $0x78] sm:$0xff]
  %v4171 = vld [vmem:[#allocation2 + $0x80] sm:$0xff]
  %v4172 = vld [vmem:[#allocation2 + $0x88] sm:$0x3]
  %v4173 = vld [vmem:[#allocation2 + $0x90] sm:$0xff]
  %v4174 = vld [vmem:[#allocation2 + $0x98] sm:$0xff]
  %v4175 = vld [vmem:[#allocation2 + $0xa0] sm:$0x3]
  %v4176 = vld [vmem:[#allocation2 + $0xa8] sm:$0xff]
  %v4177 = vld [vmem:[#allocation2 + $0xb0] sm:$0xff]
  %v4178 = vld [vmem:[#allocation2 + $0xb8] sm:$0x3]
  %v4179 = vld [vmem:[#allocation2 + $0xc0] sm:$0xff]
  %v4180 = vld [vmem:[#allocation2 + $0xc8] sm:$0xff]
  %v4181 = vld [vmem:[#allocation2 + $0xd0] sm:$0x3]
  %v4182 = vld [vmem:[#allocation2 + $0xd8] sm:$0xff]
  %v4183 = vld [vmem:[#allocation2 + $0xe0] sm:$0xff]
  %v4184 = vld [vmem:[#allocation2 + $0xe8] sm:$0x3]
  %v4185 = vld [vmem:[#allocation2 + $0xf0] sm:$0xff]
  %v4186 = vld [vmem:[#allocation2 + $0xf8] sm:$0xff]
  %v4187 = vld [vmem:[#allocation2 + $0x100] sm:$0x3]
  %v4188 = vld [vmem:[#allocation2 + $0x108] sm:$0xff]
  %v4189 = vld [vmem:[#allocation2 + $0x110] sm:$0xff]
  %v4190 = vld [vmem:[#allocation2 + $0x118] sm:$0x3]
  %v4191 = vld [vmem:[#allocation2 + $0x120] sm:$0xff]
  %v4192 = vld [vmem:[#allocation2 + $0x128] sm:$0xff]
  %v4193 = vld [vmem:[#allocation2 + $0x130] sm:$0x3]
  %v4194 = vld [vmem:[#allocation2 + $0x138] sm:$0xff]
  %v4195 = vld [vmem:[#allocation2 + $0x140] sm:$0xff]
  %v4196 = vld [vmem:[#allocation2 + $0x148] sm:$0x3]
  %v4197 = vld [vmem:[#allocation2 + $0x150] sm:$0xff]
  %v4198 = vld [vmem:[#allocation2 + $0x158] sm:$0xff]
  %v4199 = vld [vmem:[#allocation2 + $0x160] sm:$0x3]
  %v4200 = vld [vmem:[#allocation2 + $0x168] sm:$0xff]
  %v4201 = vld [vmem:[#allocation2 + $0x170] sm:$0xff]
  %v4202 = vld [vmem:[#allocation2 + $0x178] sm:$0x3]
  %v4203 = vld [vmem:[#allocation2 + $0x180] sm:$0xff]
  %v4204 = vld [vmem:[#allocation2 + $0x188] sm:$0xff]
  %v4205 = vld [vmem:[#allocation2 + $0x190] sm:$0x3]
  %v4206 = vld [vmem:[#allocation2 + $0x198] sm:$0xff]
  %v4207 = vld [vmem:[#allocation2 + $0x1a0] sm:$0xff]
  %v4208 = vld [vmem:[#allocation2 + $0x1a8] sm:$0x3]
  %v4209 = vld [vmem:[#allocation2 + $0x1b0] sm:$0xff]
  %v4210 = vld [vmem:[#allocation2 + $0x1b8] sm:$0xff]
  %v4211 = vld [vmem:[#allocation2 + $0x1c0] sm:$0x3]
  %v4212 = vld [vmem:[#allocation2 + $0x1c8] sm:$0xff]
  %v4213 = vld [vmem:[#allocation2 + $0x1d0] sm:$0xff]
  %v4214 = vld [vmem:[#allocation2 + $0x1d8] sm:$0x3]
  %v4215 = vld [vmem:[#allocation2 + $0x1e0] sm:$0xff]
  %v4216 = vld [vmem:[#allocation2 + $0x1e8] sm:$0xff]
  %v4217 = vld [vmem:[#allocation2 + $0x1f0] sm:$0x3]
  %v4218 = vld [vmem:[#allocation2 + $0x1f8] sm:$0xff]
  %v4219 = vld [vmem:[#allocation2 + $0x200] sm:$0xff]
  %v4220 = vld [vmem:[#allocation2 + $0x208] sm:$0x3]
  %v4221 = vld [vmem:[#allocation2 + $0x210] sm:$0xff]
  %v4222 = vld [vmem:[#allocation2 + $0x218] sm:$0xff]
  %v4223 = vld [vmem:[#allocation2 + $0x220] sm:$0x3]
  %v4224 = vld [vmem:[#allocation2 + $0x228] sm:$0xff]
  %v4225 = vld [vmem:[#allocation2 + $0x230] sm:$0xff]
  %v4226 = vld [vmem:[#allocation2 + $0x238] sm:$0x3]
  %v4227 = vld [vmem:[#allocation2 + $0x240] sm:$0xff]
  %v4228 = vld [vmem:[#allocation2 + $0x248] sm:$0xff]
  %v4229 = vld [vmem:[#allocation2 + $0x250] sm:$0x3]
  %v4230 = vld [vmem:[#allocation2 + $0x258] sm:$0xff]
  %v4231 = vld [vmem:[#allocation2 + $0x260] sm:$0xff]
  %v4232 = vld [vmem:[#allocation2 + $0x268] sm:$0x3]
  %v4233 = vld [vmem:[#allocation2 + $0x270] sm:$0xff]
  %v4234 = vld [vmem:[#allocation2 + $0x278] sm:$0xff]
  %v4235 = vld [vmem:[#allocation2 + $0x280] sm:$0x3]
  %v4236 = vld [vmem:[#allocation2 + $0x288] sm:$0xff]
  %v4237 = vld [vmem:[#allocation2 + $0x290] sm:$0xff]
  %v4238 = vld [vmem:[#allocation2 + $0x298] sm:$0x3]
  %v4239 = vld [vmem:[#allocation2 + $0x2a0] sm:$0xff]
  %v4240 = vld [vmem:[#allocation2 + $0x2a8] sm:$0xff]
  %v4241 = vld [vmem:[#allocation2 + $0x2b0] sm:$0x3]
  %v4242 = vld [vmem:[#allocation2 + $0x2b8] sm:$0xff]
  %v4243 = vld [vmem:[#allocation2 + $0x2c0] sm:$0xff]
  %v4244 = vld [vmem:[#allocation2 + $0x2c8] sm:$0x3]
  %v4245 = vld [vmem:[#allocation2 + $0x2d0] sm:$0xff]
  %v4246 = vld [vmem:[#allocation2 + $0x2d8] sm:$0xff]
  %v4247 = vld [vmem:[#allocation2 + $0x2e0] sm:$0x3]
  %v4248 = vld [vmem:[#allocation2 + $0x2e8] sm:$0xff]
  %v4249 = vld [vmem:[#allocation2 + $0x2f0] sm:$0xff]
  %v4250 = vld [vmem:[#allocation2 + $0x2f8] sm:$0x3]
  %v4251 = vld [vmem:[#allocation2 + $0x300] sm:$0xff]
  %v4252 = vld [vmem:[#allocation2 + $0x308] sm:$0xff]
  %v4253 = vld [vmem:[#allocation2 + $0x310] sm:$0x3]
  %v4254 = vld [vmem:[#allocation2 + $0x318] sm:$0xff]
  %v4255 = vld [vmem:[#allocation2 + $0x320] sm:$0xff]
  %v4256 = vld [vmem:[#allocation2 + $0x328] sm:$0x3]
  %v4257 = vld [vmem:[#allocation2 + $0x330] sm:$0xff]
  %v4258 = vld [vmem:[#allocation2 + $0x338] sm:$0xff]
  %v4259 = vld [vmem:[#allocation2 + $0x340] sm:$0x3]
  %v4260 = vld [vmem:[#allocation2 + $0x348] sm:$0xff]
  %v4261 = vld [vmem:[#allocation2 + $0x350] sm:$0xff]
  %v4262 = vld [vmem:[#allocation2 + $0x358] sm:$0x3]
  %v4263 = vpack.c.bf16 %v4156, %v4155
  %v4264 = vpack.c.bf16 %v4159, %v4158
  %v4265 = vpack.c.bf16 %v4162, %v4161
  %v4266 = vpack.c.bf16 %v4165, %v4164
  %v4267 = vpack.c.bf16 %v4168, %v4167
  %v4268 = vpack.c.bf16 %v4171, %v4170
  %v4269 = vpack.c.bf16 %v4174, %v4173
  %v4270 = vpack.c.bf16 %v4177, %v4176
  %v4271 = vpack.c.bf16 %v4180, %v4179
  %v4272 = vpack.c.bf16 %v4183, %v4182
  %v4273 = vpack.c.bf16 %v4186, %v4185
  %v4274 = vpack.c.bf16 %v4189, %v4188
  %v4275 = vpack.c.bf16 %v4192, %v4191
  %v4276 = vpack.c.bf16 %v4195, %v4194
  %v4277 = vpack.c.bf16 %v4198, %v4197
  %v4278 = vpack.c.bf16 %v4201, %v4200
  %v4279 = vpack.c.bf16 %v4210, %v4209
  %v4280 = vpack.c.bf16 %v4213, %v4212
  %v4281 = vpack.c.bf16 %v4216, %v4215
  %v4282 = vpack.c.bf16 %v4219, %v4218
  %v4283 = vpack.c.bf16 %v4222, %v4221
  %v4284 = vpack.c.bf16 %v4225, %v4224
  %v4285 = vpack.c.bf16 %v4228, %v4227
  %v4286 = vpack.c.bf16 %v4231, %v4230
  %v4287 = vpack.c.bf16 %v4234, %v4233
  %v4288 = vpack.c.bf16 %v4237, %v4236
  %v4289 = vpack.c.bf16 %v4240, %v4239
  %v4290 = vpack.c.bf16 %v4243, %v4242
  %v4291 = vpack.c.bf16 %v4246, %v4245
  %v4292 = vpack.c.bf16 %v4249, %v4248
  %v4293 = vpack.c.bf16 %v4252, %v4251
  %v4294 = vpack.c.bf16 %v4255, %v4254
  %v4295 = vld [vmem:[%s2] sm:$0xf]
  %v4392 = vrot.slane %v4155, 1
  %v4393 = vrot.slane %v4156, 1
  %v4394 = vsel %vm503, %v4392, %v4393
  %v4395 = vrot.slane %v4157, 1
  %v4396 = vsel %vm503, %v4393, %v4395
  %v4397 = vrot.slane %v4158, 1
  %v4398 = vrot.slane %v4159, 1
  %v4399 = vsel %vm503, %v4397, %v4398
  %v4400 = vrot.slane %v4160, 1
  %v4401 = vsel %vm503, %v4398, %v4400
  %v4402 = vrot.slane %v4161, 1
  %v4403 = vrot.slane %v4162, 1
  %v4404 = vsel %vm503, %v4402, %v4403
  %v4405 = vrot.slane %v4163, 1
  %v4406 = vsel %vm503, %v4403, %v4405
  %v4407 = vrot.slane %v4164, 1
  %v4408 = vrot.slane %v4165, 1
  %v4409 = vsel %vm503, %v4407, %v4408
  %v4410 = vrot.slane %v4166, 1
  %v4411 = vsel %vm503, %v4408, %v4410
  %v4412 = vrot.slane %v4167, 1
  %v4413 = vrot.slane %v4168, 1
  %v4414 = vsel %vm503, %v4412, %v4413
  %v4415 = vrot.slane %v4169, 1
  %v4416 = vsel %vm503, %v4413, %v4415
  %v4417 = vrot.slane %v4170, 1
  %v4418 = vrot.slane %v4171, 1
  %v4419 = vsel %vm503, %v4417, %v4418
  %v4420 = vrot.slane %v4172, 1
  %v4421 = vsel %vm503, %v4418, %v4420
  %v4422 = vrot.slane %v4173, 1
  %v4423 = vrot.slane %v4174, 1
  %v4424 = vsel %vm503, %v4422, %v4423
  %v4425 = vrot.slane %v4175, 1
  %v4426 = vsel %vm503, %v4423, %v4425
  %v4427 = vrot.slane %v4176, 1
  %v4428 = vrot.slane %v4177, 1
  %v4429 = vsel %vm503, %v4427, %v4428
  %v4430 = vrot.slane %v4178, 1
  %v4431 = vsel %vm503, %v4428, %v4430
  %v4432 = vrot.slane %v4179, 1
  %v4433 = vrot.slane %v4180, 1
  %v4434 = vsel %vm503, %v4432, %v4433
  %v4435 = vrot.slane %v4181, 1
  %v4436 = vsel %vm503, %v4433, %v4435
  %v4437 = vrot.slane %v4182, 1
  %v4438 = vrot.slane %v4183, 1
  %v4439 = vsel %vm503, %v4437, %v4438
  %v4440 = vrot.slane %v4184, 1
  %v4441 = vsel %vm503, %v4438, %v4440
  %v4442 = vrot.slane %v4185, 1
  %v4443 = vrot.slane %v4186, 1
  %v4444 = vsel %vm503, %v4442, %v4443
  %v4445 = vrot.slane %v4187, 1
  %v4446 = vsel %vm503, %v4443, %v4445
  %v4447 = vrot.slane %v4188, 1
  %v4448 = vrot.slane %v4189, 1
  %v4449 = vsel %vm503, %v4447, %v4448
  %v4450 = vrot.slane %v4190, 1
  %v4451 = vsel %vm503, %v4448, %v4450
  %v4452 = vrot.slane %v4191, 1
  %v4453 = vrot.slane %v4192, 1
  %v4454 = vsel %vm503, %v4452, %v4453
  %v4455 = vrot.slane %v4193, 1
  %v4456 = vsel %vm503, %v4453, %v4455
  %v4457 = vrot.slane %v4194, 1
  %v4458 = vrot.slane %v4195, 1
  %v4459 = vsel %vm503, %v4457, %v4458
  %v4460 = vrot.slane %v4196, 1
  %v4461 = vsel %vm503, %v4458, %v4460
  %v4462 = vrot.slane %v4197, 1
  %v4463 = vrot.slane %v4198, 1
  %v4464 = vsel %vm503, %v4462, %v4463
  %v4465 = vrot.slane %v4199, 1
  %v4466 = vsel %vm503, %v4463, %v4465
  %v4467 = vrot.slane %v4200, 1
  %v4468 = vrot.slane %v4201, 1
  %v4469 = vsel %vm503, %v4467, %v4468
  %v4470 = vrot.slane %v4202, 1
  %v4471 = vsel %vm503, %v4468, %v4470
  %v4472 = vrot.slane %v4209, 1
  %v4473 = vrot.slane %v4210, 1
  %v4474 = vsel %vm503, %v4472, %v4473
  %v4475 = vrot.slane %v4211, 1
  %v4476 = vsel %vm503, %v4473, %v4475
  %v4477 = vrot.slane %v4212, 1
  %v4478 = vrot.slane %v4213, 1
  %v4479 = vsel %vm503, %v4477, %v4478
  %v4480 = vrot.slane %v4214, 1
  %v4481 = vsel %vm503, %v4478, %v4480
  %v4482 = vrot.slane %v4215, 1
  %v4483 = vrot.slane %v4216, 1
  %v4484 = vsel %vm503, %v4482, %v4483
  %v4485 = vrot.slane %v4217, 1
  %v4486 = vsel %vm503, %v4483, %v4485
  %v4487 = vrot.slane %v4218, 1
  %v4488 = vrot.slane %v4219, 1
  %v4489 = vsel %vm503, %v4487, %v4488
  %v4490 = vrot.slane %v4220, 1
  %v4491 = vsel %vm503, %v4488, %v4490
  %v4492 = vrot.slane %v4221, 1
  %v4493 = vrot.slane %v4222, 1
  %v4494 = vsel %vm503, %v4492, %v4493
  %v4495 = vrot.slane %v4223, 1
  %v4496 = vsel %vm503, %v4493, %v4495
  %v4497 = vrot.slane %v4224, 1
  %v4498 = vrot.slane %v4225, 1
  %v4499 = vsel %vm503, %v4497, %v4498
  %v4500 = vrot.slane %v4226, 1
  %v4501 = vsel %vm503, %v4498, %v4500
  %v4502 = vrot.slane %v4227, 1
  %v4503 = vrot.slane %v4228, 1
  %v4504 = vsel %vm503, %v4502, %v4503
  %v4505 = vrot.slane %v4229, 1
  %v4506 = vsel %vm503, %v4503, %v4505
  %v4507 = vrot.slane %v4230, 1
  %v4508 = vrot.slane %v4231, 1
  %v4509 = vsel %vm503, %v4507, %v4508
  %v4510 = vrot.slane %v4232, 1
  %v4511 = vsel %vm503, %v4508, %v4510
  %v4512 = vrot.slane %v4233, 1
  %v4513 = vrot.slane %v4234, 1
  %v4514 = vsel %vm503, %v4512, %v4513
  %v4515 = vrot.slane %v4235, 1
  %v4516 = vsel %vm503, %v4513, %v4515
  %v4517 = vrot.slane %v4236, 1
  %v4518 = vrot.slane %v4237, 1
  %v4519 = vsel %vm503, %v4517, %v4518
  %v4520 = vrot.slane %v4238, 1
  %v4521 = vsel %vm503, %v4518, %v4520
  %v4522 = vrot.slane %v4239, 1
  %v4523 = vrot.slane %v4240, 1
  %v4524 = vsel %vm503, %v4522, %v4523
  %v4525 = vrot.slane %v4241, 1
  %v4526 = vsel %vm503, %v4523, %v4525
  %v4527 = vrot.slane %v4242, 1
  %v4528 = vrot.slane %v4243, 1
  %v4529 = vsel %vm503, %v4527, %v4528
  %v4530 = vrot.slane %v4244, 1
  %v4531 = vsel %vm503, %v4528, %v4530
  %v4532 = vrot.slane %v4245, 1
  %v4533 = vrot.slane %v4246, 1
  %v4534 = vsel %vm503, %v4532, %v4533
  %v4535 = vrot.slane %v4247, 1
  %v4536 = vsel %vm503, %v4533, %v4535
  %v4537 = vrot.slane %v4248, 1
  %v4538 = vrot.slane %v4249, 1
  %v4539 = vsel %vm503, %v4537, %v4538
  %v4540 = vrot.slane %v4250, 1
  %v4541 = vsel %vm503, %v4538, %v4540
  %v4542 = vrot.slane %v4251, 1
  %v4543 = vrot.slane %v4252, 1
  %v4544 = vsel %vm503, %v4542, %v4543
  %v4545 = vrot.slane %v4253, 1
  %v4546 = vsel %vm503, %v4543, %v4545
  %v4547 = vrot.slane %v4254, 1
  %v4548 = vrot.slane %v4255, 1
  %v4549 = vsel %vm503, %v4547, %v4548
  %v4550 = vrot.slane %v4256, 1
  %v4551 = vsel %vm503, %v4548, %v4550
  %v4616 = vpack.c.bf16 %v4396, %v4394
  %v4617 = vpack.c.bf16 %v4401, %v4399
  %v4618 = vpack.c.bf16 %v4406, %v4404
  %v4619 = vpack.c.bf16 %v4411, %v4409
  %v4620 = vpack.c.bf16 %v4416, %v4414
  %v4621 = vpack.c.bf16 %v4421, %v4419
  %v4622 = vpack.c.bf16 %v4426, %v4424
  %v4623 = vpack.c.bf16 %v4431, %v4429
  %v4624 = vpack.c.bf16 %v4436, %v4434
  %v4625 = vpack.c.bf16 %v4441, %v4439
  %v4626 = vpack.c.bf16 %v4446, %v4444
  %v4627 = vpack.c.bf16 %v4451, %v4449
  %v4628 = vpack.c.bf16 %v4456, %v4454
  %v4629 = vpack.c.bf16 %v4461, %v4459
  %v4630 = vpack.c.bf16 %v4466, %v4464
  %v4631 = vpack.c.bf16 %v4471, %v4469
  %v4632 = vpack.c.bf16 %v4476, %v4474
  %v4633 = vpack.c.bf16 %v4481, %v4479
  %v4634 = vpack.c.bf16 %v4486, %v4484
  %v4635 = vpack.c.bf16 %v4491, %v4489
  %v4636 = vpack.c.bf16 %v4496, %v4494
  %v4637 = vpack.c.bf16 %v4501, %v4499
  %v4638 = vpack.c.bf16 %v4506, %v4504
  %v4639 = vpack.c.bf16 %v4511, %v4509
  %v4640 = vpack.c.bf16 %v4516, %v4514
  %v4641 = vpack.c.bf16 %v4521, %v4519
  %v4642 = vpack.c.bf16 %v4526, %v4524
  %v4643 = vpack.c.bf16 %v4531, %v4529
  %v4644 = vpack.c.bf16 %v4536, %v4534
  %v4645 = vpack.c.bf16 %v4541, %v4539
  %v4646 = vpack.c.bf16 %v4546, %v4544
  %v4647 = vpack.c.bf16 %v4551, %v4549
  %s4648 = scalar_lea.vmem %s2, 4
  %v4649 = vld [vmem:[%s4648] sm:$0xf]
  %v4651 = vsel %vm91, %v4616, 0
  %v4654 = vsel %vm91, %v4617, 0
  %v4657 = vsel %vm91, %v4618, 0
  %v4660 = vsel %vm91, %v4619, 0
  %v4663 = vsel %vm91, %v4620, 0
  %v4666 = vsel %vm91, %v4621, 0
  %v4669 = vsel %vm91, %v4622, 0
  %v4672 = vsel %vm91, %v4623, 0
  %v4675 = vsel %vm91, %v4624, 0
  %v4678 = vsel %vm91, %v4625, 0
  %v4681 = vsel %vm91, %v4626, 0
  %v4684 = vsel %vm91, %v4627, 0
  %v4687 = vsel %vm91, %v4628, 0
  %v4690 = vsel %vm91, %v4629, 0
  %v4693 = vsel %vm91, %v4630, 0
  %v4696 = vsel %vm91, %v4631, 0
  %v4699 = vsel %vm91, %v4632, 0
  %v4702 = vsel %vm91, %v4633, 0
  %v4705 = vsel %vm91, %v4634, 0
  %v4708 = vsel %vm91, %v4635, 0
  %v4711 = vsel %vm91, %v4636, 0
  %v4714 = vsel %vm91, %v4637, 0
  %v4717 = vsel %vm91, %v4638, 0
  %v4720 = vsel %vm91, %v4639, 0
  %v4723 = vsel %vm91, %v4640, 0
  %v4726 = vsel %vm91, %v4641, 0
  %v4729 = vsel %vm91, %v4642, 0
  %v4732 = vsel %vm91, %v4643, 0
  %v4735 = vsel %vm91, %v4644, 0
  %v4738 = vsel %vm91, %v4645, 0
  %v4741 = vsel %vm91, %v4646, 0
  %v4744 = vsel %vm91, %v4647, 0
  %v4747 = vsel %vm858, %v4649, 0
  %4749 = vmatpush.bf16.msra.mxu0 0
  %4750 = vmatpush.bf16.msra.mxu0 0
  %4751 = vmatpush.bf16.msra.mxu0 0
  %4752 = vmatpush.bf16.msra.mxu0 0
  %4753 = vmatpush.bf16.msra.mxu0 0
  %4754 = vmatpush.bf16.msra.mxu0 0
  %4755 = vmatpush.bf16.msra.mxu0 0
  %4756 = vmatpush.bf16.msra.mxu0 %v4747
  %4757 = vmatmul.bf16.gmra.mxu0 %v4651
  %v4758 = vpop.f32.mrf.mxu0
  %v4759 = vadd.f32 0.0, %v4758
  %v4760 = vpop.f32.mrf.mxu0
  %v4761 = vadd.f32 0.0, %v4760
  %4762 = vmatmul.bf16.gmra.mxu0 %v4654
  %v4763 = vpop.f32.mrf.mxu0
  %v4764 = vadd.f32 0.0, %v4763
  %v4765 = vpop.f32.mrf.mxu0
  %v4766 = vadd.f32 0.0, %v4765
  %4767 = vmatmul.bf16.gmra.mxu0 %v4657
  %v4768 = vpop.f32.mrf.mxu0
  %v4769 = vadd.f32 0.0, %v4768
  %v4770 = vpop.f32.mrf.mxu0
  %v4771 = vadd.f32 0.0, %v4770
  %4772 = vmatmul.bf16.gmra.mxu0 %v4660
  %v4773 = vpop.f32.mrf.mxu0
  %v4774 = vadd.f32 0.0, %v4773
  %v4775 = vpop.f32.mrf.mxu0
  %v4776 = vadd.f32 0.0, %v4775
  %4777 = vmatmul.bf16.gmra.mxu0 %v4663
  %v4778 = vpop.f32.mrf.mxu0
  %v4779 = vadd.f32 0.0, %v4778
  %v4780 = vpop.f32.mrf.mxu0
  %v4781 = vadd.f32 0.0, %v4780
  %4782 = vmatmul.bf16.gmra.mxu0 %v4666
  %v4783 = vpop.f32.mrf.mxu0
  %v4784 = vadd.f32 0.0, %v4783
  %v4785 = vpop.f32.mrf.mxu0
  %v4786 = vadd.f32 0.0, %v4785
  %4787 = vmatmul.bf16.gmra.mxu0 %v4669
  %v4788 = vpop.f32.mrf.mxu0
  %v4789 = vadd.f32 0.0, %v4788
  %v4790 = vpop.f32.mrf.mxu0
  %v4791 = vadd.f32 0.0, %v4790
  %4792 = vmatmul.bf16.gmra.mxu0 %v4672
  %v4793 = vpop.f32.mrf.mxu0
  %v4794 = vadd.f32 0.0, %v4793
  %v4795 = vpop.f32.mrf.mxu0
  %v4796 = vadd.f32 0.0, %v4795
  %4797 = vmatmul.bf16.gmra.mxu0 %v4675
  %v4798 = vpop.f32.mrf.mxu0
  %v4799 = vadd.f32 0.0, %v4798
  %v4800 = vpop.f32.mrf.mxu0
  %v4801 = vadd.f32 0.0, %v4800
  %4802 = vmatmul.bf16.gmra.mxu0 %v4678
  %v4803 = vpop.f32.mrf.mxu0
  %v4804 = vadd.f32 0.0, %v4803
  %v4805 = vpop.f32.mrf.mxu0
  %v4806 = vadd.f32 0.0, %v4805
  %4807 = vmatmul.bf16.gmra.mxu0 %v4681
  %v4808 = vpop.f32.mrf.mxu0
  %v4809 = vadd.f32 0.0, %v4808
  %v4810 = vpop.f32.mrf.mxu0
  %v4811 = vadd.f32 0.0, %v4810
  %4812 = vmatmul.bf16.gmra.mxu0 %v4684
  %v4813 = vpop.f32.mrf.mxu0
  %v4814 = vadd.f32 0.0, %v4813
  %v4815 = vpop.f32.mrf.mxu0
  %v4816 = vadd.f32 0.0, %v4815
  %4817 = vmatmul.bf16.gmra.mxu0 %v4687
  %v4818 = vpop.f32.mrf.mxu0
  %v4819 = vadd.f32 0.0, %v4818
  %v4820 = vpop.f32.mrf.mxu0
  %v4821 = vadd.f32 0.0, %v4820
  %4822 = vmatmul.bf16.gmra.mxu0 %v4690
  %v4823 = vpop.f32.mrf.mxu0
  %v4824 = vadd.f32 0.0, %v4823
  %v4825 = vpop.f32.mrf.mxu0
  %v4826 = vadd.f32 0.0, %v4825
  %4827 = vmatmul.bf16.gmra.mxu0 %v4693
  %v4828 = vpop.f32.mrf.mxu0
  %v4829 = vadd.f32 0.0, %v4828
  %v4830 = vpop.f32.mrf.mxu0
  %v4831 = vadd.f32 0.0, %v4830
  %4832 = vmatmul.bf16.gmra.mxu0 %v4696
  %v4833 = vpop.f32.mrf.mxu0
  %v4834 = vadd.f32 0.0, %v4833
  %v4835 = vpop.f32.mrf.mxu0
  %v4836 = vadd.f32 0.0, %v4835
  %4837 = vmatmul.bf16.gmra.mxu0 %v4699
  %v4838 = vpop.f32.mrf.mxu0
  %v4839 = vadd.f32 0.0, %v4838
  %v4840 = vpop.f32.mrf.mxu0
  %v4841 = vadd.f32 0.0, %v4840
  %4842 = vmatmul.bf16.gmra.mxu0 %v4702
  %v4843 = vpop.f32.mrf.mxu0
  %v4844 = vadd.f32 0.0, %v4843
  %v4845 = vpop.f32.mrf.mxu0
  %v4846 = vadd.f32 0.0, %v4845
  %4847 = vmatmul.bf16.gmra.mxu0 %v4705
  %v4848 = vpop.f32.mrf.mxu0
  %v4849 = vadd.f32 0.0, %v4848
  %v4850 = vpop.f32.mrf.mxu0
  %v4851 = vadd.f32 0.0, %v4850
  %4852 = vmatmul.bf16.gmra.mxu0 %v4708
  %v4853 = vpop.f32.mrf.mxu0
  %v4854 = vadd.f32 0.0, %v4853
  %v4855 = vpop.f32.mrf.mxu0
  %v4856 = vadd.f32 0.0, %v4855
  %4857 = vmatmul.bf16.gmra.mxu0 %v4711
  %v4858 = vpop.f32.mrf.mxu0
  %v4859 = vadd.f32 0.0, %v4858
  %v4860 = vpop.f32.mrf.mxu0
  %v4861 = vadd.f32 0.0, %v4860
  %4862 = vmatmul.bf16.gmra.mxu0 %v4714
  %v4863 = vpop.f32.mrf.mxu0
  %v4864 = vadd.f32 0.0, %v4863
  %v4865 = vpop.f32.mrf.mxu0
  %v4866 = vadd.f32 0.0, %v4865
  %4867 = vmatmul.bf16.gmra.mxu0 %v4717
  %v4868 = vpop.f32.mrf.mxu0
  %v4869 = vadd.f32 0.0, %v4868
  %v4870 = vpop.f32.mrf.mxu0
  %v4871 = vadd.f32 0.0, %v4870
  %4872 = vmatmul.bf16.gmra.mxu0 %v4720
  %v4873 = vpop.f32.mrf.mxu0
  %v4874 = vadd.f32 0.0, %v4873
  %v4875 = vpop.f32.mrf.mxu0
  %v4876 = vadd.f32 0.0, %v4875
  %4877 = vmatmul.bf16.gmra.mxu0 %v4723
  %v4878 = vpop.f32.mrf.mxu0
  %v4879 = vadd.f32 0.0, %v4878
  %v4880 = vpop.f32.mrf.mxu0
  %v4881 = vadd.f32 0.0, %v4880
  %4882 = vmatmul.bf16.gmra.mxu0 %v4726
  %v4883 = vpop.f32.mrf.mxu0
  %v4884 = vadd.f32 0.0, %v4883
  %v4885 = vpop.f32.mrf.mxu0
  %v4886 = vadd.f32 0.0, %v4885
  %4887 = vmatmul.bf16.gmra.mxu0 %v4729
  %v4888 = vpop.f32.mrf.mxu0
  %v4889 = vadd.f32 0.0, %v4888
  %v4890 = vpop.f32.mrf.mxu0
  %v4891 = vadd.f32 0.0, %v4890
  %4892 = vmatmul.bf16.gmra.mxu0 %v4732
  %v4893 = vpop.f32.mrf.mxu0
  %v4894 = vadd.f32 0.0, %v4893
  %v4895 = vpop.f32.mrf.mxu0
  %v4896 = vadd.f32 0.0, %v4895
  %4897 = vmatmul.bf16.gmra.mxu0 %v4735
  %v4898 = vpop.f32.mrf.mxu0
  %v4899 = vadd.f32 0.0, %v4898
  %v4900 = vpop.f32.mrf.mxu0
  %v4901 = vadd.f32 0.0, %v4900
  %4902 = vmatmul.bf16.gmra.mxu0 %v4738
  %v4903 = vpop.f32.mrf.mxu0
  %v4904 = vadd.f32 0.0, %v4903
  %v4905 = vpop.f32.mrf.mxu0
  %v4906 = vadd.f32 0.0, %v4905
  %4907 = vmatmul.bf16.gmra.mxu0 %v4741
  %v4908 = vpop.f32.mrf.mxu0
  %v4909 = vadd.f32 0.0, %v4908
  %v4910 = vpop.f32.mrf.mxu0
  %v4911 = vadd.f32 0.0, %v4910
  %4912 = vmatmul.bf16.gmra.mxu0 %v4744
  %v4913 = vpop.f32.mrf.mxu0
  %v4914 = vadd.f32 0.0, %v4913
  %v4915 = vpop.f32.mrf.mxu0
  %v4916 = vadd.f32 0.0, %v4915
  %4917 = vdwg.mxu0
  %v4919 = vsel %vm91, %v4263, 0
  %v4922 = vsel %vm91, %v4264, 0
  %v4925 = vsel %vm91, %v4265, 0
  %v4928 = vsel %vm91, %v4266, 0
  %v4931 = vsel %vm91, %v4267, 0
  %v4934 = vsel %vm91, %v4268, 0
  %v4937 = vsel %vm91, %v4269, 0
  %v4940 = vsel %vm91, %v4270, 0
  %v4943 = vsel %vm91, %v4271, 0
  %v4946 = vsel %vm91, %v4272, 0
  %v4949 = vsel %vm91, %v4273, 0
  %v4952 = vsel %vm91, %v4274, 0
  %v4955 = vsel %vm91, %v4275, 0
  %v4958 = vsel %vm91, %v4276, 0
  %v4961 = vsel %vm91, %v4277, 0
  %v4964 = vsel %vm91, %v4278, 0
  %v4967 = vsel %vm91, %v4279, 0
  %v4970 = vsel %vm91, %v4280, 0
  %v4973 = vsel %vm91, %v4281, 0
  %v4976 = vsel %vm91, %v4282, 0
  %v4979 = vsel %vm91, %v4283, 0
  %v4982 = vsel %vm91, %v4284, 0
  %v4985 = vsel %vm91, %v4285, 0
  %v4988 = vsel %vm91, %v4286, 0
  %v4991 = vsel %vm91, %v4287, 0
  %v4994 = vsel %vm91, %v4288, 0
  %v4997 = vsel %vm91, %v4289, 0
  %v5000 = vsel %vm91, %v4290, 0
  %v5003 = vsel %vm91, %v4291, 0
  %v5006 = vsel %vm91, %v4292, 0
  %v5009 = vsel %vm91, %v4293, 0
  %v5012 = vsel %vm91, %v4294, 0
  %v5015 = vsel %vm858, %v4295, 0
  %5017 = vmatpush.bf16.msra.mxu0 0
  %5018 = vmatpush.bf16.msra.mxu0 0
  %5019 = vmatpush.bf16.msra.mxu0 0
  %5020 = vmatpush.bf16.msra.mxu0 0
  %5021 = vmatpush.bf16.msra.mxu0 0
  %5022 = vmatpush.bf16.msra.mxu0 0
  %5023 = vmatpush.bf16.msra.mxu0 0
  %5024 = vmatpush.bf16.msra.mxu0 %v5015
  %5025 = vmatmul.bf16.gmra.mxu0 %v4919
  %v5026 = vpop.f32.mrf.mxu0
  %v5027 = vadd.f32 %v4759, %v5026
  %v5028 = vpop.f32.mrf.mxu0
  %v5029 = vadd.f32 %v4761, %v5028
  %5030 = vmatmul.bf16.gmra.mxu0 %v4922
  %v5031 = vpop.f32.mrf.mxu0
  %v5032 = vadd.f32 %v4764, %v5031
  %v5033 = vpop.f32.mrf.mxu0
  %v5034 = vadd.f32 %v4766, %v5033
  %5035 = vmatmul.bf16.gmra.mxu0 %v4925
  %v5036 = vpop.f32.mrf.mxu0
  %v5037 = vadd.f32 %v4769, %v5036
  %v5038 = vpop.f32.mrf.mxu0
  %v5039 = vadd.f32 %v4771, %v5038
  %5040 = vmatmul.bf16.gmra.mxu0 %v4928
  %v5041 = vpop.f32.mrf.mxu0
  %v5042 = vadd.f32 %v4774, %v5041
  %v5043 = vpop.f32.mrf.mxu0
  %v5044 = vadd.f32 %v4776, %v5043
  %5045 = vmatmul.bf16.gmra.mxu0 %v4931
  %v5046 = vpop.f32.mrf.mxu0
  %v5047 = vadd.f32 %v4779, %v5046
  %v5048 = vpop.f32.mrf.mxu0
  %v5049 = vadd.f32 %v4781, %v5048
  %5050 = vmatmul.bf16.gmra.mxu0 %v4934
  %v5051 = vpop.f32.mrf.mxu0
  %v5052 = vadd.f32 %v4784, %v5051
  %v5053 = vpop.f32.mrf.mxu0
  %v5054 = vadd.f32 %v4786, %v5053
  %5055 = vmatmul.bf16.gmra.mxu0 %v4937
  %v5056 = vpop.f32.mrf.mxu0
  %v5057 = vadd.f32 %v4789, %v5056
  %v5058 = vpop.f32.mrf.mxu0
  %v5059 = vadd.f32 %v4791, %v5058
  %5060 = vmatmul.bf16.gmra.mxu0 %v4940
  %v5061 = vpop.f32.mrf.mxu0
  %v5062 = vadd.f32 %v4794, %v5061
  %v5063 = vpop.f32.mrf.mxu0
  %v5064 = vadd.f32 %v4796, %v5063
  %5065 = vmatmul.bf16.gmra.mxu0 %v4943
  %v5066 = vpop.f32.mrf.mxu0
  %v5067 = vadd.f32 %v4799, %v5066
  %v5068 = vpop.f32.mrf.mxu0
  %v5069 = vadd.f32 %v4801, %v5068
  %5070 = vmatmul.bf16.gmra.mxu0 %v4946
  %v5071 = vpop.f32.mrf.mxu0
  %v5072 = vadd.f32 %v4804, %v5071
  %v5073 = vpop.f32.mrf.mxu0
  %v5074 = vadd.f32 %v4806, %v5073
  %5075 = vmatmul.bf16.gmra.mxu0 %v4949
  %v5076 = vpop.f32.mrf.mxu0
  %v5077 = vadd.f32 %v4809, %v5076
  %v5078 = vpop.f32.mrf.mxu0
  %v5079 = vadd.f32 %v4811, %v5078
  %5080 = vmatmul.bf16.gmra.mxu0 %v4952
  %v5081 = vpop.f32.mrf.mxu0
  %v5082 = vadd.f32 %v4814, %v5081
  %v5083 = vpop.f32.mrf.mxu0
  %v5084 = vadd.f32 %v4816, %v5083
  %5085 = vmatmul.bf16.gmra.mxu0 %v4955
  %v5086 = vpop.f32.mrf.mxu0
  %v5087 = vadd.f32 %v4819, %v5086
  %v5088 = vpop.f32.mrf.mxu0
  %v5089 = vadd.f32 %v4821, %v5088
  %5090 = vmatmul.bf16.gmra.mxu0 %v4958
  %v5091 = vpop.f32.mrf.mxu0
  %v5092 = vadd.f32 %v4824, %v5091
  %v5093 = vpop.f32.mrf.mxu0
  %v5094 = vadd.f32 %v4826, %v5093
  %5095 = vmatmul.bf16.gmra.mxu0 %v4961
  %v5096 = vpop.f32.mrf.mxu0
  %v5097 = vadd.f32 %v4829, %v5096
  %v5098 = vpop.f32.mrf.mxu0
  %v5099 = vadd.f32 %v4831, %v5098
  %5100 = vmatmul.bf16.gmra.mxu0 %v4964
  %v5101 = vpop.f32.mrf.mxu0
  %v5102 = vadd.f32 %v4834, %v5101
  %v5103 = vpop.f32.mrf.mxu0
  %v5104 = vadd.f32 %v4836, %v5103
  %5105 = vmatmul.bf16.gmra.mxu0 %v4967
  %v5106 = vpop.f32.mrf.mxu0
  %v5107 = vadd.f32 %v4839, %v5106
  %v5108 = vpop.f32.mrf.mxu0
  %v5109 = vadd.f32 %v4841, %v5108
  %5110 = vmatmul.bf16.gmra.mxu0 %v4970
  %v5111 = vpop.f32.mrf.mxu0
  %v5112 = vadd.f32 %v4844, %v5111
  %v5113 = vpop.f32.mrf.mxu0
  %v5114 = vadd.f32 %v4846, %v5113
  %5115 = vmatmul.bf16.gmra.mxu0 %v4973
  %v5116 = vpop.f32.mrf.mxu0
  %v5117 = vadd.f32 %v4849, %v5116
  %v5118 = vpop.f32.mrf.mxu0
  %v5119 = vadd.f32 %v4851, %v5118
  %5120 = vmatmul.bf16.gmra.mxu0 %v4976
  %v5121 = vpop.f32.mrf.mxu0
  %v5122 = vadd.f32 %v4854, %v5121
  %v5123 = vpop.f32.mrf.mxu0
  %v5124 = vadd.f32 %v4856, %v5123
  %5125 = vmatmul.bf16.gmra.mxu0 %v4979
  %v5126 = vpop.f32.mrf.mxu0
  %v5127 = vadd.f32 %v4859, %v5126
  %v5128 = vpop.f32.mrf.mxu0
  %v5129 = vadd.f32 %v4861, %v5128
  %5130 = vmatmul.bf16.gmra.mxu0 %v4982
  %v5131 = vpop.f32.mrf.mxu0
  %v5132 = vadd.f32 %v4864, %v5131
  %v5133 = vpop.f32.mrf.mxu0
  %v5134 = vadd.f32 %v4866, %v5133
  %5135 = vmatmul.bf16.gmra.mxu0 %v4985
  %v5136 = vpop.f32.mrf.mxu0
  %v5137 = vadd.f32 %v4869, %v5136
  %v5138 = vpop.f32.mrf.mxu0
  %v5139 = vadd.f32 %v4871, %v5138
  %5140 = vmatmul.bf16.gmra.mxu0 %v4988
  %v5141 = vpop.f32.mrf.mxu0
  %v5142 = vadd.f32 %v4874, %v5141
  %v5143 = vpop.f32.mrf.mxu0
  %v5144 = vadd.f32 %v4876, %v5143
  %5145 = vmatmul.bf16.gmra.mxu0 %v4991
  %v5146 = vpop.f32.mrf.mxu0
  %v5147 = vadd.f32 %v4879, %v5146
  %v5148 = vpop.f32.mrf.mxu0
  %v5149 = vadd.f32 %v4881, %v5148
  %5150 = vmatmul.bf16.gmra.mxu0 %v4994
  %v5151 = vpop.f32.mrf.mxu0
  %v5152 = vadd.f32 %v4884, %v5151
  %v5153 = vpop.f32.mrf.mxu0
  %v5154 = vadd.f32 %v4886, %v5153
  %5155 = vmatmul.bf16.gmra.mxu0 %v4997
  %v5156 = vpop.f32.mrf.mxu0
  %v5157 = vadd.f32 %v4889, %v5156
  %v5158 = vpop.f32.mrf.mxu0
  %v5159 = vadd.f32 %v4891, %v5158
  %5160 = vmatmul.bf16.gmra.mxu0 %v5000
  %v5161 = vpop.f32.mrf.mxu0
  %v5162 = vadd.f32 %v4894, %v5161
  %v5163 = vpop.f32.mrf.mxu0
  %v5164 = vadd.f32 %v4896, %v5163
  %5165 = vmatmul.bf16.gmra.mxu0 %v5003
  %v5166 = vpop.f32.mrf.mxu0
  %v5167 = vadd.f32 %v4899, %v5166
  %v5168 = vpop.f32.mrf.mxu0
  %v5169 = vadd.f32 %v4901, %v5168
  %5170 = vmatmul.bf16.gmra.mxu0 %v5006
  %v5171 = vpop.f32.mrf.mxu0
  %v5172 = vadd.f32 %v4904, %v5171
  %v5173 = vpop.f32.mrf.mxu0
  %v5174 = vadd.f32 %v4906, %v5173
  %5175 = vmatmul.bf16.gmra.mxu0 %v5009
  %v5176 = vpop.f32.mrf.mxu0
  %v5177 = vadd.f32 %v4909, %v5176
  %v5178 = vpop.f32.mrf.mxu0
  %v5179 = vadd.f32 %v4911, %v5178
  %5180 = vmatmul.bf16.gmra.mxu0 %v5012
  %v5181 = vpop.f32.mrf.mxu0
  %v5182 = vadd.f32 %v4914, %v5181
  %v5183 = vpop.f32.mrf.mxu0
  %v5184 = vadd.f32 %v4916, %v5183
  %5185 = vdwg.mxu0
  %v5186 = vrot.slane %v4155, 2
  %v5187 = vrot.slane %v4156, 2
  %v5188 = vsel %vm1299, %v5186, %v5187
  %v5189 = vrot.slane %v4157, 2
  %v5190 = vsel %vm1299, %v5187, %v5189
  %v5191 = vrot.slane %v4158, 2
  %v5192 = vrot.slane %v4159, 2
  %v5193 = vsel %vm1299, %v5191, %v5192
  %v5194 = vrot.slane %v4160, 2
  %v5195 = vsel %vm1299, %v5192, %v5194
  %v5196 = vrot.slane %v4161, 2
  %v5197 = vrot.slane %v4162, 2
  %v5198 = vsel %vm1299, %v5196, %v5197
  %v5199 = vrot.slane %v4163, 2
  %v5200 = vsel %vm1299, %v5197, %v5199
  %v5201 = vrot.slane %v4164, 2
  %v5202 = vrot.slane %v4165, 2
  %v5203 = vsel %vm1299, %v5201, %v5202
  %v5204 = vrot.slane %v4166, 2
  %v5205 = vsel %vm1299, %v5202, %v5204
  %v5206 = vrot.slane %v4167, 2
  %v5207 = vrot.slane %v4168, 2
  %v5208 = vsel %vm1299, %v5206, %v5207
  %v5209 = vrot.slane %v4169, 2
  %v5210 = vsel %vm1299, %v5207, %v5209
  %v5211 = vrot.slane %v4170, 2
  %v5212 = vrot.slane %v4171, 2
  %v5213 = vsel %vm1299, %v5211, %v5212
  %v5214 = vrot.slane %v4172, 2
  %v5215 = vsel %vm1299, %v5212, %v5214
  %v5216 = vrot.slane %v4173, 2
  %v5217 = vrot.slane %v4174, 2
  %v5218 = vsel %vm1299, %v5216, %v5217
  %v5219 = vrot.slane %v4175, 2
  %v5220 = vsel %vm1299, %v5217, %v5219
  %v5221 = vrot.slane %v4176, 2
  %v5222 = vrot.slane %v4177, 2
  %v5223 = vsel %vm1299, %v5221, %v5222
  %v5224 = vrot.slane %v4178, 2
  %v5225 = vsel %vm1299, %v5222, %v5224
  %v5226 = vrot.slane %v4179, 2
  %v5227 = vrot.slane %v4180, 2
  %v5228 = vsel %vm1299, %v5226, %v5227
  %v5229 = vrot.slane %v4181, 2
  %v5230 = vsel %vm1299, %v5227, %v5229
  %v5231 = vrot.slane %v4182, 2
  %v5232 = vrot.slane %v4183, 2
  %v5233 = vsel %vm1299, %v5231, %v5232
  %v5234 = vrot.slane %v4184, 2
  %v5235 = vsel %vm1299, %v5232, %v5234
  %v5236 = vrot.slane %v4185, 2
  %v5237 = vrot.slane %v4186, 2
  %v5238 = vsel %vm1299, %v5236, %v5237
  %v5239 = vrot.slane %v4187, 2
  %v5240 = vsel %vm1299, %v5237, %v5239
  %v5241 = vrot.slane %v4188, 2
  %v5242 = vrot.slane %v4189, 2
  %v5243 = vsel %vm1299, %v5241, %v5242
  %v5244 = vrot.slane %v4190, 2
  %v5245 = vsel %vm1299, %v5242, %v5244
  %v5246 = vrot.slane %v4191, 2
  %v5247 = vrot.slane %v4192, 2
  %v5248 = vsel %vm1299, %v5246, %v5247
  %v5249 = vrot.slane %v4193, 2
  %v5250 = vsel %vm1299, %v5247, %v5249
  %v5251 = vrot.slane %v4194, 2
  %v5252 = vrot.slane %v4195, 2
  %v5253 = vsel %vm1299, %v5251, %v5252
  %v5254 = vrot.slane %v4196, 2
  %v5255 = vsel %vm1299, %v5252, %v5254
  %v5256 = vrot.slane %v4197, 2
  %v5257 = vrot.slane %v4198, 2
  %v5258 = vsel %vm1299, %v5256, %v5257
  %v5259 = vrot.slane %v4199, 2
  %v5260 = vsel %vm1299, %v5257, %v5259
  %v5261 = vrot.slane %v4200, 2
  %v5262 = vrot.slane %v4201, 2
  %v5263 = vsel %vm1299, %v5261, %v5262
  %v5264 = vrot.slane %v4202, 2
  %v5265 = vsel %vm1299, %v5262, %v5264
  %v5266 = vrot.slane %v4209, 2
  %v5267 = vrot.slane %v4210, 2
  %v5268 = vsel %vm1299, %v5266, %v5267
  %v5269 = vrot.slane %v4211, 2
  %v5270 = vsel %vm1299, %v5267, %v5269
  %v5271 = vrot.slane %v4212, 2
  %v5272 = vrot.slane %v4213, 2
  %v5273 = vsel %vm1299, %v5271, %v5272
  %v5274 = vrot.slane %v4214, 2
  %v5275 = vsel %vm1299, %v5272, %v5274
  %v5276 = vrot.slane %v4215, 2
  %v5277 = vrot.slane %v4216, 2
  %v5278 = vsel %vm1299, %v5276, %v5277
  %v5279 = vrot.slane %v4217, 2
  %v5280 = vsel %vm1299, %v5277, %v5279
  %v5281 = vrot.slane %v4218, 2
  %v5282 = vrot.slane %v4219, 2
  %v5283 = vsel %vm1299, %v5281, %v5282
  %v5284 = vrot.slane %v4220, 2
  %v5285 = vsel %vm1299, %v5282, %v5284
  %v5286 = vrot.slane %v4221, 2
  %v5287 = vrot.slane %v4222, 2
  %v5288 = vsel %vm1299, %v5286, %v5287
  %v5289 = vrot.slane %v4223, 2
  %v5290 = vsel %vm1299, %v5287, %v5289
  %v5291 = vrot.slane %v4224, 2
  %v5292 = vrot.slane %v4225, 2
  %v5293 = vsel %vm1299, %v5291, %v5292
  %v5294 = vrot.slane %v4226, 2
  %v5295 = vsel %vm1299, %v5292, %v5294
  %v5296 = vrot.slane %v4227, 2
  %v5297 = vrot.slane %v4228, 2
  %v5298 = vsel %vm1299, %v5296, %v5297
  %v5299 = vrot.slane %v4229, 2
  %v5300 = vsel %vm1299, %v5297, %v5299
  %v5301 = vrot.slane %v4230, 2
  %v5302 = vrot.slane %v4231, 2
  %v5303 = vsel %vm1299, %v5301, %v5302
  %v5304 = vrot.slane %v4232, 2
  %v5305 = vsel %vm1299, %v5302, %v5304
  %v5306 = vrot.slane %v4233, 2
  %v5307 = vrot.slane %v4234, 2
  %v5308 = vsel %vm1299, %v5306, %v5307
  %v5309 = vrot.slane %v4235, 2
  %v5310 = vsel %vm1299, %v5307, %v5309
  %v5311 = vrot.slane %v4236, 2
  %v5312 = vrot.slane %v4237, 2
  %v5313 = vsel %vm1299, %v5311, %v5312
  %v5314 = vrot.slane %v4238, 2
  %v5315 = vsel %vm1299, %v5312, %v5314
  %v5316 = vrot.slane %v4239, 2
  %v5317 = vrot.slane %v4240, 2
  %v5318 = vsel %vm1299, %v5316, %v5317
  %v5319 = vrot.slane %v4241, 2
  %v5320 = vsel %vm1299, %v5317, %v5319
  %v5321 = vrot.slane %v4242, 2
  %v5322 = vrot.slane %v4243, 2
  %v5323 = vsel %vm1299, %v5321, %v5322
  %v5324 = vrot.slane %v4244, 2
  %v5325 = vsel %vm1299, %v5322, %v5324
  %v5326 = vrot.slane %v4245, 2
  %v5327 = vrot.slane %v4246, 2
  %v5328 = vsel %vm1299, %v5326, %v5327
  %v5329 = vrot.slane %v4247, 2
  %v5330 = vsel %vm1299, %v5327, %v5329
  %v5331 = vrot.slane %v4248, 2
  %v5332 = vrot.slane %v4249, 2
  %v5333 = vsel %vm1299, %v5331, %v5332
  %v5334 = vrot.slane %v4250, 2
  %v5335 = vsel %vm1299, %v5332, %v5334
  %v5336 = vrot.slane %v4251, 2
  %v5337 = vrot.slane %v4252, 2
  %v5338 = vsel %vm1299, %v5336, %v5337
  %v5339 = vrot.slane %v4253, 2
  %v5340 = vsel %vm1299, %v5337, %v5339
  %v5341 = vrot.slane %v4254, 2
  %v5342 = vrot.slane %v4255, 2
  %v5343 = vsel %vm1299, %v5341, %v5342
  %v5344 = vrot.slane %v4256, 2
  %v5345 = vsel %vm1299, %v5342, %v5344
  %v5410 = vpack.c.bf16 %v5190, %v5188
  %v5411 = vpack.c.bf16 %v5195, %v5193
  %v5412 = vpack.c.bf16 %v5200, %v5198
  %v5413 = vpack.c.bf16 %v5205, %v5203
  %v5414 = vpack.c.bf16 %v5210, %v5208
  %v5415 = vpack.c.bf16 %v5215, %v5213
  %v5416 = vpack.c.bf16 %v5220, %v5218
  %v5417 = vpack.c.bf16 %v5225, %v5223
  %v5418 = vpack.c.bf16 %v5230, %v5228
  %v5419 = vpack.c.bf16 %v5235, %v5233
  %v5420 = vpack.c.bf16 %v5240, %v5238
  %v5421 = vpack.c.bf16 %v5245, %v5243
  %v5422 = vpack.c.bf16 %v5250, %v5248
  %v5423 = vpack.c.bf16 %v5255, %v5253
  %v5424 = vpack.c.bf16 %v5260, %v5258
  %v5425 = vpack.c.bf16 %v5265, %v5263
  %v5426 = vpack.c.bf16 %v5270, %v5268
  %v5427 = vpack.c.bf16 %v5275, %v5273
  %v5428 = vpack.c.bf16 %v5280, %v5278
  %v5429 = vpack.c.bf16 %v5285, %v5283
  %v5430 = vpack.c.bf16 %v5290, %v5288
  %v5431 = vpack.c.bf16 %v5295, %v5293
  %v5432 = vpack.c.bf16 %v5300, %v5298
  %v5433 = vpack.c.bf16 %v5305, %v5303
  %v5434 = vpack.c.bf16 %v5310, %v5308
  %v5435 = vpack.c.bf16 %v5315, %v5313
  %v5436 = vpack.c.bf16 %v5320, %v5318
  %v5437 = vpack.c.bf16 %v5325, %v5323
  %v5438 = vpack.c.bf16 %v5330, %v5328
  %v5439 = vpack.c.bf16 %v5335, %v5333
  %v5440 = vpack.c.bf16 %v5340, %v5338
  %v5441 = vpack.c.bf16 %v5345, %v5343
  %s5442 = scalar_lea.vmem %s2, 8
  %v5443 = vld [vmem:[%s5442] sm:$0xf]
  %v5445 = vsel %vm91, %v5410, 0
  %v5448 = vsel %vm91, %v5411, 0
  %v5451 = vsel %vm91, %v5412, 0
  %v5454 = vsel %vm91, %v5413, 0
  %v5457 = vsel %vm91, %v5414, 0
  %v5460 = vsel %vm91, %v5415, 0
  %v5463 = vsel %vm91, %v5416, 0
  %v5466 = vsel %vm91, %v5417, 0
  %v5469 = vsel %vm91, %v5418, 0
  %v5472 = vsel %vm91, %v5419, 0
  %v5475 = vsel %vm91, %v5420, 0
  %v5478 = vsel %vm91, %v5421, 0
  %v5481 = vsel %vm91, %v5422, 0
  %v5484 = vsel %vm91, %v5423, 0
  %v5487 = vsel %vm91, %v5424, 0
  %v5490 = vsel %vm91, %v5425, 0
  %v5493 = vsel %vm91, %v5426, 0
  %v5496 = vsel %vm91, %v5427, 0
  %v5499 = vsel %vm91, %v5428, 0
  %v5502 = vsel %vm91, %v5429, 0
  %v5505 = vsel %vm91, %v5430, 0
  %v5508 = vsel %vm91, %v5431, 0
  %v5511 = vsel %vm91, %v5432, 0
  %v5514 = vsel %vm91, %v5433, 0
  %v5517 = vsel %vm91, %v5434, 0
  %v5520 = vsel %vm91, %v5435, 0
  %v5523 = vsel %vm91, %v5436, 0
  %v5526 = vsel %vm91, %v5437, 0
  %v5529 = vsel %vm91, %v5438, 0
  %v5532 = vsel %vm91, %v5439, 0
  %v5535 = vsel %vm91, %v5440, 0
  %v5538 = vsel %vm91, %v5441, 0
  %v5541 = vsel %vm858, %v5443, 0
  %5543 = vmatpush.bf16.msra.mxu0 0
  %5544 = vmatpush.bf16.msra.mxu0 0
  %5545 = vmatpush.bf16.msra.mxu0 0
  %5546 = vmatpush.bf16.msra.mxu0 0
  %5547 = vmatpush.bf16.msra.mxu0 0
  %5548 = vmatpush.bf16.msra.mxu0 0
  %5549 = vmatpush.bf16.msra.mxu0 0
  %5550 = vmatpush.bf16.msra.mxu0 %v5541
  %5551 = vmatmul.bf16.gmra.mxu0 %v5445
  %v5552 = vpop.f32.mrf.mxu0
  %v5553 = vadd.f32 0.0, %v5552
  %v5554 = vpop.f32.mrf.mxu0
  %v5555 = vadd.f32 0.0, %v5554
  %5556 = vmatmul.bf16.gmra.mxu0 %v5448
  %v5557 = vpop.f32.mrf.mxu0
  %v5558 = vadd.f32 0.0, %v5557
  %v5559 = vpop.f32.mrf.mxu0
  %v5560 = vadd.f32 0.0, %v5559
  %5561 = vmatmul.bf16.gmra.mxu0 %v5451
  %v5562 = vpop.f32.mrf.mxu0
  %v5563 = vadd.f32 0.0, %v5562
  %v5564 = vpop.f32.mrf.mxu0
  %v5565 = vadd.f32 0.0, %v5564
  %5566 = vmatmul.bf16.gmra.mxu0 %v5454
  %v5567 = vpop.f32.mrf.mxu0
  %v5568 = vadd.f32 0.0, %v5567
  %v5569 = vpop.f32.mrf.mxu0
  %v5570 = vadd.f32 0.0, %v5569
  %5571 = vmatmul.bf16.gmra.mxu0 %v5457
  %v5572 = vpop.f32.mrf.mxu0
  %v5573 = vadd.f32 0.0, %v5572
  %v5574 = vpop.f32.mrf.mxu0
  %v5575 = vadd.f32 0.0, %v5574
  %5576 = vmatmul.bf16.gmra.mxu0 %v5460
  %v5577 = vpop.f32.mrf.mxu0
  %v5578 = vadd.f32 0.0, %v5577
  %v5579 = vpop.f32.mrf.mxu0
  %v5580 = vadd.f32 0.0, %v5579
  %5581 = vmatmul.bf16.gmra.mxu0 %v5463
  %v5582 = vpop.f32.mrf.mxu0
  %v5583 = vadd.f32 0.0, %v5582
  %v5584 = vpop.f32.mrf.mxu0
  %v5585 = vadd.f32 0.0, %v5584
  %5586 = vmatmul.bf16.gmra.mxu0 %v5466
  %v5587 = vpop.f32.mrf.mxu0
  %v5588 = vadd.f32 0.0, %v5587
  %v5589 = vpop.f32.mrf.mxu0
  %v5590 = vadd.f32 0.0, %v5589
  %5591 = vmatmul.bf16.gmra.mxu0 %v5469
  %v5592 = vpop.f32.mrf.mxu0
  %v5593 = vadd.f32 0.0, %v5592
  %v5594 = vpop.f32.mrf.mxu0
  %v5595 = vadd.f32 0.0, %v5594
  %5596 = vmatmul.bf16.gmra.mxu0 %v5472
  %v5597 = vpop.f32.mrf.mxu0
  %v5598 = vadd.f32 0.0, %v5597
  %v5599 = vpop.f32.mrf.mxu0
  %v5600 = vadd.f32 0.0, %v5599
  %5601 = vmatmul.bf16.gmra.mxu0 %v5475
  %v5602 = vpop.f32.mrf.mxu0
  %v5603 = vadd.f32 0.0, %v5602
  %v5604 = vpop.f32.mrf.mxu0
  %v5605 = vadd.f32 0.0, %v5604
  %5606 = vmatmul.bf16.gmra.mxu0 %v5478
  %v5607 = vpop.f32.mrf.mxu0
  %v5608 = vadd.f32 0.0, %v5607
  %v5609 = vpop.f32.mrf.mxu0
  %v5610 = vadd.f32 0.0, %v5609
  %5611 = vmatmul.bf16.gmra.mxu0 %v5481
  %v5612 = vpop.f32.mrf.mxu0
  %v5613 = vadd.f32 0.0, %v5612
  %v5614 = vpop.f32.mrf.mxu0
  %v5615 = vadd.f32 0.0, %v5614
  %5616 = vmatmul.bf16.gmra.mxu0 %v5484
  %v5617 = vpop.f32.mrf.mxu0
  %v5618 = vadd.f32 0.0, %v5617
  %v5619 = vpop.f32.mrf.mxu0
  %v5620 = vadd.f32 0.0, %v5619
  %5621 = vmatmul.bf16.gmra.mxu0 %v5487
  %v5622 = vpop.f32.mrf.mxu0
  %v5623 = vadd.f32 0.0, %v5622
  %v5624 = vpop.f32.mrf.mxu0
  %v5625 = vadd.f32 0.0, %v5624
  %5626 = vmatmul.bf16.gmra.mxu0 %v5490
  %v5627 = vpop.f32.mrf.mxu0
  %v5628 = vadd.f32 0.0, %v5627
  %v5629 = vpop.f32.mrf.mxu0
  %v5630 = vadd.f32 0.0, %v5629
  %5631 = vmatmul.bf16.gmra.mxu0 %v5493
  %v5632 = vpop.f32.mrf.mxu0
  %v5633 = vadd.f32 0.0, %v5632
  %v5634 = vpop.f32.mrf.mxu0
  %v5635 = vadd.f32 0.0, %v5634
  %5636 = vmatmul.bf16.gmra.mxu0 %v5496
  %v5637 = vpop.f32.mrf.mxu0
  %v5638 = vadd.f32 0.0, %v5637
  %v5639 = vpop.f32.mrf.mxu0
  %v5640 = vadd.f32 0.0, %v5639
  %5641 = vmatmul.bf16.gmra.mxu0 %v5499
  %v5642 = vpop.f32.mrf.mxu0
  %v5643 = vadd.f32 0.0, %v5642
  %v5644 = vpop.f32.mrf.mxu0
  %v5645 = vadd.f32 0.0, %v5644
  %5646 = vmatmul.bf16.gmra.mxu0 %v5502
  %v5647 = vpop.f32.mrf.mxu0
  %v5648 = vadd.f32 0.0, %v5647
  %v5649 = vpop.f32.mrf.mxu0
  %v5650 = vadd.f32 0.0, %v5649
  %5651 = vmatmul.bf16.gmra.mxu0 %v5505
  %v5652 = vpop.f32.mrf.mxu0
  %v5653 = vadd.f32 0.0, %v5652
  %v5654 = vpop.f32.mrf.mxu0
  %v5655 = vadd.f32 0.0, %v5654
  %5656 = vmatmul.bf16.gmra.mxu0 %v5508
  %v5657 = vpop.f32.mrf.mxu0
  %v5658 = vadd.f32 0.0, %v5657
  %v5659 = vpop.f32.mrf.mxu0
  %v5660 = vadd.f32 0.0, %v5659
  %5661 = vmatmul.bf16.gmra.mxu0 %v5511
  %v5662 = vpop.f32.mrf.mxu0
  %v5663 = vadd.f32 0.0, %v5662
  %v5664 = vpop.f32.mrf.mxu0
  %v5665 = vadd.f32 0.0, %v5664
  %5666 = vmatmul.bf16.gmra.mxu0 %v5514
  %v5667 = vpop.f32.mrf.mxu0
  %v5668 = vadd.f32 0.0, %v5667
  %v5669 = vpop.f32.mrf.mxu0
  %v5670 = vadd.f32 0.0, %v5669
  %5671 = vmatmul.bf16.gmra.mxu0 %v5517
  %v5672 = vpop.f32.mrf.mxu0
  %v5673 = vadd.f32 0.0, %v5672
  %v5674 = vpop.f32.mrf.mxu0
  %v5675 = vadd.f32 0.0, %v5674
  %5676 = vmatmul.bf16.gmra.mxu0 %v5520
  %v5677 = vpop.f32.mrf.mxu0
  %v5678 = vadd.f32 0.0, %v5677
  %v5679 = vpop.f32.mrf.mxu0
  %v5680 = vadd.f32 0.0, %v5679
  %5681 = vmatmul.bf16.gmra.mxu0 %v5523
  %v5682 = vpop.f32.mrf.mxu0
  %v5683 = vadd.f32 0.0, %v5682
  %v5684 = vpop.f32.mrf.mxu0
  %v5685 = vadd.f32 0.0, %v5684
  %5686 = vmatmul.bf16.gmra.mxu0 %v5526
  %v5687 = vpop.f32.mrf.mxu0
  %v5688 = vadd.f32 0.0, %v5687
  %v5689 = vpop.f32.mrf.mxu0
  %v5690 = vadd.f32 0.0, %v5689
  %5691 = vmatmul.bf16.gmra.mxu0 %v5529
  %v5692 = vpop.f32.mrf.mxu0
  %v5693 = vadd.f32 0.0, %v5692
  %v5694 = vpop.f32.mrf.mxu0
  %v5695 = vadd.f32 0.0, %v5694
  %5696 = vmatmul.bf16.gmra.mxu0 %v5532
  %v5697 = vpop.f32.mrf.mxu0
  %v5698 = vadd.f32 0.0, %v5697
  %v5699 = vpop.f32.mrf.mxu0
  %v5700 = vadd.f32 0.0, %v5699
  %5701 = vmatmul.bf16.gmra.mxu0 %v5535
  %v5702 = vpop.f32.mrf.mxu0
  %v5703 = vadd.f32 0.0, %v5702
  %v5704 = vpop.f32.mrf.mxu0
  %v5705 = vadd.f32 0.0, %v5704
  %5706 = vmatmul.bf16.gmra.mxu0 %v5538
  %v5707 = vpop.f32.mrf.mxu0
  %v5708 = vadd.f32 0.0, %v5707
  %v5709 = vpop.f32.mrf.mxu0
  %v5710 = vadd.f32 0.0, %v5709
  %5711 = vdwg.mxu0
  %v5712 = vadd.f32 %v5027, %v5553
  %v5713 = vadd.f32 %v5029, %v5555
  %v5714 = vadd.f32 %v5032, %v5558
  %v5715 = vadd.f32 %v5034, %v5560
  %v5716 = vadd.f32 %v5037, %v5563
  %v5717 = vadd.f32 %v5039, %v5565
  %v5718 = vadd.f32 %v5042, %v5568
  %v5719 = vadd.f32 %v5044, %v5570
  %v5720 = vadd.f32 %v5047, %v5573
  %v5721 = vadd.f32 %v5049, %v5575
  %v5722 = vadd.f32 %v5052, %v5578
  %v5723 = vadd.f32 %v5054, %v5580
  %v5724 = vadd.f32 %v5057, %v5583
  %v5725 = vadd.f32 %v5059, %v5585
  %v5726 = vadd.f32 %v5062, %v5588
  %v5727 = vadd.f32 %v5064, %v5590
  %v5728 = vadd.f32 %v5067, %v5593
  %v5729 = vadd.f32 %v5069, %v5595
  %v5730 = vadd.f32 %v5072, %v5598
  %v5731 = vadd.f32 %v5074, %v5600
  %v5732 = vadd.f32 %v5077, %v5603
  %v5733 = vadd.f32 %v5079, %v5605
  %v5734 = vadd.f32 %v5082, %v5608
  %v5735 = vadd.f32 %v5084, %v5610
  %v5736 = vadd.f32 %v5087, %v5613
  %v5737 = vadd.f32 %v5089, %v5615
  %v5738 = vadd.f32 %v5092, %v5618
  %v5739 = vadd.f32 %v5094, %v5620
  %v5740 = vadd.f32 %v5097, %v5623
  %v5741 = vadd.f32 %v5099, %v5625
  %v5742 = vadd.f32 %v5102, %v5628
  %v5743 = vadd.f32 %v5104, %v5630
  %v5744 = vadd.f32 %v5107, %v5633
  %v5745 = vadd.f32 %v5109, %v5635
  %v5746 = vadd.f32 %v5112, %v5638
  %v5747 = vadd.f32 %v5114, %v5640
  %v5748 = vadd.f32 %v5117, %v5643
  %v5749 = vadd.f32 %v5119, %v5645
  %v5750 = vadd.f32 %v5122, %v5648
  %v5751 = vadd.f32 %v5124, %v5650
  %v5752 = vadd.f32 %v5127, %v5653
  %v5753 = vadd.f32 %v5129, %v5655
  %v5754 = vadd.f32 %v5132, %v5658
  %v5755 = vadd.f32 %v5134, %v5660
  %v5756 = vadd.f32 %v5137, %v5663
  %v5757 = vadd.f32 %v5139, %v5665
  %v5758 = vadd.f32 %v5142, %v5668
  %v5759 = vadd.f32 %v5144, %v5670
  %v5760 = vadd.f32 %v5147, %v5673
  %v5761 = vadd.f32 %v5149, %v5675
  %v5762 = vadd.f32 %v5152, %v5678
  %v5763 = vadd.f32 %v5154, %v5680
  %v5764 = vadd.f32 %v5157, %v5683
  %v5765 = vadd.f32 %v5159, %v5685
  %v5766 = vadd.f32 %v5162, %v5688
  %v5767 = vadd.f32 %v5164, %v5690
  %v5768 = vadd.f32 %v5167, %v5693
  %v5769 = vadd.f32 %v5169, %v5695
  %v5770 = vadd.f32 %v5172, %v5698
  %v5771 = vadd.f32 %v5174, %v5700
  %v5772 = vadd.f32 %v5177, %v5703
  %v5773 = vadd.f32 %v5179, %v5705
  %v5774 = vadd.f32 %v5182, %v5708
  %v5775 = vadd.f32 %v5184, %v5710
  %v5776 = vpack.c.bf16 %v4204, %v4203
  %v5777 = vpack.c.bf16 %v4258, %v4257
  %s5778 = scalar_lea.vmem %s2, 12
  %v5779 = vld [vmem:[%s5778] sm:$0xf]
  %v5781 = vsel %vm91, %v5776, 0
  %v5784 = vsel %vm91, %v5777, 0
  %v5787 = vsel %vm858, %v5779, 0
  %5789 = vmatpush.bf16.msra.mxu0 0
  %5790 = vmatpush.bf16.msra.mxu0 0
  %5791 = vmatpush.bf16.msra.mxu0 0
  %5792 = vmatpush.bf16.msra.mxu0 0
  %5793 = vmatpush.bf16.msra.mxu0 0
  %5794 = vmatpush.bf16.msra.mxu0 0
  %5795 = vmatpush.bf16.msra.mxu0 0
  %5796 = vmatpush.bf16.msra.mxu0 %v5787
  %5797 = vmatmul.bf16.gmra.mxu0 %v4922
  %v5798 = vpop.f32.mrf.mxu0
  %v5799 = vadd.f32 0.0, %v5798
  %v5800 = vpop.f32.mrf.mxu0
  %v5801 = vadd.f32 0.0, %v5800
  %5802 = vmatmul.bf16.gmra.mxu0 %v4925
  %v5803 = vpop.f32.mrf.mxu0
  %v5804 = vadd.f32 0.0, %v5803
  %v5805 = vpop.f32.mrf.mxu0
  %v5806 = vadd.f32 0.0, %v5805
  %5807 = vmatmul.bf16.gmra.mxu0 %v4928
  %v5808 = vpop.f32.mrf.mxu0
  %v5809 = vadd.f32 0.0, %v5808
  %v5810 = vpop.f32.mrf.mxu0
  %v5811 = vadd.f32 0.0, %v5810
  %5812 = vmatmul.bf16.gmra.mxu0 %v4931
  %v5813 = vpop.f32.mrf.mxu0
  %v5814 = vadd.f32 0.0, %v5813
  %v5815 = vpop.f32.mrf.mxu0
  %v5816 = vadd.f32 0.0, %v5815
  %5817 = vmatmul.bf16.gmra.mxu0 %v4934
  %v5818 = vpop.f32.mrf.mxu0
  %v5819 = vadd.f32 0.0, %v5818
  %v5820 = vpop.f32.mrf.mxu0
  %v5821 = vadd.f32 0.0, %v5820
  %5822 = vmatmul.bf16.gmra.mxu0 %v4937
  %v5823 = vpop.f32.mrf.mxu0
  %v5824 = vadd.f32 0.0, %v5823
  %v5825 = vpop.f32.mrf.mxu0
  %v5826 = vadd.f32 0.0, %v5825
  %5827 = vmatmul.bf16.gmra.mxu0 %v4940
  %v5828 = vpop.f32.mrf.mxu0
  %v5829 = vadd.f32 0.0, %v5828
  %v5830 = vpop.f32.mrf.mxu0
  %v5831 = vadd.f32 0.0, %v5830
  %5832 = vmatmul.bf16.gmra.mxu0 %v4943
  %v5833 = vpop.f32.mrf.mxu0
  %v5834 = vadd.f32 0.0, %v5833
  %v5835 = vpop.f32.mrf.mxu0
  %v5836 = vadd.f32 0.0, %v5835
  %5837 = vmatmul.bf16.gmra.mxu0 %v4946
  %v5838 = vpop.f32.mrf.mxu0
  %v5839 = vadd.f32 0.0, %v5838
  %v5840 = vpop.f32.mrf.mxu0
  %v5841 = vadd.f32 0.0, %v5840
  %5842 = vmatmul.bf16.gmra.mxu0 %v4949
  %v5843 = vpop.f32.mrf.mxu0
  %v5844 = vadd.f32 0.0, %v5843
  %v5845 = vpop.f32.mrf.mxu0
  %v5846 = vadd.f32 0.0, %v5845
  %5847 = vmatmul.bf16.gmra.mxu0 %v4952
  %v5848 = vpop.f32.mrf.mxu0
  %v5849 = vadd.f32 0.0, %v5848
  %v5850 = vpop.f32.mrf.mxu0
  %v5851 = vadd.f32 0.0, %v5850
  %5852 = vmatmul.bf16.gmra.mxu0 %v4955
  %v5853 = vpop.f32.mrf.mxu0
  %v5854 = vadd.f32 0.0, %v5853
  %v5855 = vpop.f32.mrf.mxu0
  %v5856 = vadd.f32 0.0, %v5855
  %5857 = vmatmul.bf16.gmra.mxu0 %v4958
  %v5858 = vpop.f32.mrf.mxu0
  %v5859 = vadd.f32 0.0, %v5858
  %v5860 = vpop.f32.mrf.mxu0
  %v5861 = vadd.f32 0.0, %v5860
  %5862 = vmatmul.bf16.gmra.mxu0 %v4961
  %v5863 = vpop.f32.mrf.mxu0
  %v5864 = vadd.f32 0.0, %v5863
  %v5865 = vpop.f32.mrf.mxu0
  %v5866 = vadd.f32 0.0, %v5865
  %5867 = vmatmul.bf16.gmra.mxu0 %v4964
  %v5868 = vpop.f32.mrf.mxu0
  %v5869 = vadd.f32 0.0, %v5868
  %v5870 = vpop.f32.mrf.mxu0
  %v5871 = vadd.f32 0.0, %v5870
  %5872 = vmatmul.bf16.gmra.mxu0 %v5781
  %v5873 = vpop.f32.mrf.mxu0
  %v5874 = vadd.f32 0.0, %v5873
  %v5875 = vpop.f32.mrf.mxu0
  %v5876 = vadd.f32 0.0, %v5875
  %5877 = vmatmul.bf16.gmra.mxu0 %v4970
  %v5878 = vpop.f32.mrf.mxu0
  %v5879 = vadd.f32 0.0, %v5878
  %v5880 = vpop.f32.mrf.mxu0
  %v5881 = vadd.f32 0.0, %v5880
  %5882 = vmatmul.bf16.gmra.mxu0 %v4973
  %v5883 = vpop.f32.mrf.mxu0
  %v5884 = vadd.f32 0.0, %v5883
  %v5885 = vpop.f32.mrf.mxu0
  %v5886 = vadd.f32 0.0, %v5885
  %5887 = vmatmul.bf16.gmra.mxu0 %v4976
  %v5888 = vpop.f32.mrf.mxu0
  %v5889 = vadd.f32 0.0, %v5888
  %v5890 = vpop.f32.mrf.mxu0
  %v5891 = vadd.f32 0.0, %v5890
  %5892 = vmatmul.bf16.gmra.mxu0 %v4979
  %v5893 = vpop.f32.mrf.mxu0
  %v5894 = vadd.f32 0.0, %v5893
  %v5895 = vpop.f32.mrf.mxu0
  %v5896 = vadd.f32 0.0, %v5895
  %5897 = vmatmul.bf16.gmra.mxu0 %v4982
  %v5898 = vpop.f32.mrf.mxu0
  %v5899 = vadd.f32 0.0, %v5898
  %v5900 = vpop.f32.mrf.mxu0
  %v5901 = vadd.f32 0.0, %v5900
  %5902 = vmatmul.bf16.gmra.mxu0 %v4985
  %v5903 = vpop.f32.mrf.mxu0
  %v5904 = vadd.f32 0.0, %v5903
  %v5905 = vpop.f32.mrf.mxu0
  %v5906 = vadd.f32 0.0, %v5905
  %5907 = vmatmul.bf16.gmra.mxu0 %v4988
  %v5908 = vpop.f32.mrf.mxu0
  %v5909 = vadd.f32 0.0, %v5908
  %v5910 = vpop.f32.mrf.mxu0
  %v5911 = vadd.f32 0.0, %v5910
  %5912 = vmatmul.bf16.gmra.mxu0 %v4991
  %v5913 = vpop.f32.mrf.mxu0
  %v5914 = vadd.f32 0.0, %v5913
  %v5915 = vpop.f32.mrf.mxu0
  %v5916 = vadd.f32 0.0, %v5915
  %5917 = vmatmul.bf16.gmra.mxu0 %v4994
  %v5918 = vpop.f32.mrf.mxu0
  %v5919 = vadd.f32 0.0, %v5918
  %v5920 = vpop.f32.mrf.mxu0
  %v5921 = vadd.f32 0.0, %v5920
  %5922 = vmatmul.bf16.gmra.mxu0 %v4997
  %v5923 = vpop.f32.mrf.mxu0
  %v5924 = vadd.f32 0.0, %v5923
  %v5925 = vpop.f32.mrf.mxu0
  %v5926 = vadd.f32 0.0, %v5925
  %5927 = vmatmul.bf16.gmra.mxu0 %v5000
  %v5928 = vpop.f32.mrf.mxu0
  %v5929 = vadd.f32 0.0, %v5928
  %v5930 = vpop.f32.mrf.mxu0
  %v5931 = vadd.f32 0.0, %v5930
  %5932 = vmatmul.bf16.gmra.mxu0 %v5003
  %v5933 = vpop.f32.mrf.mxu0
  %v5934 = vadd.f32 0.0, %v5933
  %v5935 = vpop.f32.mrf.mxu0
  %v5936 = vadd.f32 0.0, %v5935
  %5937 = vmatmul.bf16.gmra.mxu0 %v5006
  %v5938 = vpop.f32.mrf.mxu0
  %v5939 = vadd.f32 0.0, %v5938
  %v5940 = vpop.f32.mrf.mxu0
  %v5941 = vadd.f32 0.0, %v5940
  %5942 = vmatmul.bf16.gmra.mxu0 %v5009
  %v5943 = vpop.f32.mrf.mxu0
  %v5944 = vadd.f32 0.0, %v5943
  %v5945 = vpop.f32.mrf.mxu0
  %v5946 = vadd.f32 0.0, %v5945
  %5947 = vmatmul.bf16.gmra.mxu0 %v5012
  %v5948 = vpop.f32.mrf.mxu0
  %v5949 = vadd.f32 0.0, %v5948
  %v5950 = vpop.f32.mrf.mxu0
  %v5951 = vadd.f32 0.0, %v5950
  %5952 = vmatmul.bf16.gmra.mxu0 %v5784
  %v5953 = vpop.f32.mrf.mxu0
  %v5954 = vadd.f32 0.0, %v5953
  %v5955 = vpop.f32.mrf.mxu0
  %v5956 = vadd.f32 0.0, %v5955
  %5957 = vdwg.mxu0
  %v5958 = vadd.f32 %v5712, %v5799
  %v5959 = vadd.f32 %v5713, %v5801
  %v5960 = vadd.f32 %v5714, %v5804
  %v5961 = vadd.f32 %v5715, %v5806
  %v5962 = vadd.f32 %v5716, %v5809
  %v5963 = vadd.f32 %v5717, %v5811
  %v5964 = vadd.f32 %v5718, %v5814
  %v5965 = vadd.f32 %v5719, %v5816
  %v5966 = vadd.f32 %v5720, %v5819
  %v5967 = vadd.f32 %v5721, %v5821
  %v5968 = vadd.f32 %v5722, %v5824
  %v5969 = vadd.f32 %v5723, %v5826
  %v5970 = vadd.f32 %v5724, %v5829
  %v5971 = vadd.f32 %v5725, %v5831
  %v5972 = vadd.f32 %v5726, %v5834
  %v5973 = vadd.f32 %v5727, %v5836
  %v5974 = vadd.f32 %v5728, %v5839
  %v5975 = vadd.f32 %v5729, %v5841
  %v5976 = vadd.f32 %v5730, %v5844
  %v5977 = vadd.f32 %v5731, %v5846
  %v5978 = vadd.f32 %v5732, %v5849
  %v5979 = vadd.f32 %v5733, %v5851
  %v5980 = vadd.f32 %v5734, %v5854
  %v5981 = vadd.f32 %v5735, %v5856
  %v5982 = vadd.f32 %v5736, %v5859
  %v5983 = vadd.f32 %v5737, %v5861
  %v5984 = vadd.f32 %v5738, %v5864
  %v5985 = vadd.f32 %v5739, %v5866
  %v5986 = vadd.f32 %v5740, %v5869
  %v5987 = vadd.f32 %v5741, %v5871
  %v5988 = vadd.f32 %v5742, %v5874
  %v5989 = vadd.f32 %v5743, %v5876
  %v5990 = vadd.f32 %v5744, %v5879
  %v5991 = vadd.f32 %v5745, %v5881
  %v5992 = vadd.f32 %v5746, %v5884
  %v5993 = vadd.f32 %v5747, %v5886
  %v5994 = vadd.f32 %v5748, %v5889
  %v5995 = vadd.f32 %v5749, %v5891
  %v5996 = vadd.f32 %v5750, %v5894
  %v5997 = vadd.f32 %v5751, %v5896
  %v5998 = vadd.f32 %v5752, %v5899
  %v5999 = vadd.f32 %v5753, %v5901
  %v6000 = vadd.f32 %v5754, %v5904
  %v6001 = vadd.f32 %v5755, %v5906
  %v6002 = vadd.f32 %v5756, %v5909
  %v6003 = vadd.f32 %v5757, %v5911
  %v6004 = vadd.f32 %v5758, %v5914
  %v6005 = vadd.f32 %v5759, %v5916
  %v6006 = vadd.f32 %v5760, %v5919
  %v6007 = vadd.f32 %v5761, %v5921
  %v6008 = vadd.f32 %v5762, %v5924
  %v6009 = vadd.f32 %v5763, %v5926
  %v6010 = vadd.f32 %v5764, %v5929
  %v6011 = vadd.f32 %v5765, %v5931
  %v6012 = vadd.f32 %v5766, %v5934
  %v6013 = vadd.f32 %v5767, %v5936
  %v6014 = vadd.f32 %v5768, %v5939
  %v6015 = vadd.f32 %v5769, %v5941
  %v6016 = vadd.f32 %v5770, %v5944
  %v6017 = vadd.f32 %v5771, %v5946
  %v6018 = vadd.f32 %v5772, %v5949
  %v6019 = vadd.f32 %v5773, %v5951
  %v6020 = vadd.f32 %v5774, %v5954
  %v6021 = vadd.f32 %v5775, %v5956
  %v6028 = vrot.slane %v4203, 1
  %v6029 = vrot.slane %v4204, 1
  %v6030 = vsel %vm503, %v6028, %v6029
  %v6031 = vrot.slane %v4205, 1
  %v6032 = vsel %vm503, %v6029, %v6031
  %v6033 = vrot.slane %v4257, 1
  %v6034 = vrot.slane %v4258, 1
  %v6035 = vsel %vm503, %v6033, %v6034
  %v6036 = vrot.slane %v4259, 1
  %v6037 = vsel %vm503, %v6034, %v6036
  %v6042 = vpack.c.bf16 %v6032, %v6030
  %v6043 = vpack.c.bf16 %v6037, %v6035
  %s6044 = scalar_lea.vmem %s2, 16
  %v6045 = vld [vmem:[%s6044] sm:$0xf]
  %v6047 = vsel %vm91, %v6042, 0
  %v6050 = vsel %vm91, %v6043, 0
  %v6053 = vsel %vm858, %v6045, 0
  %6055 = vmatpush.bf16.msra.mxu0 0
  %6056 = vmatpush.bf16.msra.mxu0 0
  %6057 = vmatpush.bf16.msra.mxu0 0
  %6058 = vmatpush.bf16.msra.mxu0 0
  %6059 = vmatpush.bf16.msra.mxu0 0
  %6060 = vmatpush.bf16.msra.mxu0 0
  %6061 = vmatpush.bf16.msra.mxu0 0
  %6062 = vmatpush.bf16.msra.mxu0 %v6053
  %6063 = vmatmul.bf16.gmra.mxu0 %v4654
  %v6064 = vpop.f32.mrf.mxu0
  %v6065 = vadd.f32 0.0, %v6064
  %v6066 = vpop.f32.mrf.mxu0
  %v6067 = vadd.f32 0.0, %v6066
  %6068 = vmatmul.bf16.gmra.mxu0 %v4657
  %v6069 = vpop.f32.mrf.mxu0
  %v6070 = vadd.f32 0.0, %v6069
  %v6071 = vpop.f32.mrf.mxu0
  %v6072 = vadd.f32 0.0, %v6071
  %6073 = vmatmul.bf16.gmra.mxu0 %v4660
  %v6074 = vpop.f32.mrf.mxu0
  %v6075 = vadd.f32 0.0, %v6074
  %v6076 = vpop.f32.mrf.mxu0
  %v6077 = vadd.f32 0.0, %v6076
  %6078 = vmatmul.bf16.gmra.mxu0 %v4663
  %v6079 = vpop.f32.mrf.mxu0
  %v6080 = vadd.f32 0.0, %v6079
  %v6081 = vpop.f32.mrf.mxu0
  %v6082 = vadd.f32 0.0, %v6081
  %6083 = vmatmul.bf16.gmra.mxu0 %v4666
  %v6084 = vpop.f32.mrf.mxu0
  %v6085 = vadd.f32 0.0, %v6084
  %v6086 = vpop.f32.mrf.mxu0
  %v6087 = vadd.f32 0.0, %v6086
  %6088 = vmatmul.bf16.gmra.mxu0 %v4669
  %v6089 = vpop.f32.mrf.mxu0
  %v6090 = vadd.f32 0.0, %v6089
  %v6091 = vpop.f32.mrf.mxu0
  %v6092 = vadd.f32 0.0, %v6091
  %6093 = vmatmul.bf16.gmra.mxu0 %v4672
  %v6094 = vpop.f32.mrf.mxu0
  %v6095 = vadd.f32 0.0, %v6094
  %v6096 = vpop.f32.mrf.mxu0
  %v6097 = vadd.f32 0.0, %v6096
  %6098 = vmatmul.bf16.gmra.mxu0 %v4675
  %v6099 = vpop.f32.mrf.mxu0
  %v6100 = vadd.f32 0.0, %v6099
  %v6101 = vpop.f32.mrf.mxu0
  %v6102 = vadd.f32 0.0, %v6101
  %6103 = vmatmul.bf16.gmra.mxu0 %v4678
  %v6104 = vpop.f32.mrf.mxu0
  %v6105 = vadd.f32 0.0, %v6104
  %v6106 = vpop.f32.mrf.mxu0
  %v6107 = vadd.f32 0.0, %v6106
  %6108 = vmatmul.bf16.gmra.mxu0 %v4681
  %v6109 = vpop.f32.mrf.mxu0
  %v6110 = vadd.f32 0.0, %v6109
  %v6111 = vpop.f32.mrf.mxu0
  %v6112 = vadd.f32 0.0, %v6111
  %6113 = vmatmul.bf16.gmra.mxu0 %v4684
  %v6114 = vpop.f32.mrf.mxu0
  %v6115 = vadd.f32 0.0, %v6114
  %v6116 = vpop.f32.mrf.mxu0
  %v6117 = vadd.f32 0.0, %v6116
  %6118 = vmatmul.bf16.gmra.mxu0 %v4687
  %v6119 = vpop.f32.mrf.mxu0
  %v6120 = vadd.f32 0.0, %v6119
  %v6121 = vpop.f32.mrf.mxu0
  %v6122 = vadd.f32 0.0, %v6121
  %6123 = vmatmul.bf16.gmra.mxu0 %v4690
  %v6124 = vpop.f32.mrf.mxu0
  %v6125 = vadd.f32 0.0, %v6124
  %v6126 = vpop.f32.mrf.mxu0
  %v6127 = vadd.f32 0.0, %v6126
  %6128 = vmatmul.bf16.gmra.mxu0 %v4693
  %v6129 = vpop.f32.mrf.mxu0
  %v6130 = vadd.f32 0.0, %v6129
  %v6131 = vpop.f32.mrf.mxu0
  %v6132 = vadd.f32 0.0, %v6131
  %6133 = vmatmul.bf16.gmra.mxu0 %v4696
  %v6134 = vpop.f32.mrf.mxu0
  %v6135 = vadd.f32 0.0, %v6134
  %v6136 = vpop.f32.mrf.mxu0
  %v6137 = vadd.f32 0.0, %v6136
  %6138 = vmatmul.bf16.gmra.mxu0 %v6047
  %v6139 = vpop.f32.mrf.mxu0
  %v6140 = vadd.f32 0.0, %v6139
  %v6141 = vpop.f32.mrf.mxu0
  %v6142 = vadd.f32 0.0, %v6141
  %6143 = vmatmul.bf16.gmra.mxu0 %v4702
  %v6144 = vpop.f32.mrf.mxu0
  %v6145 = vadd.f32 0.0, %v6144
  %v6146 = vpop.f32.mrf.mxu0
  %v6147 = vadd.f32 0.0, %v6146
  %6148 = vmatmul.bf16.gmra.mxu0 %v4705
  %v6149 = vpop.f32.mrf.mxu0
  %v6150 = vadd.f32 0.0, %v6149
  %v6151 = vpop.f32.mrf.mxu0
  %v6152 = vadd.f32 0.0, %v6151
  %6153 = vmatmul.bf16.gmra.mxu0 %v4708
  %v6154 = vpop.f32.mrf.mxu0
  %v6155 = vadd.f32 0.0, %v6154
  %v6156 = vpop.f32.mrf.mxu0
  %v6157 = vadd.f32 0.0, %v6156
  %6158 = vmatmul.bf16.gmra.mxu0 %v4711
  %v6159 = vpop.f32.mrf.mxu0
  %v6160 = vadd.f32 0.0, %v6159
  %v6161 = vpop.f32.mrf.mxu0
  %v6162 = vadd.f32 0.0, %v6161
  %6163 = vmatmul.bf16.gmra.mxu0 %v4714
  %v6164 = vpop.f32.mrf.mxu0
  %v6165 = vadd.f32 0.0, %v6164
  %v6166 = vpop.f32.mrf.mxu0
  %v6167 = vadd.f32 0.0, %v6166
  %6168 = vmatmul.bf16.gmra.mxu0 %v4717
  %v6169 = vpop.f32.mrf.mxu0
  %v6170 = vadd.f32 0.0, %v6169
  %v6171 = vpop.f32.mrf.mxu0
  %v6172 = vadd.f32 0.0, %v6171
  %6173 = vmatmul.bf16.gmra.mxu0 %v4720
  %v6174 = vpop.f32.mrf.mxu0
  %v6175 = vadd.f32 0.0, %v6174
  %v6176 = vpop.f32.mrf.mxu0
  %v6177 = vadd.f32 0.0, %v6176
  %6178 = vmatmul.bf16.gmra.mxu0 %v4723
  %v6179 = vpop.f32.mrf.mxu0
  %v6180 = vadd.f32 0.0, %v6179
  %v6181 = vpop.f32.mrf.mxu0
  %v6182 = vadd.f32 0.0, %v6181
  %6183 = vmatmul.bf16.gmra.mxu0 %v4726
  %v6184 = vpop.f32.mrf.mxu0
  %v6185 = vadd.f32 0.0, %v6184
  %v6186 = vpop.f32.mrf.mxu0
  %v6187 = vadd.f32 0.0, %v6186
  %6188 = vmatmul.bf16.gmra.mxu0 %v4729
  %v6189 = vpop.f32.mrf.mxu0
  %v6190 = vadd.f32 0.0, %v6189
  %v6191 = vpop.f32.mrf.mxu0
  %v6192 = vadd.f32 0.0, %v6191
  %6193 = vmatmul.bf16.gmra.mxu0 %v4732
  %v6194 = vpop.f32.mrf.mxu0
  %v6195 = vadd.f32 0.0, %v6194
  %v6196 = vpop.f32.mrf.mxu0
  %v6197 = vadd.f32 0.0, %v6196
  %6198 = vmatmul.bf16.gmra.mxu0 %v4735
  %v6199 = vpop.f32.mrf.mxu0
  %v6200 = vadd.f32 0.0, %v6199
  %v6201 = vpop.f32.mrf.mxu0
  %v6202 = vadd.f32 0.0, %v6201
  %6203 = vmatmul.bf16.gmra.mxu0 %v4738
  %v6204 = vpop.f32.mrf.mxu0
  %v6205 = vadd.f32 0.0, %v6204
  %v6206 = vpop.f32.mrf.mxu0
  %v6207 = vadd.f32 0.0, %v6206
  %6208 = vmatmul.bf16.gmra.mxu0 %v4741
  %v6209 = vpop.f32.mrf.mxu0
  %v6210 = vadd.f32 0.0, %v6209
  %v6211 = vpop.f32.mrf.mxu0
  %v6212 = vadd.f32 0.0, %v6211
  %6213 = vmatmul.bf16.gmra.mxu0 %v4744
  %v6214 = vpop.f32.mrf.mxu0
  %v6215 = vadd.f32 0.0, %v6214
  %v6216 = vpop.f32.mrf.mxu0
  %v6217 = vadd.f32 0.0, %v6216
  %6218 = vmatmul.bf16.gmra.mxu0 %v6050
  %v6219 = vpop.f32.mrf.mxu0
  %v6220 = vadd.f32 0.0, %v6219
  %v6221 = vpop.f32.mrf.mxu0
  %v6222 = vadd.f32 0.0, %v6221
  %6223 = vdwg.mxu0
  %v6224 = vadd.f32 %v5958, %v6065
  %v6225 = vadd.f32 %v5959, %v6067
  %v6226 = vadd.f32 %v5960, %v6070
  %v6227 = vadd.f32 %v5961, %v6072
  %v6228 = vadd.f32 %v5962, %v6075
  %v6229 = vadd.f32 %v5963, %v6077
  %v6230 = vadd.f32 %v5964, %v6080
  %v6231 = vadd.f32 %v5965, %v6082
  %v6232 = vadd.f32 %v5966, %v6085
  %v6233 = vadd.f32 %v5967, %v6087
  %v6234 = vadd.f32 %v5968, %v6090
  %v6235 = vadd.f32 %v5969, %v6092
  %v6236 = vadd.f32 %v5970, %v6095
  %v6237 = vadd.f32 %v5971, %v6097
  %v6238 = vadd.f32 %v5972, %v6100
  %v6239 = vadd.f32 %v5973, %v6102
  %v6240 = vadd.f32 %v5974, %v6105
  %v6241 = vadd.f32 %v5975, %v6107
  %v6242 = vadd.f32 %v5976, %v6110
  %v6243 = vadd.f32 %v5977, %v6112
  %v6244 = vadd.f32 %v5978, %v6115
  %v6245 = vadd.f32 %v5979, %v6117
  %v6246 = vadd.f32 %v5980, %v6120
  %v6247 = vadd.f32 %v5981, %v6122
  %v6248 = vadd.f32 %v5982, %v6125
  %v6249 = vadd.f32 %v5983, %v6127
  %v6250 = vadd.f32 %v5984, %v6130
  %v6251 = vadd.f32 %v5985, %v6132
  %v6252 = vadd.f32 %v5986, %v6135
  %v6253 = vadd.f32 %v5987, %v6137
  %v6254 = vadd.f32 %v5988, %v6140
  %v6255 = vadd.f32 %v5989, %v6142
  %v6256 = vadd.f32 %v5990, %v6145
  %v6257 = vadd.f32 %v5991, %v6147
  %v6258 = vadd.f32 %v5992, %v6150
  %v6259 = vadd.f32 %v5993, %v6152
  %v6260 = vadd.f32 %v5994, %v6155
  %v6261 = vadd.f32 %v5995, %v6157
  %v6262 = vadd.f32 %v5996, %v6160
  %v6263 = vadd.f32 %v5997, %v6162
  %v6264 = vadd.f32 %v5998, %v6165
  %v6265 = vadd.f32 %v5999, %v6167
  %v6266 = vadd.f32 %v6000, %v6170
  %v6267 = vadd.f32 %v6001, %v6172
  %v6268 = vadd.f32 %v6002, %v6175
  %v6269 = vadd.f32 %v6003, %v6177
  %v6270 = vadd.f32 %v6004, %v6180
  %v6271 = vadd.f32 %v6005, %v6182
  %v6272 = vadd.f32 %v6006, %v6185
  %v6273 = vadd.f32 %v6007, %v6187
  %v6274 = vadd.f32 %v6008, %v6190
  %v6275 = vadd.f32 %v6009, %v6192
  %v6276 = vadd.f32 %v6010, %v6195
  %v6277 = vadd.f32 %v6011, %v6197
  %v6278 = vadd.f32 %v6012, %v6200
  %v6279 = vadd.f32 %v6013, %v6202
  %v6280 = vadd.f32 %v6014, %v6205
  %v6281 = vadd.f32 %v6015, %v6207
  %v6282 = vadd.f32 %v6016, %v6210
  %v6283 = vadd.f32 %v6017, %v6212
  %v6284 = vadd.f32 %v6018, %v6215
  %v6285 = vadd.f32 %v6019, %v6217
  %v6286 = vadd.f32 %v6020, %v6220
  %v6287 = vadd.f32 %v6021, %v6222
  %v6288 = vrot.slane %v4203, 2
  %v6289 = vrot.slane %v4204, 2
  %v6290 = vsel %vm1299, %v6288, %v6289
  %v6291 = vrot.slane %v4205, 2
  %v6292 = vsel %vm1299, %v6289, %v6291
  %v6293 = vrot.slane %v4257, 2
  %v6294 = vrot.slane %v4258, 2
  %v6295 = vsel %vm1299, %v6293, %v6294
  %v6296 = vrot.slane %v4259, 2
  %v6297 = vsel %vm1299, %v6294, %v6296
  %v6302 = vpack.c.bf16 %v6292, %v6290
  %v6303 = vpack.c.bf16 %v6297, %v6295
  %s6304 = scalar_lea.vmem %s2, 20
  %v6305 = vld [vmem:[%s6304] sm:$0xf]
  %v6307 = vsel %vm91, %v6302, 0
  %v6310 = vsel %vm91, %v6303, 0
  %v6313 = vsel %vm858, %v6305, 0
  %6315 = vmatpush.bf16.msra.mxu0 0
  %6316 = vmatpush.bf16.msra.mxu0 0
  %6317 = vmatpush.bf16.msra.mxu0 0
  %6318 = vmatpush.bf16.msra.mxu0 0
  %6319 = vmatpush.bf16.msra.mxu0 0
  %6320 = vmatpush.bf16.msra.mxu0 0
  %6321 = vmatpush.bf16.msra.mxu0 0
  %6322 = vmatpush.bf16.msra.mxu0 %v6313
  %6323 = vmatmul.bf16.gmra.mxu0 %v5448
  %v6324 = vpop.f32.mrf.mxu0
  %v6325 = vadd.f32 0.0, %v6324
  %v6326 = vpop.f32.mrf.mxu0
  %v6327 = vadd.f32 0.0, %v6326
  %6328 = vmatmul.bf16.gmra.mxu0 %v5451
  %v6329 = vpop.f32.mrf.mxu0
  %v6330 = vadd.f32 0.0, %v6329
  %v6331 = vpop.f32.mrf.mxu0
  %v6332 = vadd.f32 0.0, %v6331
  %6333 = vmatmul.bf16.gmra.mxu0 %v5454
  %v6334 = vpop.f32.mrf.mxu0
  %v6335 = vadd.f32 0.0, %v6334
  %v6336 = vpop.f32.mrf.mxu0
  %v6337 = vadd.f32 0.0, %v6336
  %6338 = vmatmul.bf16.gmra.mxu0 %v5457
  %v6339 = vpop.f32.mrf.mxu0
  %v6340 = vadd.f32 0.0, %v6339
  %v6341 = vpop.f32.mrf.mxu0
  %v6342 = vadd.f32 0.0, %v6341
  %6343 = vmatmul.bf16.gmra.mxu0 %v5460
  %v6344 = vpop.f32.mrf.mxu0
  %v6345 = vadd.f32 0.0, %v6344
  %v6346 = vpop.f32.mrf.mxu0
  %v6347 = vadd.f32 0.0, %v6346
  %6348 = vmatmul.bf16.gmra.mxu0 %v5463
  %v6349 = vpop.f32.mrf.mxu0
  %v6350 = vadd.f32 0.0, %v6349
  %v6351 = vpop.f32.mrf.mxu0
  %v6352 = vadd.f32 0.0, %v6351
  %6353 = vmatmul.bf16.gmra.mxu0 %v5466
  %v6354 = vpop.f32.mrf.mxu0
  %v6355 = vadd.f32 0.0, %v6354
  %v6356 = vpop.f32.mrf.mxu0
  %v6357 = vadd.f32 0.0, %v6356
  %6358 = vmatmul.bf16.gmra.mxu0 %v5469
  %v6359 = vpop.f32.mrf.mxu0
  %v6360 = vadd.f32 0.0, %v6359
  %v6361 = vpop.f32.mrf.mxu0
  %v6362 = vadd.f32 0.0, %v6361
  %6363 = vmatmul.bf16.gmra.mxu0 %v5472
  %v6364 = vpop.f32.mrf.mxu0
  %v6365 = vadd.f32 0.0, %v6364
  %v6366 = vpop.f32.mrf.mxu0
  %v6367 = vadd.f32 0.0, %v6366
  %6368 = vmatmul.bf16.gmra.mxu0 %v5475
  %v6369 = vpop.f32.mrf.mxu0
  %v6370 = vadd.f32 0.0, %v6369
  %v6371 = vpop.f32.mrf.mxu0
  %v6372 = vadd.f32 0.0, %v6371
  %6373 = vmatmul.bf16.gmra.mxu0 %v5478
  %v6374 = vpop.f32.mrf.mxu0
  %v6375 = vadd.f32 0.0, %v6374
  %v6376 = vpop.f32.mrf.mxu0
  %v6377 = vadd.f32 0.0, %v6376
  %6378 = vmatmul.bf16.gmra.mxu0 %v5481
  %v6379 = vpop.f32.mrf.mxu0
  %v6380 = vadd.f32 0.0, %v6379
  %v6381 = vpop.f32.mrf.mxu0
  %v6382 = vadd.f32 0.0, %v6381
  %6383 = vmatmul.bf16.gmra.mxu0 %v5484
  %v6384 = vpop.f32.mrf.mxu0
  %v6385 = vadd.f32 0.0, %v6384
  %v6386 = vpop.f32.mrf.mxu0
  %v6387 = vadd.f32 0.0, %v6386
  %6388 = vmatmul.bf16.gmra.mxu0 %v5487
  %v6389 = vpop.f32.mrf.mxu0
  %v6390 = vadd.f32 0.0, %v6389
  %v6391 = vpop.f32.mrf.mxu0
  %v6392 = vadd.f32 0.0, %v6391
  %6393 = vmatmul.bf16.gmra.mxu0 %v5490
  %v6394 = vpop.f32.mrf.mxu0
  %v6395 = vadd.f32 0.0, %v6394
  %v6396 = vpop.f32.mrf.mxu0
  %v6397 = vadd.f32 0.0, %v6396
  %6398 = vmatmul.bf16.gmra.mxu0 %v6307
  %v6399 = vpop.f32.mrf.mxu0
  %v6400 = vadd.f32 0.0, %v6399
  %v6401 = vpop.f32.mrf.mxu0
  %v6402 = vadd.f32 0.0, %v6401
  %6403 = vmatmul.bf16.gmra.mxu0 %v5496
  %v6404 = vpop.f32.mrf.mxu0
  %v6405 = vadd.f32 0.0, %v6404
  %v6406 = vpop.f32.mrf.mxu0
  %v6407 = vadd.f32 0.0, %v6406
  %6408 = vmatmul.bf16.gmra.mxu0 %v5499
  %v6409 = vpop.f32.mrf.mxu0
  %v6410 = vadd.f32 0.0, %v6409
  %v6411 = vpop.f32.mrf.mxu0
  %v6412 = vadd.f32 0.0, %v6411
  %6413 = vmatmul.bf16.gmra.mxu0 %v5502
  %v6414 = vpop.f32.mrf.mxu0
  %v6415 = vadd.f32 0.0, %v6414
  %v6416 = vpop.f32.mrf.mxu0
  %v6417 = vadd.f32 0.0, %v6416
  %6418 = vmatmul.bf16.gmra.mxu0 %v5505
  %v6419 = vpop.f32.mrf.mxu0
  %v6420 = vadd.f32 0.0, %v6419
  %v6421 = vpop.f32.mrf.mxu0
  %v6422 = vadd.f32 0.0, %v6421
  %6423 = vmatmul.bf16.gmra.mxu0 %v5508
  %v6424 = vpop.f32.mrf.mxu0
  %v6425 = vadd.f32 0.0, %v6424
  %v6426 = vpop.f32.mrf.mxu0
  %v6427 = vadd.f32 0.0, %v6426
  %6428 = vmatmul.bf16.gmra.mxu0 %v5511
  %v6429 = vpop.f32.mrf.mxu0
  %v6430 = vadd.f32 0.0, %v6429
  %v6431 = vpop.f32.mrf.mxu0
  %v6432 = vadd.f32 0.0, %v6431
  %6433 = vmatmul.bf16.gmra.mxu0 %v5514
  %v6434 = vpop.f32.mrf.mxu0
  %v6435 = vadd.f32 0.0, %v6434
  %v6436 = vpop.f32.mrf.mxu0
  %v6437 = vadd.f32 0.0, %v6436
  %6438 = vmatmul.bf16.gmra.mxu0 %v5517
  %v6439 = vpop.f32.mrf.mxu0
  %v6440 = vadd.f32 0.0, %v6439
  %v6441 = vpop.f32.mrf.mxu0
  %v6442 = vadd.f32 0.0, %v6441
  %6443 = vmatmul.bf16.gmra.mxu0 %v5520
  %v6444 = vpop.f32.mrf.mxu0
  %v6445 = vadd.f32 0.0, %v6444
  %v6446 = vpop.f32.mrf.mxu0
  %v6447 = vadd.f32 0.0, %v6446
  %6448 = vmatmul.bf16.gmra.mxu0 %v5523
  %v6449 = vpop.f32.mrf.mxu0
  %v6450 = vadd.f32 0.0, %v6449
  %v6451 = vpop.f32.mrf.mxu0
  %v6452 = vadd.f32 0.0, %v6451
  %6453 = vmatmul.bf16.gmra.mxu0 %v5526
  %v6454 = vpop.f32.mrf.mxu0
  %v6455 = vadd.f32 0.0, %v6454
  %v6456 = vpop.f32.mrf.mxu0
  %v6457 = vadd.f32 0.0, %v6456
  %6458 = vmatmul.bf16.gmra.mxu0 %v5529
  %v6459 = vpop.f32.mrf.mxu0
  %v6460 = vadd.f32 0.0, %v6459
  %v6461 = vpop.f32.mrf.mxu0
  %v6462 = vadd.f32 0.0, %v6461
  %6463 = vmatmul.bf16.gmra.mxu0 %v5532
  %v6464 = vpop.f32.mrf.mxu0
  %v6465 = vadd.f32 0.0, %v6464
  %v6466 = vpop.f32.mrf.mxu0
  %v6467 = vadd.f32 0.0, %v6466
  %6468 = vmatmul.bf16.gmra.mxu0 %v5535
  %v6469 = vpop.f32.mrf.mxu0
  %v6470 = vadd.f32 0.0, %v6469
  %v6471 = vpop.f32.mrf.mxu0
  %v6472 = vadd.f32 0.0, %v6471
  %6473 = vmatmul.bf16.gmra.mxu0 %v5538
  %v6474 = vpop.f32.mrf.mxu0
  %v6475 = vadd.f32 0.0, %v6474
  %v6476 = vpop.f32.mrf.mxu0
  %v6477 = vadd.f32 0.0, %v6476
  %6478 = vmatmul.bf16.gmra.mxu0 %v6310
  %v6479 = vpop.f32.mrf.mxu0
  %v6480 = vadd.f32 0.0, %v6479
  %v6481 = vpop.f32.mrf.mxu0
  %v6482 = vadd.f32 0.0, %v6481
  %6483 = vdwg.mxu0
  %v6484 = vadd.f32 %v6224, %v6325
  %v6485 = vadd.f32 %v6225, %v6327
  %v6486 = vadd.f32 %v6226, %v6330
  %v6487 = vadd.f32 %v6227, %v6332
  %v6488 = vadd.f32 %v6228, %v6335
  %v6489 = vadd.f32 %v6229, %v6337
  %v6490 = vadd.f32 %v6230, %v6340
  %v6491 = vadd.f32 %v6231, %v6342
  %v6492 = vadd.f32 %v6232, %v6345
  %v6493 = vadd.f32 %v6233, %v6347
  %v6494 = vadd.f32 %v6234, %v6350
  %v6495 = vadd.f32 %v6235, %v6352
  %v6496 = vadd.f32 %v6236, %v6355
  %v6497 = vadd.f32 %v6237, %v6357
  %v6498 = vadd.f32 %v6238, %v6360
  %v6499 = vadd.f32 %v6239, %v6362
  %v6500 = vadd.f32 %v6240, %v6365
  %v6501 = vadd.f32 %v6241, %v6367
  %v6502 = vadd.f32 %v6242, %v6370
  %v6503 = vadd.f32 %v6243, %v6372
  %v6504 = vadd.f32 %v6244, %v6375
  %v6505 = vadd.f32 %v6245, %v6377
  %v6506 = vadd.f32 %v6246, %v6380
  %v6507 = vadd.f32 %v6247, %v6382
  %v6508 = vadd.f32 %v6248, %v6385
  %v6509 = vadd.f32 %v6249, %v6387
  %v6510 = vadd.f32 %v6250, %v6390
  %v6511 = vadd.f32 %v6251, %v6392
  %v6512 = vadd.f32 %v6252, %v6395
  %v6513 = vadd.f32 %v6253, %v6397
  %v6514 = vadd.f32 %v6254, %v6400
  %v6515 = vadd.f32 %v6255, %v6402
  %v6516 = vadd.f32 %v6256, %v6405
  %v6517 = vadd.f32 %v6257, %v6407
  %v6518 = vadd.f32 %v6258, %v6410
  %v6519 = vadd.f32 %v6259, %v6412
  %v6520 = vadd.f32 %v6260, %v6415
  %v6521 = vadd.f32 %v6261, %v6417
  %v6522 = vadd.f32 %v6262, %v6420
  %v6523 = vadd.f32 %v6263, %v6422
  %v6524 = vadd.f32 %v6264, %v6425
  %v6525 = vadd.f32 %v6265, %v6427
  %v6526 = vadd.f32 %v6266, %v6430
  %v6527 = vadd.f32 %v6267, %v6432
  %v6528 = vadd.f32 %v6268, %v6435
  %v6529 = vadd.f32 %v6269, %v6437
  %v6530 = vadd.f32 %v6270, %v6440
  %v6531 = vadd.f32 %v6271, %v6442
  %v6532 = vadd.f32 %v6272, %v6445
  %v6533 = vadd.f32 %v6273, %v6447
  %v6534 = vadd.f32 %v6274, %v6450
  %v6535 = vadd.f32 %v6275, %v6452
  %v6536 = vadd.f32 %v6276, %v6455
  %v6537 = vadd.f32 %v6277, %v6457
  %v6538 = vadd.f32 %v6278, %v6460
  %v6539 = vadd.f32 %v6279, %v6462
  %v6540 = vadd.f32 %v6280, %v6465
  %v6541 = vadd.f32 %v6281, %v6467
  %v6542 = vadd.f32 %v6282, %v6470
  %v6543 = vadd.f32 %v6283, %v6472
  %v6544 = vadd.f32 %v6284, %v6475
  %v6545 = vadd.f32 %v6285, %v6477
  %v6546 = vadd.f32 %v6286, %v6480
  %v6547 = vadd.f32 %v6287, %v6482
  %v6548 = vpack.c.bf16 %v4207, %v4206
  %v6549 = vpack.c.bf16 %v4261, %v4260
  %s6550 = scalar_lea.vmem %s2, 24
  %v6551 = vld [vmem:[%s6550] sm:$0xf]
  %v6553 = vsel %vm91, %v6548, 0
  %v6556 = vsel %vm91, %v6549, 0
  %v6559 = vsel %vm858, %v6551, 0
  %6561 = vmatpush.bf16.msra.mxu0 0
  %6562 = vmatpush.bf16.msra.mxu0 0
  %6563 = vmatpush.bf16.msra.mxu0 0
  %6564 = vmatpush.bf16.msra.mxu0 0
  %6565 = vmatpush.bf16.msra.mxu0 0
  %6566 = vmatpush.bf16.msra.mxu0 0
  %6567 = vmatpush.bf16.msra.mxu0 0
  %6568 = vmatpush.bf16.msra.mxu0 %v6559
  %6569 = vmatmul.bf16.gmra.mxu0 %v4925
  %v6570 = vpop.f32.mrf.mxu0
  %v6571 = vadd.f32 0.0, %v6570
  %v6572 = vpop.f32.mrf.mxu0
  %v6573 = vadd.f32 0.0, %v6572
  %6574 = vmatmul.bf16.gmra.mxu0 %v4928
  %v6575 = vpop.f32.mrf.mxu0
  %v6576 = vadd.f32 0.0, %v6575
  %v6577 = vpop.f32.mrf.mxu0
  %v6578 = vadd.f32 0.0, %v6577
  %6579 = vmatmul.bf16.gmra.mxu0 %v4931
  %v6580 = vpop.f32.mrf.mxu0
  %v6581 = vadd.f32 0.0, %v6580
  %v6582 = vpop.f32.mrf.mxu0
  %v6583 = vadd.f32 0.0, %v6582
  %6584 = vmatmul.bf16.gmra.mxu0 %v4934
  %v6585 = vpop.f32.mrf.mxu0
  %v6586 = vadd.f32 0.0, %v6585
  %v6587 = vpop.f32.mrf.mxu0
  %v6588 = vadd.f32 0.0, %v6587
  %6589 = vmatmul.bf16.gmra.mxu0 %v4937
  %v6590 = vpop.f32.mrf.mxu0
  %v6591 = vadd.f32 0.0, %v6590
  %v6592 = vpop.f32.mrf.mxu0
  %v6593 = vadd.f32 0.0, %v6592
  %6594 = vmatmul.bf16.gmra.mxu0 %v4940
  %v6595 = vpop.f32.mrf.mxu0
  %v6596 = vadd.f32 0.0, %v6595
  %v6597 = vpop.f32.mrf.mxu0
  %v6598 = vadd.f32 0.0, %v6597
  %6599 = vmatmul.bf16.gmra.mxu0 %v4943
  %v6600 = vpop.f32.mrf.mxu0
  %v6601 = vadd.f32 0.0, %v6600
  %v6602 = vpop.f32.mrf.mxu0
  %v6603 = vadd.f32 0.0, %v6602
  %6604 = vmatmul.bf16.gmra.mxu0 %v4946
  %v6605 = vpop.f32.mrf.mxu0
  %v6606 = vadd.f32 0.0, %v6605
  %v6607 = vpop.f32.mrf.mxu0
  %v6608 = vadd.f32 0.0, %v6607
  %6609 = vmatmul.bf16.gmra.mxu0 %v4949
  %v6610 = vpop.f32.mrf.mxu0
  %v6611 = vadd.f32 0.0, %v6610
  %v6612 = vpop.f32.mrf.mxu0
  %v6613 = vadd.f32 0.0, %v6612
  %6614 = vmatmul.bf16.gmra.mxu0 %v4952
  %v6615 = vpop.f32.mrf.mxu0
  %v6616 = vadd.f32 0.0, %v6615
  %v6617 = vpop.f32.mrf.mxu0
  %v6618 = vadd.f32 0.0, %v6617
  %6619 = vmatmul.bf16.gmra.mxu0 %v4955
  %v6620 = vpop.f32.mrf.mxu0
  %v6621 = vadd.f32 0.0, %v6620
  %v6622 = vpop.f32.mrf.mxu0
  %v6623 = vadd.f32 0.0, %v6622
  %6624 = vmatmul.bf16.gmra.mxu0 %v4958
  %v6625 = vpop.f32.mrf.mxu0
  %v6626 = vadd.f32 0.0, %v6625
  %v6627 = vpop.f32.mrf.mxu0
  %v6628 = vadd.f32 0.0, %v6627
  %6629 = vmatmul.bf16.gmra.mxu0 %v4961
  %v6630 = vpop.f32.mrf.mxu0
  %v6631 = vadd.f32 0.0, %v6630
  %v6632 = vpop.f32.mrf.mxu0
  %v6633 = vadd.f32 0.0, %v6632
  %6634 = vmatmul.bf16.gmra.mxu0 %v4964
  %v6635 = vpop.f32.mrf.mxu0
  %v6636 = vadd.f32 0.0, %v6635
  %v6637 = vpop.f32.mrf.mxu0
  %v6638 = vadd.f32 0.0, %v6637
  %6639 = vmatmul.bf16.gmra.mxu0 %v5781
  %v6640 = vpop.f32.mrf.mxu0
  %v6641 = vadd.f32 0.0, %v6640
  %v6642 = vpop.f32.mrf.mxu0
  %v6643 = vadd.f32 0.0, %v6642
  %6644 = vmatmul.bf16.gmra.mxu0 %v6553
  %v6645 = vpop.f32.mrf.mxu0
  %v6646 = vadd.f32 0.0, %v6645
  %v6647 = vpop.f32.mrf.mxu0
  %v6648 = vadd.f32 0.0, %v6647
  %6649 = vmatmul.bf16.gmra.mxu0 %v4973
  %v6650 = vpop.f32.mrf.mxu0
  %v6651 = vadd.f32 0.0, %v6650
  %v6652 = vpop.f32.mrf.mxu0
  %v6653 = vadd.f32 0.0, %v6652
  %6654 = vmatmul.bf16.gmra.mxu0 %v4976
  %v6655 = vpop.f32.mrf.mxu0
  %v6656 = vadd.f32 0.0, %v6655
  %v6657 = vpop.f32.mrf.mxu0
  %v6658 = vadd.f32 0.0, %v6657
  %6659 = vmatmul.bf16.gmra.mxu0 %v4979
  %v6660 = vpop.f32.mrf.mxu0
  %v6661 = vadd.f32 0.0, %v6660
  %v6662 = vpop.f32.mrf.mxu0
  %v6663 = vadd.f32 0.0, %v6662
  %6664 = vmatmul.bf16.gmra.mxu0 %v4982
  %v6665 = vpop.f32.mrf.mxu0
  %v6666 = vadd.f32 0.0, %v6665
  %v6667 = vpop.f32.mrf.mxu0
  %v6668 = vadd.f32 0.0, %v6667
  %6669 = vmatmul.bf16.gmra.mxu0 %v4985
  %v6670 = vpop.f32.mrf.mxu0
  %v6671 = vadd.f32 0.0, %v6670
  %v6672 = vpop.f32.mrf.mxu0
  %v6673 = vadd.f32 0.0, %v6672
  %6674 = vmatmul.bf16.gmra.mxu0 %v4988
  %v6675 = vpop.f32.mrf.mxu0
  %v6676 = vadd.f32 0.0, %v6675
  %v6677 = vpop.f32.mrf.mxu0
  %v6678 = vadd.f32 0.0, %v6677
  %6679 = vmatmul.bf16.gmra.mxu0 %v4991
  %v6680 = vpop.f32.mrf.mxu0
  %v6681 = vadd.f32 0.0, %v6680
  %v6682 = vpop.f32.mrf.mxu0
  %v6683 = vadd.f32 0.0, %v6682
  %6684 = vmatmul.bf16.gmra.mxu0 %v4994
  %v6685 = vpop.f32.mrf.mxu0
  %v6686 = vadd.f32 0.0, %v6685
  %v6687 = vpop.f32.mrf.mxu0
  %v6688 = vadd.f32 0.0, %v6687
  %6689 = vmatmul.bf16.gmra.mxu0 %v4997
  %v6690 = vpop.f32.mrf.mxu0
  %v6691 = vadd.f32 0.0, %v6690
  %v6692 = vpop.f32.mrf.mxu0
  %v6693 = vadd.f32 0.0, %v6692
  %6694 = vmatmul.bf16.gmra.mxu0 %v5000
  %v6695 = vpop.f32.mrf.mxu0
  %v6696 = vadd.f32 0.0, %v6695
  %v6697 = vpop.f32.mrf.mxu0
  %v6698 = vadd.f32 0.0, %v6697
  %6699 = vmatmul.bf16.gmra.mxu0 %v5003
  %v6700 = vpop.f32.mrf.mxu0
  %v6701 = vadd.f32 0.0, %v6700
  %v6702 = vpop.f32.mrf.mxu0
  %v6703 = vadd.f32 0.0, %v6702
  %6704 = vmatmul.bf16.gmra.mxu0 %v5006
  %v6705 = vpop.f32.mrf.mxu0
  %v6706 = vadd.f32 0.0, %v6705
  %v6707 = vpop.f32.mrf.mxu0
  %v6708 = vadd.f32 0.0, %v6707
  %6709 = vmatmul.bf16.gmra.mxu0 %v5009
  %v6710 = vpop.f32.mrf.mxu0
  %v6711 = vadd.f32 0.0, %v6710
  %v6712 = vpop.f32.mrf.mxu0
  %v6713 = vadd.f32 0.0, %v6712
  %6714 = vmatmul.bf16.gmra.mxu0 %v5012
  %v6715 = vpop.f32.mrf.mxu0
  %v6716 = vadd.f32 0.0, %v6715
  %v6717 = vpop.f32.mrf.mxu0
  %v6718 = vadd.f32 0.0, %v6717
  %6719 = vmatmul.bf16.gmra.mxu0 %v5784
  %v6720 = vpop.f32.mrf.mxu0
  %v6721 = vadd.f32 0.0, %v6720
  %v6722 = vpop.f32.mrf.mxu0
  %v6723 = vadd.f32 0.0, %v6722
  %6724 = vmatmul.bf16.gmra.mxu0 %v6556
  %v6725 = vpop.f32.mrf.mxu0
  %v6726 = vadd.f32 0.0, %v6725
  %v6727 = vpop.f32.mrf.mxu0
  %v6728 = vadd.f32 0.0, %v6727
  %6729 = vdwg.mxu0
  %v6730 = vadd.f32 %v6484, %v6571
  %v6731 = vadd.f32 %v6485, %v6573
  %v6732 = vadd.f32 %v6486, %v6576
  %v6733 = vadd.f32 %v6487, %v6578
  %v6734 = vadd.f32 %v6488, %v6581
  %v6735 = vadd.f32 %v6489, %v6583
  %v6736 = vadd.f32 %v6490, %v6586
  %v6737 = vadd.f32 %v6491, %v6588
  %v6738 = vadd.f32 %v6492, %v6591
  %v6739 = vadd.f32 %v6493, %v6593
  %v6740 = vadd.f32 %v6494, %v6596
  %v6741 = vadd.f32 %v6495, %v6598
  %v6742 = vadd.f32 %v6496, %v6601
  %v6743 = vadd.f32 %v6497, %v6603
  %v6744 = vadd.f32 %v6498, %v6606
  %v6745 = vadd.f32 %v6499, %v6608
  %v6746 = vadd.f32 %v6500, %v6611
  %v6747 = vadd.f32 %v6501, %v6613
  %v6748 = vadd.f32 %v6502, %v6616
  %v6749 = vadd.f32 %v6503, %v6618
  %v6750 = vadd.f32 %v6504, %v6621
  %v6751 = vadd.f32 %v6505, %v6623
  %v6752 = vadd.f32 %v6506, %v6626
  %v6753 = vadd.f32 %v6507, %v6628
  %v6754 = vadd.f32 %v6508, %v6631
  %v6755 = vadd.f32 %v6509, %v6633
  %v6756 = vadd.f32 %v6510, %v6636
  %v6757 = vadd.f32 %v6511, %v6638
  %v6758 = vadd.f32 %v6512, %v6641
  %v6759 = vadd.f32 %v6513, %v6643
  %v6760 = vadd.f32 %v6514, %v6646
  %v6761 = vadd.f32 %v6515, %v6648
  %v6762 = vadd.f32 %v6516, %v6651
  %v6763 = vadd.f32 %v6517, %v6653
  %v6764 = vadd.f32 %v6518, %v6656
  %v6765 = vadd.f32 %v6519, %v6658
  %v6766 = vadd.f32 %v6520, %v6661
  %v6767 = vadd.f32 %v6521, %v6663
  %v6768 = vadd.f32 %v6522, %v6666
  %v6769 = vadd.f32 %v6523, %v6668
  %v6770 = vadd.f32 %v6524, %v6671
  %v6771 = vadd.f32 %v6525, %v6673
  %v6772 = vadd.f32 %v6526, %v6676
  %v6773 = vadd.f32 %v6527, %v6678
  %v6774 = vadd.f32 %v6528, %v6681
  %v6775 = vadd.f32 %v6529, %v6683
  %v6776 = vadd.f32 %v6530, %v6686
  %v6777 = vadd.f32 %v6531, %v6688
  %v6778 = vadd.f32 %v6532, %v6691
  %v6779 = vadd.f32 %v6533, %v6693
  %v6780 = vadd.f32 %v6534, %v6696
  %v6781 = vadd.f32 %v6535, %v6698
  %v6782 = vadd.f32 %v6536, %v6701
  %v6783 = vadd.f32 %v6537, %v6703
  %v6784 = vadd.f32 %v6538, %v6706
  %v6785 = vadd.f32 %v6539, %v6708
  %v6786 = vadd.f32 %v6540, %v6711
  %v6787 = vadd.f32 %v6541, %v6713
  %v6788 = vadd.f32 %v6542, %v6716
  %v6789 = vadd.f32 %v6543, %v6718
  %v6790 = vadd.f32 %v6544, %v6721
  %v6791 = vadd.f32 %v6545, %v6723
  %v6792 = vadd.f32 %v6546, %v6726
  %v6793 = vadd.f32 %v6547, %v6728
  %v6800 = vrot.slane %v4206, 1
  %v6801 = vrot.slane %v4207, 1
  %v6802 = vsel %vm503, %v6800, %v6801
  %v6803 = vrot.slane %v4208, 1
  %v6804 = vsel %vm503, %v6801, %v6803
  %v6805 = vrot.slane %v4260, 1
  %v6806 = vrot.slane %v4261, 1
  %v6807 = vsel %vm503, %v6805, %v6806
  %v6808 = vrot.slane %v4262, 1
  %v6809 = vsel %vm503, %v6806, %v6808
  %v6814 = vpack.c.bf16 %v6804, %v6802
  %v6815 = vpack.c.bf16 %v6809, %v6807
  %s6816 = scalar_lea.vmem %s2, 28
  %v6817 = vld [vmem:[%s6816] sm:$0xf]
  %v6819 = vsel %vm91, %v6814, 0
  %v6822 = vsel %vm91, %v6815, 0
  %v6825 = vsel %vm858, %v6817, 0
  %6827 = vmatpush.bf16.msra.mxu0 0
  %6828 = vmatpush.bf16.msra.mxu0 0
  %6829 = vmatpush.bf16.msra.mxu0 0
  %6830 = vmatpush.bf16.msra.mxu0 0
  %6831 = vmatpush.bf16.msra.mxu0 0
  %6832 = vmatpush.bf16.msra.mxu0 0
  %6833 = vmatpush.bf16.msra.mxu0 0
  %6834 = vmatpush.bf16.msra.mxu0 %v6825
  %6835 = vmatmul.bf16.gmra.mxu0 %v4657
  %v6836 = vpop.f32.mrf.mxu0
  %v6837 = vadd.f32 0.0, %v6836
  %v6838 = vpop.f32.mrf.mxu0
  %v6839 = vadd.f32 0.0, %v6838
  %6840 = vmatmul.bf16.gmra.mxu0 %v4660
  %v6841 = vpop.f32.mrf.mxu0
  %v6842 = vadd.f32 0.0, %v6841
  %v6843 = vpop.f32.mrf.mxu0
  %v6844 = vadd.f32 0.0, %v6843
  %6845 = vmatmul.bf16.gmra.mxu0 %v4663
  %v6846 = vpop.f32.mrf.mxu0
  %v6847 = vadd.f32 0.0, %v6846
  %v6848 = vpop.f32.mrf.mxu0
  %v6849 = vadd.f32 0.0, %v6848
  %6850 = vmatmul.bf16.gmra.mxu0 %v4666
  %v6851 = vpop.f32.mrf.mxu0
  %v6852 = vadd.f32 0.0, %v6851
  %v6853 = vpop.f32.mrf.mxu0
  %v6854 = vadd.f32 0.0, %v6853
  %6855 = vmatmul.bf16.gmra.mxu0 %v4669
  %v6856 = vpop.f32.mrf.mxu0
  %v6857 = vadd.f32 0.0, %v6856
  %v6858 = vpop.f32.mrf.mxu0
  %v6859 = vadd.f32 0.0, %v6858
  %6860 = vmatmul.bf16.gmra.mxu0 %v4672
  %v6861 = vpop.f32.mrf.mxu0
  %v6862 = vadd.f32 0.0, %v6861
  %v6863 = vpop.f32.mrf.mxu0
  %v6864 = vadd.f32 0.0, %v6863
  %6865 = vmatmul.bf16.gmra.mxu0 %v4675
  %v6866 = vpop.f32.mrf.mxu0
  %v6867 = vadd.f32 0.0, %v6866
  %v6868 = vpop.f32.mrf.mxu0
  %v6869 = vadd.f32 0.0, %v6868
  %6870 = vmatmul.bf16.gmra.mxu0 %v4678
  %v6871 = vpop.f32.mrf.mxu0
  %v6872 = vadd.f32 0.0, %v6871
  %v6873 = vpop.f32.mrf.mxu0
  %v6874 = vadd.f32 0.0, %v6873
  %6875 = vmatmul.bf16.gmra.mxu0 %v4681
  %v6876 = vpop.f32.mrf.mxu0
  %v6877 = vadd.f32 0.0, %v6876
  %v6878 = vpop.f32.mrf.mxu0
  %v6879 = vadd.f32 0.0, %v6878
  %6880 = vmatmul.bf16.gmra.mxu0 %v4684
  %v6881 = vpop.f32.mrf.mxu0
  %v6882 = vadd.f32 0.0, %v6881
  %v6883 = vpop.f32.mrf.mxu0
  %v6884 = vadd.f32 0.0, %v6883
  %6885 = vmatmul.bf16.gmra.mxu0 %v4687
  %v6886 = vpop.f32.mrf.mxu0
  %v6887 = vadd.f32 0.0, %v6886
  %v6888 = vpop.f32.mrf.mxu0
  %v6889 = vadd.f32 0.0, %v6888
  %6890 = vmatmul.bf16.gmra.mxu0 %v4690
  %v6891 = vpop.f32.mrf.mxu0
  %v6892 = vadd.f32 0.0, %v6891
  %v6893 = vpop.f32.mrf.mxu0
  %v6894 = vadd.f32 0.0, %v6893
  %6895 = vmatmul.bf16.gmra.mxu0 %v4693
  %v6896 = vpop.f32.mrf.mxu0
  %v6897 = vadd.f32 0.0, %v6896
  %v6898 = vpop.f32.mrf.mxu0
  %v6899 = vadd.f32 0.0, %v6898
  %6900 = vmatmul.bf16.gmra.mxu0 %v4696
  %v6901 = vpop.f32.mrf.mxu0
  %v6902 = vadd.f32 0.0, %v6901
  %v6903 = vpop.f32.mrf.mxu0
  %v6904 = vadd.f32 0.0, %v6903
  %6905 = vmatmul.bf16.gmra.mxu0 %v6047
  %v6906 = vpop.f32.mrf.mxu0
  %v6907 = vadd.f32 0.0, %v6906
  %v6908 = vpop.f32.mrf.mxu0
  %v6909 = vadd.f32 0.0, %v6908
  %6910 = vmatmul.bf16.gmra.mxu0 %v6819
  %v6911 = vpop.f32.mrf.mxu0
  %v6912 = vadd.f32 0.0, %v6911
  %v6913 = vpop.f32.mrf.mxu0
  %v6914 = vadd.f32 0.0, %v6913
  %6915 = vmatmul.bf16.gmra.mxu0 %v4705
  %v6916 = vpop.f32.mrf.mxu0
  %v6917 = vadd.f32 0.0, %v6916
  %v6918 = vpop.f32.mrf.mxu0
  %v6919 = vadd.f32 0.0, %v6918
  %6920 = vmatmul.bf16.gmra.mxu0 %v4708
  %v6921 = vpop.f32.mrf.mxu0
  %v6922 = vadd.f32 0.0, %v6921
  %v6923 = vpop.f32.mrf.mxu0
  %v6924 = vadd.f32 0.0, %v6923
  %6925 = vmatmul.bf16.gmra.mxu0 %v4711
  %v6926 = vpop.f32.mrf.mxu0
  %v6927 = vadd.f32 0.0, %v6926
  %v6928 = vpop.f32.mrf.mxu0
  %v6929 = vadd.f32 0.0, %v6928
  %6930 = vmatmul.bf16.gmra.mxu0 %v4714
  %v6931 = vpop.f32.mrf.mxu0
  %v6932 = vadd.f32 0.0, %v6931
  %v6933 = vpop.f32.mrf.mxu0
  %v6934 = vadd.f32 0.0, %v6933
  %6935 = vmatmul.bf16.gmra.mxu0 %v4717
  %v6936 = vpop.f32.mrf.mxu0
  %v6937 = vadd.f32 0.0, %v6936
  %v6938 = vpop.f32.mrf.mxu0
  %v6939 = vadd.f32 0.0, %v6938
  %6940 = vmatmul.bf16.gmra.mxu0 %v4720
  %v6941 = vpop.f32.mrf.mxu0
  %v6942 = vadd.f32 0.0, %v6941
  %v6943 = vpop.f32.mrf.mxu0
  %v6944 = vadd.f32 0.0, %v6943
  %6945 = vmatmul.bf16.gmra.mxu0 %v4723
  %v6946 = vpop.f32.mrf.mxu0
  %v6947 = vadd.f32 0.0, %v6946
  %v6948 = vpop.f32.mrf.mxu0
  %v6949 = vadd.f32 0.0, %v6948
  %6950 = vmatmul.bf16.gmra.mxu0 %v4726
  %v6951 = vpop.f32.mrf.mxu0
  %v6952 = vadd.f32 0.0, %v6951
  %v6953 = vpop.f32.mrf.mxu0
  %v6954 = vadd.f32 0.0, %v6953
  %6955 = vmatmul.bf16.gmra.mxu0 %v4729
  %v6956 = vpop.f32.mrf.mxu0
  %v6957 = vadd.f32 0.0, %v6956
  %v6958 = vpop.f32.mrf.mxu0
  %v6959 = vadd.f32 0.0, %v6958
  %6960 = vmatmul.bf16.gmra.mxu0 %v4732
  %v6961 = vpop.f32.mrf.mxu0
  %v6962 = vadd.f32 0.0, %v6961
  %v6963 = vpop.f32.mrf.mxu0
  %v6964 = vadd.f32 0.0, %v6963
  %6965 = vmatmul.bf16.gmra.mxu0 %v4735
  %v6966 = vpop.f32.mrf.mxu0
  %v6967 = vadd.f32 0.0, %v6966
  %v6968 = vpop.f32.mrf.mxu0
  %v6969 = vadd.f32 0.0, %v6968
  %6970 = vmatmul.bf16.gmra.mxu0 %v4738
  %v6971 = vpop.f32.mrf.mxu0
  %v6972 = vadd.f32 0.0, %v6971
  %v6973 = vpop.f32.mrf.mxu0
  %v6974 = vadd.f32 0.0, %v6973
  %6975 = vmatmul.bf16.gmra.mxu0 %v4741
  %v6976 = vpop.f32.mrf.mxu0
  %v6977 = vadd.f32 0.0, %v6976
  %v6978 = vpop.f32.mrf.mxu0
  %v6979 = vadd.f32 0.0, %v6978
  %6980 = vmatmul.bf16.gmra.mxu0 %v4744
  %v6981 = vpop.f32.mrf.mxu0
  %v6982 = vadd.f32 0.0, %v6981
  %v6983 = vpop.f32.mrf.mxu0
  %v6984 = vadd.f32 0.0, %v6983
  %6985 = vmatmul.bf16.gmra.mxu0 %v6050
  %v6986 = vpop.f32.mrf.mxu0
  %v6987 = vadd.f32 0.0, %v6986
  %v6988 = vpop.f32.mrf.mxu0
  %v6989 = vadd.f32 0.0, %v6988
  %6990 = vmatmul.bf16.gmra.mxu0 %v6822
  %v6991 = vpop.f32.mrf.mxu0
  %v6992 = vadd.f32 0.0, %v6991
  %v6993 = vpop.f32.mrf.mxu0
  %v6994 = vadd.f32 0.0, %v6993
  %6995 = vdwg.mxu0
  %v6996 = vadd.f32 %v6730, %v6837
  %v6997 = vadd.f32 %v6731, %v6839
  %v6998 = vadd.f32 %v6732, %v6842
  %v6999 = vadd.f32 %v6733, %v6844
  %v7000 = vadd.f32 %v6734, %v6847
  %v7001 = vadd.f32 %v6735, %v6849
  %v7002 = vadd.f32 %v6736, %v6852
  %v7003 = vadd.f32 %v6737, %v6854
  %v7004 = vadd.f32 %v6738, %v6857
  %v7005 = vadd.f32 %v6739, %v6859
  %v7006 = vadd.f32 %v6740, %v6862
  %v7007 = vadd.f32 %v6741, %v6864
  %v7008 = vadd.f32 %v6742, %v6867
  %v7009 = vadd.f32 %v6743, %v6869
  %v7010 = vadd.f32 %v6744, %v6872
  %v7011 = vadd.f32 %v6745, %v6874
  %v7012 = vadd.f32 %v6746, %v6877
  %v7013 = vadd.f32 %v6747, %v6879
  %v7014 = vadd.f32 %v6748, %v6882
  %v7015 = vadd.f32 %v6749, %v6884
  %v7016 = vadd.f32 %v6750, %v6887
  %v7017 = vadd.f32 %v6751, %v6889
  %v7018 = vadd.f32 %v6752, %v6892
  %v7019 = vadd.f32 %v6753, %v6894
  %v7020 = vadd.f32 %v6754, %v6897
  %v7021 = vadd.f32 %v6755, %v6899
  %v7022 = vadd.f32 %v6756, %v6902
  %v7023 = vadd.f32 %v6757, %v6904
  %v7024 = vadd.f32 %v6758, %v6907
  %v7025 = vadd.f32 %v6759, %v6909
  %v7026 = vadd.f32 %v6760, %v6912
  %v7027 = vadd.f32 %v6761, %v6914
  %v7028 = vadd.f32 %v6762, %v6917
  %v7029 = vadd.f32 %v6763, %v6919
  %v7030 = vadd.f32 %v6764, %v6922
  %v7031 = vadd.f32 %v6765, %v6924
  %v7032 = vadd.f32 %v6766, %v6927
  %v7033 = vadd.f32 %v6767, %v6929
  %v7034 = vadd.f32 %v6768, %v6932
  %v7035 = vadd.f32 %v6769, %v6934
  %v7036 = vadd.f32 %v6770, %v6937
  %v7037 = vadd.f32 %v6771, %v6939
  %v7038 = vadd.f32 %v6772, %v6942
  %v7039 = vadd.f32 %v6773, %v6944
  %v7040 = vadd.f32 %v6774, %v6947
  %v7041 = vadd.f32 %v6775, %v6949
  %v7042 = vadd.f32 %v6776, %v6952
  %v7043 = vadd.f32 %v6777, %v6954
  %v7044 = vadd.f32 %v6778, %v6957
  %v7045 = vadd.f32 %v6779, %v6959
  %v7046 = vadd.f32 %v6780, %v6962
  %v7047 = vadd.f32 %v6781, %v6964
  %v7048 = vadd.f32 %v6782, %v6967
  %v7049 = vadd.f32 %v6783, %v6969
  %v7050 = vadd.f32 %v6784, %v6972
  %v7051 = vadd.f32 %v6785, %v6974
  %v7052 = vadd.f32 %v6786, %v6977
  %v7053 = vadd.f32 %v6787, %v6979
  %v7054 = vadd.f32 %v6788, %v6982
  %v7055 = vadd.f32 %v6789, %v6984
  %v7056 = vadd.f32 %v6790, %v6987
  %v7057 = vadd.f32 %v6791, %v6989
  %v7058 = vadd.f32 %v6792, %v6992
  %v7059 = vadd.f32 %v6793, %v6994
  %v7060 = vrot.slane %v4206, 2
  %v7061 = vrot.slane %v4207, 2
  %v7062 = vsel %vm1299, %v7060, %v7061
  %v7063 = vrot.slane %v4208, 2
  %v7064 = vsel %vm1299, %v7061, %v7063
  %v7065 = vrot.slane %v4260, 2
  %v7066 = vrot.slane %v4261, 2
  %v7067 = vsel %vm1299, %v7065, %v7066
  %v7068 = vrot.slane %v4262, 2
  %v7069 = vsel %vm1299, %v7066, %v7068
  %v7074 = vpack.c.bf16 %v7064, %v7062
  %v7075 = vpack.c.bf16 %v7069, %v7067
  %s7076 = scalar_lea.vmem %s2, 32
  %v7077 = vld [vmem:[%s7076] sm:$0xf]
  %v7079 = vsel %vm91, %v7074, 0
  %v7082 = vsel %vm91, %v7075, 0
  %v7085 = vsel %vm858, %v7077, 0
  %7087 = vmatpush.bf16.msra.mxu0 0
  %7088 = vmatpush.bf16.msra.mxu0 0
  %7089 = vmatpush.bf16.msra.mxu0 0
  %7090 = vmatpush.bf16.msra.mxu0 0
  %7091 = vmatpush.bf16.msra.mxu0 0
  %7092 = vmatpush.bf16.msra.mxu0 0
  %7093 = vmatpush.bf16.msra.mxu0 0
  %7094 = vmatpush.bf16.msra.mxu0 %v7085
  %7095 = vmatmul.bf16.gmra.mxu0 %v5451
  %v7096 = vpop.f32.mrf.mxu0
  %v7097 = vadd.f32 0.0, %v7096
  %v7098 = vpop.f32.mrf.mxu0
  %v7099 = vadd.f32 0.0, %v7098
  %7100 = vmatmul.bf16.gmra.mxu0 %v5454
  %v7101 = vpop.f32.mrf.mxu0
  %v7102 = vadd.f32 0.0, %v7101
  %v7103 = vpop.f32.mrf.mxu0
  %v7104 = vadd.f32 0.0, %v7103
  %7105 = vmatmul.bf16.gmra.mxu0 %v5457
  %v7106 = vpop.f32.mrf.mxu0
  %v7107 = vadd.f32 0.0, %v7106
  %v7108 = vpop.f32.mrf.mxu0
  %v7109 = vadd.f32 0.0, %v7108
  %7110 = vmatmul.bf16.gmra.mxu0 %v5460
  %v7111 = vpop.f32.mrf.mxu0
  %v7112 = vadd.f32 0.0, %v7111
  %v7113 = vpop.f32.mrf.mxu0
  %v7114 = vadd.f32 0.0, %v7113
  %7115 = vmatmul.bf16.gmra.mxu0 %v5463
  %v7116 = vpop.f32.mrf.mxu0
  %v7117 = vadd.f32 0.0, %v7116
  %v7118 = vpop.f32.mrf.mxu0
  %v7119 = vadd.f32 0.0, %v7118
  %7120 = vmatmul.bf16.gmra.mxu0 %v5466
  %v7121 = vpop.f32.mrf.mxu0
  %v7122 = vadd.f32 0.0, %v7121
  %v7123 = vpop.f32.mrf.mxu0
  %v7124 = vadd.f32 0.0, %v7123
  %7125 = vmatmul.bf16.gmra.mxu0 %v5469
  %v7126 = vpop.f32.mrf.mxu0
  %v7127 = vadd.f32 0.0, %v7126
  %v7128 = vpop.f32.mrf.mxu0
  %v7129 = vadd.f32 0.0, %v7128
  %7130 = vmatmul.bf16.gmra.mxu0 %v5472
  %v7131 = vpop.f32.mrf.mxu0
  %v7132 = vadd.f32 0.0, %v7131
  %v7133 = vpop.f32.mrf.mxu0
  %v7134 = vadd.f32 0.0, %v7133
  %7135 = vmatmul.bf16.gmra.mxu0 %v5475
  %v7136 = vpop.f32.mrf.mxu0
  %v7137 = vadd.f32 0.0, %v7136
  %v7138 = vpop.f32.mrf.mxu0
  %v7139 = vadd.f32 0.0, %v7138
  %7140 = vmatmul.bf16.gmra.mxu0 %v5478
  %v7141 = vpop.f32.mrf.mxu0
  %v7142 = vadd.f32 0.0, %v7141
  %v7143 = vpop.f32.mrf.mxu0
  %v7144 = vadd.f32 0.0, %v7143
  %7145 = vmatmul.bf16.gmra.mxu0 %v5481
  %v7146 = vpop.f32.mrf.mxu0
  %v7147 = vadd.f32 0.0, %v7146
  %v7148 = vpop.f32.mrf.mxu0
  %v7149 = vadd.f32 0.0, %v7148
  %7150 = vmatmul.bf16.gmra.mxu0 %v5484
  %v7151 = vpop.f32.mrf.mxu0
  %v7152 = vadd.f32 0.0, %v7151
  %v7153 = vpop.f32.mrf.mxu0
  %v7154 = vadd.f32 0.0, %v7153
  %7155 = vmatmul.bf16.gmra.mxu0 %v5487
  %v7156 = vpop.f32.mrf.mxu0
  %v7157 = vadd.f32 0.0, %v7156
  %v7158 = vpop.f32.mrf.mxu0
  %v7159 = vadd.f32 0.0, %v7158
  %7160 = vmatmul.bf16.gmra.mxu0 %v5490
  %v7161 = vpop.f32.mrf.mxu0
  %v7162 = vadd.f32 0.0, %v7161
  %v7163 = vpop.f32.mrf.mxu0
  %v7164 = vadd.f32 0.0, %v7163
  %7165 = vmatmul.bf16.gmra.mxu0 %v6307
  %v7166 = vpop.f32.mrf.mxu0
  %v7167 = vadd.f32 0.0, %v7166
  %v7168 = vpop.f32.mrf.mxu0
  %v7169 = vadd.f32 0.0, %v7168
  %7170 = vmatmul.bf16.gmra.mxu0 %v7079
  %v7171 = vpop.f32.mrf.mxu0
  %v7172 = vadd.f32 0.0, %v7171
  %v7173 = vpop.f32.mrf.mxu0
  %v7174 = vadd.f32 0.0, %v7173
  %7175 = vmatmul.bf16.gmra.mxu0 %v5499
  %v7176 = vpop.f32.mrf.mxu0
  %v7177 = vadd.f32 0.0, %v7176
  %v7178 = vpop.f32.mrf.mxu0
  %v7179 = vadd.f32 0.0, %v7178
  %7180 = vmatmul.bf16.gmra.mxu0 %v5502
  %v7181 = vpop.f32.mrf.mxu0
  %v7182 = vadd.f32 0.0, %v7181
  %v7183 = vpop.f32.mrf.mxu0
  %v7184 = vadd.f32 0.0, %v7183
  %7185 = vmatmul.bf16.gmra.mxu0 %v5505
  %v7186 = vpop.f32.mrf.mxu0
  %v7187 = vadd.f32 0.0, %v7186
  %v7188 = vpop.f32.mrf.mxu0
  %v7189 = vadd.f32 0.0, %v7188
  %7190 = vmatmul.bf16.gmra.mxu0 %v5508
  %v7191 = vpop.f32.mrf.mxu0
  %v7192 = vadd.f32 0.0, %v7191
  %v7193 = vpop.f32.mrf.mxu0
  %v7194 = vadd.f32 0.0, %v7193
  %7195 = vmatmul.bf16.gmra.mxu0 %v5511
  %v7196 = vpop.f32.mrf.mxu0
  %v7197 = vadd.f32 0.0, %v7196
  %v7198 = vpop.f32.mrf.mxu0
  %v7199 = vadd.f32 0.0, %v7198
  %7200 = vmatmul.bf16.gmra.mxu0 %v5514
  %v7201 = vpop.f32.mrf.mxu0
  %v7202 = vadd.f32 0.0, %v7201
  %v7203 = vpop.f32.mrf.mxu0
  %v7204 = vadd.f32 0.0, %v7203
  %7205 = vmatmul.bf16.gmra.mxu0 %v5517
  %v7206 = vpop.f32.mrf.mxu0
  %v7207 = vadd.f32 0.0, %v7206
  %v7208 = vpop.f32.mrf.mxu0
  %v7209 = vadd.f32 0.0, %v7208
  %7210 = vmatmul.bf16.gmra.mxu0 %v5520
  %v7211 = vpop.f32.mrf.mxu0
  %v7212 = vadd.f32 0.0, %v7211
  %v7213 = vpop.f32.mrf.mxu0
  %v7214 = vadd.f32 0.0, %v7213
  %7215 = vmatmul.bf16.gmra.mxu0 %v5523
  %v7216 = vpop.f32.mrf.mxu0
  %v7217 = vadd.f32 0.0, %v7216
  %v7218 = vpop.f32.mrf.mxu0
  %v7219 = vadd.f32 0.0, %v7218
  %7220 = vmatmul.bf16.gmra.mxu0 %v5526
  %v7221 = vpop.f32.mrf.mxu0
  %v7222 = vadd.f32 0.0, %v7221
  %v7223 = vpop.f32.mrf.mxu0
  %v7224 = vadd.f32 0.0, %v7223
  %7225 = vmatmul.bf16.gmra.mxu0 %v5529
  %v7226 = vpop.f32.mrf.mxu0
  %v7227 = vadd.f32 0.0, %v7226
  %v7228 = vpop.f32.mrf.mxu0
  %v7229 = vadd.f32 0.0, %v7228
  %7230 = vmatmul.bf16.gmra.mxu0 %v5532
  %v7231 = vpop.f32.mrf.mxu0
  %v7232 = vadd.f32 0.0, %v7231
  %v7233 = vpop.f32.mrf.mxu0
  %v7234 = vadd.f32 0.0, %v7233
  %7235 = vmatmul.bf16.gmra.mxu0 %v5535
  %v7236 = vpop.f32.mrf.mxu0
  %v7237 = vadd.f32 0.0, %v7236
  %v7238 = vpop.f32.mrf.mxu0
  %v7239 = vadd.f32 0.0, %v7238
  %7240 = vmatmul.bf16.gmra.mxu0 %v5538
  %v7241 = vpop.f32.mrf.mxu0
  %v7242 = vadd.f32 0.0, %v7241
  %v7243 = vpop.f32.mrf.mxu0
  %v7244 = vadd.f32 0.0, %v7243
  %7245 = vmatmul.bf16.gmra.mxu0 %v6310
  %v7246 = vpop.f32.mrf.mxu0
  %v7247 = vadd.f32 0.0, %v7246
  %v7248 = vpop.f32.mrf.mxu0
  %v7249 = vadd.f32 0.0, %v7248
  %7250 = vmatmul.bf16.gmra.mxu0 %v7082
  %v7251 = vpop.f32.mrf.mxu0
  %v7252 = vadd.f32 0.0, %v7251
  %v7253 = vpop.f32.mrf.mxu0
  %v7254 = vadd.f32 0.0, %v7253
  %7255 = vdwg.mxu0
  %v7256 = vadd.f32 %v6996, %v7097
  %v7257 = vadd.f32 %v6997, %v7099
  %v7258 = vadd.f32 %v6998, %v7102
  %v7259 = vadd.f32 %v6999, %v7104
  %v7260 = vadd.f32 %v7000, %v7107
  %v7261 = vadd.f32 %v7001, %v7109
  %v7262 = vadd.f32 %v7002, %v7112
  %v7263 = vadd.f32 %v7003, %v7114
  %v7264 = vadd.f32 %v7004, %v7117
  %v7265 = vadd.f32 %v7005, %v7119
  %v7266 = vadd.f32 %v7006, %v7122
  %v7267 = vadd.f32 %v7007, %v7124
  %v7268 = vadd.f32 %v7008, %v7127
  %v7269 = vadd.f32 %v7009, %v7129
  %v7270 = vadd.f32 %v7010, %v7132
  %v7271 = vadd.f32 %v7011, %v7134
  %v7272 = vadd.f32 %v7012, %v7137
  %v7273 = vadd.f32 %v7013, %v7139
  %v7274 = vadd.f32 %v7014, %v7142
  %v7275 = vadd.f32 %v7015, %v7144
  %v7276 = vadd.f32 %v7016, %v7147
  %v7277 = vadd.f32 %v7017, %v7149
  %v7278 = vadd.f32 %v7018, %v7152
  %v7279 = vadd.f32 %v7019, %v7154
  %v7280 = vadd.f32 %v7020, %v7157
  %v7281 = vadd.f32 %v7021, %v7159
  %v7282 = vadd.f32 %v7022, %v7162
  %v7283 = vadd.f32 %v7023, %v7164
  %v7284 = vadd.f32 %v7024, %v7167
  %v7285 = vadd.f32 %v7025, %v7169
  %v7286 = vadd.f32 %v7026, %v7172
  %v7287 = vadd.f32 %v7027, %v7174
  %v7288 = vadd.f32 %v7028, %v7177
  %v7289 = vadd.f32 %v7029, %v7179
  %v7290 = vadd.f32 %v7030, %v7182
  %v7291 = vadd.f32 %v7031, %v7184
  %v7292 = vadd.f32 %v7032, %v7187
  %v7293 = vadd.f32 %v7033, %v7189
  %v7294 = vadd.f32 %v7034, %v7192
  %v7295 = vadd.f32 %v7035, %v7194
  %v7296 = vadd.f32 %v7036, %v7197
  %v7297 = vadd.f32 %v7037, %v7199
  %v7298 = vadd.f32 %v7038, %v7202
  %v7299 = vadd.f32 %v7039, %v7204
  %v7300 = vadd.f32 %v7040, %v7207
  %v7301 = vadd.f32 %v7041, %v7209
  %v7302 = vadd.f32 %v7042, %v7212
  %v7303 = vadd.f32 %v7043, %v7214
  %v7304 = vadd.f32 %v7044, %v7217
  %v7305 = vadd.f32 %v7045, %v7219
  %v7306 = vadd.f32 %v7046, %v7222
  %v7307 = vadd.f32 %v7047, %v7224
  %v7308 = vadd.f32 %v7048, %v7227
  %v7309 = vadd.f32 %v7049, %v7229
  %v7310 = vadd.f32 %v7050, %v7232
  %v7311 = vadd.f32 %v7051, %v7234
  %v7312 = vadd.f32 %v7052, %v7237
  %v7313 = vadd.f32 %v7053, %v7239
  %v7314 = vadd.f32 %v7054, %v7242
  %v7315 = vadd.f32 %v7055, %v7244
  %v7316 = vadd.f32 %v7056, %v7247
  %v7317 = vadd.f32 %v7057, %v7249
  %v7318 = vadd.f32 %v7058, %v7252
  %v7319 = vadd.f32 %v7059, %v7254
  %v7320 = vsel %vm91, %v7256, 0.0
  %v7321 = vsel %vm91, %v7257, 0.0
  %v7322 = vadd.f32 %v7320, %v7321
  %v7323 = vsel %vm91, %v7258, 0.0
  %v7324 = vadd.f32 %v7322, %v7323
  %v7325 = vsel %vm91, %v7259, 0.0
  %v7326 = vadd.f32 %v7324, %v7325
  %v7327 = vsel %vm91, %v7260, 0.0
  %v7328 = vadd.f32 %v7326, %v7327
  %v7329 = vsel %vm91, %v7261, 0.0
  %v7330 = vadd.f32 %v7328, %v7329
  %v7331 = vsel %vm91, %v7262, 0.0
  %v7332 = vadd.f32 %v7330, %v7331
  %v7333 = vsel %vm91, %v7263, 0.0
  %v7334 = vadd.f32 %v7332, %v7333
  %v7335 = vsel %vm91, %v7264, 0.0
  %v7336 = vadd.f32 %v7334, %v7335
  %v7337 = vsel %vm91, %v7265, 0.0
  %v7338 = vadd.f32 %v7336, %v7337
  %v7339 = vsel %vm91, %v7266, 0.0
  %v7340 = vadd.f32 %v7338, %v7339
  %v7341 = vsel %vm91, %v7267, 0.0
  %v7342 = vadd.f32 %v7340, %v7341
  %v7343 = vsel %vm91, %v7268, 0.0
  %v7344 = vadd.f32 %v7342, %v7343
  %v7345 = vsel %vm91, %v7269, 0.0
  %v7346 = vadd.f32 %v7344, %v7345
  %v7347 = vsel %vm91, %v7270, 0.0
  %v7348 = vadd.f32 %v7346, %v7347
  %v7349 = vsel %vm91, %v7271, 0.0
  %v7350 = vadd.f32 %v7348, %v7349
  %v7351 = vsel %vm91, %v7272, 0.0
  %v7352 = vadd.f32 %v7350, %v7351
  %v7353 = vsel %vm91, %v7273, 0.0
  %v7354 = vadd.f32 %v7352, %v7353
  %v7355 = vsel %vm91, %v7274, 0.0
  %v7356 = vadd.f32 %v7354, %v7355
  %v7357 = vsel %vm91, %v7275, 0.0
  %v7358 = vadd.f32 %v7356, %v7357
  %v7359 = vsel %vm91, %v7276, 0.0
  %v7360 = vadd.f32 %v7358, %v7359
  %v7361 = vsel %vm91, %v7277, 0.0
  %v7362 = vadd.f32 %v7360, %v7361
  %v7363 = vsel %vm91, %v7278, 0.0
  %v7364 = vadd.f32 %v7362, %v7363
  %v7365 = vsel %vm91, %v7279, 0.0
  %v7366 = vadd.f32 %v7364, %v7365
  %v7367 = vsel %vm91, %v7280, 0.0
  %v7368 = vadd.f32 %v7366, %v7367
  %v7369 = vsel %vm91, %v7281, 0.0
  %v7370 = vadd.f32 %v7368, %v7369
  %v7371 = vsel %vm91, %v7282, 0.0
  %v7372 = vadd.f32 %v7370, %v7371
  %v7373 = vsel %vm91, %v7283, 0.0
  %v7374 = vadd.f32 %v7372, %v7373
  %v7375 = vsel %vm91, %v7284, 0.0
  %v7376 = vadd.f32 %v7374, %v7375
  %v7377 = vsel %vm91, %v7285, 0.0
  %v7378 = vadd.f32 %v7376, %v7377
  %v7379 = vsel %vm91, %v7286, 0.0
  %v7380 = vadd.f32 %v7378, %v7379
  %v7381 = vsel %vm91, %v7287, 0.0
  %v7382 = vadd.f32 %v7380, %v7381
  %v7383 = vsel %vm91, %v7288, 0.0
  %v7384 = vadd.f32 %v7382, %v7383
  %v7385 = vsel %vm91, %v7289, 0.0
  %v7386 = vadd.f32 %v7384, %v7385
  %v7387 = vsel %vm91, %v7290, 0.0
  %v7388 = vadd.f32 %v7386, %v7387
  %v7389 = vsel %vm91, %v7291, 0.0
  %v7390 = vadd.f32 %v7388, %v7389
  %v7391 = vsel %vm91, %v7292, 0.0
  %v7392 = vadd.f32 %v7390, %v7391
  %v7393 = vsel %vm91, %v7293, 0.0
  %v7394 = vadd.f32 %v7392, %v7393
  %v7395 = vsel %vm91, %v7294, 0.0
  %v7396 = vadd.f32 %v7394, %v7395
  %v7397 = vsel %vm91, %v7295, 0.0
  %v7398 = vadd.f32 %v7396, %v7397
  %v7399 = vsel %vm91, %v7296, 0.0
  %v7400 = vadd.f32 %v7398, %v7399
  %v7401 = vsel %vm91, %v7297, 0.0
  %v7402 = vadd.f32 %v7400, %v7401
  %v7403 = vsel %vm91, %v7298, 0.0
  %v7404 = vadd.f32 %v7402, %v7403
  %v7405 = vsel %vm91, %v7299, 0.0
  %v7406 = vadd.f32 %v7404, %v7405
  %v7407 = vsel %vm91, %v7300, 0.0
  %v7408 = vadd.f32 %v7406, %v7407
  %v7409 = vsel %vm91, %v7301, 0.0
  %v7410 = vadd.f32 %v7408, %v7409
  %v7411 = vsel %vm91, %v7302, 0.0
  %v7412 = vadd.f32 %v7410, %v7411
  %v7413 = vsel %vm91, %v7303, 0.0
  %v7414 = vadd.f32 %v7412, %v7413
  %v7415 = vsel %vm91, %v7304, 0.0
  %v7416 = vadd.f32 %v7414, %v7415
  %v7417 = vsel %vm91, %v7305, 0.0
  %v7418 = vadd.f32 %v7416, %v7417
  %v7419 = vsel %vm91, %v7306, 0.0
  %v7420 = vadd.f32 %v7418, %v7419
  %v7421 = vsel %vm91, %v7307, 0.0
  %v7422 = vadd.f32 %v7420, %v7421
  %v7423 = vsel %vm91, %v7308, 0.0
  %v7424 = vadd.f32 %v7422, %v7423
  %v7425 = vsel %vm91, %v7309, 0.0
  %v7426 = vadd.f32 %v7424, %v7425
  %v7427 = vsel %vm91, %v7310, 0.0
  %v7428 = vadd.f32 %v7426, %v7427
  %v7429 = vsel %vm91, %v7311, 0.0
  %v7430 = vadd.f32 %v7428, %v7429
  %v7431 = vsel %vm91, %v7312, 0.0
  %v7432 = vadd.f32 %v7430, %v7431
  %v7433 = vsel %vm91, %v7313, 0.0
  %v7434 = vadd.f32 %v7432, %v7433
  %v7435 = vsel %vm91, %v7314, 0.0
  %v7436 = vadd.f32 %v7434, %v7435
  %v7437 = vsel %vm91, %v7315, 0.0
  %v7438 = vadd.f32 %v7436, %v7437
  %v7439 = vsel %vm91, %v7316, 0.0
  %v7440 = vadd.f32 %v7438, %v7439
  %v7441 = vsel %vm91, %v7317, 0.0
  %v7442 = vadd.f32 %v7440, %v7441
  %v7443 = vsel %vm91, %v7318, 0.0
  %v7444 = vadd.f32 %v7442, %v7443
  %v7445 = vsel %vm91, %v7319, 0.0
  %v7446 = vadd.f32 %v7444, %v7445
  %v7447 = vrot.slane %v7446, 4
  %v7448 = vadd.f32 %v7446, %v7447
  %v7449 = vrot.slane %v7448, 2
  %v7450 = vadd.f32 %v7448, %v7449
  %v7451 = vrot.slane %v7450, 1
  %v7452 = vadd.f32 %v7450, %v7451
  %v7453 = vmul.f32 %v7256, %v7256
  %v7454 = vmul.f32 %v7257, %v7257
  %v7455 = vmul.f32 %v7258, %v7258
  %v7456 = vmul.f32 %v7259, %v7259
  %v7457 = vmul.f32 %v7260, %v7260
  %v7458 = vmul.f32 %v7261, %v7261
  %v7459 = vmul.f32 %v7262, %v7262
  %v7460 = vmul.f32 %v7263, %v7263
  %v7461 = vmul.f32 %v7264, %v7264
  %v7462 = vmul.f32 %v7265, %v7265
  %v7463 = vmul.f32 %v7266, %v7266
  %v7464 = vmul.f32 %v7267, %v7267
  %v7465 = vmul.f32 %v7268, %v7268
  %v7466 = vmul.f32 %v7269, %v7269
  %v7467 = vmul.f32 %v7270, %v7270
  %v7468 = vmul.f32 %v7271, %v7271
  %v7469 = vmul.f32 %v7272, %v7272
  %v7470 = vmul.f32 %v7273, %v7273
  %v7471 = vmul.f32 %v7274, %v7274
  %v7472 = vmul.f32 %v7275, %v7275
  %v7473 = vmul.f32 %v7276, %v7276
  %v7474 = vmul.f32 %v7277, %v7277
  %v7475 = vmul.f32 %v7278, %v7278
  %v7476 = vmul.f32 %v7279, %v7279
  %v7477 = vmul.f32 %v7280, %v7280
  %v7478 = vmul.f32 %v7281, %v7281
  %v7479 = vmul.f32 %v7282, %v7282
  %v7480 = vmul.f32 %v7283, %v7283
  %v7481 = vmul.f32 %v7284, %v7284
  %v7482 = vmul.f32 %v7285, %v7285
  %v7483 = vmul.f32 %v7286, %v7286
  %v7484 = vmul.f32 %v7287, %v7287
  %v7485 = vmul.f32 %v7288, %v7288
  %v7486 = vmul.f32 %v7289, %v7289
  %v7487 = vmul.f32 %v7290, %v7290
  %v7488 = vmul.f32 %v7291, %v7291
  %v7489 = vmul.f32 %v7292, %v7292
  %v7490 = vmul.f32 %v7293, %v7293
  %v7491 = vmul.f32 %v7294, %v7294
  %v7492 = vmul.f32 %v7295, %v7295
  %v7493 = vmul.f32 %v7296, %v7296
  %v7494 = vmul.f32 %v7297, %v7297
  %v7495 = vmul.f32 %v7298, %v7298
  %v7496 = vmul.f32 %v7299, %v7299
  %v7497 = vmul.f32 %v7300, %v7300
  %v7498 = vmul.f32 %v7301, %v7301
  %v7499 = vmul.f32 %v7302, %v7302
  %v7500 = vmul.f32 %v7303, %v7303
  %v7501 = vmul.f32 %v7304, %v7304
  %v7502 = vmul.f32 %v7305, %v7305
  %v7503 = vmul.f32 %v7306, %v7306
  %v7504 = vmul.f32 %v7307, %v7307
  %v7505 = vmul.f32 %v7308, %v7308
  %v7506 = vmul.f32 %v7309, %v7309
  %v7507 = vmul.f32 %v7310, %v7310
  %v7508 = vmul.f32 %v7311, %v7311
  %v7509 = vmul.f32 %v7312, %v7312
  %v7510 = vmul.f32 %v7313, %v7313
  %v7511 = vmul.f32 %v7314, %v7314
  %v7512 = vmul.f32 %v7315, %v7315
  %v7513 = vmul.f32 %v7316, %v7316
  %v7514 = vmul.f32 %v7317, %v7317
  %v7515 = vmul.f32 %v7318, %v7318
  %v7516 = vmul.f32 %v7319, %v7319
  %v7517 = vsel %vm91, %v7453, 0.0
  %v7518 = vsel %vm91, %v7454, 0.0
  %v7519 = vadd.f32 %v7517, %v7518
  %v7520 = vsel %vm91, %v7455, 0.0
  %v7521 = vadd.f32 %v7519, %v7520
  %v7522 = vsel %vm91, %v7456, 0.0
  %v7523 = vadd.f32 %v7521, %v7522
  %v7524 = vsel %vm91, %v7457, 0.0
  %v7525 = vadd.f32 %v7523, %v7524
  %v7526 = vsel %vm91, %v7458, 0.0
  %v7527 = vadd.f32 %v7525, %v7526
  %v7528 = vsel %vm91, %v7459, 0.0
  %v7529 = vadd.f32 %v7527, %v7528
  %v7530 = vsel %vm91, %v7460, 0.0
  %v7531 = vadd.f32 %v7529, %v7530
  %v7532 = vsel %vm91, %v7461, 0.0
  %v7533 = vadd.f32 %v7531, %v7532
  %v7534 = vsel %vm91, %v7462, 0.0
  %v7535 = vadd.f32 %v7533, %v7534
  %v7536 = vsel %vm91, %v7463, 0.0
  %v7537 = vadd.f32 %v7535, %v7536
  %v7538 = vsel %vm91, %v7464, 0.0
  %v7539 = vadd.f32 %v7537, %v7538
  %v7540 = vsel %vm91, %v7465, 0.0
  %v7541 = vadd.f32 %v7539, %v7540
  %v7542 = vsel %vm91, %v7466, 0.0
  %v7543 = vadd.f32 %v7541, %v7542
  %v7544 = vsel %vm91, %v7467, 0.0
  %v7545 = vadd.f32 %v7543, %v7544
  %v7546 = vsel %vm91, %v7468, 0.0
  %v7547 = vadd.f32 %v7545, %v7546
  %v7548 = vsel %vm91, %v7469, 0.0
  %v7549 = vadd.f32 %v7547, %v7548
  %v7550 = vsel %vm91, %v7470, 0.0
  %v7551 = vadd.f32 %v7549, %v7550
  %v7552 = vsel %vm91, %v7471, 0.0
  %v7553 = vadd.f32 %v7551, %v7552
  %v7554 = vsel %vm91, %v7472, 0.0
  %v7555 = vadd.f32 %v7553, %v7554
  %v7556 = vsel %vm91, %v7473, 0.0
  %v7557 = vadd.f32 %v7555, %v7556
  %v7558 = vsel %vm91, %v7474, 0.0
  %v7559 = vadd.f32 %v7557, %v7558
  %v7560 = vsel %vm91, %v7475, 0.0
  %v7561 = vadd.f32 %v7559, %v7560
  %v7562 = vsel %vm91, %v7476, 0.0
  %v7563 = vadd.f32 %v7561, %v7562
  %v7564 = vsel %vm91, %v7477, 0.0
  %v7565 = vadd.f32 %v7563, %v7564
  %v7566 = vsel %vm91, %v7478, 0.0
  %v7567 = vadd.f32 %v7565, %v7566
  %v7568 = vsel %vm91, %v7479, 0.0
  %v7569 = vadd.f32 %v7567, %v7568
  %v7570 = vsel %vm91, %v7480, 0.0
  %v7571 = vadd.f32 %v7569, %v7570
  %v7572 = vsel %vm91, %v7481, 0.0
  %v7573 = vadd.f32 %v7571, %v7572
  %v7574 = vsel %vm91, %v7482, 0.0
  %v7575 = vadd.f32 %v7573, %v7574
  %v7576 = vsel %vm91, %v7483, 0.0
  %v7577 = vadd.f32 %v7575, %v7576
  %v7578 = vsel %vm91, %v7484, 0.0
  %v7579 = vadd.f32 %v7577, %v7578
  %v7580 = vsel %vm91, %v7485, 0.0
  %v7581 = vadd.f32 %v7579, %v7580
  %v7582 = vsel %vm91, %v7486, 0.0
  %v7583 = vadd.f32 %v7581, %v7582
  %v7584 = vsel %vm91, %v7487, 0.0
  %v7585 = vadd.f32 %v7583, %v7584
  %v7586 = vsel %vm91, %v7488, 0.0
  %v7587 = vadd.f32 %v7585, %v7586
  %v7588 = vsel %vm91, %v7489, 0.0
  %v7589 = vadd.f32 %v7587, %v7588
  %v7590 = vsel %vm91, %v7490, 0.0
  %v7591 = vadd.f32 %v7589, %v7590
  %v7592 = vsel %vm91, %v7491, 0.0
  %v7593 = vadd.f32 %v7591, %v7592
  %v7594 = vsel %vm91, %v7492, 0.0
  %v7595 = vadd.f32 %v7593, %v7594
  %v7596 = vsel %vm91, %v7493, 0.0
  %v7597 = vadd.f32 %v7595, %v7596
  %v7598 = vsel %vm91, %v7494, 0.0
  %v7599 = vadd.f32 %v7597, %v7598
  %v7600 = vsel %vm91, %v7495, 0.0
  %v7601 = vadd.f32 %v7599, %v7600
  %v7602 = vsel %vm91, %v7496, 0.0
  %v7603 = vadd.f32 %v7601, %v7602
  %v7604 = vsel %vm91, %v7497, 0.0
  %v7605 = vadd.f32 %v7603, %v7604
  %v7606 = vsel %vm91, %v7498, 0.0
  %v7607 = vadd.f32 %v7605, %v7606
  %v7608 = vsel %vm91, %v7499, 0.0
  %v7609 = vadd.f32 %v7607, %v7608
  %v7610 = vsel %vm91, %v7500, 0.0
  %v7611 = vadd.f32 %v7609, %v7610
  %v7612 = vsel %vm91, %v7501, 0.0
  %v7613 = vadd.f32 %v7611, %v7612
  %v7614 = vsel %vm91, %v7502, 0.0
  %v7615 = vadd.f32 %v7613, %v7614
  %v7616 = vsel %vm91, %v7503, 0.0
  %v7617 = vadd.f32 %v7615, %v7616
  %v7618 = vsel %vm91, %v7504, 0.0
  %v7619 = vadd.f32 %v7617, %v7618
  %v7620 = vsel %vm91, %v7505, 0.0
  %v7621 = vadd.f32 %v7619, %v7620
  %v7622 = vsel %vm91, %v7506, 0.0
  %v7623 = vadd.f32 %v7621, %v7622
  %v7624 = vsel %vm91, %v7507, 0.0
  %v7625 = vadd.f32 %v7623, %v7624
  %v7626 = vsel %vm91, %v7508, 0.0
  %v7627 = vadd.f32 %v7625, %v7626
  %v7628 = vsel %vm91, %v7509, 0.0
  %v7629 = vadd.f32 %v7627, %v7628
  %v7630 = vsel %vm91, %v7510, 0.0
  %v7631 = vadd.f32 %v7629, %v7630
  %v7632 = vsel %vm91, %v7511, 0.0
  %v7633 = vadd.f32 %v7631, %v7632
  %v7634 = vsel %vm91, %v7512, 0.0
  %v7635 = vadd.f32 %v7633, %v7634
  %v7636 = vsel %vm91, %v7513, 0.0
  %v7637 = vadd.f32 %v7635, %v7636
  %v7638 = vsel %vm91, %v7514, 0.0
  %v7639 = vadd.f32 %v7637, %v7638
  %v7640 = vsel %vm91, %v7515, 0.0
  %v7641 = vadd.f32 %v7639, %v7640
  %v7642 = vsel %vm91, %v7516, 0.0
  %v7643 = vadd.f32 %v7641, %v7642
  %v7644 = vrot.slane %v7643, 4
  %v7645 = vadd.f32 %v7643, %v7644
  %v7646 = vrot.slane %v7645, 2
  %v7647 = vadd.f32 %v7645, %v7646
  %v7648 = vrot.slane %v7647, 1
  %v7649 = vadd.f32 %v7647, %v7648
  %v7650 = vmul.f32 %v7452, 0.001953125
  %v7651 = vmul.f32 %v7649, 0.001953125
  %v7652 = vmul.f32 %v7650, %v7650
  %v7653 = vsub.f32 %v7651, %v7652
  %v7654 = vmax.f32 %v7653, 0.0
  %v7655 = vld [vmem:[%s5] sm:$0x1]
  %v7656 = vadd.f32 %v7654, 1e-05
  %v7657 = vrsqrt.pop %v7656
  %v7658 = vmul.f32 %v7657, %v7656
  %v7659 = vmul.f32 %v7658, %v7657
  %v7660 = vmul.f32 0.5, %v7659
  %v7661 = vsub.f32 1.5, %v7660
  %v7662 = vmul.f32 %v7657, %v7661
  %vm7663 = vweird.f32 %v7656
  %vm7664 = vweird.f32 %v7657
  %vm7665 = vmor %vm7663, %vm7664
  %v7666 = vsel %vm7665, %v7657, %v7662
  %v7667 = vmul.f32 %v7655, %v7666
  %v7668 = vld [vmem:[%s6] sm:$0x1]
  %v7669 = vmul.f32 %v7650, %v7667
  %v7670 = vsub.f32 %v7668, %v7669
  %v7672 = vperm.slane %v7667, 0
  %v7674 = vmul.f32 %v7256, %v7672
  %v7675 = vmul.f32 %v7257, %v7672
  %v7676 = vmul.f32 %v7258, %v7672
  %v7677 = vmul.f32 %v7259, %v7672
  %v7678 = vmul.f32 %v7260, %v7672
  %v7679 = vmul.f32 %v7261, %v7672
  %v7680 = vmul.f32 %v7262, %v7672
  %v7681 = vmul.f32 %v7263, %v7672
  %v7682 = vmul.f32 %v7264, %v7672
  %v7683 = vmul.f32 %v7265, %v7672
  %v7684 = vmul.f32 %v7266, %v7672
  %v7685 = vmul.f32 %v7267, %v7672
  %v7686 = vmul.f32 %v7268, %v7672
  %v7687 = vmul.f32 %v7269, %v7672
  %v7688 = vmul.f32 %v7270, %v7672
  %v7689 = vmul.f32 %v7271, %v7672
  %v7690 = vmul.f32 %v7272, %v7672
  %v7691 = vmul.f32 %v7273, %v7672
  %v7692 = vmul.f32 %v7274, %v7672
  %v7693 = vmul.f32 %v7275, %v7672
  %v7694 = vmul.f32 %v7276, %v7672
  %v7695 = vmul.f32 %v7277, %v7672
  %v7696 = vmul.f32 %v7278, %v7672
  %v7697 = vmul.f32 %v7279, %v7672
  %v7698 = vmul.f32 %v7280, %v7672
  %v7699 = vmul.f32 %v7281, %v7672
  %v7700 = vmul.f32 %v7282, %v7672
  %v7701 = vmul.f32 %v7283, %v7672
  %v7702 = vmul.f32 %v7284, %v7672
  %v7703 = vmul.f32 %v7285, %v7672
  %v7704 = vmul.f32 %v7286, %v7672
  %v7705 = vmul.f32 %v7287, %v7672
  %v7706 = vmul.f32 %v7288, %v7672
  %v7707 = vmul.f32 %v7289, %v7672
  %v7708 = vmul.f32 %v7290, %v7672
  %v7709 = vmul.f32 %v7291, %v7672
  %v7710 = vmul.f32 %v7292, %v7672
  %v7711 = vmul.f32 %v7293, %v7672
  %v7712 = vmul.f32 %v7294, %v7672
  %v7713 = vmul.f32 %v7295, %v7672
  %v7714 = vmul.f32 %v7296, %v7672
  %v7715 = vmul.f32 %v7297, %v7672
  %v7716 = vmul.f32 %v7298, %v7672
  %v7717 = vmul.f32 %v7299, %v7672
  %v7718 = vmul.f32 %v7300, %v7672
  %v7719 = vmul.f32 %v7301, %v7672
  %v7720 = vmul.f32 %v7302, %v7672
  %v7721 = vmul.f32 %v7303, %v7672
  %v7722 = vmul.f32 %v7304, %v7672
  %v7723 = vmul.f32 %v7305, %v7672
  %v7724 = vmul.f32 %v7306, %v7672
  %v7725 = vmul.f32 %v7307, %v7672
  %v7726 = vmul.f32 %v7308, %v7672
  %v7727 = vmul.f32 %v7309, %v7672
  %v7728 = vmul.f32 %v7310, %v7672
  %v7729 = vmul.f32 %v7311, %v7672
  %v7730 = vmul.f32 %v7312, %v7672
  %v7731 = vmul.f32 %v7313, %v7672
  %v7732 = vmul.f32 %v7314, %v7672
  %v7733 = vmul.f32 %v7315, %v7672
  %v7734 = vmul.f32 %v7316, %v7672
  %v7735 = vmul.f32 %v7317, %v7672
  %v7736 = vmul.f32 %v7318, %v7672
  %v7737 = vmul.f32 %v7319, %v7672
  %v7739 = vperm.slane %v7670, 0
  %v7741 = vadd.f32 %v7674, %v7739
  %v7742 = vadd.f32 %v7675, %v7739
  %v7743 = vadd.f32 %v7676, %v7739
  %v7744 = vadd.f32 %v7677, %v7739
  %v7745 = vadd.f32 %v7678, %v7739
  %v7746 = vadd.f32 %v7679, %v7739
  %v7747 = vadd.f32 %v7680, %v7739
  %v7748 = vadd.f32 %v7681, %v7739
  %v7749 = vadd.f32 %v7682, %v7739
  %v7750 = vadd.f32 %v7683, %v7739
  %v7751 = vadd.f32 %v7684, %v7739
  %v7752 = vadd.f32 %v7685, %v7739
  %v7753 = vadd.f32 %v7686, %v7739
  %v7754 = vadd.f32 %v7687, %v7739
  %v7755 = vadd.f32 %v7688, %v7739
  %v7756 = vadd.f32 %v7689, %v7739
  %v7757 = vadd.f32 %v7690, %v7739
  %v7758 = vadd.f32 %v7691, %v7739
  %v7759 = vadd.f32 %v7692, %v7739
  %v7760 = vadd.f32 %v7693, %v7739
  %v7761 = vadd.f32 %v7694, %v7739
  %v7762 = vadd.f32 %v7695, %v7739
  %v7763 = vadd.f32 %v7696, %v7739
  %v7764 = vadd.f32 %v7697, %v7739
  %v7765 = vadd.f32 %v7698, %v7739
  %v7766 = vadd.f32 %v7699, %v7739
  %v7767 = vadd.f32 %v7700, %v7739
  %v7768 = vadd.f32 %v7701, %v7739
  %v7769 = vadd.f32 %v7702, %v7739
  %v7770 = vadd.f32 %v7703, %v7739
  %v7771 = vadd.f32 %v7704, %v7739
  %v7772 = vadd.f32 %v7705, %v7739
  %v7773 = vadd.f32 %v7706, %v7739
  %v7774 = vadd.f32 %v7707, %v7739
  %v7775 = vadd.f32 %v7708, %v7739
  %v7776 = vadd.f32 %v7709, %v7739
  %v7777 = vadd.f32 %v7710, %v7739
  %v7778 = vadd.f32 %v7711, %v7739
  %v7779 = vadd.f32 %v7712, %v7739
  %v7780 = vadd.f32 %v7713, %v7739
  %v7781 = vadd.f32 %v7714, %v7739
  %v7782 = vadd.f32 %v7715, %v7739
  %v7783 = vadd.f32 %v7716, %v7739
  %v7784 = vadd.f32 %v7717, %v7739
  %v7785 = vadd.f32 %v7718, %v7739
  %v7786 = vadd.f32 %v7719, %v7739
  %v7787 = vadd.f32 %v7720, %v7739
  %v7788 = vadd.f32 %v7721, %v7739
  %v7789 = vadd.f32 %v7722, %v7739
  %v7790 = vadd.f32 %v7723, %v7739
  %v7791 = vadd.f32 %v7724, %v7739
  %v7792 = vadd.f32 %v7725, %v7739
  %v7793 = vadd.f32 %v7726, %v7739
  %v7794 = vadd.f32 %v7727, %v7739
  %v7795 = vadd.f32 %v7728, %v7739
  %v7796 = vadd.f32 %v7729, %v7739
  %v7797 = vadd.f32 %v7730, %v7739
  %v7798 = vadd.f32 %v7731, %v7739
  %v7799 = vadd.f32 %v7732, %v7739
  %v7800 = vadd.f32 %v7733, %v7739
  %v7801 = vadd.f32 %v7734, %v7739
  %v7802 = vadd.f32 %v7735, %v7739
  %v7803 = vadd.f32 %v7736, %v7739
  %v7804 = vadd.f32 %v7737, %v7739
  %v7805 = vadd.f32 %v7741, %v27
  %v7806 = vadd.f32 %v7742, %v28
  %v7807 = vadd.f32 %v7743, %v29
  %v7808 = vadd.f32 %v7744, %v30
  %v7809 = vadd.f32 %v7745, %v31
  %v7810 = vadd.f32 %v7746, %v32
  %v7811 = vadd.f32 %v7747, %v33
  %v7812 = vadd.f32 %v7748, %v34
  %v7813 = vadd.f32 %v7749, %v35
  %v7814 = vadd.f32 %v7750, %v36
  %v7815 = vadd.f32 %v7751, %v37
  %v7816 = vadd.f32 %v7752, %v38
  %v7817 = vadd.f32 %v7753, %v39
  %v7818 = vadd.f32 %v7754, %v40
  %v7819 = vadd.f32 %v7755, %v41
  %v7820 = vadd.f32 %v7756, %v42
  %v7821 = vadd.f32 %v7757, %v43
  %v7822 = vadd.f32 %v7758, %v44
  %v7823 = vadd.f32 %v7759, %v45
  %v7824 = vadd.f32 %v7760, %v46
  %v7825 = vadd.f32 %v7761, %v47
  %v7826 = vadd.f32 %v7762, %v48
  %v7827 = vadd.f32 %v7763, %v49
  %v7828 = vadd.f32 %v7764, %v50
  %v7829 = vadd.f32 %v7765, %v51
  %v7830 = vadd.f32 %v7766, %v52
  %v7831 = vadd.f32 %v7767, %v53
  %v7832 = vadd.f32 %v7768, %v54
  %v7833 = vadd.f32 %v7769, %v55
  %v7834 = vadd.f32 %v7770, %v56
  %v7835 = vadd.f32 %v7771, %v57
  %v7836 = vadd.f32 %v7772, %v58
  %v7837 = vadd.f32 %v7773, %v59
  %v7838 = vadd.f32 %v7774, %v60
  %v7839 = vadd.f32 %v7775, %v61
  %v7840 = vadd.f32 %v7776, %v62
  %v7841 = vadd.f32 %v7777, %v63
  %v7842 = vadd.f32 %v7778, %v64
  %v7843 = vadd.f32 %v7779, %v65
  %v7844 = vadd.f32 %v7780, %v66
  %v7845 = vadd.f32 %v7781, %v67
  %v7846 = vadd.f32 %v7782, %v68
  %v7847 = vadd.f32 %v7783, %v69
  %v7848 = vadd.f32 %v7784, %v70
  %v7849 = vadd.f32 %v7785, %v71
  %v7850 = vadd.f32 %v7786, %v72
  %v7851 = vadd.f32 %v7787, %v73
  %v7852 = vadd.f32 %v7788, %v74
  %v7853 = vadd.f32 %v7789, %v75
  %v7854 = vadd.f32 %v7790, %v76
  %v7855 = vadd.f32 %v7791, %v77
  %v7856 = vadd.f32 %v7792, %v78
  %v7857 = vadd.f32 %v7793, %v79
  %v7858 = vadd.f32 %v7794, %v80
  %v7859 = vadd.f32 %v7795, %v81
  %v7860 = vadd.f32 %v7796, %v82
  %v7861 = vadd.f32 %v7797, %v83
  %v7862 = vadd.f32 %v7798, %v84
  %v7863 = vadd.f32 %v7799, %v85
  %v7864 = vadd.f32 %v7800, %v86
  %v7865 = vadd.f32 %v7801, %v87
  %v7866 = vadd.f32 %v7802, %v88
  %v7867 = vadd.f32 %v7803, %v89
  %v7868 = vadd.f32 %v7804, %v90
  %v7869 = vmax.f32 %v7805, 0.0
  %v7870 = vmax.f32 %v7806, 0.0
  %v7871 = vmax.f32 %v7807, 0.0
  %v7872 = vmax.f32 %v7808, 0.0
  %v7873 = vmax.f32 %v7809, 0.0
  %v7874 = vmax.f32 %v7810, 0.0
  %v7875 = vmax.f32 %v7811, 0.0
  %v7876 = vmax.f32 %v7812, 0.0
  %v7877 = vmax.f32 %v7813, 0.0
  %v7878 = vmax.f32 %v7814, 0.0
  %v7879 = vmax.f32 %v7815, 0.0
  %v7880 = vmax.f32 %v7816, 0.0
  %v7881 = vmax.f32 %v7817, 0.0
  %v7882 = vmax.f32 %v7818, 0.0
  %v7883 = vmax.f32 %v7819, 0.0
  %v7884 = vmax.f32 %v7820, 0.0
  %v7885 = vmax.f32 %v7821, 0.0
  %v7886 = vmax.f32 %v7822, 0.0
  %v7887 = vmax.f32 %v7823, 0.0
  %v7888 = vmax.f32 %v7824, 0.0
  %v7889 = vmax.f32 %v7825, 0.0
  %v7890 = vmax.f32 %v7826, 0.0
  %v7891 = vmax.f32 %v7827, 0.0
  %v7892 = vmax.f32 %v7828, 0.0
  %v7893 = vmax.f32 %v7829, 0.0
  %v7894 = vmax.f32 %v7830, 0.0
  %v7895 = vmax.f32 %v7831, 0.0
  %v7896 = vmax.f32 %v7832, 0.0
  %v7897 = vmax.f32 %v7833, 0.0
  %v7898 = vmax.f32 %v7834, 0.0
  %v7899 = vmax.f32 %v7835, 0.0
  %v7900 = vmax.f32 %v7836, 0.0
  %v7901 = vmax.f32 %v7837, 0.0
  %v7902 = vmax.f32 %v7838, 0.0
  %v7903 = vmax.f32 %v7839, 0.0
  %v7904 = vmax.f32 %v7840, 0.0
  %v7905 = vmax.f32 %v7841, 0.0
  %v7906 = vmax.f32 %v7842, 0.0
  %v7907 = vmax.f32 %v7843, 0.0
  %v7908 = vmax.f32 %v7844, 0.0
  %v7909 = vmax.f32 %v7845, 0.0
  %v7910 = vmax.f32 %v7846, 0.0
  %v7911 = vmax.f32 %v7847, 0.0
  %v7912 = vmax.f32 %v7848, 0.0
  %v7913 = vmax.f32 %v7849, 0.0
  %v7914 = vmax.f32 %v7850, 0.0
  %v7915 = vmax.f32 %v7851, 0.0
  %v7916 = vmax.f32 %v7852, 0.0
  %v7917 = vmax.f32 %v7853, 0.0
  %v7918 = vmax.f32 %v7854, 0.0
  %v7919 = vmax.f32 %v7855, 0.0
  %v7920 = vmax.f32 %v7856, 0.0
  %v7921 = vmax.f32 %v7857, 0.0
  %v7922 = vmax.f32 %v7858, 0.0
  %v7923 = vmax.f32 %v7859, 0.0
  %v7924 = vmax.f32 %v7860, 0.0
  %v7925 = vmax.f32 %v7861, 0.0
  %v7926 = vmax.f32 %v7862, 0.0
  %v7927 = vmax.f32 %v7863, 0.0
  %v7928 = vmax.f32 %v7864, 0.0
  %v7929 = vmax.f32 %v7865, 0.0
  %v7930 = vmax.f32 %v7866, 0.0
  %v7931 = vmax.f32 %v7867, 0.0
  %v7932 = vmax.f32 %v7868, 0.0
  %7933 = vst.msk [vmem:[%s7] sm:$0xff] %vm91, %v7869
  %7934 = vst.msk [vmem:[%s7 + $0x8] sm:$0xff] %vm91, %v7870
  %7935 = vst.msk [vmem:[%s7 + $0x10] sm:$0xff] %vm91, %v7871
  %7936 = vst.msk [vmem:[%s7 + $0x18] sm:$0xff] %vm91, %v7872
  %7937 = vst.msk [vmem:[%s7 + $0x20] sm:$0xff] %vm91, %v7873
  %7938 = vst.msk [vmem:[%s7 + $0x28] sm:$0xff] %vm91, %v7874
  %7939 = vst.msk [vmem:[%s7 + $0x30] sm:$0xff] %vm91, %v7875
  %7940 = vst.msk [vmem:[%s7 + $0x38] sm:$0xff] %vm91, %v7876
  %7941 = vst.msk [vmem:[%s7 + $0x40] sm:$0xff] %vm91, %v7877
  %7942 = vst.msk [vmem:[%s7 + $0x48] sm:$0xff] %vm91, %v7878
  %7943 = vst.msk [vmem:[%s7 + $0x50] sm:$0xff] %vm91, %v7879
  %7944 = vst.msk [vmem:[%s7 + $0x58] sm:$0xff] %vm91, %v7880
  %7945 = vst.msk [vmem:[%s7 + $0x60] sm:$0xff] %vm91, %v7881
  %7946 = vst.msk [vmem:[%s7 + $0x68] sm:$0xff] %vm91, %v7882
  %7947 = vst.msk [vmem:[%s7 + $0x70] sm:$0xff] %vm91, %v7883
  %7948 = vst.msk [vmem:[%s7 + $0x78] sm:$0xff] %vm91, %v7884
  %7949 = vst.msk [vmem:[%s7 + $0x80] sm:$0xff] %vm91, %v7885
  %7950 = vst.msk [vmem:[%s7 + $0x88] sm:$0xff] %vm91, %v7886
  %7951 = vst.msk [vmem:[%s7 + $0x90] sm:$0xff] %vm91, %v7887
  %7952 = vst.msk [vmem:[%s7 + $0x98] sm:$0xff] %vm91, %v7888
  %7953 = vst.msk [vmem:[%s7 + $0xa0] sm:$0xff] %vm91, %v7889
  %7954 = vst.msk [vmem:[%s7 + $0xa8] sm:$0xff] %vm91, %v7890
  %7955 = vst.msk [vmem:[%s7 + $0xb0] sm:$0xff] %vm91, %v7891
  %7956 = vst.msk [vmem:[%s7 + $0xb8] sm:$0xff] %vm91, %v7892
  %7957 = vst.msk [vmem:[%s7 + $0xc0] sm:$0xff] %vm91, %v7893
  %7958 = vst.msk [vmem:[%s7 + $0xc8] sm:$0xff] %vm91, %v7894
  %7959 = vst.msk [vmem:[%s7 + $0xd0] sm:$0xff] %vm91, %v7895
  %7960 = vst.msk [vmem:[%s7 + $0xd8] sm:$0xff] %vm91, %v7896
  %7961 = vst.msk [vmem:[%s7 + $0xe0] sm:$0xff] %vm91, %v7897
  %7962 = vst.msk [vmem:[%s7 + $0xe8] sm:$0xff] %vm91, %v7898
  %7963 = vst.msk [vmem:[%s7 + $0xf0] sm:$0xff] %vm91, %v7899
  %7964 = vst.msk [vmem:[%s7 + $0xf8] sm:$0xff] %vm91, %v7900
  %7965 = vst.msk [vmem:[%s7 + $0x100] sm:$0xff] %vm91, %v7901
  %7966 = vst.msk [vmem:[%s7 + $0x108] sm:$0xff] %vm91, %v7902
  %7967 = vst.msk [vmem:[%s7 + $0x110] sm:$0xff] %vm91, %v7903
  %7968 = vst.msk [vmem:[%s7 + $0x118] sm:$0xff] %vm91, %v7904
  %7969 = vst.msk [vmem:[%s7 + $0x120] sm:$0xff] %vm91, %v7905
  %7970 = vst.msk [vmem:[%s7 + $0x128] sm:$0xff] %vm91, %v7906
  %7971 = vst.msk [vmem:[%s7 + $0x130] sm:$0xff] %vm91, %v7907
  %7972 = vst.msk [vmem:[%s7 + $0x138] sm:$0xff] %vm91, %v7908
  %7973 = vst.msk [vmem:[%s7 + $0x140] sm:$0xff] %vm91, %v7909
  %7974 = vst.msk [vmem:[%s7 + $0x148] sm:$0xff] %vm91, %v7910
  %7975 = vst.msk [vmem:[%s7 + $0x150] sm:$0xff] %vm91, %v7911
  %7976 = vst.msk [vmem:[%s7 + $0x158] sm:$0xff] %vm91, %v7912
  %7977 = vst.msk [vmem:[%s7 + $0x160] sm:$0xff] %vm91, %v7913
  %7978 = vst.msk [vmem:[%s7 + $0x168] sm:$0xff] %vm91, %v7914
  %7979 = vst.msk [vmem:[%s7 + $0x170] sm:$0xff] %vm91, %v7915
  %7980 = vst.msk [vmem:[%s7 + $0x178] sm:$0xff] %vm91, %v7916
  %7981 = vst.msk [vmem:[%s7 + $0x180] sm:$0xff] %vm91, %v7917
  %7982 = vst.msk [vmem:[%s7 + $0x188] sm:$0xff] %vm91, %v7918
  %7983 = vst.msk [vmem:[%s7 + $0x190] sm:$0xff] %vm91, %v7919
  %7984 = vst.msk [vmem:[%s7 + $0x198] sm:$0xff] %vm91, %v7920
  %7985 = vst.msk [vmem:[%s7 + $0x1a0] sm:$0xff] %vm91, %v7921
  %7986 = vst.msk [vmem:[%s7 + $0x1a8] sm:$0xff] %vm91, %v7922
  %7987 = vst.msk [vmem:[%s7 + $0x1b0] sm:$0xff] %vm91, %v7923
  %7988 = vst.msk [vmem:[%s7 + $0x1b8] sm:$0xff] %vm91, %v7924
  %7989 = vst.msk [vmem:[%s7 + $0x1c0] sm:$0xff] %vm91, %v7925
  %7990 = vst.msk [vmem:[%s7 + $0x1c8] sm:$0xff] %vm91, %v7926
  %7991 = vst.msk [vmem:[%s7 + $0x1d0] sm:$0xff] %vm91, %v7927
  %7992 = vst.msk [vmem:[%s7 + $0x1d8] sm:$0xff] %vm91, %v7928
  %7993 = vst.msk [vmem:[%s7 + $0x1e0] sm:$0xff] %vm91, %v7929
  %7994 = vst.msk [vmem:[%s7 + $0x1e8] sm:$0xff] %vm91, %v7930
  %7995 = vst.msk [vmem:[%s7 + $0x1f0] sm:$0xff] %vm91, %v7931
  %7996 = vst.msk [vmem:[%s7 + $0x1f8] sm:$0xff] %vm91, %v7932
  // Predicated region
  $region30: #{basic_block_pallas.1} parent=0 // pred_check
    _
  $region31: #{basic_block_pallas.1} parent=0 // pred_check_branch
    %7998 = sbr.rel (0) target = $region33
  $region32: #{basic_block_pallas.1} parent=0 // pred_region
    _
  $region33: #{basic_block_pallas.1} parent=0 // pred_fallthru
    _
  // Predicated region
  $region34: #{basic_block_pallas.1} parent=0 // pred_check
    _
  $region35: #{basic_block_pallas.1} parent=0 // pred_check_branch
    %8000 = sbr.rel (0) target = $region37
  $region36: #{basic_block_pallas.1} parent=0 // pred_region
    _
  $region37: #{basic_block_pallas.1} parent=0 // pred_fallthru
    _

</llo_original>
